<compile_context>
chip_gen: v6e
topology: v6e:2x2x1
jax: 0.10.0
libtpu: 0.0.40
codegen_flags: <defaults>
</compile_context>

<pallas_src>
import functools

import numpy as np
import jax
import jax.numpy as jnp
from jax.experimental import pallas as pl
from jax.experimental.pallas import tpu as pltpu

RGB_MEAN = jnp.array([0.4488, 0.4371, 0.4040], jnp.float32)  # rgb_std == (1,1,1)
RGB_RANGE = 1.0

ACT_DTYPE = jnp.bfloat16      # inter-layer activations + conv weights on the MXU
RCAB_FUSE = 2                 # RCABs fused per pallas_call (amortize whole-image DMA)
LAM_CHUNK = 32768             # per-chunk M length for the streamed (N, N) Gram reduction


def _default_vmem_limit():
    """Generation-aware scoped-VMEM limit: ~100 MiB on v5e/v6e (128 MiB physical),
    ~51 MiB on v7x (64 MiB physical); conservative 48 MiB if the query fails."""
    try:
        cap = getattr(pltpu.get_tpu_info(), "vmem_capacity_bytes", None)
        if cap:
            return int(min(cap * 0.8, 100 * 1024 * 1024))
    except Exception:
        pass
    return 48 * 1024 * 1024


_VMEM_LIMIT = _default_vmem_limit()


def _cparams(*sem):
    return pltpu.CompilerParams(dimension_semantics=sem, vmem_limit_bytes=_VMEM_LIMIT)


# ----------------------------- in-kernel helpers --------------------------------------


def _pad_hw(x):
    """Zero-pad an (H, W, C) value by 1 on each spatial side, entirely in VMEM."""
    H, W, C = x.shape
    zr = jnp.zeros((1, W, C), x.dtype)
    x = jnp.concatenate([zr, x, zr], axis=0)
    zc = jnp.zeros((H + 2, 1, C), x.dtype)
    return jnp.concatenate([zc, x, zc], axis=1)


def _conv3x3_fat(x, w_fat, H, W, Cout):
    """3x3 "same" conv of one (H, W, Cin) value with an N-fattened weight.

    `w_fat` is (3*Cin, 3*Cout) laid out as [(kw, cin), (kh, cout)].  One im2col patch is
    built over the padded rows and ONE (H+2)*W x 3Cin @ 3Cin x 3Cout MXU matmul is issued;
    the three kh output planes are combined with row-shifted adds.  Returns f32 (H, W, Cout).
    """
    Cin = x.shape[-1]
    xp = _pad_hw(x)                                                     # (H+2, W+2, Cin)
    patch = jnp.concatenate(
        [xp[:, 0:W, :], xp[:, 1:W + 1, :], xp[:, 2:W + 2, :]], axis=-1)  # (H+2, W, 3Cin)
    y = jnp.dot(patch.reshape((H + 2) * W, 3 * Cin), w_fat,
                preferred_element_type=jnp.float32).reshape(H + 2, W, 3 * Cout)
    return (y[0:H, :, 0:Cout]
            + y[1:H + 1, :, Cout:2 * Cout]
            + y[2:H + 2, :, 2 * Cout:3 * Cout])


def _fat_w(w):
    """(3,3,Cin,Cout) conv weight -> (3*Cin, 3*Cout) bf16, [(kw,cin) rows, (kh,cout) cols]."""
    _, _, cin, cout = w.shape
    return jnp.transpose(w, (1, 2, 0, 3)).reshape(3 * cin, 3 * cout).astype(ACT_DTYPE)


# ----------------------------- generic conv3x3 kernel ----------------------------------


def _conv_kernel(*refs, n_in, H, W, Cout, relu, has_res):
    xs = refs[:n_in]
    ws = refs[n_in:2 * n_in]
    b_ref = refs[2 * n_in]
    res_ref = refs[2 * n_in + 1] if has_res else None
    o_ref = refs[-1]

    acc = _conv3x3_fat(xs[0][0], ws[0][...], H, W, Cout)
    for x_ref, w_ref in zip(xs[1:], ws[1:]):
        acc = acc + _conv3x3_fat(x_ref[0], w_ref[...], H, W, Cout)
    acc = acc + b_ref[...]                                              # (1, Cout) broadcast
    if relu:
        acc = jnp.maximum(acc, 0.0)
    if has_res:
        acc = acc + res_ref[0].astype(jnp.float32)
    o_ref[...] = acc.reshape(o_ref.shape).astype(o_ref.dtype)


def conv3x3(xs, ws, b, *, relu=False, residual=None, out_dtype=None):
    """3x3 same conv over the channel-concatenation of `xs` (no HBM concat needed).

    xs: array or list of NHWC arrays; ws: matching (3,3,Cin_i,Cout) weights; b: (Cout,).
    Optional fused ReLU and fused residual add (residual has Cout channels).
    """
    if not isinstance(xs, (list, tuple)):
        xs, ws = [xs], [ws]
    B, H, W, _ = xs[0].shape
    Cout = ws[0].shape[-1]
    n_in = len(xs)
    has_res = residual is not None

    w_fat = [_fat_w(w) for w in ws]
    b2 = b.reshape(1, Cout).astype(jnp.float32)

    in_specs, args = [], []
    for x in xs:
        Cin = x.shape[-1]
        in_specs.append(pl.BlockSpec((1, H, W, Cin), lambda i: (i, 0, 0, 0)))
        args.append(x)
    for w in w_fat:
        in_specs.append(pl.BlockSpec(w.shape, lambda i: (0, 0)))
        args.append(w)
    in_specs.append(pl.BlockSpec((1, Cout), lambda i: (0, 0)))
    args.append(b2)
    if has_res:
        in_specs.append(pl.BlockSpec((1, H, W, Cout), lambda i: (i, 0, 0, 0)))
        args.append(residual)

    kernel = functools.partial(_conv_kernel, n_in=n_in, H=H, W=W, Cout=Cout,
                               relu=relu, has_res=has_res)
    dtype = out_dtype if out_dtype is not None else xs[0].dtype
    return pl.pallas_call(
        kernel,
        out_shape=jax.ShapeDtypeStruct((B, H, W, Cout), dtype),
        grid=(B,),
        in_specs=in_specs,
        out_specs=pl.BlockSpec((1, H, W, Cout), lambda i: (i, 0, 0, 0)),
        compiler_params=_cparams("parallel"),
    )(*args)


# ----------------------------- fused RCAB-chain kernel ---------------------------------


def _rcab_chain_kernel(x_ref, w1_ref, b1_ref, w2_ref, b2_ref,
                       wd_ref, bd_ref, wu_ref, bu_ref, o_ref, *, H, W, C, nb):
    x = x_ref[0]                                                        # (H, W, C) bf16
    for i in range(nb):                                                 # static unroll
        # conv1 + ReLU
        h1 = _conv3x3_fat(x, w1_ref[i], H, W, C) + b1_ref[i]
        h1 = jnp.maximum(h1, 0.0).astype(ACT_DTYPE)
        # conv2
        h2 = _conv3x3_fat(h1, w2_ref[i], H, W, C) + b2_ref[i]
        # CALayer: global average pool -> 1x1 conv -> ReLU -> 1x1 conv -> sigmoid -> scale
        pool = jnp.mean(h2.reshape(H * W, C), axis=0, keepdims=True)    # (1, C)
        y = jnp.dot(pool, wd_ref[i], preferred_element_type=jnp.float32) + bd_ref[i]
        y = jnp.maximum(y, 0.0)
        y = jnp.dot(y, wu_ref[i], preferred_element_type=jnp.float32) + bu_ref[i]
        s = jax.nn.sigmoid(y)                                           # (1, C)
        # CA scale + block residual, all in the epilogue (no HBM round trip between blocks)
        out = h2 * s.reshape(1, 1, C) + x.astype(jnp.float32)
        x = out.astype(ACT_DTYPE)
    o_ref[...] = x.reshape(o_ref.shape)


def rcab_chain(x, blocks):
    """Run `len(blocks)` consecutive RCABs in one pallas_call (weights stacked)."""
    B, H, W, C = x.shape
    nb = len(blocks)
    Cmid = blocks[0]['ca_w1'].shape[-1]

    w1 = jnp.stack([_fat_w(bp['c1']['w']) for bp in blocks])             # (nb, 3C, 3C)
    b1 = jnp.stack([bp['c1']['b'].reshape(1, C) for bp in blocks]).astype(jnp.float32)
    w2 = jnp.stack([_fat_w(bp['c2']['w']) for bp in blocks])
    b2 = jnp.stack([bp['c2']['b'].reshape(1, C) for bp in blocks]).astype(jnp.float32)
    wd = jnp.stack([bp['ca_w1'] for bp in blocks]).astype(jnp.float32)   # (nb, C, Cmid)
    bd = jnp.stack([bp['ca_b1'].reshape(1, Cmid) for bp in blocks]).astype(jnp.float32)
    wu = jnp.stack([bp['ca_w2'] for bp in blocks]).astype(jnp.float32)   # (nb, Cmid, C)
    bu = jnp.stack([bp['ca_b2'].reshape(1, C) for bp in blocks]).astype(jnp.float32)

    kernel = functools.partial(_rcab_chain_kernel, H=H, W=W, C=C, nb=nb)
    return pl.pallas_call(
        kernel,
        out_shape=jax.ShapeDtypeStruct((B, H, W, C), x.dtype),
        grid=(B,),
        in_specs=[
            pl.BlockSpec((1, H, W, C), lambda i: (i, 0, 0, 0)),
            pl.BlockSpec((nb, 3 * C, 3 * C), lambda i: (0, 0, 0)),
            pl.BlockSpec((nb, 1, C), lambda i: (0, 0, 0)),
            pl.BlockSpec((nb, 3 * C, 3 * C), lambda i: (0, 0, 0)),
            pl.BlockSpec((nb, 1, C), lambda i: (0, 0, 0)),
            pl.BlockSpec((nb, C, Cmid), lambda i: (0, 0, 0)),
            pl.BlockSpec((nb, 1, Cmid), lambda i: (0, 0, 0)),
            pl.BlockSpec((nb, Cmid, C), lambda i: (0, 0, 0)),
            pl.BlockSpec((nb, 1, C), lambda i: (0, 0, 0)),
        ],
        out_specs=pl.BlockSpec((1, H, W, C), lambda i: (i, 0, 0, 0)),
        compiler_params=_cparams("parallel"),
    )(x, w1, b1, w2, b2, wd, bd, wu, bu)


# ----------------------------- LAM (layer attention) -----------------------------------


def _lam_energy_kernel(x_ref, att_ref, e_acc):
    c = pl.program_id(1)

    @pl.when(c == 0)
    def _():
        e_acc[...] = jnp.zeros_like(e_acc)

    x = x_ref[0]                                                        # (N, TM) bf16
    e_acc[...] += jax.lax.dot_general(
        x, x, (((1,), (1,)), ((), ())), preferred_element_type=jnp.float32)

    @pl.when(c == pl.num_programs(1) - 1)
    def _():
        e = e_acc[...]
        e_new = jnp.max(e, axis=-1, keepdims=True) - e                  # torch "energy_new"
        e_new = e_new - jnp.max(e_new, axis=-1, keepdims=True)          # stable softmax
        p = jnp.exp(e_new)
        att_ref[...] = (p / jnp.sum(p, axis=-1, keepdims=True)).reshape(att_ref.shape)


def _lam_chunk(M, cap=LAM_CHUNK):
    """Pick a 128-aligned chunk length TM (and required zero-padding of M)."""
    if M <= cap:
        return M, 0
    for tm in range(cap - cap % 128, 127, -128):                        # aligned divisor
        if M % tm == 0:
            return tm, 0
    nchunks = -(-M // cap)
    tm = ((M + nchunks - 1) // nchunks + 127) // 128 * 128
    return tm, (-M) % tm


def lam_attention_matrix(x_flat):
    """x_flat: (B, N, M) stacked layer features -> (B, N, N) attention (f32)."""
    B, N, M = x_flat.shape
    TM, pad = _lam_chunk(M)
    if pad:
        x_flat = jnp.pad(x_flat, ((0, 0), (0, 0), (0, pad)))            # zeros: Gram-neutral
    nchunks = (M + pad) // TM
    return pl.pallas_call(
        _lam_energy_kernel,
        out_shape=jax.ShapeDtypeStruct((B, N, N), jnp.float32),
        grid=(B, nchunks),
        in_specs=[pl.BlockSpec((1, N, TM), lambda b, c: (b, 0, c))],
        out_specs=pl.BlockSpec((1, N, N), lambda b, c: (b, 0, 0)),
        scratch_shapes=[pltpu.VMEM((N, N), jnp.float32)],
        compiler_params=_cparams("parallel", "arbitrary"),
    )(x_flat)


def _lam_lastconv_kernel(x_ref, w_ref, b_ref, o_ref, acc_ref, *, H, W, Cout):
    n = pl.program_id(1)

    @pl.when(n == 0)
    def _():
        acc_ref[...] = jnp.zeros_like(acc_ref)

    acc_ref[...] += _conv3x3_fat(x_ref[0, 0], w_ref[0, 0], H, W, Cout)

    @pl.when(n == pl.num_programs(1) - 1)
    def _():
        out = acc_ref[...] + b_ref[...]
        o_ref[...] = out.reshape(o_ref.shape).astype(o_ref.dtype)


def lam_last_conv(res1, attn, gamma, w_last, b_last):
    """out2 = last_conv( gamma * (attn @ layers) + layers ), without materializing lam_out.

    The LAM apply is folded into per-batch effective weights (conv is linear in its input
    channels), then evaluated as a layer-reduction conv over the stacked features.
    """
    B, N, H, W, C = res1.shape
    Cout = w_last.shape[-1]
    Wl = w_last.reshape(3, 3, N, C, Cout)                               # in-channel = n*C + c
    # V[b,kh,kw,k,c,o] = W[kh,kw,k,c,o] + gamma * sum_n attn[b,n,k] W[kh,kw,n,c,o]
    V = Wl[None] + gamma * jnp.einsum('bnk,hwnco->bhwkco', attn, Wl)
    # fat layout per (b, layer k): rows (kw, c), cols (kh, o)
    V = jnp.transpose(V, (0, 3, 2, 4, 1, 5)).reshape(B, N, 3 * C, 3 * Cout).astype(ACT_DTYPE)
    b2 = b_last.reshape(1, Cout).astype(jnp.float32)

    kernel = functools.partial(_lam_lastconv_kernel, H=H, W=W, Cout=Cout)
    return pl.pallas_call(
        kernel,
        out_shape=jax.ShapeDtypeStruct((B, H, W, Cout), res1.dtype),
        grid=(B, N),
        in_specs=[
            pl.BlockSpec((1, 1, H, W, C), lambda b, n: (b, n, 0, 0, 0)),
            pl.BlockSpec((1, 1, 3 * C, 3 * Cout), lambda b, n: (b, n, 0, 0)),
            pl.BlockSpec((1, Cout), lambda b, n: (0, 0)),
        ],
        out_specs=pl.BlockSpec((1, H, W, Cout), lambda b, n: (b, 0, 0, 0)),
        scratch_shapes=[pltpu.VMEM((H, W, Cout), jnp.float32)],
        compiler_params=_cparams("parallel", "arbitrary"),
    )(res1, V, b2)


# ----------------------------- CSAM (channel-spatial attention) ------------------------


def _csam_kernel(x_ref, w_ref, s_ref, o_ref, *, H, W, C):
    # s_ref (SMEM, f32[2]) = [conv3d bias, gamma]
    x = x_ref[0]                                                        # (H, W, C) bf16
    acc = _conv3x3_fat(x, w_ref[...], H, W, C) + s_ref[0]               # banded MXU stencil
    att = s_ref[1] * jax.nn.sigmoid(acc)                                # gamma gate
    xf = x.astype(jnp.float32)
    o_ref[...] = (xf * att + xf).reshape(o_ref.shape).astype(o_ref.dtype)


def csam(x, w3, bias3, gamma):
    """conv3d(1,1,3,3,3) over (1, C, H, W) == 3x3 2-D conv with a banded (C, C) weight per tap.

    w2d[kh, kw, cin, cout] = w3[kd, kh, kw] with cin = cout + kd - 1 (zero-padded channel dim),
    so CSAM reuses the same N-fattened MXU conv path instead of 27 scalar VPU passes.
    """
    B, H, W, C = x.shape
    bands = jnp.stack([jnp.eye(C, k=1, dtype=jnp.float32),              # kd = 0
                       jnp.eye(C, k=0, dtype=jnp.float32),              # kd = 1
                       jnp.eye(C, k=-1, dtype=jnp.float32)])            # kd = 2
    w2d = jnp.einsum('dhw,dio->hwio', jnp.asarray(w3, jnp.float32), bands)   # (3,3,C,C)
    w_fat = _fat_w(w2d)
    s = jnp.stack([jnp.reshape(jnp.asarray(bias3, jnp.float32), ()),
                   jnp.reshape(jnp.asarray(gamma, jnp.float32), ())])

    kernel = functools.partial(_csam_kernel, H=H, W=W, C=C)
    return pl.pallas_call(
        kernel,
        out_shape=jax.ShapeDtypeStruct((B, H, W, C), x.dtype),
        grid=(B,),
        in_specs=[
            pl.BlockSpec((1, H, W, C), lambda i: (i, 0, 0, 0)),
            pl.BlockSpec((3 * C, 3 * C), lambda i: (0, 0)),
            pl.BlockSpec(memory_space=pltpu.MemorySpace.SMEM),
        ],
        out_specs=pl.BlockSpec((1, H, W, C), lambda i: (i, 0, 0, 0)),
        compiler_params=_cparams("parallel"),
    )(x, w_fat, s)


# ----------------------------- JAX glue (layout only) ----------------------------------


def pixel_unshuffle_nhwc(x, r):
    B, H, W, C = x.shape
    x = x.reshape(B, H // r, r, W // r, r, C)
    x = jnp.transpose(x, (0, 1, 3, 5, 2, 4))
    return x.reshape(B, H // r, W // r, C * r * r)


def pixel_shuffle_nhwc(x, r):
    B, H, W, Crr = x.shape
    C = Crr // (r * r)
    x = x.reshape(B, H, W, C, r, r)
    x = jnp.transpose(x, (0, 1, 4, 2, 5, 3))
    return x.reshape(B, H * r, W * r, C)


# ----------------------------- forward pass --------------------------------------------


def han_forward(params, x_nchw, *, scale):
    x = jnp.transpose(x_nchw, (0, 2, 3, 1)).astype(jnp.float32)        # NCHW -> NHWC
    x = x - RGB_RANGE * RGB_MEAN                                       # sub_mean
    x = pixel_unshuffle_nhwc(x, scale).astype(ACT_DTYPE)               # space2depth
    x = conv3x3(x, params['head']['w'], params['head']['b'])           # head
    head_out = x

    feats = []
    res = x
    for gp in params['groups']:
        gin = res
        blocks = gp['blocks']
        for s in range(0, len(blocks), RCAB_FUSE):                     # fused RCAB chains
            res = rcab_chain(res, blocks[s:s + RCAB_FUSE])
        res = conv3x3(res, gp['conv']['w'], gp['conv']['b'], residual=gin)  # fused +x
        feats.append(res)
    res = conv3x3(res, params['body_conv']['w'], params['body_conv']['b'])
    feats.append(res)
    out1 = res

    # layer attention: torch prepends each new feature map, so layer 0 is the newest
    res1 = jnp.stack(feats[::-1], axis=1)                              # (B, N, H, W, C) bf16
    B, N, H, W, C = res1.shape
    attn = lam_attention_matrix(res1.reshape(B, N, H * W * C))         # (B, N, N)
    out2 = lam_last_conv(res1, attn, params['lam_gamma'],
                         params['last_conv']['w'], params['last_conv']['b'])

    out1 = csam(out1, params['csam_w'], params['csam_b'], params['csam_gamma'])

    # last conv over concat([out1, out2]) with fused head residual (split weights, no concat)
    wl = params['last']['w']
    res = conv3x3([out1, out2], [wl[:, :, :C, :], wl[:, :, C:, :]],
                  params['last']['b'], residual=head_out)

    # tail: Upsampler(scale) = log2(scale) x [conv(n_feats -> 4*n_feats), PixelShuffle(2)]
    t = res
    for sp in params['tail_ups']:
        t = conv3x3(t, sp['w'], sp['b'])
        t = pixel_shuffle_nhwc(t, 2)
    t = conv3x3(t, params['tail_out']['w'], params['tail_out']['b'], out_dtype=jnp.float32)
    t = t + RGB_RANGE * RGB_MEAN                                       # add_mean
    return jnp.transpose(t, (0, 3, 1, 2))                              # NHWC -> NCHW


# ----------------------------- parameter init ------------------------------------------


def init_params(key, *, n_feats, n_resgroups, n_resblocks, reduction, scale):
    assert scale & (scale - 1) == 0, "Upsampler here supports power-of-2 scales"
    keys = iter(jax.random.split(key, 4096))

    def conv_p(cin, cout, k=3):
        fan = cin * k * k
        w = jax.random.normal(next(keys), (k, k, cin, cout), jnp.float32) / np.sqrt(fan)
        b = jax.random.normal(next(keys), (cout,), jnp.float32) * 0.01
        return {'w': w, 'b': b}

    def ca_p(c, r):
        cm = max(c // r, 1)
        return {
            'ca_w1': jax.random.normal(next(keys), (c, cm), jnp.float32) / np.sqrt(c),
            'ca_b1': jax.random.normal(next(keys), (cm,), jnp.float32) * 0.01,
            'ca_w2': jax.random.normal(next(keys), (cm, c), jnp.float32) / np.sqrt(cm),
            'ca_b2': jax.random.normal(next(keys), (c,), jnp.float32) * 0.01,
        }

    params = {}
    params['head'] = conv_p(3 * scale * scale, n_feats)
    groups = []
    for _ in range(n_resgroups):
        blocks = []
        for _ in range(n_resblocks):
            bp = {'c1': conv_p(n_feats, n_feats), 'c2': conv_p(n_feats, n_feats)}
            bp.update(ca_p(n_feats, reduction))
            blocks.append(bp)
        groups.append({'blocks': blocks, 'conv': conv_p(n_feats, n_feats)})
    params['groups'] = groups
    params['body_conv'] = conv_p(n_feats, n_feats)

    n_layers = n_resgroups + 1
    params['last_conv'] = conv_p(n_feats * n_layers, n_feats)
    params['last'] = conv_p(2 * n_feats, n_feats)

    # gammas start at zero, exactly like nn.Parameter(torch.zeros(1)) in the reference.
    params['lam_gamma'] = jnp.zeros((), jnp.float32)
    params['csam_gamma'] = jnp.zeros((), jnp.float32)
    params['csam_w'] = jax.random.normal(next(keys), (3, 3, 3), jnp.float32) * 0.1
    params['csam_b'] = jnp.asarray(0.05, jnp.float32)

    n_up = int(np.log2(scale))
    params['tail_ups'] = [conv_p(n_feats, 4 * n_feats) for _ in range(n_up)]
    params['tail_out'] = conv_p(n_feats, 3)
    return params


# ----------------------------- demo ------------------------------------------------------


if __name__ == "__main__":
    # Small configuration consistent with the HAN architecture (module defaults are
    # n_resgroups=10, n_resblocks=20, n_feats=64; reduced here for a quick synthetic run).
    cfg = dict(n_feats=32, n_resgroups=2, n_resblocks=2, reduction=16, scale=4)

    key = jax.random.PRNGKey(0)
    pkey, xkey = jax.random.split(key)
    params = init_params(pkey, **cfg)

    x = jax.random.uniform(xkey, (2, 3, 16, 16), jnp.float32)          # NCHW, rgb_range = 1
    fwd = jax.jit(functools.partial(han_forward, scale=cfg['scale']))
    y = fwd(params, x)
    y = jax.block_until_ready(y)

    assert y.shape == (2, 3, 16, 16), y.shape
    assert bool(jnp.all(jnp.isfinite(y)))
    print("KERNEL_OK")
</pallas_src>

<mosaic_0001>
module attributes {stable_mosaic.version = 11 : i64} {
  func.func @_conv_kernel(%arg0: i32, %arg1: memref<1x4x4x48xbf16, #tpu.memory_space<vmem>>, %arg2: memref<144x96xbf16, #tpu.memory_space<vmem>>, %arg3: memref<1x32xf32, #tpu.memory_space<vmem>>, %arg4: memref<1x4x4x32xbf16, #tpu.memory_space<vmem>>) attributes {dimension_semantics = [#tpu.dimension_semantics<parallel>], iteration_bounds = array<i64: 2>, scalar_prefetch = 0 : i64, scratch_operands = 0 : i64, tpu.core_type = #tpu.core_type<tc>, window_params = [{transform_indices = @transform_0, window_bounds = array<i64: 1, 4, 4, 48>}, {pipeline_mode = #tpu.pipeline_mode<synchronous>, transform_indices = @transform_1, window_bounds = array<i64: 144, 96>}, {pipeline_mode = #tpu.pipeline_mode<synchronous>, transform_indices = @transform_2, window_bounds = array<i64: 1, 32>}, {transform_indices = @transform_3, window_bounds = array<i64: 1, 4, 4, 32>}]} {
    %c0 = arith.constant 0 : index
    %c0_0 = arith.constant 0 : index
    %c0_1 = arith.constant 0 : index
    %c0_2 = arith.constant 0 : index
    %0 = vector.load %arg1[%c0, %c0_0, %c0_1, %c0_2] : memref<1x4x4x48xbf16, #tpu.memory_space<vmem>>, vector<1x4x4x48xbf16>
    %1 = vector.shape_cast %0 : vector<1x4x4x48xbf16> to vector<4x4x48xbf16>
    %c0_3 = arith.constant 0 : index
    %c0_4 = arith.constant 0 : index
    %2 = vector.load %arg2[%c0_3, %c0_4] : memref<144x96xbf16, #tpu.memory_space<vmem>>, vector<144x96xbf16>
    %cst = arith.constant 0.000000e+00 : bf16
    %3 = vector.broadcast %cst : bf16 to vector<1x4x48xbf16>
    %4 = tpu.concatenate %3, %1, %3 in 0 : vector<1x4x48xbf16>, vector<4x4x48xbf16>, vector<1x4x48xbf16> -> vector<6x4x48xbf16>
    %cst_5 = arith.constant 0.000000e+00 : bf16
    %5 = vector.broadcast %cst_5 : bf16 to vector<6x1x48xbf16>
    %6 = tpu.concatenate %5, %4, %5 in 1 : vector<6x1x48xbf16>, vector<6x4x48xbf16>, vector<6x1x48xbf16> -> vector<6x6x48xbf16>
    %7 = vector.extract_strided_slice %6 {offsets = [0, 0, 0], sizes = [6, 4, 48], strides = [1, 1, 1]} : vector<6x6x48xbf16> to vector<6x4x48xbf16>
    %8 = vector.extract_strided_slice %6 {offsets = [0, 1, 0], sizes = [6, 4, 48], strides = [1, 1, 1]} : vector<6x6x48xbf16> to vector<6x4x48xbf16>
    %9 = vector.extract_strided_slice %6 {offsets = [0, 2, 0], sizes = [6, 4, 48], strides = [1, 1, 1]} : vector<6x6x48xbf16> to vector<6x4x48xbf16>
    %10 = tpu.concatenate %7, %8, %9 in 2 : vector<6x4x48xbf16>, vector<6x4x48xbf16>, vector<6x4x48xbf16> -> vector<6x4x144xbf16>
    %11 = vector.shape_cast %10 : vector<6x4x144xbf16> to vector<24x144xbf16>
    %cst_6 = arith.constant dense<0.000000e+00> : vector<24x96xf32>
    %12 = tpu.matmul %11, %2, %cst_6 {dimension_numbers = #tpu.dot_dimension_numbers<[1], [0], [0], [1], [0, 0, 1, 1], [], []>} : vector<24x144xbf16>, vector<144x96xbf16>, vector<24x96xf32> -> vector<24x96xf32>
    %13 = vector.shape_cast %12 : vector<24x96xf32> to vector<6x4x96xf32>
    %14 = vector.extract_strided_slice %13 {offsets = [0, 0, 0], sizes = [4, 4, 32], strides = [1, 1, 1]} : vector<6x4x96xf32> to vector<4x4x32xf32>
    %15 = vector.extract_strided_slice %13 {offsets = [1, 0, 32], sizes = [4, 4, 32], strides = [1, 1, 1]} : vector<6x4x96xf32> to vector<4x4x32xf32>
    %16 = arith.addf %14, %15 : vector<4x4x32xf32>
    %17 = vector.extract_strided_slice %13 {offsets = [2, 0, 64], sizes = [4, 4, 32], strides = [1, 1, 1]} : vector<6x4x96xf32> to vector<4x4x32xf32>
    %18 = arith.addf %16, %17 : vector<4x4x32xf32>
    %c0_7 = arith.constant 0 : index
    %c0_8 = arith.constant 0 : index
    %19 = vector.load %arg3[%c0_7, %c0_8] : memref<1x32xf32, #tpu.memory_space<vmem>>, vector<1x32xf32>
    %20 = vector.shape_cast %19 : vector<1x32xf32> to vector<1x1x32xf32>
    %21 = vector.broadcast %20 : vector<1x1x32xf32> to vector<4x4x32xf32>
    %22 = arith.addf %18, %21 : vector<4x4x32xf32>
    %23 = vector.shape_cast %22 : vector<4x4x32xf32> to vector<1x4x4x32xf32>
    %24 = arith.truncf %23 : vector<1x4x4x32xf32> to vector<1x4x4x32xbf16>
    %c0_9 = arith.constant 0 : index
    %c0_10 = arith.constant 0 : index
    %c0_11 = arith.constant 0 : index
    %c0_12 = arith.constant 0 : index
    %25 = vector.load %arg4[%c0_9, %c0_10, %c0_11, %c0_12] : memref<1x4x4x32xbf16, #tpu.memory_space<vmem>>, vector<1x4x4x32xbf16>
    tpu.vector_store %arg4[%c0_9, %c0_10, %c0_11, %c0_12], %24 {strides = array<i32>} : memref<1x4x4x32xbf16, #tpu.memory_space<vmem>>, vector<1x4x4x32xbf16>,
    return
  }
  func.func @transform_0(%arg0: i32) -> (i32, i32, i32, i32) {
    %c0_i32 = arith.constant 0 : i32
    %c0_i32_0 = arith.constant 0 : i32
    %c0_i32_1 = arith.constant 0 : i32
    %c0_i32_2 = arith.constant 0 : i32
    return %arg0, %c0_i32, %c0_i32_0, %c0_i32_1 : i32, i32, i32, i32
  }
  func.func @transform_1(%arg0: i32) -> (i32, i32) {
    %c0_i32 = arith.constant 0 : i32
    %c0_i32_0 = arith.constant 0 : i32
    %c0_i32_1 = arith.constant 0 : i32
    return %c0_i32, %c0_i32_0 : i32, i32
  }
  func.func @transform_2(%arg0: i32) -> (i32, i32) {
    %c0_i32 = arith.constant 0 : i32
    %c0_i32_0 = arith.constant 0 : i32
    %c0_i32_1 = arith.constant 0 : i32
    return %c0_i32, %c0_i32_0 : i32, i32
  }
  func.func @transform_3(%arg0: i32) -> (i32, i32, i32, i32) {
    %c0_i32 = arith.constant 0 : i32
    %c0_i32_0 = arith.constant 0 : i32
    %c0_i32_1 = arith.constant 0 : i32
    %c0_i32_2 = arith.constant 0 : i32
    return %arg0, %c0_i32, %c0_i32_0, %c0_i32_1 : i32, i32, i32, i32
  }
}

module attributes {stable_mosaic.version = 11 : i64} {
  func.func @_conv_kernel(%arg0: i32, %arg1: memref<1x4x4x32xbf16, #tpu.memory_space<vmem>>, %arg2: memref<96x96xbf16, #tpu.memory_space<vmem>>, %arg3: memref<1x32xf32, #tpu.memory_space<vmem>>, %arg4: memref<1x4x4x32xbf16, #tpu.memory_space<vmem>>, %arg5: memref<1x4x4x32xbf16, #tpu.memory_space<vmem>>) attributes {dimension_semantics = [#tpu.dimension_semantics<parallel>], iteration_bounds = array<i64: 2>, scalar_prefetch = 0 : i64, scratch_operands = 0 : i64, tpu.core_type = #tpu.core_type<tc>, window_params = [{transform_indices = @transform_0, window_bounds = array<i64: 1, 4, 4, 32>}, {pipeline_mode = #tpu.pipeline_mode<synchronous>, transform_indices = @transform_1, window_bounds = array<i64: 96, 96>}, {pipeline_mode = #tpu.pipeline_mode<synchronous>, transform_indices = @transform_2, window_bounds = array<i64: 1, 32>}, {transform_indices = @transform_3, window_bounds = array<i64: 1, 4, 4, 32>}, {transform_indices = @transform_4, window_bounds = array<i64: 1, 4, 4, 32>}]} {
    %c0 = arith.constant 0 : index
    %c0_0 = arith.constant 0 : index
    %c0_1 = arith.constant 0 : index
    %c0_2 = arith.constant 0 : index
    %0 = vector.load %arg1[%c0, %c0_0, %c0_1, %c0_2] : memref<1x4x4x32xbf16, #tpu.memory_space<vmem>>, vector<1x4x4x32xbf16>
    %1 = vector.shape_cast %0 : vector<1x4x4x32xbf16> to vector<4x4x32xbf16>
    %c0_3 = arith.constant 0 : index
    %c0_4 = arith.constant 0 : index
    %2 = vector.load %arg2[%c0_3, %c0_4] : memref<96x96xbf16, #tpu.memory_space<vmem>>, vector<96x96xbf16>
    %cst = arith.constant 0.000000e+00 : bf16
    %3 = vector.broadcast %cst : bf16 to vector<1x4x32xbf16>
    %4 = tpu.concatenate %3, %1, %3 in 0 : vector<1x4x32xbf16>, vector<4x4x32xbf16>, vector<1x4x32xbf16> -> vector<6x4x32xbf16>
    %cst_5 = arith.constant 0.000000e+00 : bf16
    %5 = vector.broadcast %cst_5 : bf16 to vector<6x1x32xbf16>
    %6 = tpu.concatenate %5, %4, %5 in 1 : vector<6x1x32xbf16>, vector<6x4x32xbf16>, vector<6x1x32xbf16> -> vector<6x6x32xbf16>
    %7 = vector.extract_strided_slice %6 {offsets = [0, 0, 0], sizes = [6, 4, 32], strides = [1, 1, 1]} : vector<6x6x32xbf16> to vector<6x4x32xbf16>
    %8 = vector.extract_strided_slice %6 {offsets = [0, 1, 0], sizes = [6, 4, 32], strides = [1, 1, 1]} : vector<6x6x32xbf16> to vector<6x4x32xbf16>
    %9 = vector.extract_strided_slice %6 {offsets = [0, 2, 0], sizes = [6, 4, 32], strides = [1, 1, 1]} : vector<6x6x32xbf16> to vector<6x4x32xbf16>
    %10 = tpu.concatenate %7, %8, %9 in 2 : vector<6x4x32xbf16>, vector<6x4x32xbf16>, vector<6x4x32xbf16> -> vector<6x4x96xbf16>
    %11 = vector.shape_cast %10 : vector<6x4x96xbf16> to vector<24x96xbf16>
    %cst_6 = arith.constant dense<0.000000e+00> : vector<24x96xf32>
    %12 = tpu.matmul %11, %2, %cst_6 {dimension_numbers = #tpu.dot_dimension_numbers<[1], [0], [0], [1], [0, 0, 1, 1], [], []>} : vector<24x96xbf16>, vector<96x96xbf16>, vector<24x96xf32> -> vector<24x96xf32>
    %13 = vector.shape_cast %12 : vector<24x96xf32> to vector<6x4x96xf32>
    %14 = vector.extract_strided_slice %13 {offsets = [0, 0, 0], sizes = [4, 4, 32], strides = [1, 1, 1]} : vector<6x4x96xf32> to vector<4x4x32xf32>
    %15 = vector.extract_strided_slice %13 {offsets = [1, 0, 32], sizes = [4, 4, 32], strides = [1, 1, 1]} : vector<6x4x96xf32> to vector<4x4x32xf32>
    %16 = arith.addf %14, %15 : vector<4x4x32xf32>
    %17 = vector.extract_strided_slice %13 {offsets = [2, 0, 64], sizes = [4, 4, 32], strides = [1, 1, 1]} : vector<6x4x96xf32> to vector<4x4x32xf32>
    %18 = arith.addf %16, %17 : vector<4x4x32xf32>
    %c0_7 = arith.constant 0 : index
    %c0_8 = arith.constant 0 : index
    %19 = vector.load %arg3[%c0_7, %c0_8] : memref<1x32xf32, #tpu.memory_space<vmem>>, vector<1x32xf32>
    %20 = vector.shape_cast %19 : vector<1x32xf32> to vector<1x1x32xf32>
    %21 = vector.broadcast %20 : vector<1x1x32xf32> to vector<4x4x32xf32>
    %22 = arith.addf %18, %21 : vector<4x4x32xf32>
    %c0_9 = arith.constant 0 : index
    %c0_10 = arith.constant 0 : index
    %c0_11 = arith.constant 0 : index
    %c0_12 = arith.constant 0 : index
    %23 = vector.load %arg4[%c0_9, %c0_10, %c0_11, %c0_12] : memref<1x4x4x32xbf16, #tpu.memory_space<vmem>>, vector<1x4x4x32xbf16>
    %24 = vector.shape_cast %23 : vector<1x4x4x32xbf16> to vector<4x4x32xbf16>
    %25 = arith.extf %24 : vector<4x4x32xbf16> to vector<4x4x32xf32>
    %26 = arith.addf %22, %25 : vector<4x4x32xf32>
    %27 = vector.shape_cast %26 : vector<4x4x32xf32> to vector<1x4x4x32xf32>
    %28 = arith.truncf %27 : vector<1x4x4x32xf32> to vector<1x4x4x32xbf16>
    %c0_13 = arith.constant 0 : index
    %c0_14 = arith.constant 0 : index
    %c0_15 = arith.constant 0 : index
    %c0_16 = arith.constant 0 : index
    %29 = vector.load %arg5[%c0_13, %c0_14, %c0_15, %c0_16] : memref<1x4x4x32xbf16, #tpu.memory_space<vmem>>, vector<1x4x4x32xbf16>
    tpu.vector_store %arg5[%c0_13, %c0_14, %c0_15, %c0_16], %28 {strides = array<i32>} : memref<1x4x4x32xbf16, #tpu.memory_space<vmem>>, vector<1x4x4x32xbf16>,
    return
  }
  func.func @transform_0(%arg0: i32) -> (i32, i32, i32, i32) {
    %c0_i32 = arith.constant 0 : i32
    %c0_i32_0 = arith.constant 0 : i32
    %c0_i32_1 = arith.constant 0 : i32
    %c0_i32_2 = arith.constant 0 : i32
    return %arg0, %c0_i32, %c0_i32_0, %c0_i32_1 : i32, i32, i32, i32
  }
  func.func @transform_1(%arg0: i32) -> (i32, i32) {
    %c0_i32 = arith.constant 0 : i32
    %c0_i32_0 = arith.constant 0 : i32
    %c0_i32_1 = arith.constant 0 : i32
    return %c0_i32, %c0_i32_0 : i32, i32
  }
  func.func @transform_2(%arg0: i32) -> (i32, i32) {
    %c0_i32 = arith.constant 0 : i32
    %c0_i32_0 = arith.constant 0 : i32
    %c0_i32_1 = arith.constant 0 : i32
    return %c0_i32, %c0_i32_0 : i32, i32
  }
  func.func @transform_3(%arg0: i32) -> (i32, i32, i32, i32) {
    %c0_i32 = arith.constant 0 : i32
    %c0_i32_0 = arith.constant 0 : i32
    %c0_i32_1 = arith.constant 0 : i32
    %c0_i32_2 = arith.constant 0 : i32
    return %arg0, %c0_i32, %c0_i32_0, %c0_i32_1 : i32, i32, i32, i32
  }
  func.func @transform_4(%arg0: i32) -> (i32, i32, i32, i32) {
    %c0_i32 = arith.constant 0 : i32
    %c0_i32_0 = arith.constant 0 : i32
    %c0_i32_1 = arith.constant 0 : i32
    %c0_i32_2 = arith.constant 0 : i32
    return %arg0, %c0_i32, %c0_i32_0, %c0_i32_1 : i32, i32, i32, i32
  }
}

module attributes {stable_mosaic.version = 11 : i64} {
  func.func @_rcab_chain_kernel(%arg0: i32, %arg1: memref<1x4x4x32xbf16, #tpu.memory_space<vmem>>, %arg2: memref<2x96x96xbf16, #tpu.memory_space<vmem>>, %arg3: memref<2x1x32xf32, #tpu.memory_space<vmem>>, %arg4: memref<2x96x96xbf16, #tpu.memory_space<vmem>>, %arg5: memref<2x1x32xf32, #tpu.memory_space<vmem>>, %arg6: memref<2x32x2xf32, #tpu.memory_space<vmem>>, %arg7: memref<2x1x2xf32, #tpu.memory_space<vmem>>, %arg8: memref<2x2x32xf32, #tpu.memory_space<vmem>>, %arg9: memref<2x1x32xf32, #tpu.memory_space<vmem>>, %arg10: memref<1x4x4x32xbf16, #tpu.memory_space<vmem>>) attributes {dimension_semantics = [#tpu.dimension_semantics<parallel>], iteration_bounds = array<i64: 2>, scalar_prefetch = 0 : i64, scratch_operands = 0 : i64, tpu.core_type = #tpu.core_type<tc>, window_params = [{transform_indices = @transform_0, window_bounds = array<i64: 1, 4, 4, 32>}, {pipeline_mode = #tpu.pipeline_mode<synchronous>, transform_indices = @transform_1, window_bounds = array<i64: 2, 96, 96>}, {pipeline_mode = #tpu.pipeline_mode<synchronous>, transform_indices = @transform_2, window_bounds = array<i64: 2, 1, 32>}, {pipeline_mode = #tpu.pipeline_mode<synchronous>, transform_indices = @transform_3, window_bounds = array<i64: 2, 96, 96>}, {pipeline_mode = #tpu.pipeline_mode<synchronous>, transform_indices = @transform_4, window_bounds = array<i64: 2, 1, 32>}, {pipeline_mode = #tpu.pipeline_mode<synchronous>, transform_indices = @transform_5, window_bounds = array<i64: 2, 32, 2>}, {pipeline_mode = #tpu.pipeline_mode<synchronous>, transform_indices = @transform_6, window_bounds = array<i64: 2, 1, 2>}, {pipeline_mode = #tpu.pipeline_mode<synchronous>, transform_indices = @transform_7, window_bounds = array<i64: 2, 2, 32>}, {pipeline_mode = #tpu.pipeline_mode<synchronous>, transform_indices = @transform_8, window_bounds = array<i64: 2, 1, 32>}, {transform_indices = @transform_9, window_bounds = array<i64: 1, 4, 4, 32>}]} {
    %c0 = arith.constant 0 : index
    %c0_0 = arith.constant 0 : index
    %c0_1 = arith.constant 0 : index
    %c0_2 = arith.constant 0 : index
    %0 = vector.load %arg1[%c0, %c0_0, %c0_1, %c0_2] : memref<1x4x4x32xbf16, #tpu.memory_space<vmem>>, vector<1x4x4x32xbf16>
    %1 = vector.shape_cast %0 : vector<1x4x4x32xbf16> to vector<4x4x32xbf16>
    %c0_3 = arith.constant 0 : index
    %c0_4 = arith.constant 0 : index
    %c0_5 = arith.constant 0 : index
    %2 = vector.load %arg2[%c0_3, %c0_4, %c0_5] : memref<2x96x96xbf16, #tpu.memory_space<vmem>>, vector<1x96x96xbf16>
    %3 = vector.shape_cast %2 : vector<1x96x96xbf16> to vector<96x96xbf16>
    %cst = arith.constant 0.000000e+00 : bf16
    %4 = vector.broadcast %cst : bf16 to vector<1x4x32xbf16>
    %5 = tpu.concatenate %4, %1, %4 in 0 : vector<1x4x32xbf16>, vector<4x4x32xbf16>, vector<1x4x32xbf16> -> vector<6x4x32xbf16>
    %cst_6 = arith.constant 0.000000e+00 : bf16
    %6 = vector.broadcast %cst_6 : bf16 to vector<6x1x32xbf16>
    %7 = tpu.concatenate %6, %5, %6 in 1 : vector<6x1x32xbf16>, vector<6x4x32xbf16>, vector<6x1x32xbf16> -> vector<6x6x32xbf16>
    %8 = vector.extract_strided_slice %7 {offsets = [0, 0, 0], sizes = [6, 4, 32], strides = [1, 1, 1]} : vector<6x6x32xbf16> to vector<6x4x32xbf16>
    %9 = vector.extract_strided_slice %7 {offsets = [0, 1, 0], sizes = [6, 4, 32], strides = [1, 1, 1]} : vector<6x6x32xbf16> to vector<6x4x32xbf16>
    %10 = vector.extract_strided_slice %7 {offsets = [0, 2, 0], sizes = [6, 4, 32], strides = [1, 1, 1]} : vector<6x6x32xbf16> to vector<6x4x32xbf16>
    %11 = tpu.concatenate %8, %9, %10 in 2 : vector<6x4x32xbf16>, vector<6x4x32xbf16>, vector<6x4x32xbf16> -> vector<6x4x96xbf16>
    %12 = vector.shape_cast %11 : vector<6x4x96xbf16> to vector<24x96xbf16>
    %cst_7 = arith.constant dense<0.000000e+00> : vector<24x96xf32>
    %13 = tpu.matmul %12, %3, %cst_7 {dimension_numbers = #tpu.dot_dimension_numbers<[1], [0], [0], [1], [0, 0, 1, 1], [], []>} : vector<24x96xbf16>, vector<96x96xbf16>, vector<24x96xf32> -> vector<24x96xf32>
    %14 = vector.shape_cast %13 : vector<24x96xf32> to vector<6x4x96xf32>
    %15 = vector.extract_strided_slice %14 {offsets = [0, 0, 0], sizes = [4, 4, 32], strides = [1, 1, 1]} : vector<6x4x96xf32> to vector<4x4x32xf32>
    %16 = vector.extract_strided_slice %14 {offsets = [1, 0, 32], sizes = [4, 4, 32], strides = [1, 1, 1]} : vector<6x4x96xf32> to vector<4x4x32xf32>
    %17 = arith.addf %15, %16 : vector<4x4x32xf32>
    %18 = vector.extract_strided_slice %14 {offsets = [2, 0, 64], sizes = [4, 4, 32], strides = [1, 1, 1]} : vector<6x4x96xf32> to vector<4x4x32xf32>
    %19 = arith.addf %17, %18 : vector<4x4x32xf32>
    %c0_8 = arith.constant 0 : index
    %c0_9 = arith.constant 0 : index
    %c0_10 = arith.constant 0 : index
    %20 = vector.load %arg3[%c0_8, %c0_9, %c0_10] : memref<2x1x32xf32, #tpu.memory_space<vmem>>, vector<1x1x32xf32>
    %21 = vector.shape_cast %20 : vector<1x1x32xf32> to vector<1x32xf32>
    %22 = vector.shape_cast %21 : vector<1x32xf32> to vector<1x1x32xf32>
    %23 = vector.broadcast %22 : vector<1x1x32xf32> to vector<4x4x32xf32>
    %24 = arith.addf %19, %23 : vector<4x4x32xf32>
    %cst_11 = arith.constant 0.000000e+00 : f32
    %25 = vector.broadcast %cst_11 : f32 to vector<4x4x32xf32>
    %26 = arith.maximumf %24, %25 : vector<4x4x32xf32>
    %27 = arith.truncf %26 : vector<4x4x32xf32> to vector<4x4x32xbf16>
    %c0_12 = arith.constant 0 : index
    %c0_13 = arith.constant 0 : index
    %c0_14 = arith.constant 0 : index
    %28 = vector.load %arg4[%c0_12, %c0_13, %c0_14] : memref<2x96x96xbf16, #tpu.memory_space<vmem>>, vector<1x96x96xbf16>
    %29 = vector.shape_cast %28 : vector<1x96x96xbf16> to vector<96x96xbf16>
    %cst_15 = arith.constant 0.000000e+00 : bf16
    %30 = vector.broadcast %cst_15 : bf16 to vector<1x4x32xbf16>
    %31 = tpu.concatenate %30, %27, %30 in 0 : vector<1x4x32xbf16>, vector<4x4x32xbf16>, vector<1x4x32xbf16> -> vector<6x4x32xbf16>
    %cst_16 = arith.constant 0.000000e+00 : bf16
    %32 = vector.broadcast %cst_16 : bf16 to vector<6x1x32xbf16>
    %33 = tpu.concatenate %32, %31, %32 in 1 : vector<6x1x32xbf16>, vector<6x4x32xbf16>, vector<6x1x32xbf16> -> vector<6x6x32xbf16>
    %34 = vector.extract_strided_slice %33 {offsets = [0, 0, 0], sizes = [6, 4, 32], strides = [1, 1, 1]} : vector<6x6x32xbf16> to vector<6x4x32xbf16>
    %35 = vector.extract_strided_slice %33 {offsets = [0, 1, 0], sizes = [6, 4, 32], strides = [1, 1, 1]} : vector<6x6x32xbf16> to vector<6x4x32xbf16>
    %36 = vector.extract_strided_slice %33 {offsets = [0, 2, 0], sizes = [6, 4, 32], strides = [1, 1, 1]} : vector<6x6x32xbf16> to vector<6x4x32xbf16>
    %37 = tpu.concatenate %34, %35, %36 in 2 : vector<6x4x32xbf16>, vector<6x4x32xbf16>, vector<6x4x32xbf16> -> vector<6x4x96xbf16>
    %38 = vector.shape_cast %37 : vector<6x4x96xbf16> to vector<24x96xbf16>
    %cst_17 = arith.constant dense<0.000000e+00> : vector<24x96xf32>
    %39 = tpu.matmul %38, %29, %cst_17 {dimension_numbers = #tpu.dot_dimension_numbers<[1], [0], [0], [1], [0, 0, 1, 1], [], []>} : vector<24x96xbf16>, vector<96x96xbf16>, vector<24x96xf32> -> vector<24x96xf32>
    %40 = vector.shape_cast %39 : vector<24x96xf32> to vector<6x4x96xf32>
    %41 = vector.extract_strided_slice %40 {offsets = [0, 0, 0], sizes = [4, 4, 32], strides = [1, 1, 1]} : vector<6x4x96xf32> to vector<4x4x32xf32>
    %42 = vector.extract_strided_slice %40 {offsets = [1, 0, 32], sizes = [4, 4, 32], strides = [1, 1, 1]} : vector<6x4x96xf32> to vector<4x4x32xf32>
    %43 = arith.addf %41, %42 : vector<4x4x32xf32>
    %44 = vector.extract_strided_slice %40 {offsets = [2, 0, 64], sizes = [4, 4, 32], strides = [1, 1, 1]} : vector<6x4x96xf32> to vector<4x4x32xf32>
    %45 = arith.addf %43, %44 : vector<4x4x32xf32>
    %c0_18 = arith.constant 0 : index
    %c0_19 = arith.constant 0 : index
    %c0_20 = arith.constant 0 : index
    %46 = vector.load %arg5[%c0_18, %c0_19, %c0_20] : memref<2x1x32xf32, #tpu.memory_space<vmem>>, vector<1x1x32xf32>
    %47 = vector.shape_cast %46 : vector<1x1x32xf32> to vector<1x32xf32>
    %48 = vector.shape_cast %47 : vector<1x32xf32> to vector<1x1x32xf32>
    %49 = vector.broadcast %48 : vector<1x1x32xf32> to vector<4x4x32xf32>
    %50 = arith.addf %45, %49 : vector<4x4x32xf32>
    %51 = vector.shape_cast %50 : vector<4x4x32xf32> to vector<16x32xf32>
    %cst_21 = arith.constant dense<0.000000e+00> : vector<32xf32>
    %52 = vector.multi_reduction <add>, %51, %cst_21 [0] : vector<16x32xf32> to vector<32xf32>
    %53 = vector.shape_cast %52 : vector<32xf32> to vector<1x32xf32>
    %cst_22 = arith.constant 1.600000e+01 : f32
    %54 = vector.broadcast %cst_22 : f32 to vector<1x32xf32>
    %55 = arith.divf %53, %54 : vector<1x32xf32>
    %c0_23 = arith.constant 0 : index
    %c0_24 = arith.constant 0 : index
    %c0_25 = arith.constant 0 : index
    %56 = vector.load %arg6[%c0_23, %c0_24, %c0_25] : memref<2x32x2xf32, #tpu.memory_space<vmem>>, vector<1x32x2xf32>
    %57 = vector.shape_cast %56 : vector<1x32x2xf32> to vector<32x2xf32>
    %cst_26 = arith.constant dense<0.000000e+00> : vector<1x2xf32>
    %58 = tpu.matmul %55, %57, %cst_26 {dimension_numbers = #tpu.dot_dimension_numbers<[1], [0], [0], [1], [0, 0, 1, 1], [], []>} : vector<1x32xf32>, vector<32x2xf32>, vector<1x2xf32> -> vector<1x2xf32>
    %c0_27 = arith.constant 0 : index
    %c0_28 = arith.constant 0 : index
    %c0_29 = arith.constant 0 : index
    %59 = vector.load %arg7[%c0_27, %c0_28, %c0_29] : memref<2x1x2xf32, #tpu.memory_space<vmem>>, vector<1x1x2xf32>
    %60 = vector.shape_cast %59 : vector<1x1x2xf32> to vector<1x2xf32>
    %61 = arith.addf %58, %60 : vector<1x2xf32>
    %cst_30 = arith.constant 0.000000e+00 : f32
    %62 = vector.broadcast %cst_30 : f32 to vector<1x2xf32>
    %63 = arith.maximumf %61, %62 : vector<1x2xf32>
    %c0_31 = arith.constant 0 : index
    %c0_32 = arith.constant 0 : index
    %c0_33 = arith.constant 0 : index
    %64 = vector.load %arg8[%c0_31, %c0_32, %c0_33] : memref<2x2x32xf32, #tpu.memory_space<vmem>>, vector<1x2x32xf32>
    %65 = vector.shape_cast %64 : vector<1x2x32xf32> to vector<2x32xf32>
    %cst_34 = arith.constant dense<0.000000e+00> : vector<1x32xf32>
    %66 = tpu.matmul %63, %65, %cst_34 {dimension_numbers = #tpu.dot_dimension_numbers<[1], [0], [0], [1], [0, 0, 1, 1], [], []>} : vector<1x2xf32>, vector<2x32xf32>, vector<1x32xf32> -> vector<1x32xf32>
    %c0_35 = arith.constant 0 : index
    %c0_36 = arith.constant 0 : index
    %c0_37 = arith.constant 0 : index
    %67 = vector.load %arg9[%c0_35, %c0_36, %c0_37] : memref<2x1x32xf32, #tpu.memory_space<vmem>>, vector<1x1x32xf32>
    %68 = vector.shape_cast %67 : vector<1x1x32xf32> to vector<1x32xf32>
    %69 = arith.addf %66, %68 : vector<1x32xf32>
    %70 = arith.negf %69 : vector<1x32xf32>
    %71 = math.exp %70 : vector<1x32xf32>
    %cst_38 = arith.constant 1.000000e+00 : f32
    %72 = vector.broadcast %cst_38 : f32 to vector<1x32xf32>
    %73 = arith.addf %72, %71 : vector<1x32xf32>
    %74 = arith.divf %72, %73 : vector<1x32xf32>
    %75 = vector.shape_cast %74 : vector<1x32xf32> to vector<1x1x32xf32>
    %76 = vector.broadcast %75 : vector<1x1x32xf32> to vector<4x4x32xf32>
    %77 = arith.mulf %50, %76 : vector<4x4x32xf32>
    %78 = arith.extf %1 : vector<4x4x32xbf16> to vector<4x4x32xf32>
    %79 = arith.addf %77, %78 : vector<4x4x32xf32>
    %80 = arith.truncf %79 : vector<4x4x32xf32> to vector<4x4x32xbf16>
    %c1 = arith.constant 1 : index
    %c0_39 = arith.constant 0 : index
    %c0_40 = arith.constant 0 : index
    %81 = vector.load %arg2[%c1, %c0_39, %c0_40] : memref<2x96x96xbf16, #tpu.memory_space<vmem>>, vector<1x96x96xbf16>
    %82 = vector.shape_cast %81 : vector<1x96x96xbf16> to vector<96x96xbf16>
    %cst_41 = arith.constant 0.000000e+00 : bf16
    %83 = vector.broadcast %cst_41 : bf16 to vector<1x4x32xbf16>
    %84 = tpu.concatenate %83, %80, %83 in 0 : vector<1x4x32xbf16>, vector<4x4x32xbf16>, vector<1x4x32xbf16> -> vector<6x4x32xbf16>
    %cst_42 = arith.constant 0.000000e+00 : bf16
    %85 = vector.broadcast %cst_42 : bf16 to vector<6x1x32xbf16>
    %86 = tpu.concatenate %85, %84, %85 in 1 : vector<6x1x32xbf16>, vector<6x4x32xbf16>, vector<6x1x32xbf16> -> vector<6x6x32xbf16>
    %87 = vector.extract_strided_slice %86 {offsets = [0, 0, 0], sizes = [6, 4, 32], strides = [1, 1, 1]} : vector<6x6x32xbf16> to vector<6x4x32xbf16>
    %88 = vector.extract_strided_slice %86 {offsets = [0, 1, 0], sizes = [6, 4, 32], strides = [1, 1, 1]} : vector<6x6x32xbf16> to vector<6x4x32xbf16>
    %89 = vector.extract_strided_slice %86 {offsets = [0, 2, 0], sizes = [6, 4, 32], strides = [1, 1, 1]} : vector<6x6x32xbf16> to vector<6x4x32xbf16>
    %90 = tpu.concatenate %87, %88, %89 in 2 : vector<6x4x32xbf16>, vector<6x4x32xbf16>, vector<6x4x32xbf16> -> vector<6x4x96xbf16>
    %91 = vector.shape_cast %90 : vector<6x4x96xbf16> to vector<24x96xbf16>
    %cst_43 = arith.constant dense<0.000000e+00> : vector<24x96xf32>
    %92 = tpu.matmul %91, %82, %cst_43 {dimension_numbers = #tpu.dot_dimension_numbers<[1], [0], [0], [1], [0, 0, 1, 1], [], []>} : vector<24x96xbf16>, vector<96x96xbf16>, vector<24x96xf32> -> vector<24x96xf32>
    %93 = vector.shape_cast %92 : vector<24x96xf32> to vector<6x4x96xf32>
    %94 = vector.extract_strided_slice %93 {offsets = [0, 0, 0], sizes = [4, 4, 32], strides = [1, 1, 1]} : vector<6x4x96xf32> to vector<4x4x32xf32>
    %95 = vector.extract_strided_slice %93 {offsets = [1, 0, 32], sizes = [4, 4, 32], strides = [1, 1, 1]} : vector<6x4x96xf32> to vector<4x4x32xf32>
    %96 = arith.addf %94, %95 : vector<4x4x32xf32>
    %97 = vector.extract_strided_slice %93 {offsets = [2, 0, 64], sizes = [4, 4, 32], strides = [1, 1, 1]} : vector<6x4x96xf32> to vector<4x4x32xf32>
    %98 = arith.addf %96, %97 : vector<4x4x32xf32>
    %c1_44 = arith.constant 1 : index
    %c0_45 = arith.constant 0 : index
    %c0_46 = arith.constant 0 : index
    %99 = vector.load %arg3[%c1_44, %c0_45, %c0_46] : memref<2x1x32xf32, #tpu.memory_space<vmem>>, vector<1x1x32xf32>
    %100 = vector.shape_cast %99 : vector<1x1x32xf32> to vector<1x32xf32>
    %101 = vector.shape_cast %100 : vector<1x32xf32> to vector<1x1x32xf32>
    %102 = vector.broadcast %101 : vector<1x1x32xf32> to vector<4x4x32xf32>
    %103 = arith.addf %98, %102 : vector<4x4x32xf32>
    %cst_47 = arith.constant 0.000000e+00 : f32
    %104 = vector.broadcast %cst_47 : f32 to vector<4x4x32xf32>
    %105 = arith.maximumf %103, %104 : vector<4x4x32xf32>
    %106 = arith.truncf %105 : vector<4x4x32xf32> to vector<4x4x32xbf16>
    %c1_48 = arith.constant 1 : index
    %c0_49 = arith.constant 0 : index
    %c0_50 = arith.constant 0 : index
    %107 = vector.load %arg4[%c1_48, %c0_49, %c0_50] : memref<2x96x96xbf16, #tpu.memory_space<vmem>>, vector<1x96x96xbf16>
    %108 = vector.shape_cast %107 : vector<1x96x96xbf16> to vector<96x96xbf16>
    %cst_51 = arith.constant 0.000000e+00 : bf16
    %109 = vector.broadcast %cst_51 : bf16 to vector<1x4x32xbf16>
    %110 = tpu.concatenate %109, %106, %109 in 0 : vector<1x4x32xbf16>, vector<4x4x32xbf16>, vector<1x4x32xbf16> -> vector<6x4x32xbf16>
    %cst_52 = arith.constant 0.000000e+00 : bf16
    %111 = vector.broadcast %cst_52 : bf16 to vector<6x1x32xbf16>
    %112 = tpu.concatenate %111, %110, %111 in 1 : vector<6x1x32xbf16>, vector<6x4x32xbf16>, vector<6x1x32xbf16> -> vector<6x6x32xbf16>
    %113 = vector.extract_strided_slice %112 {offsets = [0, 0, 0], sizes = [6, 4, 32], strides = [1, 1, 1]} : vector<6x6x32xbf16> to vector<6x4x32xbf16>
    %114 = vector.extract_strided_slice %112 {offsets = [0, 1, 0], sizes = [6, 4, 32], strides = [1, 1, 1]} : vector<6x6x32xbf16> to vector<6x4x32xbf16>
    %115 = vector.extract_strided_slice %112 {offsets = [0, 2, 0], sizes = [6, 4, 32], strides = [1, 1, 1]} : vector<6x6x32xbf16> to vector<6x4x32xbf16>
    %116 = tpu.concatenate %113, %114, %115 in 2 : vector<6x4x32xbf16>, vector<6x4x32xbf16>, vector<6x4x32xbf16> -> vector<6x4x96xbf16>
    %117 = vector.shape_cast %116 : vector<6x4x96xbf16> to vector<24x96xbf16>
    %cst_53 = arith.constant dense<0.000000e+00> : vector<24x96xf32>
    %118 = tpu.matmul %117, %108, %cst_53 {dimension_numbers = #tpu.dot_dimension_numbers<[1], [0], [0], [1], [0, 0, 1, 1], [], []>} : vector<24x96xbf16>, vector<96x96xbf16>, vector<24x96xf32> -> vector<24x96xf32>
    %119 = vector.shape_cast %118 : vector<24x96xf32> to vector<6x4x96xf32>
    %120 = vector.extract_strided_slice %119 {offsets = [0, 0, 0], sizes = [4, 4, 32], strides = [1, 1, 1]} : vector<6x4x96xf32> to vector<4x4x32xf32>
    %121 = vector.extract_strided_slice %119 {offsets = [1, 0, 32], sizes = [4, 4, 32], strides = [1, 1, 1]} : vector<6x4x96xf32> to vector<4x4x32xf32>
    %122 = arith.addf %120, %121 : vector<4x4x32xf32>
    %123 = vector.extract_strided_slice %119 {offsets = [2, 0, 64], sizes = [4, 4, 32], strides = [1, 1, 1]} : vector<6x4x96xf32> to vector<4x4x32xf32>
    %124 = arith.addf %122, %123 : vector<4x4x32xf32>
    %c1_54 = arith.constant 1 : index
    %c0_55 = arith.constant 0 : index
    %c0_56 = arith.constant 0 : index
    %125 = vector.load %arg5[%c1_54, %c0_55, %c0_56] : memref<2x1x32xf32, #tpu.memory_space<vmem>>, vector<1x1x32xf32>
    %126 = vector.shape_cast %125 : vector<1x1x32xf32> to vector<1x32xf32>
    %127 = vector.shape_cast %126 : vector<1x32xf32> to vector<1x1x32xf32>
    %128 = vector.broadcast %127 : vector<1x1x32xf32> to vector<4x4x32xf32>
    %129 = arith.addf %124, %128 : vector<4x4x32xf32>
    %130 = vector.shape_cast %129 : vector<4x4x32xf32> to vector<16x32xf32>
    %cst_57 = arith.constant dense<0.000000e+00> : vector<32xf32>
    %131 = vector.multi_reduction <add>, %130, %cst_57 [0] : vector<16x32xf32> to vector<32xf32>
    %132 = vector.shape_cast %131 : vector<32xf32> to vector<1x32xf32>
    %cst_58 = arith.constant 1.600000e+01 : f32
    %133 = vector.broadcast %cst_58 : f32 to vector<1x32xf32>
    %134 = arith.divf %132, %133 : vector<1x32xf32>
    %c1_59 = arith.constant 1 : index
    %c0_60 = arith.constant 0 : index
    %c0_61 = arith.constant 0 : index
    %135 = vector.load %arg6[%c1_59, %c0_60, %c0_61] : memref<2x32x2xf32, #tpu.memory_space<vmem>>, vector<1x32x2xf32>
    %136 = vector.shape_cast %135 : vector<1x32x2xf32> to vector<32x2xf32>
    %cst_62 = arith.constant dense<0.000000e+00> : vector<1x2xf32>
    %137 = tpu.matmul %134, %136, %cst_62 {dimension_numbers = #tpu.dot_dimension_numbers<[1], [0], [0], [1], [0, 0, 1, 1], [], []>} : vector<1x32xf32>, vector<32x2xf32>, vector<1x2xf32> -> vector<1x2xf32>
    %c1_63 = arith.constant 1 : index
    %c0_64 = arith.constant 0 : index
    %c0_65 = arith.constant 0 : index
    %138 = vector.load %arg7[%c1_63, %c0_64, %c0_65] : memref<2x1x2xf32, #tpu.memory_space<vmem>>, vector<1x1x2xf32>
    %139 = vector.shape_cast %138 : vector<1x1x2xf32> to vector<1x2xf32>
    %140 = arith.addf %137, %139 : vector<1x2xf32>
    %cst_66 = arith.constant 0.000000e+00 : f32
    %141 = vector.broadcast %cst_66 : f32 to vector<1x2xf32>
    %142 = arith.maximumf %140, %141 : vector<1x2xf32>
    %c1_67 = arith.constant 1 : index
    %c0_68 = arith.constant 0 : index
    %c0_69 = arith.constant 0 : index
    %143 = vector.load %arg8[%c1_67, %c0_68, %c0_69] : memref<2x2x32xf32, #tpu.memory_space<vmem>>, vector<1x2x32xf32>
    %144 = vector.shape_cast %143 : vector<1x2x32xf32> to vector<2x32xf32>
    %cst_70 = arith.constant dense<0.000000e+00> : vector<1x32xf32>
    %145 = tpu.matmul %142, %144, %cst_70 {dimension_numbers = #tpu.dot_dimension_numbers<[1], [0], [0], [1], [0, 0, 1, 1], [], []>} : vector<1x2xf32>, vector<2x32xf32>, vector<1x32xf32> -> vector<1x32xf32>
    %c1_71 = arith.constant 1 : index
    %c0_72 = arith.constant 0 : index
    %c0_73 = arith.constant 0 : index
    %146 = vector.load %arg9[%c1_71, %c0_72, %c0_73] : memref<2x1x32xf32, #tpu.memory_space<vmem>>, vector<1x1x32xf32>
    %147 = vector.shape_cast %146 : vector<1x1x32xf32> to vector<1x32xf32>
    %148 = arith.addf %145, %147 : vector<1x32xf32>
    %149 = arith.negf %148 : vector<1x32xf32>
    %150 = math.exp %149 : vector<1x32xf32>
    %cst_74 = arith.constant 1.000000e+00 : f32
    %151 = vector.broadcast %cst_74 : f32 to vector<1x32xf32>
    %152 = arith.addf %151, %150 : vector<1x32xf32>
    %153 = arith.divf %151, %152 : vector<1x32xf32>
    %154 = vector.shape_cast %153 : vector<1x32xf32> to vector<1x1x32xf32>
    %155 = vector.broadcast %154 : vector<1x1x32xf32> to vector<4x4x32xf32>
    %156 = arith.mulf %129, %155 : vector<4x4x32xf32>
    %157 = arith.extf %80 : vector<4x4x32xbf16> to vector<4x4x32xf32>
    %158 = arith.addf %156, %157 : vector<4x4x32xf32>
    %159 = arith.truncf %158 : vector<4x4x32xf32> to vector<4x4x32xbf16>
    %160 = vector.shape_cast %159 : vector<4x4x32xbf16> to vector<1x4x4x32xbf16>
    %c0_75 = arith.constant 0 : index
    %c0_76 = arith.constant 0 : index
    %c0_77 = arith.constant 0 : index
    %c0_78 = arith.constant 0 : index
    %161 = vector.load %arg10[%c0_75, %c0_76, %c0_77, %c0_78] : memref<1x4x4x32xbf16, #tpu.memory_space<vmem>>, vector<1x4x4x32xbf16>
    tpu.vector_store %arg10[%c0_75, %c0_76, %c0_77, %c0_78], %160 {strides = array<i32>} : memref<1x4x4x32xbf16, #tpu.memory_space<vmem>>, vector<1x4x4x32xbf16>,
    return
  }
  func.func @transform_0(%arg0: i32) -> (i32, i32, i32, i32) {
    %c0_i32 = arith.constant 0 : i32
    %c0_i32_0 = arith.constant 0 : i32
    %c0_i32_1 = arith.constant 0 : i32
    %c0_i32_2 = arith.constant 0 : i32
    return %arg0, %c0_i32, %c0_i32_0, %c0_i32_1 : i32, i32, i32, i32
  }
  func.func @transform_1(%arg0: i32) -> (i32, i32, i32) {
    %c0_i32 = arith.constant 0 : i32
    %c0_i32_0 = arith.constant 0 : i32
    %c0_i32_1 = arith.constant 0 : i32
    %c0_i32_2 = arith.constant 0 : i32
    return %c0_i32, %c0_i32_0, %c0_i32_1 : i32, i32, i32
  }
  func.func @transform_2(%arg0: i32) -> (i32, i32, i32) {
    %c0_i32 = arith.constant 0 : i32
    %c0_i32_0 = arith.constant 0 : i32
    %c0_i32_1 = arith.constant 0 : i32
    %c0_i32_2 = arith.constant 0 : i32
    return %c0_i32, %c0_i32_0, %c0_i32_1 : i32, i32, i32
  }
  func.func @transform_3(%arg0: i32) -> (i32, i32, i32) {
    %c0_i32 = arith.constant 0 : i32
    %c0_i32_0 = arith.constant 0 : i32
    %c0_i32_1 = arith.constant 0 : i32
    %c0_i32_2 = arith.constant 0 : i32
    return %c0_i32, %c0_i32_0, %c0_i32_1 : i32, i32, i32
  }
  func.func @transform_4(%arg0: i32) -> (i32, i32, i32) {
    %c0_i32 = arith.constant 0 : i32
    %c0_i32_0 = arith.constant 0 : i32
    %c0_i32_1 = arith.constant 0 : i32
    %c0_i32_2 = arith.constant 0 : i32
    return %c0_i32, %c0_i32_0, %c0_i32_1 : i32, i32, i32
  }
  func.func @transform_5(%arg0: i32) -> (i32, i32, i32) {
    %c0_i32 = arith.constant 0 : i32
    %c0_i32_0 = arith.constant 0 : i32
    %c0_i32_1 = arith.constant 0 : i32
    %c0_i32_2 = arith.constant 0 : i32
    return %c0_i32, %c0_i32_0, %c0_i32_1 : i32, i32, i32
  }
  func.func @transform_6(%arg0: i32) -> (i32, i32, i32) {
    %c0_i32 = arith.constant 0 : i32
    %c0_i32_0 = arith.constant 0 : i32
    %c0_i32_1 = arith.constant 0 : i32
    %c0_i32_2 = arith.constant 0 : i32
    return %c0_i32, %c0_i32_0, %c0_i32_1 : i32, i32, i32
  }
  func.func @transform_7(%arg0: i32) -> (i32, i32, i32) {
    %c0_i32 = arith.constant 0 : i32
    %c0_i32_0 = arith.constant 0 : i32
    %c0_i32_1 = arith.constant 0 : i32
    %c0_i32_2 = arith.constant 0 : i32
    return %c0_i32, %c0_i32_0, %c0_i32_1 : i32, i32, i32
  }
  func.func @transform_8(%arg0: i32) -> (i32, i32, i32) {
    %c0_i32 = arith.constant 0 : i32
    %c0_i32_0 = arith.constant 0 : i32
    %c0_i32_1 = arith.constant 0 : i32
    %c0_i32_2 = arith.constant 0 : i32
    return %c0_i32, %c0_i32_0, %c0_i32_1 : i32, i32, i32
  }
  func.func @transform_9(%arg0: i32) -> (i32, i32, i32, i32) {
    %c0_i32 = arith.constant 0 : i32
    %c0_i32_0 = arith.constant 0 : i32
    %c0_i32_1 = arith.constant 0 : i32
    %c0_i32_2 = arith.constant 0 : i32
    return %arg0, %c0_i32, %c0_i32_0, %c0_i32_1 : i32, i32, i32, i32
  }
}

module attributes {stable_mosaic.version = 11 : i64} {
  func.func @_conv_kernel(%arg0: i32, %arg1: memref<1x4x4x32xbf16, #tpu.memory_space<vmem>>, %arg2: memref<96x96xbf16, #tpu.memory_space<vmem>>, %arg3: memref<1x32xf32, #tpu.memory_space<vmem>>, %arg4: memref<1x4x4x32xbf16, #tpu.memory_space<vmem>>) attributes {dimension_semantics = [#tpu.dimension_semantics<parallel>], iteration_bounds = array<i64: 2>, scalar_prefetch = 0 : i64, scratch_operands = 0 : i64, tpu.core_type = #tpu.core_type<tc>, window_params = [{transform_indices = @transform_0, window_bounds = array<i64: 1, 4, 4, 32>}, {pipeline_mode = #tpu.pipeline_mode<synchronous>, transform_indices = @transform_1, window_bounds = array<i64: 96, 96>}, {pipeline_mode = #tpu.pipeline_mode<synchronous>, transform_indices = @transform_2, window_bounds = array<i64: 1, 32>}, {transform_indices = @transform_3, window_bounds = array<i64: 1, 4, 4, 32>}]} {
    %c0 = arith.constant 0 : index
    %c0_0 = arith.constant 0 : index
    %c0_1 = arith.constant 0 : index
    %c0_2 = arith.constant 0 : index
    %0 = vector.load %arg1[%c0, %c0_0, %c0_1, %c0_2] : memref<1x4x4x32xbf16, #tpu.memory_space<vmem>>, vector<1x4x4x32xbf16>
    %1 = vector.shape_cast %0 : vector<1x4x4x32xbf16> to vector<4x4x32xbf16>
    %c0_3 = arith.constant 0 : index
    %c0_4 = arith.constant 0 : index
    %2 = vector.load %arg2[%c0_3, %c0_4] : memref<96x96xbf16, #tpu.memory_space<vmem>>, vector<96x96xbf16>
    %cst = arith.constant 0.000000e+00 : bf16
    %3 = vector.broadcast %cst : bf16 to vector<1x4x32xbf16>
    %4 = tpu.concatenate %3, %1, %3 in 0 : vector<1x4x32xbf16>, vector<4x4x32xbf16>, vector<1x4x32xbf16> -> vector<6x4x32xbf16>
    %cst_5 = arith.constant 0.000000e+00 : bf16
    %5 = vector.broadcast %cst_5 : bf16 to vector<6x1x32xbf16>
    %6 = tpu.concatenate %5, %4, %5 in 1 : vector<6x1x32xbf16>, vector<6x4x32xbf16>, vector<6x1x32xbf16> -> vector<6x6x32xbf16>
    %7 = vector.extract_strided_slice %6 {offsets = [0, 0, 0], sizes = [6, 4, 32], strides = [1, 1, 1]} : vector<6x6x32xbf16> to vector<6x4x32xbf16>
    %8 = vector.extract_strided_slice %6 {offsets = [0, 1, 0], sizes = [6, 4, 32], strides = [1, 1, 1]} : vector<6x6x32xbf16> to vector<6x4x32xbf16>
    %9 = vector.extract_strided_slice %6 {offsets = [0, 2, 0], sizes = [6, 4, 32], strides = [1, 1, 1]} : vector<6x6x32xbf16> to vector<6x4x32xbf16>
    %10 = tpu.concatenate %7, %8, %9 in 2 : vector<6x4x32xbf16>, vector<6x4x32xbf16>, vector<6x4x32xbf16> -> vector<6x4x96xbf16>
    %11 = vector.shape_cast %10 : vector<6x4x96xbf16> to vector<24x96xbf16>
    %cst_6 = arith.constant dense<0.000000e+00> : vector<24x96xf32>
    %12 = tpu.matmul %11, %2, %cst_6 {dimension_numbers = #tpu.dot_dimension_numbers<[1], [0], [0], [1], [0, 0, 1, 1], [], []>} : vector<24x96xbf16>, vector<96x96xbf16>, vector<24x96xf32> -> vector<24x96xf32>
    %13 = vector.shape_cast %12 : vector<24x96xf32> to vector<6x4x96xf32>
    %14 = vector.extract_strided_slice %13 {offsets = [0, 0, 0], sizes = [4, 4, 32], strides = [1, 1, 1]} : vector<6x4x96xf32> to vector<4x4x32xf32>
    %15 = vector.extract_strided_slice %13 {offsets = [1, 0, 32], sizes = [4, 4, 32], strides = [1, 1, 1]} : vector<6x4x96xf32> to vector<4x4x32xf32>
    %16 = arith.addf %14, %15 : vector<4x4x32xf32>
    %17 = vector.extract_strided_slice %13 {offsets = [2, 0, 64], sizes = [4, 4, 32], strides = [1, 1, 1]} : vector<6x4x96xf32> to vector<4x4x32xf32>
    %18 = arith.addf %16, %17 : vector<4x4x32xf32>
    %c0_7 = arith.constant 0 : index
    %c0_8 = arith.constant 0 : index
    %19 = vector.load %arg3[%c0_7, %c0_8] : memref<1x32xf32, #tpu.memory_space<vmem>>, vector<1x32xf32>
    %20 = vector.shape_cast %19 : vector<1x32xf32> to vector<1x1x32xf32>
    %21 = vector.broadcast %20 : vector<1x1x32xf32> to vector<4x4x32xf32>
    %22 = arith.addf %18, %21 : vector<4x4x32xf32>
    %23 = vector.shape_cast %22 : vector<4x4x32xf32> to vector<1x4x4x32xf32>
    %24 = arith.truncf %23 : vector<1x4x4x32xf32> to vector<1x4x4x32xbf16>
    %c0_9 = arith.constant 0 : index
    %c0_10 = arith.constant 0 : index
    %c0_11 = arith.constant 0 : index
    %c0_12 = arith.constant 0 : index
    %25 = vector.load %arg4[%c0_9, %c0_10, %c0_11, %c0_12] : memref<1x4x4x32xbf16, #tpu.memory_space<vmem>>, vector<1x4x4x32xbf16>
    tpu.vector_store %arg4[%c0_9, %c0_10, %c0_11, %c0_12], %24 {strides = array<i32>} : memref<1x4x4x32xbf16, #tpu.memory_space<vmem>>, vector<1x4x4x32xbf16>,
    return
  }
  func.func @transform_0(%arg0: i32) -> (i32, i32, i32, i32) {
    %c0_i32 = arith.constant 0 : i32
    %c0_i32_0 = arith.constant 0 : i32
    %c0_i32_1 = arith.constant 0 : i32
    %c0_i32_2 = arith.constant 0 : i32
    return %arg0, %c0_i32, %c0_i32_0, %c0_i32_1 : i32, i32, i32, i32
  }
  func.func @transform_1(%arg0: i32) -> (i32, i32) {
    %c0_i32 = arith.constant 0 : i32
    %c0_i32_0 = arith.constant 0 : i32
    %c0_i32_1 = arith.constant 0 : i32
    return %c0_i32, %c0_i32_0 : i32, i32
  }
  func.func @transform_2(%arg0: i32) -> (i32, i32) {
    %c0_i32 = arith.constant 0 : i32
    %c0_i32_0 = arith.constant 0 : i32
    %c0_i32_1 = arith.constant 0 : i32
    return %c0_i32, %c0_i32_0 : i32, i32
  }
  func.func @transform_3(%arg0: i32) -> (i32, i32, i32, i32) {
    %c0_i32 = arith.constant 0 : i32
    %c0_i32_0 = arith.constant 0 : i32
    %c0_i32_1 = arith.constant 0 : i32
    %c0_i32_2 = arith.constant 0 : i32
    return %arg0, %c0_i32, %c0_i32_0, %c0_i32_1 : i32, i32, i32, i32
  }
}

module attributes {stable_mosaic.version = 11 : i64} {
  func.func @_lam_energy_kernel(%arg0: i32, %arg1: i32, %arg2: memref<1x3x512xbf16, #tpu.memory_space<vmem>>, %arg3: memref<1x3x3xf32, #tpu.memory_space<vmem>>, %arg4: memref<3x3xf32, #tpu.memory_space<vmem>>) attributes {dimension_semantics = [#tpu.dimension_semantics<parallel>, #tpu.dimension_semantics<arbitrary>], iteration_bounds = array<i64: 2, 1>, scalar_prefetch = 0 : i64, scratch_operands = 1 : i64, tpu.core_type = #tpu.core_type<tc>, window_params = [{transform_indices = @transform_0, window_bounds = array<i64: 1, 3, 512>}, {transform_indices = @transform_1, window_bounds = array<i64: 1, 3, 3>}]} {
    %c0_i32 = arith.constant 0 : i32
    %0 = arith.cmpi eq, %arg1, %c0_i32 : i32
    %1 = arith.extui %0 : i1 to i32
    %c0_i32_0 = arith.constant 0 : i32
    %2 = arith.cmpi ne, %1, %c0_i32_0 : i32
    scf.if %2 {
      %cst_9 = arith.constant 0.000000e+00 : f32
      %12 = vector.broadcast %cst_9 : f32 to vector<3x3xf32>
      %c0_10 = arith.constant 0 : index
      %c0_11 = arith.constant 0 : index
      %13 = vector.load %arg4[%c0_10, %c0_11] : memref<3x3xf32, #tpu.memory_space<vmem>>, vector<3x3xf32>
      tpu.vector_store %arg4[%c0_10, %c0_11], %12 {strides = array<i32>} : memref<3x3xf32, #tpu.memory_space<vmem>>, vector<3x3xf32>,
    } else {
    }
    %c0 = arith.constant 0 : index
    %c0_1 = arith.constant 0 : index
    %c0_2 = arith.constant 0 : index
    %3 = vector.load %arg2[%c0, %c0_1, %c0_2] : memref<1x3x512xbf16, #tpu.memory_space<vmem>>, vector<1x3x512xbf16>
    %4 = vector.shape_cast %3 : vector<1x3x512xbf16> to vector<3x512xbf16>
    %c0_3 = arith.constant 0 : index
    %c0_4 = arith.constant 0 : index
    %5 = vector.load %arg4[%c0_3, %c0_4] : memref<3x3xf32, #tpu.memory_space<vmem>>, vector<3x3xf32>
    %cst = arith.constant dense<0.000000e+00> : vector<3x3xf32>
    %6 = tpu.matmul %4, %4, %cst {dimension_numbers = #tpu.dot_dimension_numbers<[1], [1], [0], [0], [0, 0, 1, 0], [], []>} : vector<3x512xbf16>, vector<3x512xbf16>, vector<3x3xf32> -> vector<3x3xf32>
    %7 = arith.addf %5, %6 : vector<3x3xf32>
    %c0_5 = arith.constant 0 : index
    %c0_6 = arith.constant 0 : index
    %8 = vector.load %arg4[%c0_5, %c0_6] : memref<3x3xf32, #tpu.memory_space<vmem>>, vector<3x3xf32>
    tpu.vector_store %arg4[%c0_5, %c0_6], %7 {strides = array<i32>} : memref<3x3xf32, #tpu.memory_space<vmem>>, vector<3x3xf32>,
    %c0_i32_7 = arith.constant 0 : i32
    %9 = arith.cmpi eq, %arg1, %c0_i32_7 : i32
    %10 = arith.extui %9 : i1 to i32
    %c0_i32_8 = arith.constant 0 : i32
    %11 = arith.cmpi ne, %10, %c0_i32_8 : i32
    scf.if %11 {
      %c0_9 = arith.constant 0 : index
      %c0_10 = arith.constant 0 : index
      %12 = vector.load %arg4[%c0_9, %c0_10] : memref<3x3xf32, #tpu.memory_space<vmem>>, vector<3x3xf32>
      %cst_11 = arith.constant dense<0xFF800000> : vector<3xf32>
      %13 = vector.multi_reduction <maximumf>, %12, %cst_11 [1] : vector<3x3xf32> to vector<3xf32>
      %14 = vector.shape_cast %13 : vector<3xf32> to vector<3x1xf32>
      %15 = vector.broadcast %14 : vector<3x1xf32> to vector<3x3xf32>
      %16 = arith.subf %15, %12 : vector<3x3xf32>
      %cst_12 = arith.constant dense<0xFF800000> : vector<3xf32>
      %17 = vector.multi_reduction <maximumf>, %16, %cst_12 [1] : vector<3x3xf32> to vector<3xf32>
      %18 = vector.shape_cast %17 : vector<3xf32> to vector<3x1xf32>
      %19 = vector.broadcast %18 : vector<3x1xf32> to vector<3x3xf32>
      %20 = arith.subf %16, %19 : vector<3x3xf32>
      %21 = math.exp %20 : vector<3x3xf32>
      %cst_13 = arith.constant dense<0.000000e+00> : vector<3xf32>
      %22 = vector.multi_reduction <add>, %21, %cst_13 [1] : vector<3x3xf32> to vector<3xf32>
      %23 = vector.shape_cast %22 : vector<3xf32> to vector<3x1xf32>
      %24 = vector.broadcast %23 : vector<3x1xf32> to vector<3x3xf32>
      %25 = arith.divf %21, %24 : vector<3x3xf32>
      %26 = vector.shape_cast %25 : vector<3x3xf32> to vector<1x3x3xf32>
      %c0_14 = arith.constant 0 : index
      %c0_15 = arith.constant 0 : index
      %c0_16 = arith.constant 0 : index
      %27 = vector.load %arg3[%c0_14, %c0_15, %c0_16] : memref<1x3x3xf32, #tpu.memory_space<vmem>>, vector<1x3x3xf32>
      tpu.vector_store %arg3[%c0_14, %c0_15, %c0_16], %26 {strides = array<i32>} : memref<1x3x3xf32, #tpu.memory_space<vmem>>, vector<1x3x3xf32>,
    } else {
    }
    return
  }
  func.func @transform_0(%arg0: i32, %arg1: i32) -> (i32, i32, i32) {
    %c0_i32 = arith.constant 0 : i32
    %c0_i32_0 = arith.constant 0 : i32
    return %arg0, %c0_i32, %arg1 : i32, i32, i32
  }
  func.func @transform_1(%arg0: i32, %arg1: i32) -> (i32, i32, i32) {
    %c0_i32 = arith.constant 0 : i32
    %c0_i32_0 = arith.constant 0 : i32
    %c0_i32_1 = arith.constant 0 : i32
    return %arg0, %c0_i32, %c0_i32_0 : i32, i32, i32
  }
}

module attributes {stable_mosaic.version = 11 : i64} {
  func.func @_lam_lastconv_kernel(%arg0: i32, %arg1: i32, %arg2: memref<1x1x4x4x32xbf16, #tpu.memory_space<vmem>>, %arg3: memref<1x1x96x96xbf16, #tpu.memory_space<vmem>>, %arg4: memref<1x32xf32, #tpu.memory_space<vmem>>, %arg5: memref<1x4x4x32xbf16, #tpu.memory_space<vmem>>, %arg6: memref<4x4x32xf32, #tpu.memory_space<vmem>>) attributes {dimension_semantics = [#tpu.dimension_semantics<parallel>, #tpu.dimension_semantics<arbitrary>], iteration_bounds = array<i64: 2, 3>, scalar_prefetch = 0 : i64, scratch_operands = 1 : i64, tpu.core_type = #tpu.core_type<tc>, window_params = [{transform_indices = @transform_0, window_bounds = array<i64: 1, 1, 4, 4, 32>}, {transform_indices = @transform_1, window_bounds = array<i64: 1, 1, 96, 96>}, {pipeline_mode = #tpu.pipeline_mode<synchronous>, transform_indices = @transform_2, window_bounds = array<i64: 1, 32>}, {transform_indices = @transform_3, window_bounds = array<i64: 1, 4, 4, 32>}]} {
    %c0_i32 = arith.constant 0 : i32
    %0 = arith.cmpi eq, %arg1, %c0_i32 : i32
    %1 = arith.extui %0 : i1 to i32
    %c0_i32_0 = arith.constant 0 : i32
    %2 = arith.cmpi ne, %1, %c0_i32_0 : i32
    scf.if %2 {
      %cst_18 = arith.constant 0.000000e+00 : f32
      %29 = vector.broadcast %cst_18 : f32 to vector<4x4x32xf32>
      %c0_19 = arith.constant 0 : index
      %c0_20 = arith.constant 0 : index
      %c0_21 = arith.constant 0 : index
      %30 = vector.load %arg6[%c0_19, %c0_20, %c0_21] : memref<4x4x32xf32, #tpu.memory_space<vmem>>, vector<4x4x32xf32>
      tpu.vector_store %arg6[%c0_19, %c0_20, %c0_21], %29 {strides = array<i32>} : memref<4x4x32xf32, #tpu.memory_space<vmem>>, vector<4x4x32xf32>,
    } else {
    }
    %c0 = arith.constant 0 : index
    %c0_1 = arith.constant 0 : index
    %c0_2 = arith.constant 0 : index
    %3 = vector.load %arg6[%c0, %c0_1, %c0_2] : memref<4x4x32xf32, #tpu.memory_space<vmem>>, vector<4x4x32xf32>
    %c0_3 = arith.constant 0 : index
    %c0_4 = arith.constant 0 : index
    %c0_5 = arith.constant 0 : index
    %c0_6 = arith.constant 0 : index
    %c0_7 = arith.constant 0 : index
    %4 = vector.load %arg2[%c0_3, %c0_4, %c0_5, %c0_6, %c0_7] : memref<1x1x4x4x32xbf16, #tpu.memory_space<vmem>>, vector<1x1x4x4x32xbf16>
    %5 = vector.shape_cast %4 : vector<1x1x4x4x32xbf16> to vector<4x4x32xbf16>
    %c0_8 = arith.constant 0 : index
    %c0_9 = arith.constant 0 : index
    %c0_10 = arith.constant 0 : index
    %c0_11 = arith.constant 0 : index
    %6 = vector.load %arg3[%c0_8, %c0_9, %c0_10, %c0_11] : memref<1x1x96x96xbf16, #tpu.memory_space<vmem>>, vector<1x1x96x96xbf16>
    %7 = vector.shape_cast %6 : vector<1x1x96x96xbf16> to vector<96x96xbf16>
    %cst = arith.constant 0.000000e+00 : bf16
    %8 = vector.broadcast %cst : bf16 to vector<1x4x32xbf16>
    %9 = tpu.concatenate %8, %5, %8 in 0 : vector<1x4x32xbf16>, vector<4x4x32xbf16>, vector<1x4x32xbf16> -> vector<6x4x32xbf16>
    %cst_12 = arith.constant 0.000000e+00 : bf16
    %10 = vector.broadcast %cst_12 : bf16 to vector<6x1x32xbf16>
    %11 = tpu.concatenate %10, %9, %10 in 1 : vector<6x1x32xbf16>, vector<6x4x32xbf16>, vector<6x1x32xbf16> -> vector<6x6x32xbf16>
    %12 = vector.extract_strided_slice %11 {offsets = [0, 0, 0], sizes = [6, 4, 32], strides = [1, 1, 1]} : vector<6x6x32xbf16> to vector<6x4x32xbf16>
    %13 = vector.extract_strided_slice %11 {offsets = [0, 1, 0], sizes = [6, 4, 32], strides = [1, 1, 1]} : vector<6x6x32xbf16> to vector<6x4x32xbf16>
    %14 = vector.extract_strided_slice %11 {offsets = [0, 2, 0], sizes = [6, 4, 32], strides = [1, 1, 1]} : vector<6x6x32xbf16> to vector<6x4x32xbf16>
    %15 = tpu.concatenate %12, %13, %14 in 2 : vector<6x4x32xbf16>, vector<6x4x32xbf16>, vector<6x4x32xbf16> -> vector<6x4x96xbf16>
    %16 = vector.shape_cast %15 : vector<6x4x96xbf16> to vector<24x96xbf16>
    %cst_13 = arith.constant dense<0.000000e+00> : vector<24x96xf32>
    %17 = tpu.matmul %16, %7, %cst_13 {dimension_numbers = #tpu.dot_dimension_numbers<[1], [0], [0], [1], [0, 0, 1, 1], [], []>} : vector<24x96xbf16>, vector<96x96xbf16>, vector<24x96xf32> -> vector<24x96xf32>
    %18 = vector.shape_cast %17 : vector<24x96xf32> to vector<6x4x96xf32>
    %19 = vector.extract_strided_slice %18 {offsets = [0, 0, 0], sizes = [4, 4, 32], strides = [1, 1, 1]} : vector<6x4x96xf32> to vector<4x4x32xf32>
    %20 = vector.extract_strided_slice %18 {offsets = [1, 0, 32], sizes = [4, 4, 32], strides = [1, 1, 1]} : vector<6x4x96xf32> to vector<4x4x32xf32>
    %21 = arith.addf %19, %20 : vector<4x4x32xf32>
    %22 = vector.extract_strided_slice %18 {offsets = [2, 0, 64], sizes = [4, 4, 32], strides = [1, 1, 1]} : vector<6x4x96xf32> to vector<4x4x32xf32>
    %23 = arith.addf %21, %22 : vector<4x4x32xf32>
    %24 = arith.addf %3, %23 : vector<4x4x32xf32>
    %c0_14 = arith.constant 0 : index
    %c0_15 = arith.constant 0 : index
    %c0_16 = arith.constant 0 : index
    %25 = vector.load %arg6[%c0_14, %c0_15, %c0_16] : memref<4x4x32xf32, #tpu.memory_space<vmem>>, vector<4x4x32xf32>
    tpu.vector_store %arg6[%c0_14, %c0_15, %c0_16], %24 {strides = array<i32>} : memref<4x4x32xf32, #tpu.memory_space<vmem>>, vector<4x4x32xf32>,
    %c2_i32 = arith.constant 2 : i32
    %26 = arith.cmpi eq, %arg1, %c2_i32 : i32
    %27 = arith.extui %26 : i1 to i32
    %c0_i32_17 = arith.constant 0 : i32
    %28 = arith.cmpi ne, %27, %c0_i32_17 : i32
    scf.if %28 {
      %c0_18 = arith.constant 0 : index
      %c0_19 = arith.constant 0 : index
      %c0_20 = arith.constant 0 : index
      %29 = vector.load %arg6[%c0_18, %c0_19, %c0_20] : memref<4x4x32xf32, #tpu.memory_space<vmem>>, vector<4x4x32xf32>
      %c0_21 = arith.constant 0 : index
      %c0_22 = arith.constant 0 : index
      %30 = vector.load %arg4[%c0_21, %c0_22] : memref<1x32xf32, #tpu.memory_space<vmem>>, vector<1x32xf32>
      %31 = vector.shape_cast %30 : vector<1x32xf32> to vector<1x1x32xf32>
      %32 = vector.broadcast %31 : vector<1x1x32xf32> to vector<4x4x32xf32>
      %33 = arith.addf %29, %32 : vector<4x4x32xf32>
      %34 = vector.shape_cast %33 : vector<4x4x32xf32> to vector<1x4x4x32xf32>
      %35 = arith.truncf %34 : vector<1x4x4x32xf32> to vector<1x4x4x32xbf16>
      %c0_23 = arith.constant 0 : index
      %c0_24 = arith.constant 0 : index
      %c0_25 = arith.constant 0 : index
      %c0_26 = arith.constant 0 : index
      %36 = vector.load %arg5[%c0_23, %c0_24, %c0_25, %c0_26] : memref<1x4x4x32xbf16, #tpu.memory_space<vmem>>, vector<1x4x4x32xbf16>
      tpu.vector_store %arg5[%c0_23, %c0_24, %c0_25, %c0_26], %35 {strides = array<i32>} : memref<1x4x4x32xbf16, #tpu.memory_space<vmem>>, vector<1x4x4x32xbf16>,
    } else {
    }
    return
  }
  func.func @transform_0(%arg0: i32, %arg1: i32) -> (i32, i32, i32, i32, i32) {
    %c0_i32 = arith.constant 0 : i32
    %c0_i32_0 = arith.constant 0 : i32
    %c0_i32_1 = arith.constant 0 : i32
    %c0_i32_2 = arith.constant 0 : i32
    return %arg0, %arg1, %c0_i32, %c0_i32_0, %c0_i32_1 : i32, i32, i32, i32, i32
  }
  func.func @transform_1(%arg0: i32, %arg1: i32) -> (i32, i32, i32, i32) {
    %c0_i32 = arith.constant 0 : i32
    %c0_i32_0 = arith.constant 0 : i32
    %c0_i32_1 = arith.constant 0 : i32
    return %arg0, %arg1, %c0_i32, %c0_i32_0 : i32, i32, i32, i32
  }
  func.func @transform_2(%arg0: i32, %arg1: i32) -> (i32, i32) {
    %c0_i32 = arith.constant 0 : i32
    %c0_i32_0 = arith.constant 0 : i32
    %c0_i32_1 = arith.constant 0 : i32
    return %c0_i32, %c0_i32_0 : i32, i32
  }
  func.func @transform_3(%arg0: i32, %arg1: i32) -> (i32, i32, i32, i32) {
    %c0_i32 = arith.constant 0 : i32
    %c0_i32_0 = arith.constant 0 : i32
    %c0_i32_1 = arith.constant 0 : i32
    %c0_i32_2 = arith.constant 0 : i32
    return %arg0, %c0_i32, %c0_i32_0, %c0_i32_1 : i32, i32, i32, i32
  }
}

module attributes {stable_mosaic.version = 11 : i64} {
  func.func @_csam_kernel(%arg0: i32, %arg1: memref<1x4x4x32xbf16, #tpu.memory_space<vmem>>, %arg2: memref<96x96xbf16, #tpu.memory_space<vmem>>, %arg3: memref<2xf32, #tpu.memory_space<smem>>, %arg4: memref<1x4x4x32xbf16, #tpu.memory_space<vmem>>) attributes {dimension_semantics = [#tpu.dimension_semantics<parallel>], iteration_bounds = array<i64: 2>, scalar_prefetch = 0 : i64, scratch_operands = 0 : i64, tpu.core_type = #tpu.core_type<tc>, window_params = [{transform_indices = @transform_0, window_bounds = array<i64: 1, 4, 4, 32>}, {pipeline_mode = #tpu.pipeline_mode<synchronous>, transform_indices = @transform_1, window_bounds = array<i64: 96, 96>}, {transform_indices = @transform_2, window_bounds = array<i64: 2>}, {transform_indices = @transform_3, window_bounds = array<i64: 1, 4, 4, 32>}]} {
    %c0 = arith.constant 0 : index
    %c0_0 = arith.constant 0 : index
    %c0_1 = arith.constant 0 : index
    %c0_2 = arith.constant 0 : index
    %0 = vector.load %arg1[%c0, %c0_0, %c0_1, %c0_2] : memref<1x4x4x32xbf16, #tpu.memory_space<vmem>>, vector<1x4x4x32xbf16>
    %1 = vector.shape_cast %0 : vector<1x4x4x32xbf16> to vector<4x4x32xbf16>
    %c0_3 = arith.constant 0 : index
    %c0_4 = arith.constant 0 : index
    %2 = vector.load %arg2[%c0_3, %c0_4] : memref<96x96xbf16, #tpu.memory_space<vmem>>, vector<96x96xbf16>
    %cst = arith.constant 0.000000e+00 : bf16
    %3 = vector.broadcast %cst : bf16 to vector<1x4x32xbf16>
    %4 = tpu.concatenate %3, %1, %3 in 0 : vector<1x4x32xbf16>, vector<4x4x32xbf16>, vector<1x4x32xbf16> -> vector<6x4x32xbf16>
    %cst_5 = arith.constant 0.000000e+00 : bf16
    %5 = vector.broadcast %cst_5 : bf16 to vector<6x1x32xbf16>
    %6 = tpu.concatenate %5, %4, %5 in 1 : vector<6x1x32xbf16>, vector<6x4x32xbf16>, vector<6x1x32xbf16> -> vector<6x6x32xbf16>
    %7 = vector.extract_strided_slice %6 {offsets = [0, 0, 0], sizes = [6, 4, 32], strides = [1, 1, 1]} : vector<6x6x32xbf16> to vector<6x4x32xbf16>
    %8 = vector.extract_strided_slice %6 {offsets = [0, 1, 0], sizes = [6, 4, 32], strides = [1, 1, 1]} : vector<6x6x32xbf16> to vector<6x4x32xbf16>
    %9 = vector.extract_strided_slice %6 {offsets = [0, 2, 0], sizes = [6, 4, 32], strides = [1, 1, 1]} : vector<6x6x32xbf16> to vector<6x4x32xbf16>
    %10 = tpu.concatenate %7, %8, %9 in 2 : vector<6x4x32xbf16>, vector<6x4x32xbf16>, vector<6x4x32xbf16> -> vector<6x4x96xbf16>
    %11 = vector.shape_cast %10 : vector<6x4x96xbf16> to vector<24x96xbf16>
    %cst_6 = arith.constant dense<0.000000e+00> : vector<24x96xf32>
    %12 = tpu.matmul %11, %2, %cst_6 {dimension_numbers = #tpu.dot_dimension_numbers<[1], [0], [0], [1], [0, 0, 1, 1], [], []>} : vector<24x96xbf16>, vector<96x96xbf16>, vector<24x96xf32> -> vector<24x96xf32>
    %13 = vector.shape_cast %12 : vector<24x96xf32> to vector<6x4x96xf32>
    %14 = vector.extract_strided_slice %13 {offsets = [0, 0, 0], sizes = [4, 4, 32], strides = [1, 1, 1]} : vector<6x4x96xf32> to vector<4x4x32xf32>
    %15 = vector.extract_strided_slice %13 {offsets = [1, 0, 32], sizes = [4, 4, 32], strides = [1, 1, 1]} : vector<6x4x96xf32> to vector<4x4x32xf32>
    %16 = arith.addf %14, %15 : vector<4x4x32xf32>
    %17 = vector.extract_strided_slice %13 {offsets = [2, 0, 64], sizes = [4, 4, 32], strides = [1, 1, 1]} : vector<6x4x96xf32> to vector<4x4x32xf32>
    %18 = arith.addf %16, %17 : vector<4x4x32xf32>
    %c0_7 = arith.constant 0 : index
    %19 = memref.load %arg3[%c0_7] : memref<2xf32, #tpu.memory_space<smem>>
    %20 = vector.broadcast %19 : f32 to vector<4x4x32xf32>
    %21 = arith.addf %18, %20 : vector<4x4x32xf32>
    %c1 = arith.constant 1 : index
    %22 = memref.load %arg3[%c1] : memref<2xf32, #tpu.memory_space<smem>>
    %23 = arith.negf %21 : vector<4x4x32xf32>
    %24 = math.exp %23 : vector<4x4x32xf32>
    %cst_8 = arith.constant 1.000000e+00 : f32
    %25 = vector.broadcast %cst_8 : f32 to vector<4x4x32xf32>
    %26 = arith.addf %25, %24 : vector<4x4x32xf32>
    %27 = arith.divf %25, %26 : vector<4x4x32xf32>
    %28 = vector.broadcast %22 : f32 to vector<4x4x32xf32>
    %29 = arith.mulf %28, %27 : vector<4x4x32xf32>
    %30 = arith.extf %1 : vector<4x4x32xbf16> to vector<4x4x32xf32>
    %31 = arith.mulf %30, %29 : vector<4x4x32xf32>
    %32 = arith.addf %31, %30 : vector<4x4x32xf32>
    %33 = vector.shape_cast %32 : vector<4x4x32xf32> to vector<1x4x4x32xf32>
    %34 = arith.truncf %33 : vector<1x4x4x32xf32> to vector<1x4x4x32xbf16>
    %c0_9 = arith.constant 0 : index
    %c0_10 = arith.constant 0 : index
    %c0_11 = arith.constant 0 : index
    %c0_12 = arith.constant 0 : index
    %35 = vector.load %arg4[%c0_9, %c0_10, %c0_11, %c0_12] : memref<1x4x4x32xbf16, #tpu.memory_space<vmem>>, vector<1x4x4x32xbf16>
    tpu.vector_store %arg4[%c0_9, %c0_10, %c0_11, %c0_12], %34 {strides = array<i32>} : memref<1x4x4x32xbf16, #tpu.memory_space<vmem>>, vector<1x4x4x32xbf16>,
    return
  }
  func.func @transform_0(%arg0: i32) -> (i32, i32, i32, i32) {
    %c0_i32 = arith.constant 0 : i32
    %c0_i32_0 = arith.constant 0 : i32
    %c0_i32_1 = arith.constant 0 : i32
    %c0_i32_2 = arith.constant 0 : i32
    return %arg0, %c0_i32, %c0_i32_0, %c0_i32_1 : i32, i32, i32, i32
  }
  func.func @transform_1(%arg0: i32) -> (i32, i32) {
    %c0_i32 = arith.constant 0 : i32
    %c0_i32_0 = arith.constant 0 : i32
    %c0_i32_1 = arith.constant 0 : i32
    return %c0_i32, %c0_i32_0 : i32, i32
  }
  func.func @transform_2(%arg0: i32) -> i32 {
    %c0_i32 = arith.constant 0 : i32
    %c0_i32_0 = arith.constant 0 : i32
    return %c0_i32 : i32
  }
  func.func @transform_3(%arg0: i32) -> (i32, i32, i32, i32) {
    %c0_i32 = arith.constant 0 : i32
    %c0_i32_0 = arith.constant 0 : i32
    %c0_i32_1 = arith.constant 0 : i32
    %c0_i32_2 = arith.constant 0 : i32
    return %arg0, %c0_i32, %c0_i32_0, %c0_i32_1 : i32, i32, i32, i32
  }
}

module attributes {stable_mosaic.version = 11 : i64} {
  func.func @_conv_kernel(%arg0: i32, %arg1: memref<1x4x4x32xbf16, #tpu.memory_space<vmem>>, %arg2: memref<1x4x4x32xbf16, #tpu.memory_space<vmem>>, %arg3: memref<96x96xbf16, #tpu.memory_space<vmem>>, %arg4: memref<96x96xbf16, #tpu.memory_space<vmem>>, %arg5: memref<1x32xf32, #tpu.memory_space<vmem>>, %arg6: memref<1x4x4x32xbf16, #tpu.memory_space<vmem>>, %arg7: memref<1x4x4x32xbf16, #tpu.memory_space<vmem>>) attributes {dimension_semantics = [#tpu.dimension_semantics<parallel>], iteration_bounds = array<i64: 2>, scalar_prefetch = 0 : i64, scratch_operands = 0 : i64, tpu.core_type = #tpu.core_type<tc>, window_params = [{transform_indices = @transform_0, window_bounds = array<i64: 1, 4, 4, 32>}, {transform_indices = @transform_1, window_bounds = array<i64: 1, 4, 4, 32>}, {pipeline_mode = #tpu.pipeline_mode<synchronous>, transform_indices = @transform_2, window_bounds = array<i64: 96, 96>}, {pipeline_mode = #tpu.pipeline_mode<synchronous>, transform_indices = @transform_3, window_bounds = array<i64: 96, 96>}, {pipeline_mode = #tpu.pipeline_mode<synchronous>, transform_indices = @transform_4, window_bounds = array<i64: 1, 32>}, {transform_indices = @transform_5, window_bounds = array<i64: 1, 4, 4, 32>}, {transform_indices = @transform_6, window_bounds = array<i64: 1, 4, 4, 32>}]} {
    %c0 = arith.constant 0 : index
    %c0_0 = arith.constant 0 : index
    %c0_1 = arith.constant 0 : index
    %c0_2 = arith.constant 0 : index
    %0 = vector.load %arg1[%c0, %c0_0, %c0_1, %c0_2] : memref<1x4x4x32xbf16, #tpu.memory_space<vmem>>, vector<1x4x4x32xbf16>
    %1 = vector.shape_cast %0 : vector<1x4x4x32xbf16> to vector<4x4x32xbf16>
    %c0_3 = arith.constant 0 : index
    %c0_4 = arith.constant 0 : index
    %2 = vector.load %arg3[%c0_3, %c0_4] : memref<96x96xbf16, #tpu.memory_space<vmem>>, vector<96x96xbf16>
    %cst = arith.constant 0.000000e+00 : bf16
    %3 = vector.broadcast %cst : bf16 to vector<1x4x32xbf16>
    %4 = tpu.concatenate %3, %1, %3 in 0 : vector<1x4x32xbf16>, vector<4x4x32xbf16>, vector<1x4x32xbf16> -> vector<6x4x32xbf16>
    %cst_5 = arith.constant 0.000000e+00 : bf16
    %5 = vector.broadcast %cst_5 : bf16 to vector<6x1x32xbf16>
    %6 = tpu.concatenate %5, %4, %5 in 1 : vector<6x1x32xbf16>, vector<6x4x32xbf16>, vector<6x1x32xbf16> -> vector<6x6x32xbf16>
    %7 = vector.extract_strided_slice %6 {offsets = [0, 0, 0], sizes = [6, 4, 32], strides = [1, 1, 1]} : vector<6x6x32xbf16> to vector<6x4x32xbf16>
    %8 = vector.extract_strided_slice %6 {offsets = [0, 1, 0], sizes = [6, 4, 32], strides = [1, 1, 1]} : vector<6x6x32xbf16> to vector<6x4x32xbf16>
    %9 = vector.extract_strided_slice %6 {offsets = [0, 2, 0], sizes = [6, 4, 32], strides = [1, 1, 1]} : vector<6x6x32xbf16> to vector<6x4x32xbf16>
    %10 = tpu.concatenate %7, %8, %9 in 2 : vector<6x4x32xbf16>, vector<6x4x32xbf16>, vector<6x4x32xbf16> -> vector<6x4x96xbf16>
    %11 = vector.shape_cast %10 : vector<6x4x96xbf16> to vector<24x96xbf16>
    %cst_6 = arith.constant dense<0.000000e+00> : vector<24x96xf32>
    %12 = tpu.matmul %11, %2, %cst_6 {dimension_numbers = #tpu.dot_dimension_numbers<[1], [0], [0], [1], [0, 0, 1, 1], [], []>} : vector<24x96xbf16>, vector<96x96xbf16>, vector<24x96xf32> -> vector<24x96xf32>
    %13 = vector.shape_cast %12 : vector<24x96xf32> to vector<6x4x96xf32>
    %14 = vector.extract_strided_slice %13 {offsets = [0, 0, 0], sizes = [4, 4, 32], strides = [1, 1, 1]} : vector<6x4x96xf32> to vector<4x4x32xf32>
    %15 = vector.extract_strided_slice %13 {offsets = [1, 0, 32], sizes = [4, 4, 32], strides = [1, 1, 1]} : vector<6x4x96xf32> to vector<4x4x32xf32>
    %16 = arith.addf %14, %15 : vector<4x4x32xf32>
    %17 = vector.extract_strided_slice %13 {offsets = [2, 0, 64], sizes = [4, 4, 32], strides = [1, 1, 1]} : vector<6x4x96xf32> to vector<4x4x32xf32>
    %18 = arith.addf %16, %17 : vector<4x4x32xf32>
    %c0_7 = arith.constant 0 : index
    %c0_8 = arith.constant 0 : index
    %c0_9 = arith.constant 0 : index
    %c0_10 = arith.constant 0 : index
    %19 = vector.load %arg2[%c0_7, %c0_8, %c0_9, %c0_10] : memref<1x4x4x32xbf16, #tpu.memory_space<vmem>>, vector<1x4x4x32xbf16>
    %20 = vector.shape_cast %19 : vector<1x4x4x32xbf16> to vector<4x4x32xbf16>
    %c0_11 = arith.constant 0 : index
    %c0_12 = arith.constant 0 : index
    %21 = vector.load %arg4[%c0_11, %c0_12] : memref<96x96xbf16, #tpu.memory_space<vmem>>, vector<96x96xbf16>
    %cst_13 = arith.constant 0.000000e+00 : bf16
    %22 = vector.broadcast %cst_13 : bf16 to vector<1x4x32xbf16>
    %23 = tpu.concatenate %22, %20, %22 in 0 : vector<1x4x32xbf16>, vector<4x4x32xbf16>, vector<1x4x32xbf16> -> vector<6x4x32xbf16>
    %cst_14 = arith.constant 0.000000e+00 : bf16
    %24 = vector.broadcast %cst_14 : bf16 to vector<6x1x32xbf16>
    %25 = tpu.concatenate %24, %23, %24 in 1 : vector<6x1x32xbf16>, vector<6x4x32xbf16>, vector<6x1x32xbf16> -> vector<6x6x32xbf16>
    %26 = vector.extract_strided_slice %25 {offsets = [0, 0, 0], sizes = [6, 4, 32], strides = [1, 1, 1]} : vector<6x6x32xbf16> to vector<6x4x32xbf16>
    %27 = vector.extract_strided_slice %25 {offsets = [0, 1, 0], sizes = [6, 4, 32], strides = [1, 1, 1]} : vector<6x6x32xbf16> to vector<6x4x32xbf16>
    %28 = vector.extract_strided_slice %25 {offsets = [0, 2, 0], sizes = [6, 4, 32], strides = [1, 1, 1]} : vector<6x6x32xbf16> to vector<6x4x32xbf16>
    %29 = tpu.concatenate %26, %27, %28 in 2 : vector<6x4x32xbf16>, vector<6x4x32xbf16>, vector<6x4x32xbf16> -> vector<6x4x96xbf16>
    %30 = vector.shape_cast %29 : vector<6x4x96xbf16> to vector<24x96xbf16>
    %cst_15 = arith.constant dense<0.000000e+00> : vector<24x96xf32>
    %31 = tpu.matmul %30, %21, %cst_15 {dimension_numbers = #tpu.dot_dimension_numbers<[1], [0], [0], [1], [0, 0, 1, 1], [], []>} : vector<24x96xbf16>, vector<96x96xbf16>, vector<24x96xf32> -> vector<24x96xf32>
    %32 = vector.shape_cast %31 : vector<24x96xf32> to vector<6x4x96xf32>
    %33 = vector.extract_strided_slice %32 {offsets = [0, 0, 0], sizes = [4, 4, 32], strides = [1, 1, 1]} : vector<6x4x96xf32> to vector<4x4x32xf32>
    %34 = vector.extract_strided_slice %32 {offsets = [1, 0, 32], sizes = [4, 4, 32], strides = [1, 1, 1]} : vector<6x4x96xf32> to vector<4x4x32xf32>
    %35 = arith.addf %33, %34 : vector<4x4x32xf32>
    %36 = vector.extract_strided_slice %32 {offsets = [2, 0, 64], sizes = [4, 4, 32], strides = [1, 1, 1]} : vector<6x4x96xf32> to vector<4x4x32xf32>
    %37 = arith.addf %35, %36 : vector<4x4x32xf32>
    %38 = arith.addf %18, %37 : vector<4x4x32xf32>
    %c0_16 = arith.constant 0 : index
    %c0_17 = arith.constant 0 : index
    %39 = vector.load %arg5[%c0_16, %c0_17] : memref<1x32xf32, #tpu.memory_space<vmem>>, vector<1x32xf32>
    %40 = vector.shape_cast %39 : vector<1x32xf32> to vector<1x1x32xf32>
    %41 = vector.broadcast %40 : vector<1x1x32xf32> to vector<4x4x32xf32>
    %42 = arith.addf %38, %41 : vector<4x4x32xf32>
    %c0_18 = arith.constant 0 : index
    %c0_19 = arith.constant 0 : index
    %c0_20 = arith.constant 0 : index
    %c0_21 = arith.constant 0 : index
    %43 = vector.load %arg6[%c0_18, %c0_19, %c0_20, %c0_21] : memref<1x4x4x32xbf16, #tpu.memory_space<vmem>>, vector<1x4x4x32xbf16>
    %44 = vector.shape_cast %43 : vector<1x4x4x32xbf16> to vector<4x4x32xbf16>
    %45 = arith.extf %44 : vector<4x4x32xbf16> to vector<4x4x32xf32>
    %46 = arith.addf %42, %45 : vector<4x4x32xf32>
    %47 = vector.shape_cast %46 : vector<4x4x32xf32> to vector<1x4x4x32xf32>
    %48 = arith.truncf %47 : vector<1x4x4x32xf32> to vector<1x4x4x32xbf16>
    %c0_22 = arith.constant 0 : index
    %c0_23 = arith.constant 0 : index
    %c0_24 = arith.constant 0 : index
    %c0_25 = arith.constant 0 : index
    %49 = vector.load %arg7[%c0_22, %c0_23, %c0_24, %c0_25] : memref<1x4x4x32xbf16, #tpu.memory_space<vmem>>, vector<1x4x4x32xbf16>
    tpu.vector_store %arg7[%c0_22, %c0_23, %c0_24, %c0_25], %48 {strides = array<i32>} : memref<1x4x4x32xbf16, #tpu.memory_space<vmem>>, vector<1x4x4x32xbf16>,
    return
  }
  func.func @transform_0(%arg0: i32) -> (i32, i32, i32, i32) {
    %c0_i32 = arith.constant 0 : i32
    %c0_i32_0 = arith.constant 0 : i32
    %c0_i32_1 = arith.constant 0 : i32
    %c0_i32_2 = arith.constant 0 : i32
    return %arg0, %c0_i32, %c0_i32_0, %c0_i32_1 : i32, i32, i32, i32
  }
  func.func @transform_1(%arg0: i32) -> (i32, i32, i32, i32) {
    %c0_i32 = arith.constant 0 : i32
    %c0_i32_0 = arith.constant 0 : i32
    %c0_i32_1 = arith.constant 0 : i32
    %c0_i32_2 = arith.constant 0 : i32
    return %arg0, %c0_i32, %c0_i32_0, %c0_i32_1 : i32, i32, i32, i32
  }
  func.func @transform_2(%arg0: i32) -> (i32, i32) {
    %c0_i32 = arith.constant 0 : i32
    %c0_i32_0 = arith.constant 0 : i32
    %c0_i32_1 = arith.constant 0 : i32
    return %c0_i32, %c0_i32_0 : i32, i32
  }
  func.func @transform_3(%arg0: i32) -> (i32, i32) {
    %c0_i32 = arith.constant 0 : i32
    %c0_i32_0 = arith.constant 0 : i32
    %c0_i32_1 = arith.constant 0 : i32
    return %c0_i32, %c0_i32_0 : i32, i32
  }
  func.func @transform_4(%arg0: i32) -> (i32, i32) {
    %c0_i32 = arith.constant 0 : i32
    %c0_i32_0 = arith.constant 0 : i32
    %c0_i32_1 = arith.constant 0 : i32
    return %c0_i32, %c0_i32_0 : i32, i32
  }
  func.func @transform_5(%arg0: i32) -> (i32, i32, i32, i32) {
    %c0_i32 = arith.constant 0 : i32
    %c0_i32_0 = arith.constant 0 : i32
    %c0_i32_1 = arith.constant 0 : i32
    %c0_i32_2 = arith.constant 0 : i32
    return %arg0, %c0_i32, %c0_i32_0, %c0_i32_1 : i32, i32, i32, i32
  }
  func.func @transform_6(%arg0: i32) -> (i32, i32, i32, i32) {
    %c0_i32 = arith.constant 0 : i32
    %c0_i32_0 = arith.constant 0 : i32
    %c0_i32_1 = arith.constant 0 : i32
    %c0_i32_2 = arith.constant 0 : i32
    return %arg0, %c0_i32, %c0_i32_0, %c0_i32_1 : i32, i32, i32, i32
  }
}

module attributes {stable_mosaic.version = 11 : i64} {
  func.func @_conv_kernel(%arg0: i32, %arg1: memref<1x4x4x32xbf16, #tpu.memory_space<vmem>>, %arg2: memref<96x384xbf16, #tpu.memory_space<vmem>>, %arg3: memref<1x128xf32, #tpu.memory_space<vmem>>, %arg4: memref<1x4x4x128xbf16, #tpu.memory_space<vmem>>) attributes {dimension_semantics = [#tpu.dimension_semantics<parallel>], iteration_bounds = array<i64: 2>, scalar_prefetch = 0 : i64, scratch_operands = 0 : i64, tpu.core_type = #tpu.core_type<tc>, window_params = [{transform_indices = @transform_0, window_bounds = array<i64: 1, 4, 4, 32>}, {pipeline_mode = #tpu.pipeline_mode<synchronous>, transform_indices = @transform_1, window_bounds = array<i64: 96, 384>}, {pipeline_mode = #tpu.pipeline_mode<synchronous>, transform_indices = @transform_2, window_bounds = array<i64: 1, 128>}, {transform_indices = @transform_3, window_bounds = array<i64: 1, 4, 4, 128>}]} {
    %c0 = arith.constant 0 : index
    %c0_0 = arith.constant 0 : index
    %c0_1 = arith.constant 0 : index
    %c0_2 = arith.constant 0 : index
    %0 = vector.load %arg1[%c0, %c0_0, %c0_1, %c0_2] : memref<1x4x4x32xbf16, #tpu.memory_space<vmem>>, vector<1x4x4x32xbf16>
    %1 = vector.shape_cast %0 : vector<1x4x4x32xbf16> to vector<4x4x32xbf16>
    %c0_3 = arith.constant 0 : index
    %c0_4 = arith.constant 0 : index
    %2 = vector.load %arg2[%c0_3, %c0_4] : memref<96x384xbf16, #tpu.memory_space<vmem>>, vector<96x384xbf16>
    %cst = arith.constant 0.000000e+00 : bf16
    %3 = vector.broadcast %cst : bf16 to vector<1x4x32xbf16>
    %4 = tpu.concatenate %3, %1, %3 in 0 : vector<1x4x32xbf16>, vector<4x4x32xbf16>, vector<1x4x32xbf16> -> vector<6x4x32xbf16>
    %cst_5 = arith.constant 0.000000e+00 : bf16
    %5 = vector.broadcast %cst_5 : bf16 to vector<6x1x32xbf16>
    %6 = tpu.concatenate %5, %4, %5 in 1 : vector<6x1x32xbf16>, vector<6x4x32xbf16>, vector<6x1x32xbf16> -> vector<6x6x32xbf16>
    %7 = vector.extract_strided_slice %6 {offsets = [0, 0, 0], sizes = [6, 4, 32], strides = [1, 1, 1]} : vector<6x6x32xbf16> to vector<6x4x32xbf16>
    %8 = vector.extract_strided_slice %6 {offsets = [0, 1, 0], sizes = [6, 4, 32], strides = [1, 1, 1]} : vector<6x6x32xbf16> to vector<6x4x32xbf16>
    %9 = vector.extract_strided_slice %6 {offsets = [0, 2, 0], sizes = [6, 4, 32], strides = [1, 1, 1]} : vector<6x6x32xbf16> to vector<6x4x32xbf16>
    %10 = tpu.concatenate %7, %8, %9 in 2 : vector<6x4x32xbf16>, vector<6x4x32xbf16>, vector<6x4x32xbf16> -> vector<6x4x96xbf16>
    %11 = vector.shape_cast %10 : vector<6x4x96xbf16> to vector<24x96xbf16>
    %cst_6 = arith.constant dense<0.000000e+00> : vector<24x384xf32>
    %12 = tpu.matmul %11, %2, %cst_6 {dimension_numbers = #tpu.dot_dimension_numbers<[1], [0], [0], [1], [0, 0, 1, 1], [], []>} : vector<24x96xbf16>, vector<96x384xbf16>, vector<24x384xf32> -> vector<24x384xf32>
    %13 = vector.shape_cast %12 : vector<24x384xf32> to vector<6x4x384xf32>
    %14 = vector.extract_strided_slice %13 {offsets = [0, 0, 0], sizes = [4, 4, 128], strides = [1, 1, 1]} : vector<6x4x384xf32> to vector<4x4x128xf32>
    %15 = vector.extract_strided_slice %13 {offsets = [1, 0, 128], sizes = [4, 4, 128], strides = [1, 1, 1]} : vector<6x4x384xf32> to vector<4x4x128xf32>
    %16 = arith.addf %14, %15 : vector<4x4x128xf32>
    %17 = vector.extract_strided_slice %13 {offsets = [2, 0, 256], sizes = [4, 4, 128], strides = [1, 1, 1]} : vector<6x4x384xf32> to vector<4x4x128xf32>
    %18 = arith.addf %16, %17 : vector<4x4x128xf32>
    %c0_7 = arith.constant 0 : index
    %c0_8 = arith.constant 0 : index
    %19 = vector.load %arg3[%c0_7, %c0_8] : memref<1x128xf32, #tpu.memory_space<vmem>>, vector<1x128xf32>
    %20 = vector.shape_cast %19 : vector<1x128xf32> to vector<1x1x128xf32>
    %21 = vector.broadcast %20 : vector<1x1x128xf32> to vector<4x4x128xf32>
    %22 = arith.addf %18, %21 : vector<4x4x128xf32>
    %23 = vector.shape_cast %22 : vector<4x4x128xf32> to vector<1x4x4x128xf32>
    %24 = arith.truncf %23 : vector<1x4x4x128xf32> to vector<1x4x4x128xbf16>
    %c0_9 = arith.constant 0 : index
    %c0_10 = arith.constant 0 : index
    %c0_11 = arith.constant 0 : index
    %c0_12 = arith.constant 0 : index
    %25 = vector.load %arg4[%c0_9, %c0_10, %c0_11, %c0_12] : memref<1x4x4x128xbf16, #tpu.memory_space<vmem>>, vector<1x4x4x128xbf16>
    tpu.vector_store %arg4[%c0_9, %c0_10, %c0_11, %c0_12], %24 {strides = array<i32>} : memref<1x4x4x128xbf16, #tpu.memory_space<vmem>>, vector<1x4x4x128xbf16>,
    return
  }
  func.func @transform_0(%arg0: i32) -> (i32, i32, i32, i32) {
    %c0_i32 = arith.constant 0 : i32
    %c0_i32_0 = arith.constant 0 : i32
    %c0_i32_1 = arith.constant 0 : i32
    %c0_i32_2 = arith.constant 0 : i32
    return %arg0, %c0_i32, %c0_i32_0, %c0_i32_1 : i32, i32, i32, i32
  }
  func.func @transform_1(%arg0: i32) -> (i32, i32) {
    %c0_i32 = arith.constant 0 : i32
    %c0_i32_0 = arith.constant 0 : i32
    %c0_i32_1 = arith.constant 0 : i32
    return %c0_i32, %c0_i32_0 : i32, i32
  }
  func.func @transform_2(%arg0: i32) -> (i32, i32) {
    %c0_i32 = arith.constant 0 : i32
    %c0_i32_0 = arith.constant 0 : i32
    %c0_i32_1 = arith.constant 0 : i32
    return %c0_i32, %c0_i32_0 : i32, i32
  }
  func.func @transform_3(%arg0: i32) -> (i32, i32, i32, i32) {
    %c0_i32 = arith.constant 0 : i32
    %c0_i32_0 = arith.constant 0 : i32
    %c0_i32_1 = arith.constant 0 : i32
    %c0_i32_2 = arith.constant 0 : i32
    return %arg0, %c0_i32, %c0_i32_0, %c0_i32_1 : i32, i32, i32, i32
  }
}

module attributes {stable_mosaic.version = 11 : i64} {
  func.func @_conv_kernel(%arg0: i32, %arg1: memref<1x8x8x32xbf16, #tpu.memory_space<vmem>>, %arg2: memref<96x384xbf16, #tpu.memory_space<vmem>>, %arg3: memref<1x128xf32, #tpu.memory_space<vmem>>, %arg4: memref<1x8x8x128xbf16, #tpu.memory_space<vmem>>) attributes {dimension_semantics = [#tpu.dimension_semantics<parallel>], iteration_bounds = array<i64: 2>, scalar_prefetch = 0 : i64, scratch_operands = 0 : i64, tpu.core_type = #tpu.core_type<tc>, window_params = [{transform_indices = @transform_0, window_bounds = array<i64: 1, 8, 8, 32>}, {pipeline_mode = #tpu.pipeline_mode<synchronous>, transform_indices = @transform_1, window_bounds = array<i64: 96, 384>}, {pipeline_mode = #tpu.pipeline_mode<synchronous>, transform_indices = @transform_2, window_bounds = array<i64: 1, 128>}, {transform_indices = @transform_3, window_bounds = array<i64: 1, 8, 8, 128>}]} {
    %c0 = arith.constant 0 : index
    %c0_0 = arith.constant 0 : index
    %c0_1 = arith.constant 0 : index
    %c0_2 = arith.constant 0 : index
    %0 = vector.load %arg1[%c0, %c0_0, %c0_1, %c0_2] : memref<1x8x8x32xbf16, #tpu.memory_space<vmem>>, vector<1x8x8x32xbf16>
    %1 = vector.shape_cast %0 : vector<1x8x8x32xbf16> to vector<8x8x32xbf16>
    %c0_3 = arith.constant 0 : index
    %c0_4 = arith.constant 0 : index
    %2 = vector.load %arg2[%c0_3, %c0_4] : memref<96x384xbf16, #tpu.memory_space<vmem>>, vector<96x384xbf16>
    %cst = arith.constant 0.000000e+00 : bf16
    %3 = vector.broadcast %cst : bf16 to vector<1x8x32xbf16>
    %4 = tpu.concatenate %3, %1, %3 in 0 : vector<1x8x32xbf16>, vector<8x8x32xbf16>, vector<1x8x32xbf16> -> vector<10x8x32xbf16>
    %cst_5 = arith.constant 0.000000e+00 : bf16
    %5 = vector.broadcast %cst_5 : bf16 to vector<10x1x32xbf16>
    %6 = tpu.concatenate %5, %4, %5 in 1 : vector<10x1x32xbf16>, vector<10x8x32xbf16>, vector<10x1x32xbf16> -> vector<10x10x32xbf16>
    %7 = vector.extract_strided_slice %6 {offsets = [0, 0, 0], sizes = [10, 8, 32], strides = [1, 1, 1]} : vector<10x10x32xbf16> to vector<10x8x32xbf16>
    %8 = vector.extract_strided_slice %6 {offsets = [0, 1, 0], sizes = [10, 8, 32], strides = [1, 1, 1]} : vector<10x10x32xbf16> to vector<10x8x32xbf16>
    %9 = vector.extract_strided_slice %6 {offsets = [0, 2, 0], sizes = [10, 8, 32], strides = [1, 1, 1]} : vector<10x10x32xbf16> to vector<10x8x32xbf16>
    %10 = tpu.concatenate %7, %8, %9 in 2 : vector<10x8x32xbf16>, vector<10x8x32xbf16>, vector<10x8x32xbf16> -> vector<10x8x96xbf16>
    %11 = vector.shape_cast %10 : vector<10x8x96xbf16> to vector<80x96xbf16>
    %cst_6 = arith.constant dense<0.000000e+00> : vector<80x384xf32>
    %12 = tpu.matmul %11, %2, %cst_6 {dimension_numbers = #tpu.dot_dimension_numbers<[1], [0], [0], [1], [0, 0, 1, 1], [], []>} : vector<80x96xbf16>, vector<96x384xbf16>, vector<80x384xf32> -> vector<80x384xf32>
    %13 = vector.shape_cast %12 : vector<80x384xf32> to vector<10x8x384xf32>
    %14 = vector.extract_strided_slice %13 {offsets = [0, 0, 0], sizes = [8, 8, 128], strides = [1, 1, 1]} : vector<10x8x384xf32> to vector<8x8x128xf32>
    %15 = vector.extract_strided_slice %13 {offsets = [1, 0, 128], sizes = [8, 8, 128], strides = [1, 1, 1]} : vector<10x8x384xf32> to vector<8x8x128xf32>
    %16 = arith.addf %14, %15 : vector<8x8x128xf32>
    %17 = vector.extract_strided_slice %13 {offsets = [2, 0, 256], sizes = [8, 8, 128], strides = [1, 1, 1]} : vector<10x8x384xf32> to vector<8x8x128xf32>
    %18 = arith.addf %16, %17 : vector<8x8x128xf32>
    %c0_7 = arith.constant 0 : index
    %c0_8 = arith.constant 0 : index
    %19 = vector.load %arg3[%c0_7, %c0_8] : memref<1x128xf32, #tpu.memory_space<vmem>>, vector<1x128xf32>
    %20 = vector.shape_cast %19 : vector<1x128xf32> to vector<1x1x128xf32>
    %21 = vector.broadcast %20 : vector<1x1x128xf32> to vector<8x8x128xf32>
    %22 = arith.addf %18, %21 : vector<8x8x128xf32>
    %23 = vector.shape_cast %22 : vector<8x8x128xf32> to vector<1x8x8x128xf32>
    %24 = arith.truncf %23 : vector<1x8x8x128xf32> to vector<1x8x8x128xbf16>
    %c0_9 = arith.constant 0 : index
    %c0_10 = arith.constant 0 : index
    %c0_11 = arith.constant 0 : index
    %c0_12 = arith.constant 0 : index
    %25 = vector.load %arg4[%c0_9, %c0_10, %c0_11, %c0_12] : memref<1x8x8x128xbf16, #tpu.memory_space<vmem>>, vector<1x8x8x128xbf16>
    tpu.vector_store %arg4[%c0_9, %c0_10, %c0_11, %c0_12], %24 {strides = array<i32>} : memref<1x8x8x128xbf16, #tpu.memory_space<vmem>>, vector<1x8x8x128xbf16>,
    return
  }
  func.func @transform_0(%arg0: i32) -> (i32, i32, i32, i32) {
    %c0_i32 = arith.constant 0 : i32
    %c0_i32_0 = arith.constant 0 : i32
    %c0_i32_1 = arith.constant 0 : i32
    %c0_i32_2 = arith.constant 0 : i32
    return %arg0, %c0_i32, %c0_i32_0, %c0_i32_1 : i32, i32, i32, i32
  }
  func.func @transform_1(%arg0: i32) -> (i32, i32) {
    %c0_i32 = arith.constant 0 : i32
    %c0_i32_0 = arith.constant 0 : i32
    %c0_i32_1 = arith.constant 0 : i32
    return %c0_i32, %c0_i32_0 : i32, i32
  }
  func.func @transform_2(%arg0: i32) -> (i32, i32) {
    %c0_i32 = arith.constant 0 : i32
    %c0_i32_0 = arith.constant 0 : i32
    %c0_i32_1 = arith.constant 0 : i32
    return %c0_i32, %c0_i32_0 : i32, i32
  }
  func.func @transform_3(%arg0: i32) -> (i32, i32, i32, i32) {
    %c0_i32 = arith.constant 0 : i32
    %c0_i32_0 = arith.constant 0 : i32
    %c0_i32_1 = arith.constant 0 : i32
    %c0_i32_2 = arith.constant 0 : i32
    return %arg0, %c0_i32, %c0_i32_0, %c0_i32_1 : i32, i32, i32, i32
  }
}

module attributes {stable_mosaic.version = 11 : i64} {
  func.func @_conv_kernel(%arg0: i32, %arg1: memref<1x16x16x32xbf16, #tpu.memory_space<vmem>>, %arg2: memref<96x9xbf16, #tpu.memory_space<vmem>>, %arg3: memref<1x3xf32, #tpu.memory_space<vmem>>, %arg4: memref<1x16x16x3xf32, #tpu.memory_space<vmem>>) attributes {dimension_semantics = [#tpu.dimension_semantics<parallel>], iteration_bounds = array<i64: 2>, scalar_prefetch = 0 : i64, scratch_operands = 0 : i64, tpu.core_type = #tpu.core_type<tc>, window_params = [{transform_indices = @transform_0, window_bounds = array<i64: 1, 16, 16, 32>}, {pipeline_mode = #tpu.pipeline_mode<synchronous>, transform_indices = @transform_1, window_bounds = array<i64: 96, 9>}, {pipeline_mode = #tpu.pipeline_mode<synchronous>, transform_indices = @transform_2, window_bounds = array<i64: 1, 3>}, {transform_indices = @transform_3, window_bounds = array<i64: 1, 16, 16, 3>}]} {
    %c0 = arith.constant 0 : index
    %c0_0 = arith.constant 0 : index
    %c0_1 = arith.constant 0 : index
    %c0_2 = arith.constant 0 : index
    %0 = vector.load %arg1[%c0, %c0_0, %c0_1, %c0_2] : memref<1x16x16x32xbf16, #tpu.memory_space<vmem>>, vector<1x16x16x32xbf16>
    %1 = vector.shape_cast %0 : vector<1x16x16x32xbf16> to vector<16x16x32xbf16>
    %c0_3 = arith.constant 0 : index
    %c0_4 = arith.constant 0 : index
    %2 = vector.load %arg2[%c0_3, %c0_4] : memref<96x9xbf16, #tpu.memory_space<vmem>>, vector<96x9xbf16>
    %cst = arith.constant 0.000000e+00 : bf16
    %3 = vector.broadcast %cst : bf16 to vector<1x16x32xbf16>
    %4 = tpu.concatenate %3, %1, %3 in 0 : vector<1x16x32xbf16>, vector<16x16x32xbf16>, vector<1x16x32xbf16> -> vector<18x16x32xbf16>
    %cst_5 = arith.constant 0.000000e+00 : bf16
    %5 = vector.broadcast %cst_5 : bf16 to vector<18x1x32xbf16>
    %6 = tpu.concatenate %5, %4, %5 in 1 : vector<18x1x32xbf16>, vector<18x16x32xbf16>, vector<18x1x32xbf16> -> vector<18x18x32xbf16>
    %7 = vector.extract_strided_slice %6 {offsets = [0, 0, 0], sizes = [18, 16, 32], strides = [1, 1, 1]} : vector<18x18x32xbf16> to vector<18x16x32xbf16>
    %8 = vector.extract_strided_slice %6 {offsets = [0, 1, 0], sizes = [18, 16, 32], strides = [1, 1, 1]} : vector<18x18x32xbf16> to vector<18x16x32xbf16>
    %9 = vector.extract_strided_slice %6 {offsets = [0, 2, 0], sizes = [18, 16, 32], strides = [1, 1, 1]} : vector<18x18x32xbf16> to vector<18x16x32xbf16>
    %10 = tpu.concatenate %7, %8, %9 in 2 : vector<18x16x32xbf16>, vector<18x16x32xbf16>, vector<18x16x32xbf16> -> vector<18x16x96xbf16>
    %11 = vector.shape_cast %10 : vector<18x16x96xbf16> to vector<288x96xbf16>
    %cst_6 = arith.constant dense<0.000000e+00> : vector<288x9xf32>
    %12 = tpu.matmul %11, %2, %cst_6 {dimension_numbers = #tpu.dot_dimension_numbers<[1], [0], [0], [1], [0, 0, 1, 1], [], []>} : vector<288x96xbf16>, vector<96x9xbf16>, vector<288x9xf32> -> vector<288x9xf32>
    %13 = vector.shape_cast %12 : vector<288x9xf32> to vector<18x16x9xf32>
    %14 = vector.extract_strided_slice %13 {offsets = [0, 0, 0], sizes = [16, 16, 3], strides = [1, 1, 1]} : vector<18x16x9xf32> to vector<16x16x3xf32>
    %15 = vector.extract_strided_slice %13 {offsets = [1, 0, 3], sizes = [16, 16, 3], strides = [1, 1, 1]} : vector<18x16x9xf32> to vector<16x16x3xf32>
    %16 = arith.addf %14, %15 : vector<16x16x3xf32>
    %17 = vector.extract_strided_slice %13 {offsets = [2, 0, 6], sizes = [16, 16, 3], strides = [1, 1, 1]} : vector<18x16x9xf32> to vector<16x16x3xf32>
    %18 = arith.addf %16, %17 : vector<16x16x3xf32>
    %c0_7 = arith.constant 0 : index
    %c0_8 = arith.constant 0 : index
    %19 = vector.load %arg3[%c0_7, %c0_8] : memref<1x3xf32, #tpu.memory_space<vmem>>, vector<1x3xf32>
    %20 = vector.shape_cast %19 : vector<1x3xf32> to vector<1x1x3xf32>
    %21 = vector.broadcast %20 : vector<1x1x3xf32> to vector<16x16x3xf32>
    %22 = arith.addf %18, %21 : vector<16x16x3xf32>
    %23 = vector.shape_cast %22 : vector<16x16x3xf32> to vector<1x16x16x3xf32>
    %c0_9 = arith.constant 0 : index
    %c0_10 = arith.constant 0 : index
    %c0_11 = arith.constant 0 : index
    %c0_12 = arith.constant 0 : index
    %24 = vector.load %arg4[%c0_9, %c0_10, %c0_11, %c0_12] : memref<1x16x16x3xf32, #tpu.memory_space<vmem>>, vector<1x16x16x3xf32>
    tpu.vector_store %arg4[%c0_9, %c0_10, %c0_11, %c0_12], %23 {strides = array<i32>} : memref<1x16x16x3xf32, #tpu.memory_space<vmem>>, vector<1x16x16x3xf32>,
    return
  }
  func.func @transform_0(%arg0: i32) -> (i32, i32, i32, i32) {
    %c0_i32 = arith.constant 0 : i32
    %c0_i32_0 = arith.constant 0 : i32
    %c0_i32_1 = arith.constant 0 : i32
    %c0_i32_2 = arith.constant 0 : i32
    return %arg0, %c0_i32, %c0_i32_0, %c0_i32_1 : i32, i32, i32, i32
  }
  func.func @transform_1(%arg0: i32) -> (i32, i32) {
    %c0_i32 = arith.constant 0 : i32
    %c0_i32_0 = arith.constant 0 : i32
    %c0_i32_1 = arith.constant 0 : i32
    return %c0_i32, %c0_i32_0 : i32, i32
  }
  func.func @transform_2(%arg0: i32) -> (i32, i32) {
    %c0_i32 = arith.constant 0 : i32
    %c0_i32_0 = arith.constant 0 : i32
    %c0_i32_1 = arith.constant 0 : i32
    return %c0_i32, %c0_i32_0 : i32, i32
  }
  func.func @transform_3(%arg0: i32) -> (i32, i32, i32, i32) {
    %c0_i32 = arith.constant 0 : i32
    %c0_i32_0 = arith.constant 0 : i32
    %c0_i32_1 = arith.constant 0 : i32
    %c0_i32_2 = arith.constant 0 : i32
    return %arg0, %c0_i32, %c0_i32_0, %c0_i32_1 : i32, i32, i32, i32
  }
}

</mosaic_0001>

<llo_original>
// kernel: han_forward.13
$region0: #{han_forward.13}
  #allocation0 [shape = 'u32[]', space=smem, size = 0x4, offset = 0x4, fixed_abs, tag = 'smem constant byte address 0x4 - core index']
  #allocation1 [shape = 'u32[144,128]{1,0:T(1,128)}', space=vmem, size = 0x12000, scoped, tag = 'internal scratch']
  %s0 = inlined_call_operand.vmem [shape: bf16[2,4,4,48], index: 0, kind: input, shape index: {}]
  %s1 = inlined_call_operand.vmem [shape: bf16[144,96], index: 1, kind: input, shape index: {}]
  %s2 = inlined_call_operand.vmem [shape: f32[1,32], index: 2, kind: input, shape index: {}]
  %s3 = inlined_call_operand.vmem [shape: bf16[2,4,4,32], index: 3, kind: output, shape index: {}]
  %s4 = sld [smem:[#allocation0]]
  $region45: #{han_forward.13} parent=0
    _
  %s6 = ssub.s32 1, %s4
  %s7 = scalar_select 0, %s6, %s4
  loop: start=0, step=1, limit=4
  $region2: #{han_forward.13} parent=0 // loop_pre_header
    _
  $region3: #{han_forward.13} parent=0 // loop_header
    %s9 = sphi 0, %s13
    %p10 = scmp.ge.s32.totalorder %s9, 4
    %s19 = sphi 0, %s21
    %s22 = sphi 0, %s19
    %s23 = sphi 0, %s22
    %s39 = sphi 0, %s23
    %s43 = sphi 0, %s43
    %s45 = sphi 0, %s43
    %s46 = sphi 0, %s45
    %s60 = sphi 0, %s46
    %s64 = sphi 0, %s64
    %s66 = sphi 0, %s64
    %s67 = sphi 0, %s66
    %s81 = sphi 0, %s67
    %s87 = sphi 0, %s89
    %s90 = sphi 0, %s87
    %s91 = sphi 0, %s90
    %s107 = sphi 0, %s91
  $region4: #{han_forward.13} parent=0 // loop_header_branch
    %12 = sbr.rel (%p10) target = $region8
  $region5: #{han_forward.13} parent=0 // loop_body
    %s14 = ssub.s32 %s9, 1
    %s15 = ssub.s32 %s9, 2
    %s16 = sadd.s32 %s9, 1
    %s17 = ssub.s32 %s9, %s16
    %p18 = scmp.eq.s32.totalorder %s17, 0
    %s20 = sadd.s32 %s19, 1
    %s21 = scalar_select %p18, %s19, %s20
    %p24 = pneg %p18
    %p25 = scmp.eq.s32.totalorder %s9, 1
    %p26 = por %p24, %p25
    %p27 = scmp.ne.s32.totalorder %s19, %s22
    %p28 = scmp.eq.s32.totalorder %s9, 0
    %p29 = por %p27, %p28
    %p30 = scmp.ne.s32.totalorder %s19, %s22
    %p31 = scmp.eq.s32.totalorder %s14, 1
    %p32 = por %p30, %p31
    %p33 = scmp.ne.s32.totalorder %s22, %s23
    %p34 = scmp.eq.s32.totalorder %s14, 0
    %p35 = por %p33, %p34
    %p36 = scmp.ne.s32.totalorder %s22, %s23
    %p37 = scmp.eq.s32.totalorder %s15, 1
    %p38 = por %p36, %p37
    %p40 = scmp.ne.s32.totalorder %s23, %s39
    %p41 = scmp.eq.s32.totalorder %s15, 0
    %p42 = por %p40, %p41
    %s44 = sadd.s32 %s43, 1
    %p47 = scmp.eq.s32.totalorder %s9, 1
    %p48 = scmp.ne.s32.totalorder %s43, %s45
    %p49 = scmp.eq.s32.totalorder %s9, 0
    %p50 = por %p48, %p49
    %p51 = scmp.ne.s32.totalorder %s43, %s45
    %p52 = scmp.eq.s32.totalorder %s14, 1
    %p53 = por %p51, %p52
    %p54 = scmp.ne.s32.totalorder %s45, %s46
    %p55 = scmp.eq.s32.totalorder %s14, 0
    %p56 = por %p54, %p55
    %p57 = scmp.ne.s32.totalorder %s45, %s46
    %p58 = scmp.eq.s32.totalorder %s15, 1
    %p59 = por %p57, %p58
    %p61 = scmp.ne.s32.totalorder %s46, %s60
    %p62 = scmp.eq.s32.totalorder %s15, 0
    %p63 = por %p61, %p62
    %s65 = sadd.s32 %s64, 1
    %p68 = scmp.eq.s32.totalorder %s9, 1
    %p69 = scmp.ne.s32.totalorder %s64, %s66
    %p70 = scmp.eq.s32.totalorder %s9, 0
    %p71 = por %p69, %p70
    %p72 = scmp.ne.s32.totalorder %s64, %s66
    %p73 = scmp.eq.s32.totalorder %s14, 1
    %p74 = por %p72, %p73
    %p75 = scmp.ne.s32.totalorder %s66, %s67
    %p76 = scmp.eq.s32.totalorder %s14, 0
    %p77 = por %p75, %p76
    %p78 = scmp.ne.s32.totalorder %s66, %s67
    %p79 = scmp.eq.s32.totalorder %s15, 1
    %p80 = por %p78, %p79
    %p82 = scmp.ne.s32.totalorder %s67, %s81
    %p83 = scmp.eq.s32.totalorder %s15, 0
    %p84 = por %p82, %p83
    %s85 = ssub.s32 %s9, %s16
    %p86 = scmp.eq.s32.totalorder %s85, 0
    %s88 = sadd.s32 %s87, 1
    %s89 = scalar_select %p86, %s87, %s88
    %p92 = pneg %p86
    %p93 = scmp.eq.s32.totalorder %s9, 1
    %p94 = por %p92, %p93
    %p95 = scmp.ne.s32.totalorder %s87, %s90
    %p96 = scmp.eq.s32.totalorder %s9, 0
    %p97 = por %p95, %p96
    %p98 = scmp.ne.s32.totalorder %s87, %s90
    %p99 = scmp.eq.s32.totalorder %s14, 1
    %p100 = por %p98, %p99
    %p101 = scmp.ne.s32.totalorder %s90, %s91
    %p102 = scmp.eq.s32.totalorder %s14, 0
    %p103 = por %p101, %p102
    %p104 = scmp.ne.s32.totalorder %s90, %s91
    %p105 = scmp.eq.s32.totalorder %s15, 1
    %p106 = por %p104, %p105
    %p108 = scmp.ne.s32.totalorder %s91, %s107
    %p109 = scmp.eq.s32.totalorder %s15, 0
    %p110 = por %p108, %p109
    %p111 = scmp.le.s32.totalorder 1, %s9
    %p112 = scmp.lt.s32.totalorder %s9, 3
    %p113 = pnand %p111, %p112
    %p114 = pneg %p113
    // Predicated region
    $region9: #{han_forward.13} parent=5 // pred_check
      _
    $region10: #{han_forward.13} parent=5 // pred_check_branch
      %116 = sbr.rel (%p113) target = $region12
    $region11: #{han_forward.13} parent=5 // pred_region
      %s117 = ssub.s32 %s9, 1
      // Predicated region
      $region13: #{han_forward.13} parent=11 // pred_check
        %p118 = pneg %p56
      $region14: #{han_forward.13} parent=11 // pred_check_branch
        %120 = sbr.rel (%p118) target = $region16
      $region15: #{han_forward.13} parent=11 // pred_region
        _
      $region16: #{han_forward.13} parent=11 // pred_fallthru
        _
      // Predicated region
      $region17: #{han_forward.13} parent=11 // pred_check
        %p121 = pneg %p77
      $region18: #{han_forward.13} parent=11 // pred_check_branch
        %123 = sbr.rel (%p121) target = $region20
      $region19: #{han_forward.13} parent=11 // pred_region
        _
      $region20: #{han_forward.13} parent=11 // pred_fallthru
        _
    $region12: #{han_forward.13} parent=5 // pred_fallthru
      _
    %p124 = scmp.lt.s32.totalorder %s9, 2
    // Predicated region
    $region21: #{han_forward.13} parent=5 // pred_check
      %p125 = pneg %p124
    $region22: #{han_forward.13} parent=5 // pred_check_branch
      %127 = sbr.rel (%p125) target = $region24
    $region23: #{han_forward.13} parent=5 // pred_region
      // Predicated region
      $region25: #{han_forward.13} parent=23 // pred_check
        %p128 = pneg %p29
      $region26: #{han_forward.13} parent=23 // pred_check_branch
        %130 = sbr.rel (%p128) target = $region28
      $region27: #{han_forward.13} parent=23 // pred_region
        %p131 = scmp.lt.s32.totalorder %s9, 1
        %s132 = scalar_select %p131, %s9, 1
        %s133 = smul.addr %s132, 4
        %s134 = smul.addr %s133, 2
        %s135 = scalar_lea.vmem %s0, %s134
      $region28: #{han_forward.13} parent=23 // pred_fallthru
        _
    $region24: #{han_forward.13} parent=5 // pred_fallthru
      _
    %p136 = scmp.le.s32.totalorder 1, %s9
    %p137 = scmp.lt.s32.totalorder %s9, 3
    %p138 = pnand %p136, %p137
    %p139 = pneg %p138
    // Predicated region
    $region29: #{han_forward.13} parent=5 // pred_check
      _
    $region30: #{han_forward.13} parent=5 // pred_check_branch
      %141 = sbr.rel (%p138) target = $region32
    $region31: #{han_forward.13} parent=5 // pred_region
      %s142 = ssub.s32 %s9, 1
      %p143 = scmp.lt.s32.totalorder %s14, 1
      %s144 = scalar_select %p143, %s14, 1
      %s145 = smul.addr %s144, 4
      %s146 = smul.addr %s145, 2
      %s147 = scalar_lea.vmem %s0, %s146
      %p148 = pneg %p35
      %p149 = pneg %p32
      %p150 = pneg %p56
      %p151 = pneg %p53
      %p152 = pneg %p77
      %p153 = pneg %p74
      %p154 = pneg %p103
      %p155 = pneg %p100
      %p156 = scmp.lt.s32.totalorder %s14, 1
      %s157 = scalar_select %p156, %s14, 1
      %s158 = smul.addr %s157, 4
      %s159 = smul.addr %s158, 2
      %s160 = scalar_lea.vmem %s3, %s159
      %p161 = scmp.lt.s32.totalorder %s14, 1
      %s162 = scalar_select %p161, %s14, 1
      %s163 = smul.addr %s162, 4
      %s164 = smul.addr %s163, 2
      %s165 = scalar_lea.vmem %s0, %s164
      %p166 = scmp.lt.s32.totalorder %s14, 1
      %s167 = scalar_select %p166, %s14, 1
      %s168 = smul.addr %s167, 4
      %s169 = smul.addr %s168, 2
      %s170 = scalar_lea.vmem %s3, %s169
      %v172 = vld [vmem:[%s165] sm:$0x3]
      %v173 = vld [vmem:[%s165 + $0x2] sm:$0x3]
      %v174 = vld [vmem:[%s165 + $0x4] sm:$0x3]
      %v175 = vld [vmem:[%s165 + $0x6] sm:$0x3]
      %v176 = vld [vmem:[%s1] sm:$0xf]
      %v177 = vld [vmem:[%s1 + $0x4] sm:$0xf]
      %v178 = vld [vmem:[%s1 + $0x8] sm:$0xf]
      %v179 = vld [vmem:[%s1 + $0xc] sm:$0xf]
      %v180 = vld [vmem:[%s1 + $0x10] sm:$0xf]
      %v181 = vld [vmem:[%s1 + $0x14] sm:$0xf]
      %v182 = vld [vmem:[%s1 + $0x18] sm:$0xf]
      %v183 = vld [vmem:[%s1 + $0x1c] sm:$0xf]
      %v184 = vld [vmem:[%s1 + $0x20] sm:$0xf]
      %v185 = vld [vmem:[%s1 + $0x24] sm:$0xf]
      %v186 = vld [vmem:[%s1 + $0x28] sm:$0xf]
      %v187 = vld [vmem:[%s1 + $0x2c] sm:$0xf]
      %v188 = vld [vmem:[%s1 + $0x30] sm:$0xf]
      %v189 = vld [vmem:[%s1 + $0x34] sm:$0xf]
      %v190 = vld [vmem:[%s1 + $0x38] sm:$0xf]
      %v191 = vld [vmem:[%s1 + $0x3c] sm:$0xf]
      %v192 = vld [vmem:[%s1 + $0x40] sm:$0xf]
      %v193 = vld [vmem:[%s1 + $0x44] sm:$0xf]
      %v195 = vshrl.u32 0, 16
      %v197 = vrot.slane %v195, 7
      %v198 = vshll.u32 0, 16
      %v200 = vor.u32 %v197, %v198
      %v202 = vshrl.u32 %v172, 16
      %v204 = vrot.slane %v202, 7
      %v205 = vshll.u32 %v172, 16
      %v207 = vor.u32 %v204, %v205
      %v209 = vshrl.u32 %v173, 16
      %v211 = vrot.slane %v209, 7
      %v212 = vshll.u32 %v173, 16
      %v214 = vor.u32 %v211, %v212
      %v216 = vshrl.u32 %v174, 16
      %v218 = vrot.slane %v216, 7
      %v219 = vshll.u32 %v174, 16
      %v221 = vor.u32 %v218, %v219
      %v223 = vshrl.u32 %v175, 16
      %v225 = vrot.slane %v223, 7
      %v226 = vshll.u32 %v175, 16
      %v228 = vor.u32 %v225, %v226
      %vm234 = vcmask 1040384
      %vm235 = vsmask.f32 256
      %vm236 = vmand %vm234, %vm235
      %v237 = vsel %vm236, 0, %v200
      %v238 = vsel %vm236, 0, %v207
      %v239 = vsel %vm236, 0, %v214
      %v240 = vsel %vm236, 0, %v221
      %v241 = vsel %vm236, 0, %v228
      %vm242 = vcmask 1042432
      %vm243 = vsmask.f32 2304
      %vm244 = vmand %vm242, %vm243
      %v245 = vsel %vm244, %v237, 0
      %v246 = vsel %vm244, %v238, 0
      %v247 = vsel %vm244, %v239, 0
      %v248 = vsel %vm244, %v240, 0
      %v249 = vsel %vm244, %v241, 0
      %v251 = vshrl.u32 %v245, 16
      %v253 = vshll.u32 %v245, 16
      %v255 = vrot.slane %v253, 1
      %v256 = vor.u32 %v251, %v255
      %v258 = vshrl.u32 %v246, 16
      %v260 = vshll.u32 %v246, 16
      %v262 = vrot.slane %v260, 1
      %v263 = vor.u32 %v258, %v262
      %v265 = vshrl.u32 %v247, 16
      %v267 = vshll.u32 %v247, 16
      %v269 = vrot.slane %v267, 1
      %v270 = vor.u32 %v265, %v269
      %v272 = vshrl.u32 %v248, 16
      %v274 = vshll.u32 %v248, 16
      %v276 = vrot.slane %v274, 1
      %v277 = vor.u32 %v272, %v276
      %v279 = vshrl.u32 %v249, 16
      %v281 = vshll.u32 %v249, 16
      %v283 = vrot.slane %v281, 1
      %v284 = vor.u32 %v279, %v283
      %285 = vrot.lane.b32.xlu0 %v256, 48
      %v286 = vpop.permute.xlu0 %285
      %287 = vrot.lane.b32.xlu0 %v263, 48
      %v288 = vpop.permute.xlu0 %287
      %289 = vrot.lane.b32.xlu0 %v270, 48
      %v290 = vpop.permute.xlu0 %289
      %291 = vrot.lane.b32.xlu0 %v277, 48
      %v292 = vpop.permute.xlu0 %291
      %293 = vrot.lane.b32.xlu0 %v284, 48
      %v294 = vpop.permute.xlu0 %293
      %v300 = vrot.slane %v245, 1
      %v301 = vrot.slane %v246, 1
      %v302 = vrot.slane %v247, 1
      %v303 = vrot.slane %v248, 1
      %v304 = vrot.slane %v249, 1
      %305 = vrot.lane.b32.xlu0 %v300, 96
      %v306 = vpop.permute.xlu0 %305
      %307 = vrot.lane.b32.xlu0 %v301, 96
      %v308 = vpop.permute.xlu0 %307
      %309 = vrot.lane.b32.xlu0 %v302, 96
      %v310 = vpop.permute.xlu0 %309
      %311 = vrot.lane.b32.xlu0 %v303, 96
      %v312 = vpop.permute.xlu0 %311
      %313 = vrot.lane.b32.xlu0 %v304, 96
      %v314 = vpop.permute.xlu0 %313
      %vm315 = vcmask 392192
      %v317 = vsel %vm315, %v245, %v286
      %v319 = vsel %vm315, %v246, %v288
      %v321 = vsel %vm315, %v247, %v290
      %v323 = vsel %vm315, %v248, %v292
      %v325 = vsel %vm315, %v249, %v294
      %vm326 = vcmask 785408
      %v328 = vsel %vm326, %v317, %v306
      %v330 = vsel %vm326, %v319, %v308
      %v332 = vsel %vm326, %v321, %v310
      %v334 = vsel %vm326, %v323, %v312
      %v336 = vsel %vm326, %v325, %v314
      %v342 = vcombine.low %v328, %v306
      %v344 = vunpack.c.l.s4 1983009808
      %v345 = vunpack.c.0.s8 %v344
      %v346 = vlaneseq
      %v347 = vshrl.u32 %v346, 7
      %v348 = vsub.s32 %v345, %v347
      %v349 = vrot.slane %v342, %v348
      %v350 = vcombine.low %v330, %v308
      %v352 = vunpack.c.l.s4 1983009808
      %v353 = vunpack.c.0.s8 %v352
      %v354 = vlaneseq
      %v355 = vshrl.u32 %v354, 7
      %v356 = vsub.s32 %v353, %v355
      %v357 = vrot.slane %v350, %v356
      %v358 = vcombine.low %v332, %v310
      %v360 = vunpack.c.l.s4 1983009808
      %v361 = vunpack.c.0.s8 %v360
      %v362 = vlaneseq
      %v363 = vshrl.u32 %v362, 7
      %v364 = vsub.s32 %v361, %v363
      %v365 = vrot.slane %v358, %v364
      %v366 = vcombine.low %v334, %v312
      %v368 = vunpack.c.l.s4 1983009808
      %v369 = vunpack.c.0.s8 %v368
      %v370 = vlaneseq
      %v371 = vshrl.u32 %v370, 7
      %v372 = vsub.s32 %v369, %v371
      %v373 = vrot.slane %v366, %v372
      %v374 = vcombine.low %v336, %v314
      %v376 = vunpack.c.l.s4 1983009808
      %v377 = vunpack.c.0.s8 %v376
      %v378 = vlaneseq
      %v379 = vshrl.u32 %v378, 7
      %v380 = vsub.s32 %v377, %v379
      %v381 = vrot.slane %v374, %v380
      %v382 = vcombine.low %v349, %v357
      %v383 = vcombine.low %v365, %v373
      %v385 = vunpack.c.l.s4 1983009808
      %v386 = vunpack.c.0.s8 %v385
      %v387 = vlaneseq
      %v388 = vshrl.u32 %v387, 7
      %v389 = vsub.s32 %v386, %v388
      %v390 = vrot.slane %v382, %v389
      %v392 = vunpack.c.l.s4 1983009808
      %v393 = vunpack.c.0.s8 %v392
      %v394 = vlaneseq
      %v395 = vshrl.u32 %v394, 7
      %v396 = vsub.s32 %v393, %v395
      %v397 = vrot.slane %v383, %v396
      %v398 = vcombine.low %v390, %v397
      %v399 = vcombine.high %v390, %v397
      %v400 = vcombine.low %v381, %v349
      %v402 = vunpack.c.l.s4 1983009808
      %v403 = vunpack.c.0.s8 %v402
      %v404 = vlaneseq
      %v405 = vshrl.u32 %v404, 7
      %v406 = vsub.s32 %v403, %v405
      %v407 = vrot.slane %v400, %v406
      %v408 = vcombine.high %v407, %v407
      %v429 = vunpack.c.l.b16 %v176
      %v430 = vunpack.c.l.b16 %v177
      %v431 = vunpack.c.l.b16 %v178
      %v432 = vunpack.c.l.b16 %v179
      %v433 = vunpack.c.l.b16 %v180
      %v434 = vunpack.c.l.b16 %v181
      %v435 = vunpack.c.l.b16 %v182
      %v436 = vunpack.c.l.b16 %v183
      %v437 = vunpack.c.l.b16 %v184
      %v438 = vunpack.c.l.b16 %v185
      %v439 = vunpack.c.l.b16 %v186
      %v440 = vunpack.c.l.b16 %v187
      %v441 = vunpack.c.l.b16 %v188
      %v442 = vunpack.c.l.b16 %v189
      %v443 = vunpack.c.l.b16 %v190
      %v444 = vunpack.c.l.b16 %v191
      %v445 = vunpack.c.l.b16 %v192
      %v446 = vunpack.c.l.b16 %v193
      %v447 = vpack.c.b16 %v430, %v429
      %v448 = vpack.c.b16 %v432, %v431
      %v449 = vpack.c.b16 %v434, %v433
      %v450 = vpack.c.b16 %v436, %v435
      %v451 = vpack.c.b16 %v438, %v437
      %v452 = vpack.c.b16 %v440, %v439
      %v453 = vpack.c.b16 %v442, %v441
      %v454 = vpack.c.b16 %v444, %v443
      %v455 = vpack.c.b16 %v446, %v445
      %vm465 = vcmask 130048
      %v467 = vsel %vm465, %v399, 0
      %v470 = vsel %vm465, %v408, 0
      %472 = vmatprep.subr.bf16.mxu0 0
      %473 = vmatpush1.bf16.msra.mxu0 %v454
      %474 = vmatprep.subr.bf16.mxu0 0
      %475 = vmatpush1.bf16.msra.mxu0 %v453
      %476 = vmatprep.subr.bf16.mxu0 0
      %477 = vmatpush1.bf16.msra.mxu0 %v452
      %478 = vmatprep.subr.bf16.mxu0 0
      %479 = vmatpush1.bf16.msra.mxu0 %v451
      %480 = vmatprep.subr.bf16.mxu0 0
      %481 = vmatpush1.bf16.msra.mxu0 %v450
      %482 = vmatprep.subr.bf16.mxu0 0
      %483 = vmatpush1.bf16.msra.mxu0 %v449
      %484 = vmatprep.subr.bf16.mxu0 0
      %485 = vmatpush1.bf16.msra.mxu0 %v448
      %486 = vmatprep.subr.bf16.mxu0 0
      %487 = vmatpush1.bf16.msra.mxu0 %v447
      %488 = vmatprep.subr.bf16.mxu0 0
      %489 = vmatpush2.bf16.msra.mxu0 0
      %490 = vmatprep.subr.bf16.mxu0 0
      %491 = vmatpush2.bf16.msra.mxu0 0
      %492 = vmatprep.subr.bf16.mxu0 0
      %493 = vmatpush2.bf16.msra.mxu0 0
      %494 = vmatprep.subr.bf16.mxu0 0
      %495 = vmatpush2.bf16.msra.mxu0 0
      %496 = vmatprep.subr.bf16.mxu0 0
      %497 = vmatpush2.bf16.msra.mxu0 0
      %498 = vmatprep.subr.bf16.mxu0 0
      %499 = vmatpush2.bf16.msra.mxu0 0
      %500 = vmatprep.subr.bf16.mxu0 0
      %501 = vmatpush2.bf16.msra.mxu0 0
      %502 = vmatprep.subr.bf16.mxu0 0
      %503 = vmatpush2.bf16.msra.mxu0 %v455
      %504 = vmatprep.mubr.bf16.mxu0 %v467
      %505 = vmatmul.mubr.bf16.gmra.mxu0 %v398
      %v506 = vpop.f32.mrf.mxu0
      %v507 = vadd.f32 0.0, %v506
      %v508 = vpop.f32.mrf.mxu0
      %v509 = vpop.f32.mrf.mxu0
      %v510 = vadd.f32 0.0, %v509
      %v511 = vpop.f32.mrf.mxu0
      %512 = vmatprep.mubr.bf16.mxu0 %v470
      %513 = vmatmul.mubr.bf16.gmra.mxu0 %v407
      %v514 = vpop.f32.mrf.mxu0
      %v515 = vadd.f32 0.0, %v514
      %v516 = vpop.f32.mrf.mxu0
      %v517 = vpop.f32.mrf.mxu0
      %v518 = vpop.f32.mrf.mxu0
      %519 = vdwg.mxu0
      %v523 = vcombine.high %v507, %v507
      %v524 = vcombine.high %v510, %v510
      %v525 = vcombine.high %v515, %v515
      %528 = vrot.lane.b32.xlu0 %v523, 96
      %v529 = vpop.permute.xlu0 %528
      %530 = vrot.lane.b32.xlu0 %v510, 96
      %v531 = vpop.permute.xlu0 %530
      %532 = vrot.lane.b32.xlu0 %v524, 96
      %v533 = vpop.permute.xlu0 %532
      %534 = vrot.lane.b32.xlu0 %v515, 96
      %v535 = vpop.permute.xlu0 %534
      %v540 = vadd.f32 %v507, %v529
      %v541 = vadd.f32 %v523, %v531
      %v542 = vadd.f32 %v510, %v533
      %v543 = vadd.f32 %v524, %v535
      %544 = vrot.lane.b32.xlu0 %v510, 64
      %v545 = vpop.permute.xlu0 %544
      %546 = vrot.lane.b32.xlu0 %v524, 64
      %v547 = vpop.permute.xlu0 %546
      %548 = vrot.lane.b32.xlu0 %v515, 64
      %v549 = vpop.permute.xlu0 %548
      %550 = vrot.lane.b32.xlu0 %v525, 64
      %v551 = vpop.permute.xlu0 %550
      %v556 = vadd.f32 %v540, %v545
      %v557 = vadd.f32 %v541, %v547
      %v558 = vadd.f32 %v542, %v549
      %v559 = vadd.f32 %v543, %v551
      %v560 = vld [vmem:[%s2] sm:$0x1]
      %v562 = vlaneseq
      %v563 = vshrl.u32 %v562, 7
      %v564 = vsub.s32 0, %v563
      %v565 = vrot.slane %v560, %v564
      %v567 = vadd.f32 %v556, %v565
      %v568 = vadd.f32 %v557, %v565
      %v569 = vadd.f32 %v558, %v565
      %v570 = vadd.f32 %v559, %v565
      %v571 = vpack.c.bf16 %v567, %v567
      %v572 = vpack.c.bf16 %v568, %v568
      %v573 = vpack.c.bf16 %v569, %v569
      %v574 = vpack.c.bf16 %v570, %v570
      %vm575 = vcmask 254976
      %576 = vst.msk [vmem:[%s170] sm:$0x3] %vm575, %v571
      %577 = vst.msk [vmem:[%s170 + $0x2] sm:$0x3] %vm575, %v572
      %578 = vst.msk [vmem:[%s170 + $0x4] sm:$0x3] %vm575, %v573
      %579 = vst.msk [vmem:[%s170 + $0x6] sm:$0x3] %vm575, %v574
      %p580 = scmp.lt.s32.totalorder %s14, 1
      %s581 = scalar_select %p580, %s14, 1
      %s582 = smul.addr %s581, 4
      %s583 = smul.addr %s582, 2
      %s584 = scalar_lea.vmem %s3, %s583
      // Predicated region
      $region33: #{han_forward.13} parent=31 // pred_check
        %p585 = pneg %p100
      $region34: #{han_forward.13} parent=31 // pred_check_branch
        %587 = sbr.rel (%p585) target = $region36
      $region35: #{han_forward.13} parent=31 // pred_region
        _
      $region36: #{han_forward.13} parent=31 // pred_fallthru
        _
    $region32: #{han_forward.13} parent=5 // pred_fallthru
      _
    %p588 = scmp.le.s32.totalorder 2, %s9
    // Predicated region
    $region37: #{han_forward.13} parent=5 // pred_check
      %p589 = pneg %p588
    $region38: #{han_forward.13} parent=5 // pred_check_branch
      %591 = sbr.rel (%p589) target = $region40
    $region39: #{han_forward.13} parent=5 // pred_region
      %s592 = ssub.s32 %s9, 2
      // Predicated region
      $region41: #{han_forward.13} parent=39 // pred_check
        %p593 = pneg %p106
      $region42: #{han_forward.13} parent=39 // pred_check_branch
        %595 = sbr.rel (%p593) target = $region44
      $region43: #{han_forward.13} parent=39 // pred_region
        %p596 = scmp.lt.s32.totalorder %s15, 1
        %s597 = scalar_select %p596, %s15, 1
        %s598 = smul.addr %s597, 4
        %s599 = smul.addr %s598, 2
        %s600 = scalar_lea.vmem %s3, %s599
      $region44: #{han_forward.13} parent=39 // pred_fallthru
        _
    $region40: #{han_forward.13} parent=5 // pred_fallthru
      _
  $region6: #{han_forward.13} parent=0 // loop_footer
    %s13 = sadd.s32 1, %s9
  $region7: #{han_forward.13} parent=0 // loop_footer_branch
    %8 = sbr.rel target = $region3
  $region8: #{han_forward.13} parent=0 // loop_exit
    _

// kernel: han_forward.15
$region0: #{han_forward.15}
  #allocation0 [shape = 'u32[]', space=smem, size = 0x4, offset = 0x4, fixed_abs, tag = 'smem constant byte address 0x4 - core index']
  #allocation1 [shape = 'u32[144,128]{1,0:T(1,128)}', space=vmem, size = 0x12000, scoped, tag = 'internal scratch']
  %s0 = inlined_call_operand.vmem [shape: bf16[2,4,4,32], index: 0, kind: input, shape index: {}]
  %s1 = inlined_call_operand.vmem [shape: bf16[96,96], index: 1, kind: input, shape index: {}]
  %s2 = inlined_call_operand.vmem [shape: f32[1,32], index: 2, kind: input, shape index: {}]
  %s3 = inlined_call_operand.vmem [shape: bf16[2,4,4,32], index: 3, kind: input, shape index: {}]
  %s4 = inlined_call_operand.vmem [shape: bf16[2,4,4,32], index: 4, kind: output, shape index: {}]
  %s5 = sld [smem:[#allocation0]]
  $region49: #{han_forward.15} parent=0
    _
  %s7 = ssub.s32 1, %s5
  %s8 = scalar_select 0, %s7, %s5
  loop: start=0, step=1, limit=4
  $region2: #{han_forward.15} parent=0 // loop_pre_header
    _
  $region3: #{han_forward.15} parent=0 // loop_header
    %s10 = sphi 0, %s14
    %p11 = scmp.ge.s32.totalorder %s10, 4
    %s20 = sphi 0, %s22
    %s23 = sphi 0, %s20
    %s24 = sphi 0, %s23
    %s40 = sphi 0, %s24
    %s44 = sphi 0, %s44
    %s46 = sphi 0, %s44
    %s47 = sphi 0, %s46
    %s61 = sphi 0, %s47
    %s65 = sphi 0, %s65
    %s67 = sphi 0, %s65
    %s68 = sphi 0, %s67
    %s82 = sphi 0, %s68
    %s88 = sphi 0, %s90
    %s91 = sphi 0, %s88
    %s92 = sphi 0, %s91
    %s108 = sphi 0, %s92
    %s114 = sphi 0, %s116
    %s117 = sphi 0, %s114
    %s118 = sphi 0, %s117
    %s134 = sphi 0, %s118
  $region4: #{han_forward.15} parent=0 // loop_header_branch
    %13 = sbr.rel (%p11) target = $region8
  $region5: #{han_forward.15} parent=0 // loop_body
    %s15 = ssub.s32 %s10, 1
    %s16 = ssub.s32 %s10, 2
    %s17 = sadd.s32 %s10, 1
    %s18 = ssub.s32 %s10, %s17
    %p19 = scmp.eq.s32.totalorder %s18, 0
    %s21 = sadd.s32 %s20, 1
    %s22 = scalar_select %p19, %s20, %s21
    %p25 = pneg %p19
    %p26 = scmp.eq.s32.totalorder %s10, 1
    %p27 = por %p25, %p26
    %p28 = scmp.ne.s32.totalorder %s20, %s23
    %p29 = scmp.eq.s32.totalorder %s10, 0
    %p30 = por %p28, %p29
    %p31 = scmp.ne.s32.totalorder %s20, %s23
    %p32 = scmp.eq.s32.totalorder %s15, 1
    %p33 = por %p31, %p32
    %p34 = scmp.ne.s32.totalorder %s23, %s24
    %p35 = scmp.eq.s32.totalorder %s15, 0
    %p36 = por %p34, %p35
    %p37 = scmp.ne.s32.totalorder %s23, %s24
    %p38 = scmp.eq.s32.totalorder %s16, 1
    %p39 = por %p37, %p38
    %p41 = scmp.ne.s32.totalorder %s24, %s40
    %p42 = scmp.eq.s32.totalorder %s16, 0
    %p43 = por %p41, %p42
    %s45 = sadd.s32 %s44, 1
    %p48 = scmp.eq.s32.totalorder %s10, 1
    %p49 = scmp.ne.s32.totalorder %s44, %s46
    %p50 = scmp.eq.s32.totalorder %s10, 0
    %p51 = por %p49, %p50
    %p52 = scmp.ne.s32.totalorder %s44, %s46
    %p53 = scmp.eq.s32.totalorder %s15, 1
    %p54 = por %p52, %p53
    %p55 = scmp.ne.s32.totalorder %s46, %s47
    %p56 = scmp.eq.s32.totalorder %s15, 0
    %p57 = por %p55, %p56
    %p58 = scmp.ne.s32.totalorder %s46, %s47
    %p59 = scmp.eq.s32.totalorder %s16, 1
    %p60 = por %p58, %p59
    %p62 = scmp.ne.s32.totalorder %s47, %s61
    %p63 = scmp.eq.s32.totalorder %s16, 0
    %p64 = por %p62, %p63
    %s66 = sadd.s32 %s65, 1
    %p69 = scmp.eq.s32.totalorder %s10, 1
    %p70 = scmp.ne.s32.totalorder %s65, %s67
    %p71 = scmp.eq.s32.totalorder %s10, 0
    %p72 = por %p70, %p71
    %p73 = scmp.ne.s32.totalorder %s65, %s67
    %p74 = scmp.eq.s32.totalorder %s15, 1
    %p75 = por %p73, %p74
    %p76 = scmp.ne.s32.totalorder %s67, %s68
    %p77 = scmp.eq.s32.totalorder %s15, 0
    %p78 = por %p76, %p77
    %p79 = scmp.ne.s32.totalorder %s67, %s68
    %p80 = scmp.eq.s32.totalorder %s16, 1
    %p81 = por %p79, %p80
    %p83 = scmp.ne.s32.totalorder %s68, %s82
    %p84 = scmp.eq.s32.totalorder %s16, 0
    %p85 = por %p83, %p84
    %s86 = ssub.s32 %s10, %s17
    %p87 = scmp.eq.s32.totalorder %s86, 0
    %s89 = sadd.s32 %s88, 1
    %s90 = scalar_select %p87, %s88, %s89
    %p93 = pneg %p87
    %p94 = scmp.eq.s32.totalorder %s10, 1
    %p95 = por %p93, %p94
    %p96 = scmp.ne.s32.totalorder %s88, %s91
    %p97 = scmp.eq.s32.totalorder %s10, 0
    %p98 = por %p96, %p97
    %p99 = scmp.ne.s32.totalorder %s88, %s91
    %p100 = scmp.eq.s32.totalorder %s15, 1
    %p101 = por %p99, %p100
    %p102 = scmp.ne.s32.totalorder %s91, %s92
    %p103 = scmp.eq.s32.totalorder %s15, 0
    %p104 = por %p102, %p103
    %p105 = scmp.ne.s32.totalorder %s91, %s92
    %p106 = scmp.eq.s32.totalorder %s16, 1
    %p107 = por %p105, %p106
    %p109 = scmp.ne.s32.totalorder %s92, %s108
    %p110 = scmp.eq.s32.totalorder %s16, 0
    %p111 = por %p109, %p110
    %s112 = ssub.s32 %s10, %s17
    %p113 = scmp.eq.s32.totalorder %s112, 0
    %s115 = sadd.s32 %s114, 1
    %s116 = scalar_select %p113, %s114, %s115
    %p119 = pneg %p113
    %p120 = scmp.eq.s32.totalorder %s10, 1
    %p121 = por %p119, %p120
    %p122 = scmp.ne.s32.totalorder %s114, %s117
    %p123 = scmp.eq.s32.totalorder %s10, 0
    %p124 = por %p122, %p123
    %p125 = scmp.ne.s32.totalorder %s114, %s117
    %p126 = scmp.eq.s32.totalorder %s15, 1
    %p127 = por %p125, %p126
    %p128 = scmp.ne.s32.totalorder %s117, %s118
    %p129 = scmp.eq.s32.totalorder %s15, 0
    %p130 = por %p128, %p129
    %p131 = scmp.ne.s32.totalorder %s117, %s118
    %p132 = scmp.eq.s32.totalorder %s16, 1
    %p133 = por %p131, %p132
    %p135 = scmp.ne.s32.totalorder %s118, %s134
    %p136 = scmp.eq.s32.totalorder %s16, 0
    %p137 = por %p135, %p136
    %p138 = scmp.le.s32.totalorder 1, %s10
    %p139 = scmp.lt.s32.totalorder %s10, 3
    %p140 = pnand %p138, %p139
    %p141 = pneg %p140
    // Predicated region
    $region9: #{han_forward.15} parent=5 // pred_check
      _
    $region10: #{han_forward.15} parent=5 // pred_check_branch
      %143 = sbr.rel (%p140) target = $region12
    $region11: #{han_forward.15} parent=5 // pred_region
      %s144 = ssub.s32 %s10, 1
      // Predicated region
      $region13: #{han_forward.15} parent=11 // pred_check
        %p145 = pneg %p57
      $region14: #{han_forward.15} parent=11 // pred_check_branch
        %147 = sbr.rel (%p145) target = $region16
      $region15: #{han_forward.15} parent=11 // pred_region
        _
      $region16: #{han_forward.15} parent=11 // pred_fallthru
        _
      // Predicated region
      $region17: #{han_forward.15} parent=11 // pred_check
        %p148 = pneg %p78
      $region18: #{han_forward.15} parent=11 // pred_check_branch
        %150 = sbr.rel (%p148) target = $region20
      $region19: #{han_forward.15} parent=11 // pred_region
        _
      $region20: #{han_forward.15} parent=11 // pred_fallthru
        _
    $region12: #{han_forward.15} parent=5 // pred_fallthru
      _
    %p151 = scmp.lt.s32.totalorder %s10, 2
    // Predicated region
    $region21: #{han_forward.15} parent=5 // pred_check
      %p152 = pneg %p151
    $region22: #{han_forward.15} parent=5 // pred_check_branch
      %154 = sbr.rel (%p152) target = $region24
    $region23: #{han_forward.15} parent=5 // pred_region
      // Predicated region
      $region25: #{han_forward.15} parent=23 // pred_check
        %p155 = pneg %p30
      $region26: #{han_forward.15} parent=23 // pred_check_branch
        %157 = sbr.rel (%p155) target = $region28
      $region27: #{han_forward.15} parent=23 // pred_region
        %p158 = scmp.lt.s32.totalorder %s10, 1
        %s159 = scalar_select %p158, %s10, 1
        %s160 = smul.addr %s159, 4
        %s161 = smul.addr %s160, 2
        %s162 = scalar_lea.vmem %s0, %s161
      $region28: #{han_forward.15} parent=23 // pred_fallthru
        _
      // Predicated region
      $region29: #{han_forward.15} parent=23 // pred_check
        %p163 = pneg %p98
      $region30: #{han_forward.15} parent=23 // pred_check_branch
        %165 = sbr.rel (%p163) target = $region32
      $region31: #{han_forward.15} parent=23 // pred_region
        %p166 = scmp.lt.s32.totalorder %s10, 1
        %s167 = scalar_select %p166, %s10, 1
        %s168 = smul.addr %s167, 4
        %s169 = smul.addr %s168, 2
        %s170 = scalar_lea.vmem %s3, %s169
      $region32: #{han_forward.15} parent=23 // pred_fallthru
        _
    $region24: #{han_forward.15} parent=5 // pred_fallthru
      _
    %p171 = scmp.le.s32.totalorder 1, %s10
    %p172 = scmp.lt.s32.totalorder %s10, 3
    %p173 = pnand %p171, %p172
    %p174 = pneg %p173
    // Predicated region
    $region33: #{han_forward.15} parent=5 // pred_check
      _
    $region34: #{han_forward.15} parent=5 // pred_check_branch
      %176 = sbr.rel (%p173) target = $region36
    $region35: #{han_forward.15} parent=5 // pred_region
      %s177 = ssub.s32 %s10, 1
      %p178 = scmp.lt.s32.totalorder %s15, 1
      %s179 = scalar_select %p178, %s15, 1
      %s180 = smul.addr %s179, 4
      %s181 = smul.addr %s180, 2
      %s182 = scalar_lea.vmem %s0, %s181
      %p183 = pneg %p36
      %p184 = pneg %p33
      %p185 = pneg %p57
      %p186 = pneg %p54
      %p187 = pneg %p78
      %p188 = pneg %p75
      %p189 = scmp.lt.s32.totalorder %s15, 1
      %s190 = scalar_select %p189, %s15, 1
      %s191 = smul.addr %s190, 4
      %s192 = smul.addr %s191, 2
      %s193 = scalar_lea.vmem %s3, %s192
      %p194 = pneg %p104
      %p195 = pneg %p101
      %p196 = pneg %p130
      %p197 = pneg %p127
      %p198 = scmp.lt.s32.totalorder %s15, 1
      %s199 = scalar_select %p198, %s15, 1
      %s200 = smul.addr %s199, 4
      %s201 = smul.addr %s200, 2
      %s202 = scalar_lea.vmem %s4, %s201
      %p203 = scmp.lt.s32.totalorder %s15, 1
      %s204 = scalar_select %p203, %s15, 1
      %s205 = smul.addr %s204, 4
      %s206 = smul.addr %s205, 2
      %s207 = scalar_lea.vmem %s0, %s206
      %p208 = scmp.lt.s32.totalorder %s15, 1
      %s209 = scalar_select %p208, %s15, 1
      %s210 = smul.addr %s209, 4
      %s211 = smul.addr %s210, 2
      %s212 = scalar_lea.vmem %s3, %s211
      %p213 = scmp.lt.s32.totalorder %s15, 1
      %s214 = scalar_select %p213, %s15, 1
      %s215 = smul.addr %s214, 4
      %s216 = smul.addr %s215, 2
      %s217 = scalar_lea.vmem %s4, %s216
      %v219 = vld [vmem:[%s207] sm:$0x3]
      %v220 = vld [vmem:[%s207 + $0x2] sm:$0x3]
      %v221 = vld [vmem:[%s207 + $0x4] sm:$0x3]
      %v222 = vld [vmem:[%s207 + $0x6] sm:$0x3]
      %v223 = vld [vmem:[%s1] sm:$0xf]
      %v224 = vld [vmem:[%s1 + $0x4] sm:$0xf]
      %v225 = vld [vmem:[%s1 + $0x8] sm:$0xf]
      %v226 = vld [vmem:[%s1 + $0xc] sm:$0xf]
      %v227 = vld [vmem:[%s1 + $0x10] sm:$0xf]
      %v228 = vld [vmem:[%s1 + $0x14] sm:$0xf]
      %v229 = vld [vmem:[%s1 + $0x18] sm:$0xf]
      %v230 = vld [vmem:[%s1 + $0x1c] sm:$0xf]
      %v231 = vld [vmem:[%s1 + $0x20] sm:$0xf]
      %v232 = vld [vmem:[%s1 + $0x24] sm:$0xf]
      %v233 = vld [vmem:[%s1 + $0x28] sm:$0xf]
      %v234 = vld [vmem:[%s1 + $0x2c] sm:$0xf]
      %v236 = vshrl.u32 0, 16
      %v238 = vrot.slane %v236, 7
      %v239 = vshll.u32 0, 16
      %v241 = vor.u32 %v238, %v239
      %v243 = vshrl.u32 %v219, 16
      %v245 = vrot.slane %v243, 7
      %v246 = vshll.u32 %v219, 16
      %v248 = vor.u32 %v245, %v246
      %v250 = vshrl.u32 %v220, 16
      %v252 = vrot.slane %v250, 7
      %v253 = vshll.u32 %v220, 16
      %v255 = vor.u32 %v252, %v253
      %v257 = vshrl.u32 %v221, 16
      %v259 = vrot.slane %v257, 7
      %v260 = vshll.u32 %v221, 16
      %v262 = vor.u32 %v259, %v260
      %v264 = vshrl.u32 %v222, 16
      %v266 = vrot.slane %v264, 7
      %v267 = vshll.u32 %v222, 16
      %v269 = vor.u32 %v266, %v267
      %vm275 = vcmask 1040384
      %vm276 = vsmask.f32 256
      %vm277 = vmand %vm275, %vm276
      %v278 = vsel %vm277, 0, %v241
      %v279 = vsel %vm277, 0, %v248
      %v280 = vsel %vm277, 0, %v255
      %v281 = vsel %vm277, 0, %v262
      %v282 = vsel %vm277, 0, %v269
      %vm283 = vcmask 1042432
      %vm284 = vsmask.f32 2304
      %vm285 = vmand %vm283, %vm284
      %v286 = vsel %vm285, %v278, 0
      %v287 = vsel %vm285, %v279, 0
      %v288 = vsel %vm285, %v280, 0
      %v289 = vsel %vm285, %v281, 0
      %v290 = vsel %vm285, %v282, 0
      %v292 = vshrl.u32 %v286, 16
      %v294 = vshll.u32 %v286, 16
      %v296 = vrot.slane %v294, 1
      %v297 = vor.u32 %v292, %v296
      %v299 = vshrl.u32 %v287, 16
      %v301 = vshll.u32 %v287, 16
      %v303 = vrot.slane %v301, 1
      %v304 = vor.u32 %v299, %v303
      %v306 = vshrl.u32 %v288, 16
      %v308 = vshll.u32 %v288, 16
      %v310 = vrot.slane %v308, 1
      %v311 = vor.u32 %v306, %v310
      %v313 = vshrl.u32 %v289, 16
      %v315 = vshll.u32 %v289, 16
      %v317 = vrot.slane %v315, 1
      %v318 = vor.u32 %v313, %v317
      %v320 = vshrl.u32 %v290, 16
      %v322 = vshll.u32 %v290, 16
      %v324 = vrot.slane %v322, 1
      %v325 = vor.u32 %v320, %v324
      %326 = vrot.lane.b32.xlu0 %v297, 32
      %v327 = vpop.permute.xlu0 %326
      %328 = vrot.lane.b32.xlu0 %v304, 32
      %v329 = vpop.permute.xlu0 %328
      %330 = vrot.lane.b32.xlu0 %v311, 32
      %v331 = vpop.permute.xlu0 %330
      %332 = vrot.lane.b32.xlu0 %v318, 32
      %v333 = vpop.permute.xlu0 %332
      %334 = vrot.lane.b32.xlu0 %v325, 32
      %v335 = vpop.permute.xlu0 %334
      %v341 = vrot.slane %v286, 1
      %v342 = vrot.slane %v287, 1
      %v343 = vrot.slane %v288, 1
      %v344 = vrot.slane %v289, 1
      %v345 = vrot.slane %v290, 1
      %346 = vrot.lane.b32.xlu0 %v341, 64
      %v347 = vpop.permute.xlu0 %346
      %348 = vrot.lane.b32.xlu0 %v342, 64
      %v349 = vpop.permute.xlu0 %348
      %350 = vrot.lane.b32.xlu0 %v343, 64
      %v351 = vpop.permute.xlu0 %350
      %352 = vrot.lane.b32.xlu0 %v344, 64
      %v353 = vpop.permute.xlu0 %352
      %354 = vrot.lane.b32.xlu0 %v345, 64
      %v355 = vpop.permute.xlu0 %354
      %vm356 = vcmask 261120
      %v358 = vsel %vm356, %v286, %v327
      %v360 = vsel %vm356, %v287, %v329
      %v362 = vsel %vm356, %v288, %v331
      %v364 = vsel %vm356, %v289, %v333
      %v366 = vsel %vm356, %v290, %v335
      %vm367 = vcmask 523264
      %v369 = vsel %vm367, %v358, %v347
      %v371 = vsel %vm367, %v360, %v349
      %v373 = vsel %vm367, %v362, %v351
      %v375 = vsel %vm367, %v364, %v353
      %v377 = vsel %vm367, %v366, %v355
      %v383 = vcombine.low %v369, %v371
      %v384 = vcombine.low %v373, %v375
      %v386 = vunpack.c.l.s4 1983009808
      %v387 = vunpack.c.0.s8 %v386
      %v388 = vlaneseq
      %v389 = vshrl.u32 %v388, 7
      %v390 = vsub.s32 %v387, %v389
      %v391 = vrot.slane %v383, %v390
      %v393 = vunpack.c.l.s4 1983009808
      %v394 = vunpack.c.0.s8 %v393
      %v395 = vlaneseq
      %v396 = vshrl.u32 %v395, 7
      %v397 = vsub.s32 %v394, %v396
      %v398 = vrot.slane %v384, %v397
      %v399 = vcombine.low %v391, %v398
      %v400 = vcombine.low %v377, %v369
      %v402 = vunpack.c.l.s4 1983009808
      %v403 = vunpack.c.0.s8 %v402
      %v404 = vlaneseq
      %v405 = vshrl.u32 %v404, 7
      %v406 = vsub.s32 %v403, %v405
      %v407 = vrot.slane %v400, %v406
      %v420 = vunpack.c.l.b16 %v223
      %v421 = vunpack.c.l.b16 %v224
      %v422 = vunpack.c.l.b16 %v225
      %v423 = vunpack.c.l.b16 %v226
      %v424 = vunpack.c.l.b16 %v227
      %v425 = vunpack.c.l.b16 %v228
      %v426 = vunpack.c.l.b16 %v229
      %v427 = vunpack.c.l.b16 %v230
      %v428 = vunpack.c.l.b16 %v231
      %v429 = vunpack.c.l.b16 %v232
      %v430 = vunpack.c.l.b16 %v233
      %v431 = vunpack.c.l.b16 %v234
      %v432 = vpack.c.b16 %v421, %v420
      %v433 = vpack.c.b16 %v423, %v422
      %v434 = vpack.c.b16 %v425, %v424
      %v435 = vpack.c.b16 %v427, %v426
      %v436 = vpack.c.b16 %v429, %v428
      %v437 = vpack.c.b16 %v431, %v430
      %vm444 = vcmask 785408
      %v446 = vsel %vm444, %v399, 0
      %v449 = vsel %vm444, %v407, 0
      %451 = vmatprep.subr.bf16.mxu0 0
      %452 = vmatpush1.bf16.msra.mxu0 0
      %453 = vmatprep.subr.bf16.mxu0 0
      %454 = vmatpush1.bf16.msra.mxu0 0
      %455 = vmatprep.subr.bf16.mxu0 0
      %456 = vmatpush1.bf16.msra.mxu0 %v437
      %457 = vmatprep.subr.bf16.mxu0 0
      %458 = vmatpush1.bf16.msra.mxu0 %v436
      %459 = vmatprep.subr.bf16.mxu0 0
      %460 = vmatpush1.bf16.msra.mxu0 %v435
      %461 = vmatprep.subr.bf16.mxu0 0
      %462 = vmatpush1.bf16.msra.mxu0 %v434
      %463 = vmatprep.subr.bf16.mxu0 0
      %464 = vmatpush1.bf16.msra.mxu0 %v433
      %465 = vmatprep.subr.bf16.mxu0 0
      %466 = vmatpush1.bf16.msra.mxu0 %v432
      %467 = vmatprep.subr.bf16.mxu0 0
      %468 = vmatpush2.bf16.msra.mxu0 0
      %469 = vmatprep.subr.bf16.mxu0 0
      %470 = vmatpush2.bf16.msra.mxu0 0
      %471 = vmatprep.subr.bf16.mxu0 0
      %472 = vmatpush2.bf16.msra.mxu0 0
      %473 = vmatprep.subr.bf16.mxu0 0
      %474 = vmatpush2.bf16.msra.mxu0 0
      %475 = vmatprep.subr.bf16.mxu0 0
      %476 = vmatpush2.bf16.msra.mxu0 0
      %477 = vmatprep.subr.bf16.mxu0 0
      %478 = vmatpush2.bf16.msra.mxu0 0
      %479 = vmatprep.subr.bf16.mxu0 0
      %480 = vmatpush2.bf16.msra.mxu0 0
      %481 = vmatprep.subr.bf16.mxu0 0
      %482 = vmatpush2.bf16.msra.mxu0 0
      %483 = vmatprep.mubr.bf16.mxu0 0
      %484 = vmatmul.mubr.bf16.gmra.mxu0 %v446
      %v485 = vpop.f32.mrf.mxu0
      %v486 = vadd.f32 0.0, %v485
      %v487 = vpop.f32.mrf.mxu0
      %v488 = vpop.f32.mrf.mxu0
      %v489 = vadd.f32 0.0, %v488
      %v490 = vpop.f32.mrf.mxu0
      %491 = vmatprep.mubr.bf16.mxu0 0
      %492 = vmatmul.mubr.bf16.gmra.mxu0 %v449
      %v493 = vpop.f32.mrf.mxu0
      %v494 = vadd.f32 0.0, %v493
      %v495 = vpop.f32.mrf.mxu0
      %v496 = vpop.f32.mrf.mxu0
      %v497 = vpop.f32.mrf.mxu0
      %498 = vdwg.mxu0
      %v502 = vcombine.high %v486, %v486
      %v503 = vcombine.high %v489, %v489
      %v504 = vcombine.high %v494, %v494
      %507 = vrot.lane.b32.xlu0 %v502, 96
      %v508 = vpop.permute.xlu0 %507
      %509 = vrot.lane.b32.xlu0 %v489, 96
      %v510 = vpop.permute.xlu0 %509
      %511 = vrot.lane.b32.xlu0 %v503, 96
      %v512 = vpop.permute.xlu0 %511
      %513 = vrot.lane.b32.xlu0 %v494, 96
      %v514 = vpop.permute.xlu0 %513
      %v519 = vadd.f32 %v486, %v508
      %v520 = vadd.f32 %v502, %v510
      %v521 = vadd.f32 %v489, %v512
      %v522 = vadd.f32 %v503, %v514
      %523 = vrot.lane.b32.xlu0 %v489, 64
      %v524 = vpop.permute.xlu0 %523
      %525 = vrot.lane.b32.xlu0 %v503, 64
      %v526 = vpop.permute.xlu0 %525
      %527 = vrot.lane.b32.xlu0 %v494, 64
      %v528 = vpop.permute.xlu0 %527
      %529 = vrot.lane.b32.xlu0 %v504, 64
      %v530 = vpop.permute.xlu0 %529
      %v535 = vadd.f32 %v519, %v524
      %v536 = vadd.f32 %v520, %v526
      %v537 = vadd.f32 %v521, %v528
      %v538 = vadd.f32 %v522, %v530
      %v539 = vld [vmem:[%s2] sm:$0x1]
      %v541 = vlaneseq
      %v542 = vshrl.u32 %v541, 7
      %v543 = vsub.s32 0, %v542
      %v544 = vrot.slane %v539, %v543
      %v546 = vadd.f32 %v535, %v544
      %v547 = vadd.f32 %v536, %v544
      %v548 = vadd.f32 %v537, %v544
      %v549 = vadd.f32 %v538, %v544
      %v550 = vld [vmem:[%s212] sm:$0x3]
      %v551 = vld [vmem:[%s212 + $0x2] sm:$0x3]
      %v552 = vld [vmem:[%s212 + $0x4] sm:$0x3]
      %v553 = vld [vmem:[%s212 + $0x6] sm:$0x3]
      %v554 = vunpack.c.l.bf16 %v550
      %v555 = vunpack.c.l.bf16 %v551
      %v556 = vunpack.c.l.bf16 %v552
      %v557 = vunpack.c.l.bf16 %v553
      %v558 = vadd.f32 %v546, %v554
      %v559 = vadd.f32 %v547, %v555
      %v560 = vadd.f32 %v548, %v556
      %v561 = vadd.f32 %v549, %v557
      %v562 = vpack.c.bf16 %v558, %v558
      %v563 = vpack.c.bf16 %v559, %v559
      %v564 = vpack.c.bf16 %v560, %v560
      %v565 = vpack.c.bf16 %v561, %v561
      %vm566 = vcmask 254976
      %567 = vst.msk [vmem:[%s217] sm:$0x3] %vm566, %v562
      %568 = vst.msk [vmem:[%s217 + $0x2] sm:$0x3] %vm566, %v563
      %569 = vst.msk [vmem:[%s217 + $0x4] sm:$0x3] %vm566, %v564
      %570 = vst.msk [vmem:[%s217 + $0x6] sm:$0x3] %vm566, %v565
      %p571 = scmp.lt.s32.totalorder %s15, 1
      %s572 = scalar_select %p571, %s15, 1
      %s573 = smul.addr %s572, 4
      %s574 = smul.addr %s573, 2
      %s575 = scalar_lea.vmem %s4, %s574
      // Predicated region
      $region37: #{han_forward.15} parent=35 // pred_check
        %p576 = pneg %p127
      $region38: #{han_forward.15} parent=35 // pred_check_branch
        %578 = sbr.rel (%p576) target = $region40
      $region39: #{han_forward.15} parent=35 // pred_region
        _
      $region40: #{han_forward.15} parent=35 // pred_fallthru
        _
    $region36: #{han_forward.15} parent=5 // pred_fallthru
      _
    %p579 = scmp.le.s32.totalorder 2, %s10
    // Predicated region
    $region41: #{han_forward.15} parent=5 // pred_check
      %p580 = pneg %p579
    $region42: #{han_forward.15} parent=5 // pred_check_branch
      %582 = sbr.rel (%p580) target = $region44
    $region43: #{han_forward.15} parent=5 // pred_region
      %s583 = ssub.s32 %s10, 2
      // Predicated region
      $region45: #{han_forward.15} parent=43 // pred_check
        %p584 = pneg %p133
      $region46: #{han_forward.15} parent=43 // pred_check_branch
        %586 = sbr.rel (%p584) target = $region48
      $region47: #{han_forward.15} parent=43 // pred_region
        %p587 = scmp.lt.s32.totalorder %s16, 1
        %s588 = scalar_select %p587, %s16, 1
        %s589 = smul.addr %s588, 4
        %s590 = smul.addr %s589, 2
        %s591 = scalar_lea.vmem %s4, %s590
      $region48: #{han_forward.15} parent=43 // pred_fallthru
        _
    $region44: #{han_forward.15} parent=5 // pred_fallthru
      _
  $region6: #{han_forward.15} parent=0 // loop_footer
    %s14 = sadd.s32 1, %s10
  $region7: #{han_forward.15} parent=0 // loop_footer_branch
    %9 = sbr.rel target = $region3
  $region8: #{han_forward.15} parent=0 // loop_exit
    _

// kernel: han_forward.18
$region0: #{han_forward.18}
  #allocation0 [shape = 'u32[]', space=smem, size = 0x4, offset = 0x4, fixed_abs, tag = 'smem constant byte address 0x4 - core index']
  #allocation1 [shape = 'u32[144,128]{1,0:T(1,128)}', space=vmem, size = 0x12000, scoped, tag = 'internal scratch']
  %s0 = inlined_call_operand.vmem [shape: bf16[2,4,4,32], index: 0, kind: input, shape index: {}]
  %s1 = inlined_call_operand.vmem [shape: bf16[96,96], index: 1, kind: input, shape index: {}]
  %s2 = inlined_call_operand.vmem [shape: f32[1,32], index: 2, kind: input, shape index: {}]
  %s3 = inlined_call_operand.vmem [shape: bf16[2,4,4,32], index: 3, kind: output, shape index: {}]
  %s4 = sld [smem:[#allocation0]]
  $region45: #{han_forward.18} parent=0
    _
  %s6 = ssub.s32 1, %s4
  %s7 = scalar_select 0, %s6, %s4
  loop: start=0, step=1, limit=4
  $region2: #{han_forward.18} parent=0 // loop_pre_header
    _
  $region3: #{han_forward.18} parent=0 // loop_header
    %s9 = sphi 0, %s13
    %p10 = scmp.ge.s32.totalorder %s9, 4
    %s19 = sphi 0, %s21
    %s22 = sphi 0, %s19
    %s23 = sphi 0, %s22
    %s39 = sphi 0, %s23
    %s43 = sphi 0, %s43
    %s45 = sphi 0, %s43
    %s46 = sphi 0, %s45
    %s60 = sphi 0, %s46
    %s64 = sphi 0, %s64
    %s66 = sphi 0, %s64
    %s67 = sphi 0, %s66
    %s81 = sphi 0, %s67
    %s87 = sphi 0, %s89
    %s90 = sphi 0, %s87
    %s91 = sphi 0, %s90
    %s107 = sphi 0, %s91
  $region4: #{han_forward.18} parent=0 // loop_header_branch
    %12 = sbr.rel (%p10) target = $region8
  $region5: #{han_forward.18} parent=0 // loop_body
    %s14 = ssub.s32 %s9, 1
    %s15 = ssub.s32 %s9, 2
    %s16 = sadd.s32 %s9, 1
    %s17 = ssub.s32 %s9, %s16
    %p18 = scmp.eq.s32.totalorder %s17, 0
    %s20 = sadd.s32 %s19, 1
    %s21 = scalar_select %p18, %s19, %s20
    %p24 = pneg %p18
    %p25 = scmp.eq.s32.totalorder %s9, 1
    %p26 = por %p24, %p25
    %p27 = scmp.ne.s32.totalorder %s19, %s22
    %p28 = scmp.eq.s32.totalorder %s9, 0
    %p29 = por %p27, %p28
    %p30 = scmp.ne.s32.totalorder %s19, %s22
    %p31 = scmp.eq.s32.totalorder %s14, 1
    %p32 = por %p30, %p31
    %p33 = scmp.ne.s32.totalorder %s22, %s23
    %p34 = scmp.eq.s32.totalorder %s14, 0
    %p35 = por %p33, %p34
    %p36 = scmp.ne.s32.totalorder %s22, %s23
    %p37 = scmp.eq.s32.totalorder %s15, 1
    %p38 = por %p36, %p37
    %p40 = scmp.ne.s32.totalorder %s23, %s39
    %p41 = scmp.eq.s32.totalorder %s15, 0
    %p42 = por %p40, %p41
    %s44 = sadd.s32 %s43, 1
    %p47 = scmp.eq.s32.totalorder %s9, 1
    %p48 = scmp.ne.s32.totalorder %s43, %s45
    %p49 = scmp.eq.s32.totalorder %s9, 0
    %p50 = por %p48, %p49
    %p51 = scmp.ne.s32.totalorder %s43, %s45
    %p52 = scmp.eq.s32.totalorder %s14, 1
    %p53 = por %p51, %p52
    %p54 = scmp.ne.s32.totalorder %s45, %s46
    %p55 = scmp.eq.s32.totalorder %s14, 0
    %p56 = por %p54, %p55
    %p57 = scmp.ne.s32.totalorder %s45, %s46
    %p58 = scmp.eq.s32.totalorder %s15, 1
    %p59 = por %p57, %p58
    %p61 = scmp.ne.s32.totalorder %s46, %s60
    %p62 = scmp.eq.s32.totalorder %s15, 0
    %p63 = por %p61, %p62
    %s65 = sadd.s32 %s64, 1
    %p68 = scmp.eq.s32.totalorder %s9, 1
    %p69 = scmp.ne.s32.totalorder %s64, %s66
    %p70 = scmp.eq.s32.totalorder %s9, 0
    %p71 = por %p69, %p70
    %p72 = scmp.ne.s32.totalorder %s64, %s66
    %p73 = scmp.eq.s32.totalorder %s14, 1
    %p74 = por %p72, %p73
    %p75 = scmp.ne.s32.totalorder %s66, %s67
    %p76 = scmp.eq.s32.totalorder %s14, 0
    %p77 = por %p75, %p76
    %p78 = scmp.ne.s32.totalorder %s66, %s67
    %p79 = scmp.eq.s32.totalorder %s15, 1
    %p80 = por %p78, %p79
    %p82 = scmp.ne.s32.totalorder %s67, %s81
    %p83 = scmp.eq.s32.totalorder %s15, 0
    %p84 = por %p82, %p83
    %s85 = ssub.s32 %s9, %s16
    %p86 = scmp.eq.s32.totalorder %s85, 0
    %s88 = sadd.s32 %s87, 1
    %s89 = scalar_select %p86, %s87, %s88
    %p92 = pneg %p86
    %p93 = scmp.eq.s32.totalorder %s9, 1
    %p94 = por %p92, %p93
    %p95 = scmp.ne.s32.totalorder %s87, %s90
    %p96 = scmp.eq.s32.totalorder %s9, 0
    %p97 = por %p95, %p96
    %p98 = scmp.ne.s32.totalorder %s87, %s90
    %p99 = scmp.eq.s32.totalorder %s14, 1
    %p100 = por %p98, %p99
    %p101 = scmp.ne.s32.totalorder %s90, %s91
    %p102 = scmp.eq.s32.totalorder %s14, 0
    %p103 = por %p101, %p102
    %p104 = scmp.ne.s32.totalorder %s90, %s91
    %p105 = scmp.eq.s32.totalorder %s15, 1
    %p106 = por %p104, %p105
    %p108 = scmp.ne.s32.totalorder %s91, %s107
    %p109 = scmp.eq.s32.totalorder %s15, 0
    %p110 = por %p108, %p109
    %p111 = scmp.le.s32.totalorder 1, %s9
    %p112 = scmp.lt.s32.totalorder %s9, 3
    %p113 = pnand %p111, %p112
    %p114 = pneg %p113
    // Predicated region
    $region9: #{han_forward.18} parent=5 // pred_check
      _
    $region10: #{han_forward.18} parent=5 // pred_check_branch
      %116 = sbr.rel (%p113) target = $region12
    $region11: #{han_forward.18} parent=5 // pred_region
      %s117 = ssub.s32 %s9, 1
      // Predicated region
      $region13: #{han_forward.18} parent=11 // pred_check
        %p118 = pneg %p56
      $region14: #{han_forward.18} parent=11 // pred_check_branch
        %120 = sbr.rel (%p118) target = $region16
      $region15: #{han_forward.18} parent=11 // pred_region
        _
      $region16: #{han_forward.18} parent=11 // pred_fallthru
        _
      // Predicated region
      $region17: #{han_forward.18} parent=11 // pred_check
        %p121 = pneg %p77
      $region18: #{han_forward.18} parent=11 // pred_check_branch
        %123 = sbr.rel (%p121) target = $region20
      $region19: #{han_forward.18} parent=11 // pred_region
        _
      $region20: #{han_forward.18} parent=11 // pred_fallthru
        _
    $region12: #{han_forward.18} parent=5 // pred_fallthru
      _
    %p124 = scmp.lt.s32.totalorder %s9, 2
    // Predicated region
    $region21: #{han_forward.18} parent=5 // pred_check
      %p125 = pneg %p124
    $region22: #{han_forward.18} parent=5 // pred_check_branch
      %127 = sbr.rel (%p125) target = $region24
    $region23: #{han_forward.18} parent=5 // pred_region
      // Predicated region
      $region25: #{han_forward.18} parent=23 // pred_check
        %p128 = pneg %p29
      $region26: #{han_forward.18} parent=23 // pred_check_branch
        %130 = sbr.rel (%p128) target = $region28
      $region27: #{han_forward.18} parent=23 // pred_region
        %p131 = scmp.lt.s32.totalorder %s9, 1
        %s132 = scalar_select %p131, %s9, 1
        %s133 = smul.addr %s132, 4
        %s134 = smul.addr %s133, 2
        %s135 = scalar_lea.vmem %s0, %s134
      $region28: #{han_forward.18} parent=23 // pred_fallthru
        _
    $region24: #{han_forward.18} parent=5 // pred_fallthru
      _
    %p136 = scmp.le.s32.totalorder 1, %s9
    %p137 = scmp.lt.s32.totalorder %s9, 3
    %p138 = pnand %p136, %p137
    %p139 = pneg %p138
    // Predicated region
    $region29: #{han_forward.18} parent=5 // pred_check
      _
    $region30: #{han_forward.18} parent=5 // pred_check_branch
      %141 = sbr.rel (%p138) target = $region32
    $region31: #{han_forward.18} parent=5 // pred_region
      %s142 = ssub.s32 %s9, 1
      %p143 = scmp.lt.s32.totalorder %s14, 1
      %s144 = scalar_select %p143, %s14, 1
      %s145 = smul.addr %s144, 4
      %s146 = smul.addr %s145, 2
      %s147 = scalar_lea.vmem %s0, %s146
      %p148 = pneg %p35
      %p149 = pneg %p32
      %p150 = pneg %p56
      %p151 = pneg %p53
      %p152 = pneg %p77
      %p153 = pneg %p74
      %p154 = pneg %p103
      %p155 = pneg %p100
      %p156 = scmp.lt.s32.totalorder %s14, 1
      %s157 = scalar_select %p156, %s14, 1
      %s158 = smul.addr %s157, 4
      %s159 = smul.addr %s158, 2
      %s160 = scalar_lea.vmem %s3, %s159
      %p161 = scmp.lt.s32.totalorder %s14, 1
      %s162 = scalar_select %p161, %s14, 1
      %s163 = smul.addr %s162, 4
      %s164 = smul.addr %s163, 2
      %s165 = scalar_lea.vmem %s0, %s164
      %p166 = scmp.lt.s32.totalorder %s14, 1
      %s167 = scalar_select %p166, %s14, 1
      %s168 = smul.addr %s167, 4
      %s169 = smul.addr %s168, 2
      %s170 = scalar_lea.vmem %s3, %s169
      %v172 = vld [vmem:[%s165] sm:$0x3]
      %v173 = vld [vmem:[%s165 + $0x2] sm:$0x3]
      %v174 = vld [vmem:[%s165 + $0x4] sm:$0x3]
      %v175 = vld [vmem:[%s165 + $0x6] sm:$0x3]
      %v176 = vld [vmem:[%s1] sm:$0xf]
      %v177 = vld [vmem:[%s1 + $0x4] sm:$0xf]
      %v178 = vld [vmem:[%s1 + $0x8] sm:$0xf]
      %v179 = vld [vmem:[%s1 + $0xc] sm:$0xf]
      %v180 = vld [vmem:[%s1 + $0x10] sm:$0xf]
      %v181 = vld [vmem:[%s1 + $0x14] sm:$0xf]
      %v182 = vld [vmem:[%s1 + $0x18] sm:$0xf]
      %v183 = vld [vmem:[%s1 + $0x1c] sm:$0xf]
      %v184 = vld [vmem:[%s1 + $0x20] sm:$0xf]
      %v185 = vld [vmem:[%s1 + $0x24] sm:$0xf]
      %v186 = vld [vmem:[%s1 + $0x28] sm:$0xf]
      %v187 = vld [vmem:[%s1 + $0x2c] sm:$0xf]
      %v189 = vshrl.u32 0, 16
      %v191 = vrot.slane %v189, 7
      %v192 = vshll.u32 0, 16
      %v194 = vor.u32 %v191, %v192
      %v196 = vshrl.u32 %v172, 16
      %v198 = vrot.slane %v196, 7
      %v199 = vshll.u32 %v172, 16
      %v201 = vor.u32 %v198, %v199
      %v203 = vshrl.u32 %v173, 16
      %v205 = vrot.slane %v203, 7
      %v206 = vshll.u32 %v173, 16
      %v208 = vor.u32 %v205, %v206
      %v210 = vshrl.u32 %v174, 16
      %v212 = vrot.slane %v210, 7
      %v213 = vshll.u32 %v174, 16
      %v215 = vor.u32 %v212, %v213
      %v217 = vshrl.u32 %v175, 16
      %v219 = vrot.slane %v217, 7
      %v220 = vshll.u32 %v175, 16
      %v222 = vor.u32 %v219, %v220
      %vm228 = vcmask 1040384
      %vm229 = vsmask.f32 256
      %vm230 = vmand %vm228, %vm229
      %v231 = vsel %vm230, 0, %v194
      %v232 = vsel %vm230, 0, %v201
      %v233 = vsel %vm230, 0, %v208
      %v234 = vsel %vm230, 0, %v215
      %v235 = vsel %vm230, 0, %v222
      %vm236 = vcmask 1042432
      %vm237 = vsmask.f32 2304
      %vm238 = vmand %vm236, %vm237
      %v239 = vsel %vm238, %v231, 0
      %v240 = vsel %vm238, %v232, 0
      %v241 = vsel %vm238, %v233, 0
      %v242 = vsel %vm238, %v234, 0
      %v243 = vsel %vm238, %v235, 0
      %v245 = vshrl.u32 %v239, 16
      %v247 = vshll.u32 %v239, 16
      %v249 = vrot.slane %v247, 1
      %v250 = vor.u32 %v245, %v249
      %v252 = vshrl.u32 %v240, 16
      %v254 = vshll.u32 %v240, 16
      %v256 = vrot.slane %v254, 1
      %v257 = vor.u32 %v252, %v256
      %v259 = vshrl.u32 %v241, 16
      %v261 = vshll.u32 %v241, 16
      %v263 = vrot.slane %v261, 1
      %v264 = vor.u32 %v259, %v263
      %v266 = vshrl.u32 %v242, 16
      %v268 = vshll.u32 %v242, 16
      %v270 = vrot.slane %v268, 1
      %v271 = vor.u32 %v266, %v270
      %v273 = vshrl.u32 %v243, 16
      %v275 = vshll.u32 %v243, 16
      %v277 = vrot.slane %v275, 1
      %v278 = vor.u32 %v273, %v277
      %279 = vrot.lane.b32.xlu0 %v250, 32
      %v280 = vpop.permute.xlu0 %279
      %281 = vrot.lane.b32.xlu0 %v257, 32
      %v282 = vpop.permute.xlu0 %281
      %283 = vrot.lane.b32.xlu0 %v264, 32
      %v284 = vpop.permute.xlu0 %283
      %285 = vrot.lane.b32.xlu0 %v271, 32
      %v286 = vpop.permute.xlu0 %285
      %287 = vrot.lane.b32.xlu0 %v278, 32
      %v288 = vpop.permute.xlu0 %287
      %v294 = vrot.slane %v239, 1
      %v295 = vrot.slane %v240, 1
      %v296 = vrot.slane %v241, 1
      %v297 = vrot.slane %v242, 1
      %v298 = vrot.slane %v243, 1
      %299 = vrot.lane.b32.xlu0 %v294, 64
      %v300 = vpop.permute.xlu0 %299
      %301 = vrot.lane.b32.xlu0 %v295, 64
      %v302 = vpop.permute.xlu0 %301
      %303 = vrot.lane.b32.xlu0 %v296, 64
      %v304 = vpop.permute.xlu0 %303
      %305 = vrot.lane.b32.xlu0 %v297, 64
      %v306 = vpop.permute.xlu0 %305
      %307 = vrot.lane.b32.xlu0 %v298, 64
      %v308 = vpop.permute.xlu0 %307
      %vm309 = vcmask 261120
      %v311 = vsel %vm309, %v239, %v280
      %v313 = vsel %vm309, %v240, %v282
      %v315 = vsel %vm309, %v241, %v284
      %v317 = vsel %vm309, %v242, %v286
      %v319 = vsel %vm309, %v243, %v288
      %vm320 = vcmask 523264
      %v322 = vsel %vm320, %v311, %v300
      %v324 = vsel %vm320, %v313, %v302
      %v326 = vsel %vm320, %v315, %v304
      %v328 = vsel %vm320, %v317, %v306
      %v330 = vsel %vm320, %v319, %v308
      %v336 = vcombine.low %v322, %v324
      %v337 = vcombine.low %v326, %v328
      %v339 = vunpack.c.l.s4 1983009808
      %v340 = vunpack.c.0.s8 %v339
      %v341 = vlaneseq
      %v342 = vshrl.u32 %v341, 7
      %v343 = vsub.s32 %v340, %v342
      %v344 = vrot.slane %v336, %v343
      %v346 = vunpack.c.l.s4 1983009808
      %v347 = vunpack.c.0.s8 %v346
      %v348 = vlaneseq
      %v349 = vshrl.u32 %v348, 7
      %v350 = vsub.s32 %v347, %v349
      %v351 = vrot.slane %v337, %v350
      %v352 = vcombine.low %v344, %v351
      %v353 = vcombine.low %v330, %v322
      %v355 = vunpack.c.l.s4 1983009808
      %v356 = vunpack.c.0.s8 %v355
      %v357 = vlaneseq
      %v358 = vshrl.u32 %v357, 7
      %v359 = vsub.s32 %v356, %v358
      %v360 = vrot.slane %v353, %v359
      %v373 = vunpack.c.l.b16 %v176
      %v374 = vunpack.c.l.b16 %v177
      %v375 = vunpack.c.l.b16 %v178
      %v376 = vunpack.c.l.b16 %v179
      %v377 = vunpack.c.l.b16 %v180
      %v378 = vunpack.c.l.b16 %v181
      %v379 = vunpack.c.l.b16 %v182
      %v380 = vunpack.c.l.b16 %v183
      %v381 = vunpack.c.l.b16 %v184
      %v382 = vunpack.c.l.b16 %v185
      %v383 = vunpack.c.l.b16 %v186
      %v384 = vunpack.c.l.b16 %v187
      %v385 = vpack.c.b16 %v374, %v373
      %v386 = vpack.c.b16 %v376, %v375
      %v387 = vpack.c.b16 %v378, %v377
      %v388 = vpack.c.b16 %v380, %v379
      %v389 = vpack.c.b16 %v382, %v381
      %v390 = vpack.c.b16 %v384, %v383
      %vm397 = vcmask 785408
      %v399 = vsel %vm397, %v352, 0
      %v402 = vsel %vm397, %v360, 0
      %404 = vmatprep.subr.bf16.mxu0 0
      %405 = vmatpush1.bf16.msra.mxu0 0
      %406 = vmatprep.subr.bf16.mxu0 0
      %407 = vmatpush1.bf16.msra.mxu0 0
      %408 = vmatprep.subr.bf16.mxu0 0
      %409 = vmatpush1.bf16.msra.mxu0 %v390
      %410 = vmatprep.subr.bf16.mxu0 0
      %411 = vmatpush1.bf16.msra.mxu0 %v389
      %412 = vmatprep.subr.bf16.mxu0 0
      %413 = vmatpush1.bf16.msra.mxu0 %v388
      %414 = vmatprep.subr.bf16.mxu0 0
      %415 = vmatpush1.bf16.msra.mxu0 %v387
      %416 = vmatprep.subr.bf16.mxu0 0
      %417 = vmatpush1.bf16.msra.mxu0 %v386
      %418 = vmatprep.subr.bf16.mxu0 0
      %419 = vmatpush1.bf16.msra.mxu0 %v385
      %420 = vmatprep.subr.bf16.mxu0 0
      %421 = vmatpush2.bf16.msra.mxu0 0
      %422 = vmatprep.subr.bf16.mxu0 0
      %423 = vmatpush2.bf16.msra.mxu0 0
      %424 = vmatprep.subr.bf16.mxu0 0
      %425 = vmatpush2.bf16.msra.mxu0 0
      %426 = vmatprep.subr.bf16.mxu0 0
      %427 = vmatpush2.bf16.msra.mxu0 0
      %428 = vmatprep.subr.bf16.mxu0 0
      %429 = vmatpush2.bf16.msra.mxu0 0
      %430 = vmatprep.subr.bf16.mxu0 0
      %431 = vmatpush2.bf16.msra.mxu0 0
      %432 = vmatprep.subr.bf16.mxu0 0
      %433 = vmatpush2.bf16.msra.mxu0 0
      %434 = vmatprep.subr.bf16.mxu0 0
      %435 = vmatpush2.bf16.msra.mxu0 0
      %436 = vmatprep.mubr.bf16.mxu0 0
      %437 = vmatmul.mubr.bf16.gmra.mxu0 %v399
      %v438 = vpop.f32.mrf.mxu0
      %v439 = vadd.f32 0.0, %v438
      %v440 = vpop.f32.mrf.mxu0
      %v441 = vpop.f32.mrf.mxu0
      %v442 = vadd.f32 0.0, %v441
      %v443 = vpop.f32.mrf.mxu0
      %444 = vmatprep.mubr.bf16.mxu0 0
      %445 = vmatmul.mubr.bf16.gmra.mxu0 %v402
      %v446 = vpop.f32.mrf.mxu0
      %v447 = vadd.f32 0.0, %v446
      %v448 = vpop.f32.mrf.mxu0
      %v449 = vpop.f32.mrf.mxu0
      %v450 = vpop.f32.mrf.mxu0
      %451 = vdwg.mxu0
      %v455 = vcombine.high %v439, %v439
      %v456 = vcombine.high %v442, %v442
      %v457 = vcombine.high %v447, %v447
      %460 = vrot.lane.b32.xlu0 %v455, 96
      %v461 = vpop.permute.xlu0 %460
      %462 = vrot.lane.b32.xlu0 %v442, 96
      %v463 = vpop.permute.xlu0 %462
      %464 = vrot.lane.b32.xlu0 %v456, 96
      %v465 = vpop.permute.xlu0 %464
      %466 = vrot.lane.b32.xlu0 %v447, 96
      %v467 = vpop.permute.xlu0 %466
      %v472 = vadd.f32 %v439, %v461
      %v473 = vadd.f32 %v455, %v463
      %v474 = vadd.f32 %v442, %v465
      %v475 = vadd.f32 %v456, %v467
      %476 = vrot.lane.b32.xlu0 %v442, 64
      %v477 = vpop.permute.xlu0 %476
      %478 = vrot.lane.b32.xlu0 %v456, 64
      %v479 = vpop.permute.xlu0 %478
      %480 = vrot.lane.b32.xlu0 %v447, 64
      %v481 = vpop.permute.xlu0 %480
      %482 = vrot.lane.b32.xlu0 %v457, 64
      %v483 = vpop.permute.xlu0 %482
      %v488 = vadd.f32 %v472, %v477
      %v489 = vadd.f32 %v473, %v479
      %v490 = vadd.f32 %v474, %v481
      %v491 = vadd.f32 %v475, %v483
      %v492 = vld [vmem:[%s2] sm:$0x1]
      %v494 = vlaneseq
      %v495 = vshrl.u32 %v494, 7
      %v496 = vsub.s32 0, %v495
      %v497 = vrot.slane %v492, %v496
      %v499 = vadd.f32 %v488, %v497
      %v500 = vadd.f32 %v489, %v497
      %v501 = vadd.f32 %v490, %v497
      %v502 = vadd.f32 %v491, %v497
      %v503 = vpack.c.bf16 %v499, %v499
      %v504 = vpack.c.bf16 %v500, %v500
      %v505 = vpack.c.bf16 %v501, %v501
      %v506 = vpack.c.bf16 %v502, %v502
      %vm507 = vcmask 254976
      %508 = vst.msk [vmem:[%s170] sm:$0x3] %vm507, %v503
      %509 = vst.msk [vmem:[%s170 + $0x2] sm:$0x3] %vm507, %v504
      %510 = vst.msk [vmem:[%s170 + $0x4] sm:$0x3] %vm507, %v505
      %511 = vst.msk [vmem:[%s170 + $0x6] sm:$0x3] %vm507, %v506
      %p512 = scmp.lt.s32.totalorder %s14, 1
      %s513 = scalar_select %p512, %s14, 1
      %s514 = smul.addr %s513, 4
      %s515 = smul.addr %s514, 2
      %s516 = scalar_lea.vmem %s3, %s515
      // Predicated region
      $region33: #{han_forward.18} parent=31 // pred_check
        %p517 = pneg %p100
      $region34: #{han_forward.18} parent=31 // pred_check_branch
        %519 = sbr.rel (%p517) target = $region36
      $region35: #{han_forward.18} parent=31 // pred_region
        _
      $region36: #{han_forward.18} parent=31 // pred_fallthru
        _
    $region32: #{han_forward.18} parent=5 // pred_fallthru
      _
    %p520 = scmp.le.s32.totalorder 2, %s9
    // Predicated region
    $region37: #{han_forward.18} parent=5 // pred_check
      %p521 = pneg %p520
    $region38: #{han_forward.18} parent=5 // pred_check_branch
      %523 = sbr.rel (%p521) target = $region40
    $region39: #{han_forward.18} parent=5 // pred_region
      %s524 = ssub.s32 %s9, 2
      // Predicated region
      $region41: #{han_forward.18} parent=39 // pred_check
        %p525 = pneg %p106
      $region42: #{han_forward.18} parent=39 // pred_check_branch
        %527 = sbr.rel (%p525) target = $region44
      $region43: #{han_forward.18} parent=39 // pred_region
        %p528 = scmp.lt.s32.totalorder %s15, 1
        %s529 = scalar_select %p528, %s15, 1
        %s530 = smul.addr %s529, 4
        %s531 = smul.addr %s530, 2
        %s532 = scalar_lea.vmem %s3, %s531
      $region44: #{han_forward.18} parent=39 // pred_fallthru
        _
    $region40: #{han_forward.18} parent=5 // pred_fallthru
      _
  $region6: #{han_forward.18} parent=0 // loop_footer
    %s13 = sadd.s32 1, %s9
  $region7: #{han_forward.18} parent=0 // loop_footer_branch
    %8 = sbr.rel target = $region3
  $region8: #{han_forward.18} parent=0 // loop_exit
    _

// kernel: han_forward.19
$region0: #{han_forward.19}
  #allocation0 [shape = 'u32[]', space=smem, size = 0x4, offset = 0x4, fixed_abs, tag = 'smem constant byte address 0x4 - core index']
  #allocation1 [shape = 'u32[144,128]{1,0:T(1,128)}', space=vmem, size = 0x12000, scoped, tag = 'internal scratch']
  #allocation2 [shape = 'f32[3,3]{1,0:T(4,128)}', space=vmem, size = 0x800, scoped, tag = 'scratch operand']
  %s0 = inlined_call_operand.vmem [shape: bf16[2,3,512], index: 0, kind: input, shape index: {}]
  %s1 = inlined_call_operand.vmem [shape: f32[2,3,3], index: 1, kind: output, shape index: {}]
  %s2 = sld [smem:[#allocation0]]
  $region45: #{han_forward.19} parent=0
    _
  %s4 = ssub.s32 1, %s2
  %s5 = scalar_select 0, %s4, %s2
  loop: start=0, step=1, limit=4
  $region2: #{han_forward.19} parent=0 // loop_pre_header
    _
  $region3: #{han_forward.19} parent=0 // loop_header
    %s7 = sphi 0, %s11
    %p8 = scmp.ge.s32.totalorder %s7, 4
    %s14 = sphi 0, %s26
    %s15 = sphi 0, %s22
    %s16 = sphi 0, %s14
    %s17 = sphi 0, %s15
    %s18 = sphi 0, %s16
    %s19 = sphi 0, %s17
    %s31 = sphi 0, %s33
    %s34 = sphi 0, %s31
    %s35 = sphi 0, %s34
    %s51 = sphi 0, %s35
    %s57 = sphi 0, %s59
    %s60 = sphi 0, %s57
    %s61 = sphi 0, %s60
    %s77 = sphi 0, %s61
  $region4: #{han_forward.19} parent=0 // loop_header_branch
    %10 = sbr.rel (%p8) target = $region8
  $region5: #{han_forward.19} parent=0 // loop_body
    %s12 = ssub.s32 %s7, 1
    %s13 = ssub.s32 %s7, 2
    %s20 = sadd.s32 1, %s15
    %p21 = scmp.ge.s32.totalorder %s20, 1
    %s22 = scalar_select %p21, 0, %s20
    %s23 = sadd.s32 1, %s14
    %s24 = scalar_select %p21, %s23, %s14
    %p25 = scmp.ge.s32.totalorder %s24, 2
    %s26 = scalar_select %p25, 0, %s24
    %s27 = ssub.s32 %s14, %s26
    %s28 = ssub.s32 %s15, %s22
    %s29 = sor.u32 %s27, %s28
    %p30 = scmp.eq.s32.totalorder %s29, 0
    %s32 = sadd.s32 %s31, 1
    %s33 = scalar_select %p30, %s31, %s32
    %p36 = pneg %p30
    %p37 = scmp.eq.s32.totalorder %s7, 1
    %p38 = por %p36, %p37
    %p39 = scmp.ne.s32.totalorder %s31, %s34
    %p40 = scmp.eq.s32.totalorder %s7, 0
    %p41 = por %p39, %p40
    %p42 = scmp.ne.s32.totalorder %s31, %s34
    %p43 = scmp.eq.s32.totalorder %s12, 1
    %p44 = por %p42, %p43
    %p45 = scmp.ne.s32.totalorder %s34, %s35
    %p46 = scmp.eq.s32.totalorder %s12, 0
    %p47 = por %p45, %p46
    %p48 = scmp.ne.s32.totalorder %s34, %s35
    %p49 = scmp.eq.s32.totalorder %s13, 1
    %p50 = por %p48, %p49
    %p52 = scmp.ne.s32.totalorder %s35, %s51
    %p53 = scmp.eq.s32.totalorder %s13, 0
    %p54 = por %p52, %p53
    %s55 = ssub.s32 %s14, %s26
    %p56 = scmp.eq.s32.totalorder %s55, 0
    %s58 = sadd.s32 %s57, 1
    %s59 = scalar_select %p56, %s57, %s58
    %p62 = pneg %p56
    %p63 = scmp.eq.s32.totalorder %s7, 1
    %p64 = por %p62, %p63
    %p65 = scmp.ne.s32.totalorder %s57, %s60
    %p66 = scmp.eq.s32.totalorder %s7, 0
    %p67 = por %p65, %p66
    %p68 = scmp.ne.s32.totalorder %s57, %s60
    %p69 = scmp.eq.s32.totalorder %s12, 1
    %p70 = por %p68, %p69
    %p71 = scmp.ne.s32.totalorder %s60, %s61
    %p72 = scmp.eq.s32.totalorder %s12, 0
    %p73 = por %p71, %p72
    %p74 = scmp.ne.s32.totalorder %s60, %s61
    %p75 = scmp.eq.s32.totalorder %s13, 1
    %p76 = por %p74, %p75
    %p78 = scmp.ne.s32.totalorder %s61, %s77
    %p79 = scmp.eq.s32.totalorder %s13, 0
    %p80 = por %p78, %p79
    %p81 = scmp.le.s32.totalorder 1, %s7
    %p82 = scmp.lt.s32.totalorder %s7, 3
    %p83 = pnand %p81, %p82
    %p84 = pneg %p83
    // Predicated region
    $region9: #{han_forward.19} parent=5 // pred_check
      _
    $region10: #{han_forward.19} parent=5 // pred_check_branch
      %86 = sbr.rel (%p83) target = $region12
    $region11: #{han_forward.19} parent=5 // pred_region
      %s87 = ssub.s32 %s7, 1
    $region12: #{han_forward.19} parent=5 // pred_fallthru
      _
    %p88 = scmp.lt.s32.totalorder %s7, 2
    // Predicated region
    $region13: #{han_forward.19} parent=5 // pred_check
      %p89 = pneg %p88
    $region14: #{han_forward.19} parent=5 // pred_check_branch
      %91 = sbr.rel (%p89) target = $region16
    $region15: #{han_forward.19} parent=5 // pred_region
      // Predicated region
      $region17: #{han_forward.19} parent=15 // pred_check
        %p92 = pneg %p41
      $region18: #{han_forward.19} parent=15 // pred_check_branch
        %94 = sbr.rel (%p92) target = $region20
      $region19: #{han_forward.19} parent=15 // pred_region
        %s95 = smul.u32 4, %s15
        %p96 = scmp.lt.s32.totalorder %s14, 1
        %s97 = scalar_select %p96, %s14, 1
        %p98 = scmp.lt.s32.totalorder %s95, 3
        %s99 = scalar_select %p98, %s95, 3
        %s100 = smul.addr %s97, 4
        %s101 = sadd.s32 %s99, %s100
        %s102 = smul.addr %s101, 2
        %s103 = scalar_lea.vmem %s0, %s102
        %s104 = smul.u32 4, %s15
      $region20: #{han_forward.19} parent=15 // pred_fallthru
        _
    $region16: #{han_forward.19} parent=5 // pred_fallthru
      _
    %p105 = scmp.le.s32.totalorder 1, %s7
    %p106 = scmp.lt.s32.totalorder %s7, 3
    %p107 = pnand %p105, %p106
    %p108 = pneg %p107
    // Predicated region
    $region21: #{han_forward.19} parent=5 // pred_check
      _
    $region22: #{han_forward.19} parent=5 // pred_check_branch
      %110 = sbr.rel (%p107) target = $region24
    $region23: #{han_forward.19} parent=5 // pred_region
      %s111 = ssub.s32 %s7, 1
      %s112 = smul.u32 4, %s17
      %p113 = scmp.lt.s32.totalorder %s16, 1
      %s114 = scalar_select %p113, %s16, 1
      %p115 = scmp.lt.s32.totalorder %s112, 3
      %s116 = scalar_select %p115, %s112, 3
      %s117 = smul.addr %s114, 4
      %s118 = sadd.s32 %s116, %s117
      %s119 = smul.addr %s118, 2
      %s120 = scalar_lea.vmem %s0, %s119
      %p121 = pneg %p47
      %p122 = pneg %p44
      %p123 = pneg %p73
      %p124 = pneg %p70
      %p125 = scmp.lt.s32.totalorder %s16, 1
      %s126 = scalar_select %p125, %s16, 1
      %s127 = smul.addr %s126, 4
      %s128 = scalar_lea.vmem %s1, %s127
      %s129 = smul.u32 4, %s17
      %p130 = scmp.lt.s32.totalorder %s16, 1
      %s131 = scalar_select %p130, %s16, 1
      %p132 = scmp.lt.s32.totalorder %s129, 3
      %s133 = scalar_select %p132, %s129, 3
      %s134 = smul.addr %s131, 4
      %s135 = sadd.s32 %s133, %s134
      %s136 = smul.addr %s135, 2
      %s137 = scalar_lea.vmem %s0, %s136
      %s138 = smul.u32 4, %s17
      %p139 = scmp.lt.s32.totalorder %s16, 1
      %s140 = scalar_select %p139, %s16, 1
      %s141 = smul.addr %s140, 4
      %s142 = scalar_lea.vmem %s1, %s141
      %p144 = scmp.eq.s32.totalorder %s17, 0
      // Predicated region
      $region25: #{han_forward.19} parent=23 // pred_check
        %p145 = pneg %p144
      $region26: #{han_forward.19} parent=23 // pred_check_branch
        %147 = sbr.rel (%p145) target = $region28
      $region27: #{han_forward.19} parent=23 // pred_region
        %vm148 = vcmask 18432
        %149 = vst.msk [vmem:[#allocation2] sm:$0x7] %vm148, 0.0
      $region28: #{han_forward.19} parent=23 // pred_fallthru
        _
      %v150 = vld [vmem:[%s137] sm:$0xff]
      %v151 = vld [vmem:[#allocation2] sm:$0x7]
      %v153 = vcombine.high %v150, %v150
      %v155 = vunpack.c.l.s4 1983009808
      %v156 = vunpack.c.0.s8 %v155
      %v157 = vlaneseq
      %v158 = vshrl.u32 %v157, 7
      %v159 = vsub.s32 %v156, %v158
      %v160 = vrot.slane %v150, %v159
      %v162 = vunpack.c.l.s4 1983009808
      %v163 = vunpack.c.0.s8 %v162
      %v164 = vlaneseq
      %v165 = vshrl.u32 %v164, 7
      %v166 = vsub.s32 %v163, %v165
      %v167 = vrot.slane %v153, %v166
      %v168 = vcombine.high %v160, %v160
      %v169 = vcombine.high %v167, %v167
      %174 = vmatprep.subr.bf16.mxu0 0
      %175 = vmatpush1.bf16.xpose.msra.mxu0 0
      %176 = vmatprep.subr.bf16.mxu0 0
      %177 = vmatpush1.bf16.xpose.msra.mxu0 0
      %178 = vmatprep.subr.bf16.mxu0 0
      %179 = vmatpush1.bf16.xpose.msra.mxu0 0
      %180 = vmatprep.subr.bf16.mxu0 0
      %181 = vmatpush1.bf16.xpose.msra.mxu0 0
      %182 = vmatprep.subr.bf16.mxu0 0
      %183 = vmatpush1.bf16.xpose.msra.mxu0 0
      %184 = vmatprep.subr.bf16.mxu0 0
      %185 = vmatpush1.bf16.xpose.msra.mxu0 0
      %186 = vmatprep.subr.bf16.mxu0 0
      %187 = vmatpush1.bf16.xpose.msra.mxu0 0
      %188 = vmatprep.subr.bf16.mxu0 %v168
      %189 = vmatpush1.bf16.xpose.msra.mxu0 %v160
      %190 = vmatprep.subr.bf16.mxu0 0
      %191 = vmatpush2.bf16.xpose.msra.mxu0 0
      %192 = vmatprep.subr.bf16.mxu0 0
      %193 = vmatpush2.bf16.xpose.msra.mxu0 0
      %194 = vmatprep.subr.bf16.mxu0 0
      %195 = vmatpush2.bf16.xpose.msra.mxu0 0
      %196 = vmatprep.subr.bf16.mxu0 0
      %197 = vmatpush2.bf16.xpose.msra.mxu0 0
      %198 = vmatprep.subr.bf16.mxu0 0
      %199 = vmatpush2.bf16.xpose.msra.mxu0 0
      %200 = vmatprep.subr.bf16.mxu0 0
      %201 = vmatpush2.bf16.xpose.msra.mxu0 0
      %202 = vmatprep.subr.bf16.mxu0 0
      %203 = vmatpush2.bf16.xpose.msra.mxu0 0
      %204 = vmatprep.subr.bf16.mxu0 0
      %205 = vmatpush2.bf16.xpose.msra.mxu0 0
      %206 = vmatprep.mubr.bf16.mxu0 %v168
      %207 = vmatmul.mubr.bf16.gmra.mxu0 %v160
      %v208 = vpop.f32.mrf.mxu0
      %v209 = vadd.f32 0.0, %v208
      %v210 = vpop.f32.mrf.mxu0
      %v211 = vpop.f32.mrf.mxu0
      %v212 = vpop.f32.mrf.mxu0
      %213 = vdwg.mxu0
      %214 = vmatprep.subr.bf16.mxu0 0
      %215 = vmatpush1.bf16.xpose.msra.mxu0 0
      %216 = vmatprep.subr.bf16.mxu0 0
      %217 = vmatpush1.bf16.xpose.msra.mxu0 0
      %218 = vmatprep.subr.bf16.mxu0 0
      %219 = vmatpush1.bf16.xpose.msra.mxu0 0
      %220 = vmatprep.subr.bf16.mxu0 0
      %221 = vmatpush1.bf16.xpose.msra.mxu0 0
      %222 = vmatprep.subr.bf16.mxu0 0
      %223 = vmatpush1.bf16.xpose.msra.mxu0 0
      %224 = vmatprep.subr.bf16.mxu0 0
      %225 = vmatpush1.bf16.xpose.msra.mxu0 0
      %226 = vmatprep.subr.bf16.mxu0 0
      %227 = vmatpush1.bf16.xpose.msra.mxu0 0
      %228 = vmatprep.subr.bf16.mxu0 %v169
      %229 = vmatpush1.bf16.xpose.msra.mxu0 %v167
      %230 = vmatprep.subr.bf16.mxu0 0
      %231 = vmatpush2.bf16.xpose.msra.mxu0 0
      %232 = vmatprep.subr.bf16.mxu0 0
      %233 = vmatpush2.bf16.xpose.msra.mxu0 0
      %234 = vmatprep.subr.bf16.mxu0 0
      %235 = vmatpush2.bf16.xpose.msra.mxu0 0
      %236 = vmatprep.subr.bf16.mxu0 0
      %237 = vmatpush2.bf16.xpose.msra.mxu0 0
      %238 = vmatprep.subr.bf16.mxu0 0
      %239 = vmatpush2.bf16.xpose.msra.mxu0 0
      %240 = vmatprep.subr.bf16.mxu0 0
      %241 = vmatpush2.bf16.xpose.msra.mxu0 0
      %242 = vmatprep.subr.bf16.mxu0 0
      %243 = vmatpush2.bf16.xpose.msra.mxu0 0
      %244 = vmatprep.subr.bf16.mxu0 0
      %245 = vmatpush2.bf16.xpose.msra.mxu0 0
      %246 = vmatprep.mubr.bf16.mxu0 %v169
      %247 = vmatmul.mubr.bf16.gmra.mxu0 %v167
      %v248 = vpop.f32.mrf.mxu0
      %v249 = vadd.f32 %v209, %v248
      %v250 = vpop.f32.mrf.mxu0
      %v251 = vpop.f32.mrf.mxu0
      %v252 = vpop.f32.mrf.mxu0
      %253 = vdwg.mxu0
      %v254 = vadd.f32 %v151, %v249
      %vm255 = vcmask 18432
      %256 = vst.msk [vmem:[#allocation2] sm:$0x7] %vm255, %v254
      // Predicated region
      $region29: #{han_forward.19} parent=23 // pred_check
        %p257 = pneg %p144
      $region30: #{han_forward.19} parent=23 // pred_check_branch
        %259 = sbr.rel (%p257) target = $region32
      $region31: #{han_forward.19} parent=23 // pred_region
        %v260 = vld [vmem:[#allocation2] sm:$0x7]
        %v261 = vsel %vm255, %v260, -inf
        %262 = vmax.xlane.f32.xlu0 %v261
        %v263 = vpop.xlane.xlu0 %262
        %v264 = vsub.f32 %v263, %v260
        %v265 = vsel %vm255, %v264, -inf
        %266 = vmax.xlane.f32.xlu0 %v265
        %v267 = vpop.xlane.xlu0 %266
        %v268 = vsub.f32 %v264, %v267
        %v269 = vmul.f32 %v268, 1.442695
        %v270 = vpow.pop %v269
        %v271 = vsel %vm255, %v270, 0.0
        %272 = vadd.xlane.f32.xlu0 %v271
        %v273 = vpop.xlane.xlu0 %272
        %v274 = vrcp.pop %v273
        %v275 = vmul.f32 %v270, %v274
        %276 = vst.msk [vmem:[%s142] sm:$0x7] %vm255, %v275
      $region32: #{han_forward.19} parent=23 // pred_fallthru
        _
      %p277 = scmp.lt.s32.totalorder %s16, 1
      %s278 = scalar_select %p277, %s16, 1
      %s279 = smul.addr %s278, 4
      %s280 = scalar_lea.vmem %s1, %s279
      // Predicated region
      $region33: #{han_forward.19} parent=23 // pred_check
        %p281 = pneg %p70
      $region34: #{han_forward.19} parent=23 // pred_check_branch
        %283 = sbr.rel (%p281) target = $region36
      $region35: #{han_forward.19} parent=23 // pred_region
        _
      $region36: #{han_forward.19} parent=23 // pred_fallthru
        _
    $region24: #{han_forward.19} parent=5 // pred_fallthru
      _
    %p284 = scmp.le.s32.totalorder 2, %s7
    // Predicated region
    $region37: #{han_forward.19} parent=5 // pred_check
      %p285 = pneg %p284
    $region38: #{han_forward.19} parent=5 // pred_check_branch
      %287 = sbr.rel (%p285) target = $region40
    $region39: #{han_forward.19} parent=5 // pred_region
      %s288 = ssub.s32 %s7, 2
      // Predicated region
      $region41: #{han_forward.19} parent=39 // pred_check
        %p289 = pneg %p76
      $region42: #{han_forward.19} parent=39 // pred_check_branch
        %291 = sbr.rel (%p289) target = $region44
      $region43: #{han_forward.19} parent=39 // pred_region
        %p292 = scmp.lt.s32.totalorder %s18, 1
        %s293 = scalar_select %p292, %s18, 1
        %s294 = smul.addr %s293, 4
        %s295 = scalar_lea.vmem %s1, %s294
      $region44: #{han_forward.19} parent=39 // pred_fallthru
        _
    $region40: #{han_forward.19} parent=5 // pred_fallthru
      _
  $region6: #{han_forward.19} parent=0 // loop_footer
    %s11 = sadd.s32 1, %s7
  $region7: #{han_forward.19} parent=0 // loop_footer_branch
    %6 = sbr.rel target = $region3
  $region8: #{han_forward.19} parent=0 // loop_exit
    _

// kernel: han_forward.14
$region0: #{han_forward.14}
  #allocation0 [shape = 'u32[]', space=smem, size = 0x4, offset = 0x4, fixed_abs, tag = 'smem constant byte address 0x4 - core index']
  #allocation1 [shape = 'u32[144,128]{1,0:T(1,128)}', space=vmem, size = 0x12000, scoped, tag = 'internal scratch']
  %s0 = inlined_call_operand.vmem [shape: bf16[2,4,4,32], index: 0, kind: input, shape index: {}]
  %s1 = inlined_call_operand.vmem [shape: bf16[2,96,96], index: 1, kind: input, shape index: {}]
  %s2 = inlined_call_operand.vmem [shape: f32[2,1,32], index: 2, kind: input, shape index: {}]
  %s3 = inlined_call_operand.vmem [shape: bf16[2,96,96], index: 3, kind: input, shape index: {}]
  %s4 = inlined_call_operand.vmem [shape: f32[2,1,32], index: 4, kind: input, shape index: {}]
  %s5 = inlined_call_operand.vmem [shape: f32[2,32,2], index: 5, kind: input, shape index: {}]
  %s6 = inlined_call_operand.vmem [shape: f32[2,1,2], index: 6, kind: input, shape index: {}]
  %s7 = inlined_call_operand.vmem [shape: f32[2,2,32], index: 7, kind: input, shape index: {}]
  %s8 = inlined_call_operand.vmem [shape: f32[2,1,32], index: 8, kind: input, shape index: {}]
  %s9 = inlined_call_operand.vmem [shape: bf16[2,4,4,32], index: 9, kind: output, shape index: {}]
  %s10 = sld [smem:[#allocation0]]
  $region69: #{han_forward.14} parent=0
    _
  %s12 = ssub.s32 1, %s10
  %s13 = scalar_select 0, %s12, %s10
  loop: start=0, step=1, limit=4
  $region2: #{han_forward.14} parent=0 // loop_pre_header
    _
  $region3: #{han_forward.14} parent=0 // loop_header
    %s15 = sphi 0, %s19
    %p16 = scmp.ge.s32.totalorder %s15, 4
    %s25 = sphi 0, %s27
    %s28 = sphi 0, %s25
    %s29 = sphi 0, %s28
    %s45 = sphi 0, %s29
    %s49 = sphi 0, %s49
    %s51 = sphi 0, %s49
    %s52 = sphi 0, %s51
    %s66 = sphi 0, %s52
    %s70 = sphi 0, %s70
    %s72 = sphi 0, %s70
    %s73 = sphi 0, %s72
    %s87 = sphi 0, %s73
    %s91 = sphi 0, %s91
    %s93 = sphi 0, %s91
    %s94 = sphi 0, %s93
    %s108 = sphi 0, %s94
    %s112 = sphi 0, %s112
    %s114 = sphi 0, %s112
    %s115 = sphi 0, %s114
    %s129 = sphi 0, %s115
    %s133 = sphi 0, %s133
    %s135 = sphi 0, %s133
    %s136 = sphi 0, %s135
    %s150 = sphi 0, %s136
    %s154 = sphi 0, %s154
    %s156 = sphi 0, %s154
    %s157 = sphi 0, %s156
    %s171 = sphi 0, %s157
    %s175 = sphi 0, %s175
    %s177 = sphi 0, %s175
    %s178 = sphi 0, %s177
    %s192 = sphi 0, %s178
    %s196 = sphi 0, %s196
    %s198 = sphi 0, %s196
    %s199 = sphi 0, %s198
    %s213 = sphi 0, %s199
    %s219 = sphi 0, %s221
    %s222 = sphi 0, %s219
    %s223 = sphi 0, %s222
    %s239 = sphi 0, %s223
  $region4: #{han_forward.14} parent=0 // loop_header_branch
    %18 = sbr.rel (%p16) target = $region8
  $region5: #{han_forward.14} parent=0 // loop_body
    %s20 = ssub.s32 %s15, 1
    %s21 = ssub.s32 %s15, 2
    %s22 = sadd.s32 %s15, 1
    %s23 = ssub.s32 %s15, %s22
    %p24 = scmp.eq.s32.totalorder %s23, 0
    %s26 = sadd.s32 %s25, 1
    %s27 = scalar_select %p24, %s25, %s26
    %p30 = pneg %p24
    %p31 = scmp.eq.s32.totalorder %s15, 1
    %p32 = por %p30, %p31
    %p33 = scmp.ne.s32.totalorder %s25, %s28
    %p34 = scmp.eq.s32.totalorder %s15, 0
    %p35 = por %p33, %p34
    %p36 = scmp.ne.s32.totalorder %s25, %s28
    %p37 = scmp.eq.s32.totalorder %s20, 1
    %p38 = por %p36, %p37
    %p39 = scmp.ne.s32.totalorder %s28, %s29
    %p40 = scmp.eq.s32.totalorder %s20, 0
    %p41 = por %p39, %p40
    %p42 = scmp.ne.s32.totalorder %s28, %s29
    %p43 = scmp.eq.s32.totalorder %s21, 1
    %p44 = por %p42, %p43
    %p46 = scmp.ne.s32.totalorder %s29, %s45
    %p47 = scmp.eq.s32.totalorder %s21, 0
    %p48 = por %p46, %p47
    %s50 = sadd.s32 %s49, 1
    %p53 = scmp.eq.s32.totalorder %s15, 1
    %p54 = scmp.ne.s32.totalorder %s49, %s51
    %p55 = scmp.eq.s32.totalorder %s15, 0
    %p56 = por %p54, %p55
    %p57 = scmp.ne.s32.totalorder %s49, %s51
    %p58 = scmp.eq.s32.totalorder %s20, 1
    %p59 = por %p57, %p58
    %p60 = scmp.ne.s32.totalorder %s51, %s52
    %p61 = scmp.eq.s32.totalorder %s20, 0
    %p62 = por %p60, %p61
    %p63 = scmp.ne.s32.totalorder %s51, %s52
    %p64 = scmp.eq.s32.totalorder %s21, 1
    %p65 = por %p63, %p64
    %p67 = scmp.ne.s32.totalorder %s52, %s66
    %p68 = scmp.eq.s32.totalorder %s21, 0
    %p69 = por %p67, %p68
    %s71 = sadd.s32 %s70, 1
    %p74 = scmp.eq.s32.totalorder %s15, 1
    %p75 = scmp.ne.s32.totalorder %s70, %s72
    %p76 = scmp.eq.s32.totalorder %s15, 0
    %p77 = por %p75, %p76
    %p78 = scmp.ne.s32.totalorder %s70, %s72
    %p79 = scmp.eq.s32.totalorder %s20, 1
    %p80 = por %p78, %p79
    %p81 = scmp.ne.s32.totalorder %s72, %s73
    %p82 = scmp.eq.s32.totalorder %s20, 0
    %p83 = por %p81, %p82
    %p84 = scmp.ne.s32.totalorder %s72, %s73
    %p85 = scmp.eq.s32.totalorder %s21, 1
    %p86 = por %p84, %p85
    %p88 = scmp.ne.s32.totalorder %s73, %s87
    %p89 = scmp.eq.s32.totalorder %s21, 0
    %p90 = por %p88, %p89
    %s92 = sadd.s32 %s91, 1
    %p95 = scmp.eq.s32.totalorder %s15, 1
    %p96 = scmp.ne.s32.totalorder %s91, %s93
    %p97 = scmp.eq.s32.totalorder %s15, 0
    %p98 = por %p96, %p97
    %p99 = scmp.ne.s32.totalorder %s91, %s93
    %p100 = scmp.eq.s32.totalorder %s20, 1
    %p101 = por %p99, %p100
    %p102 = scmp.ne.s32.totalorder %s93, %s94
    %p103 = scmp.eq.s32.totalorder %s20, 0
    %p104 = por %p102, %p103
    %p105 = scmp.ne.s32.totalorder %s93, %s94
    %p106 = scmp.eq.s32.totalorder %s21, 1
    %p107 = por %p105, %p106
    %p109 = scmp.ne.s32.totalorder %s94, %s108
    %p110 = scmp.eq.s32.totalorder %s21, 0
    %p111 = por %p109, %p110
    %s113 = sadd.s32 %s112, 1
    %p116 = scmp.eq.s32.totalorder %s15, 1
    %p117 = scmp.ne.s32.totalorder %s112, %s114
    %p118 = scmp.eq.s32.totalorder %s15, 0
    %p119 = por %p117, %p118
    %p120 = scmp.ne.s32.totalorder %s112, %s114
    %p121 = scmp.eq.s32.totalorder %s20, 1
    %p122 = por %p120, %p121
    %p123 = scmp.ne.s32.totalorder %s114, %s115
    %p124 = scmp.eq.s32.totalorder %s20, 0
    %p125 = por %p123, %p124
    %p126 = scmp.ne.s32.totalorder %s114, %s115
    %p127 = scmp.eq.s32.totalorder %s21, 1
    %p128 = por %p126, %p127
    %p130 = scmp.ne.s32.totalorder %s115, %s129
    %p131 = scmp.eq.s32.totalorder %s21, 0
    %p132 = por %p130, %p131
    %s134 = sadd.s32 %s133, 1
    %p137 = scmp.eq.s32.totalorder %s15, 1
    %p138 = scmp.ne.s32.totalorder %s133, %s135
    %p139 = scmp.eq.s32.totalorder %s15, 0
    %p140 = por %p138, %p139
    %p141 = scmp.ne.s32.totalorder %s133, %s135
    %p142 = scmp.eq.s32.totalorder %s20, 1
    %p143 = por %p141, %p142
    %p144 = scmp.ne.s32.totalorder %s135, %s136
    %p145 = scmp.eq.s32.totalorder %s20, 0
    %p146 = por %p144, %p145
    %p147 = scmp.ne.s32.totalorder %s135, %s136
    %p148 = scmp.eq.s32.totalorder %s21, 1
    %p149 = por %p147, %p148
    %p151 = scmp.ne.s32.totalorder %s136, %s150
    %p152 = scmp.eq.s32.totalorder %s21, 0
    %p153 = por %p151, %p152
    %s155 = sadd.s32 %s154, 1
    %p158 = scmp.eq.s32.totalorder %s15, 1
    %p159 = scmp.ne.s32.totalorder %s154, %s156
    %p160 = scmp.eq.s32.totalorder %s15, 0
    %p161 = por %p159, %p160
    %p162 = scmp.ne.s32.totalorder %s154, %s156
    %p163 = scmp.eq.s32.totalorder %s20, 1
    %p164 = por %p162, %p163
    %p165 = scmp.ne.s32.totalorder %s156, %s157
    %p166 = scmp.eq.s32.totalorder %s20, 0
    %p167 = por %p165, %p166
    %p168 = scmp.ne.s32.totalorder %s156, %s157
    %p169 = scmp.eq.s32.totalorder %s21, 1
    %p170 = por %p168, %p169
    %p172 = scmp.ne.s32.totalorder %s157, %s171
    %p173 = scmp.eq.s32.totalorder %s21, 0
    %p174 = por %p172, %p173
    %s176 = sadd.s32 %s175, 1
    %p179 = scmp.eq.s32.totalorder %s15, 1
    %p180 = scmp.ne.s32.totalorder %s175, %s177
    %p181 = scmp.eq.s32.totalorder %s15, 0
    %p182 = por %p180, %p181
    %p183 = scmp.ne.s32.totalorder %s175, %s177
    %p184 = scmp.eq.s32.totalorder %s20, 1
    %p185 = por %p183, %p184
    %p186 = scmp.ne.s32.totalorder %s177, %s178
    %p187 = scmp.eq.s32.totalorder %s20, 0
    %p188 = por %p186, %p187
    %p189 = scmp.ne.s32.totalorder %s177, %s178
    %p190 = scmp.eq.s32.totalorder %s21, 1
    %p191 = por %p189, %p190
    %p193 = scmp.ne.s32.totalorder %s178, %s192
    %p194 = scmp.eq.s32.totalorder %s21, 0
    %p195 = por %p193, %p194
    %s197 = sadd.s32 %s196, 1
    %p200 = scmp.eq.s32.totalorder %s15, 1
    %p201 = scmp.ne.s32.totalorder %s196, %s198
    %p202 = scmp.eq.s32.totalorder %s15, 0
    %p203 = por %p201, %p202
    %p204 = scmp.ne.s32.totalorder %s196, %s198
    %p205 = scmp.eq.s32.totalorder %s20, 1
    %p206 = por %p204, %p205
    %p207 = scmp.ne.s32.totalorder %s198, %s199
    %p208 = scmp.eq.s32.totalorder %s20, 0
    %p209 = por %p207, %p208
    %p210 = scmp.ne.s32.totalorder %s198, %s199
    %p211 = scmp.eq.s32.totalorder %s21, 1
    %p212 = por %p210, %p211
    %p214 = scmp.ne.s32.totalorder %s199, %s213
    %p215 = scmp.eq.s32.totalorder %s21, 0
    %p216 = por %p214, %p215
    %s217 = ssub.s32 %s15, %s22
    %p218 = scmp.eq.s32.totalorder %s217, 0
    %s220 = sadd.s32 %s219, 1
    %s221 = scalar_select %p218, %s219, %s220
    %p224 = pneg %p218
    %p225 = scmp.eq.s32.totalorder %s15, 1
    %p226 = por %p224, %p225
    %p227 = scmp.ne.s32.totalorder %s219, %s222
    %p228 = scmp.eq.s32.totalorder %s15, 0
    %p229 = por %p227, %p228
    %p230 = scmp.ne.s32.totalorder %s219, %s222
    %p231 = scmp.eq.s32.totalorder %s20, 1
    %p232 = por %p230, %p231
    %p233 = scmp.ne.s32.totalorder %s222, %s223
    %p234 = scmp.eq.s32.totalorder %s20, 0
    %p235 = por %p233, %p234
    %p236 = scmp.ne.s32.totalorder %s222, %s223
    %p237 = scmp.eq.s32.totalorder %s21, 1
    %p238 = por %p236, %p237
    %p240 = scmp.ne.s32.totalorder %s223, %s239
    %p241 = scmp.eq.s32.totalorder %s21, 0
    %p242 = por %p240, %p241
    %p243 = scmp.le.s32.totalorder 1, %s15
    %p244 = scmp.lt.s32.totalorder %s15, 3
    %p245 = pnand %p243, %p244
    %p246 = pneg %p245
    // Predicated region
    $region9: #{han_forward.14} parent=5 // pred_check
      _
    $region10: #{han_forward.14} parent=5 // pred_check_branch
      %248 = sbr.rel (%p245) target = $region12
    $region11: #{han_forward.14} parent=5 // pred_region
      %s249 = ssub.s32 %s15, 1
      // Predicated region
      $region13: #{han_forward.14} parent=11 // pred_check
        %p250 = pneg %p62
      $region14: #{han_forward.14} parent=11 // pred_check_branch
        %252 = sbr.rel (%p250) target = $region16
      $region15: #{han_forward.14} parent=11 // pred_region
        _
      $region16: #{han_forward.14} parent=11 // pred_fallthru
        _
      // Predicated region
      $region17: #{han_forward.14} parent=11 // pred_check
        %p253 = pneg %p83
      $region18: #{han_forward.14} parent=11 // pred_check_branch
        %255 = sbr.rel (%p253) target = $region20
      $region19: #{han_forward.14} parent=11 // pred_region
        _
      $region20: #{han_forward.14} parent=11 // pred_fallthru
        _
      // Predicated region
      $region21: #{han_forward.14} parent=11 // pred_check
        %p256 = pneg %p104
      $region22: #{han_forward.14} parent=11 // pred_check_branch
        %258 = sbr.rel (%p256) target = $region24
      $region23: #{han_forward.14} parent=11 // pred_region
        _
      $region24: #{han_forward.14} parent=11 // pred_fallthru
        _
      // Predicated region
      $region25: #{han_forward.14} parent=11 // pred_check
        %p259 = pneg %p125
      $region26: #{han_forward.14} parent=11 // pred_check_branch
        %261 = sbr.rel (%p259) target = $region28
      $region27: #{han_forward.14} parent=11 // pred_region
        _
      $region28: #{han_forward.14} parent=11 // pred_fallthru
        _
      // Predicated region
      $region29: #{han_forward.14} parent=11 // pred_check
        %p262 = pneg %p146
      $region30: #{han_forward.14} parent=11 // pred_check_branch
        %264 = sbr.rel (%p262) target = $region32
      $region31: #{han_forward.14} parent=11 // pred_region
        _
      $region32: #{han_forward.14} parent=11 // pred_fallthru
        _
      // Predicated region
      $region33: #{han_forward.14} parent=11 // pred_check
        %p265 = pneg %p167
      $region34: #{han_forward.14} parent=11 // pred_check_branch
        %267 = sbr.rel (%p265) target = $region36
      $region35: #{han_forward.14} parent=11 // pred_region
        _
      $region36: #{han_forward.14} parent=11 // pred_fallthru
        _
      // Predicated region
      $region37: #{han_forward.14} parent=11 // pred_check
        %p268 = pneg %p188
      $region38: #{han_forward.14} parent=11 // pred_check_branch
        %270 = sbr.rel (%p268) target = $region40
      $region39: #{han_forward.14} parent=11 // pred_region
        _
      $region40: #{han_forward.14} parent=11 // pred_fallthru
        _
      // Predicated region
      $region41: #{han_forward.14} parent=11 // pred_check
        %p271 = pneg %p209
      $region42: #{han_forward.14} parent=11 // pred_check_branch
        %273 = sbr.rel (%p271) target = $region44
      $region43: #{han_forward.14} parent=11 // pred_region
        _
      $region44: #{han_forward.14} parent=11 // pred_fallthru
        _
    $region12: #{han_forward.14} parent=5 // pred_fallthru
      _
    %p274 = scmp.lt.s32.totalorder %s15, 2
    // Predicated region
    $region45: #{han_forward.14} parent=5 // pred_check
      %p275 = pneg %p274
    $region46: #{han_forward.14} parent=5 // pred_check_branch
      %277 = sbr.rel (%p275) target = $region48
    $region47: #{han_forward.14} parent=5 // pred_region
      // Predicated region
      $region49: #{han_forward.14} parent=47 // pred_check
        %p278 = pneg %p35
      $region50: #{han_forward.14} parent=47 // pred_check_branch
        %280 = sbr.rel (%p278) target = $region52
      $region51: #{han_forward.14} parent=47 // pred_region
        %p281 = scmp.lt.s32.totalorder %s15, 1
        %s282 = scalar_select %p281, %s15, 1
        %s283 = smul.addr %s282, 4
        %s284 = smul.addr %s283, 2
        %s285 = scalar_lea.vmem %s0, %s284
      $region52: #{han_forward.14} parent=47 // pred_fallthru
        _
    $region48: #{han_forward.14} parent=5 // pred_fallthru
      _
    %p286 = scmp.le.s32.totalorder 1, %s15
    %p287 = scmp.lt.s32.totalorder %s15, 3
    %p288 = pnand %p286, %p287
    %p289 = pneg %p288
    // Predicated region
    $region53: #{han_forward.14} parent=5 // pred_check
      _
    $region54: #{han_forward.14} parent=5 // pred_check_branch
      %291 = sbr.rel (%p288) target = $region56
    $region55: #{han_forward.14} parent=5 // pred_region
      %s292 = ssub.s32 %s15, 1
      %p293 = scmp.lt.s32.totalorder %s20, 1
      %s294 = scalar_select %p293, %s20, 1
      %s295 = smul.addr %s294, 4
      %s296 = smul.addr %s295, 2
      %s297 = scalar_lea.vmem %s0, %s296
      %p298 = pneg %p41
      %p299 = pneg %p38
      %p300 = pneg %p62
      %p301 = pneg %p59
      %p302 = pneg %p83
      %p303 = pneg %p80
      %p304 = pneg %p104
      %p305 = pneg %p101
      %p306 = pneg %p125
      %p307 = pneg %p122
      %p308 = pneg %p146
      %p309 = pneg %p143
      %p310 = pneg %p167
      %p311 = pneg %p164
      %p312 = pneg %p188
      %p313 = pneg %p185
      %p314 = pneg %p209
      %p315 = pneg %p206
      %p316 = pneg %p235
      %p317 = pneg %p232
      %p318 = scmp.lt.s32.totalorder %s20, 1
      %s319 = scalar_select %p318, %s20, 1
      %s320 = smul.addr %s319, 4
      %s321 = smul.addr %s320, 2
      %s322 = scalar_lea.vmem %s9, %s321
      %p323 = scmp.lt.s32.totalorder %s20, 1
      %s324 = scalar_select %p323, %s20, 1
      %s325 = smul.addr %s324, 4
      %s326 = smul.addr %s325, 2
      %s327 = scalar_lea.vmem %s0, %s326
      %p328 = scmp.lt.s32.totalorder %s20, 1
      %s329 = scalar_select %p328, %s20, 1
      %s330 = smul.addr %s329, 4
      %s331 = smul.addr %s330, 2
      %s332 = scalar_lea.vmem %s9, %s331
      %v334 = vld [vmem:[%s327] sm:$0x3]
      %v335 = vld [vmem:[%s327 + $0x2] sm:$0x3]
      %v336 = vld [vmem:[%s327 + $0x4] sm:$0x3]
      %v337 = vld [vmem:[%s327 + $0x6] sm:$0x3]
      %v338 = vld [vmem:[%s1] sm:$0xf]
      %v339 = vld [vmem:[%s1 + $0x4] sm:$0xf]
      %v340 = vld [vmem:[%s1 + $0x8] sm:$0xf]
      %v341 = vld [vmem:[%s1 + $0xc] sm:$0xf]
      %v342 = vld [vmem:[%s1 + $0x10] sm:$0xf]
      %v343 = vld [vmem:[%s1 + $0x14] sm:$0xf]
      %v344 = vld [vmem:[%s1 + $0x18] sm:$0xf]
      %v345 = vld [vmem:[%s1 + $0x1c] sm:$0xf]
      %v346 = vld [vmem:[%s1 + $0x20] sm:$0xf]
      %v347 = vld [vmem:[%s1 + $0x24] sm:$0xf]
      %v348 = vld [vmem:[%s1 + $0x28] sm:$0xf]
      %v349 = vld [vmem:[%s1 + $0x2c] sm:$0xf]
      %v351 = vshrl.u32 0, 16
      %v353 = vrot.slane %v351, 7
      %v354 = vshll.u32 0, 16
      %v356 = vor.u32 %v353, %v354
      %v358 = vshrl.u32 %v334, 16
      %v360 = vrot.slane %v358, 7
      %v361 = vshll.u32 %v334, 16
      %v363 = vor.u32 %v360, %v361
      %v365 = vshrl.u32 %v335, 16
      %v367 = vrot.slane %v365, 7
      %v368 = vshll.u32 %v335, 16
      %v370 = vor.u32 %v367, %v368
      %v372 = vshrl.u32 %v336, 16
      %v374 = vrot.slane %v372, 7
      %v375 = vshll.u32 %v336, 16
      %v377 = vor.u32 %v374, %v375
      %v379 = vshrl.u32 %v337, 16
      %v381 = vrot.slane %v379, 7
      %v382 = vshll.u32 %v337, 16
      %v384 = vor.u32 %v381, %v382
      %vm390 = vcmask 1040384
      %vm391 = vsmask.f32 256
      %vm392 = vmand %vm390, %vm391
      %v393 = vsel %vm392, 0, %v356
      %v394 = vsel %vm392, 0, %v363
      %v395 = vsel %vm392, 0, %v370
      %v396 = vsel %vm392, 0, %v377
      %v397 = vsel %vm392, 0, %v384
      %vm398 = vcmask 1042432
      %vm399 = vsmask.f32 2304
      %vm400 = vmand %vm398, %vm399
      %v401 = vsel %vm400, %v393, 0
      %v402 = vsel %vm400, %v394, 0
      %v403 = vsel %vm400, %v395, 0
      %v404 = vsel %vm400, %v396, 0
      %v405 = vsel %vm400, %v397, 0
      %v407 = vshrl.u32 %v401, 16
      %v409 = vshll.u32 %v401, 16
      %v411 = vrot.slane %v409, 1
      %v412 = vor.u32 %v407, %v411
      %v414 = vshrl.u32 %v402, 16
      %v416 = vshll.u32 %v402, 16
      %v418 = vrot.slane %v416, 1
      %v419 = vor.u32 %v414, %v418
      %v421 = vshrl.u32 %v403, 16
      %v423 = vshll.u32 %v403, 16
      %v425 = vrot.slane %v423, 1
      %v426 = vor.u32 %v421, %v425
      %v428 = vshrl.u32 %v404, 16
      %v430 = vshll.u32 %v404, 16
      %v432 = vrot.slane %v430, 1
      %v433 = vor.u32 %v428, %v432
      %v435 = vshrl.u32 %v405, 16
      %v437 = vshll.u32 %v405, 16
      %v439 = vrot.slane %v437, 1
      %v440 = vor.u32 %v435, %v439
      %441 = vrot.lane.b32.xlu0 %v412, 32
      %v442 = vpop.permute.xlu0 %441
      %443 = vrot.lane.b32.xlu0 %v419, 32
      %v444 = vpop.permute.xlu0 %443
      %445 = vrot.lane.b32.xlu0 %v426, 32
      %v446 = vpop.permute.xlu0 %445
      %447 = vrot.lane.b32.xlu0 %v433, 32
      %v448 = vpop.permute.xlu0 %447
      %449 = vrot.lane.b32.xlu0 %v440, 32
      %v450 = vpop.permute.xlu0 %449
      %v456 = vrot.slane %v401, 1
      %v457 = vrot.slane %v402, 1
      %v458 = vrot.slane %v403, 1
      %v459 = vrot.slane %v404, 1
      %v460 = vrot.slane %v405, 1
      %461 = vrot.lane.b32.xlu0 %v456, 64
      %v462 = vpop.permute.xlu0 %461
      %463 = vrot.lane.b32.xlu0 %v457, 64
      %v464 = vpop.permute.xlu0 %463
      %465 = vrot.lane.b32.xlu0 %v458, 64
      %v466 = vpop.permute.xlu0 %465
      %467 = vrot.lane.b32.xlu0 %v459, 64
      %v468 = vpop.permute.xlu0 %467
      %469 = vrot.lane.b32.xlu0 %v460, 64
      %v470 = vpop.permute.xlu0 %469
      %vm471 = vcmask 261120
      %v473 = vsel %vm471, %v401, %v442
      %v475 = vsel %vm471, %v402, %v444
      %v477 = vsel %vm471, %v403, %v446
      %v479 = vsel %vm471, %v404, %v448
      %v481 = vsel %vm471, %v405, %v450
      %vm482 = vcmask 523264
      %v484 = vsel %vm482, %v473, %v462
      %v486 = vsel %vm482, %v475, %v464
      %v488 = vsel %vm482, %v477, %v466
      %v490 = vsel %vm482, %v479, %v468
      %v492 = vsel %vm482, %v481, %v470
      %v498 = vcombine.low %v484, %v486
      %v499 = vcombine.low %v488, %v490
      %v501 = vunpack.c.l.s4 1983009808
      %v502 = vunpack.c.0.s8 %v501
      %v503 = vlaneseq
      %v504 = vshrl.u32 %v503, 7
      %v505 = vsub.s32 %v502, %v504
      %v506 = vrot.slane %v498, %v505
      %v508 = vunpack.c.l.s4 1983009808
      %v509 = vunpack.c.0.s8 %v508
      %v510 = vlaneseq
      %v511 = vshrl.u32 %v510, 7
      %v512 = vsub.s32 %v509, %v511
      %v513 = vrot.slane %v499, %v512
      %v514 = vcombine.low %v506, %v513
      %v515 = vcombine.low %v492, %v484
      %v517 = vunpack.c.l.s4 1983009808
      %v518 = vunpack.c.0.s8 %v517
      %v519 = vlaneseq
      %v520 = vshrl.u32 %v519, 7
      %v521 = vsub.s32 %v518, %v520
      %v522 = vrot.slane %v515, %v521
      %v535 = vunpack.c.l.b16 %v338
      %v536 = vunpack.c.l.b16 %v339
      %v537 = vunpack.c.l.b16 %v340
      %v538 = vunpack.c.l.b16 %v341
      %v539 = vunpack.c.l.b16 %v342
      %v540 = vunpack.c.l.b16 %v343
      %v541 = vunpack.c.l.b16 %v344
      %v542 = vunpack.c.l.b16 %v345
      %v543 = vunpack.c.l.b16 %v346
      %v544 = vunpack.c.l.b16 %v347
      %v545 = vunpack.c.l.b16 %v348
      %v546 = vunpack.c.l.b16 %v349
      %v547 = vpack.c.b16 %v536, %v535
      %v548 = vpack.c.b16 %v538, %v537
      %v549 = vpack.c.b16 %v540, %v539
      %v550 = vpack.c.b16 %v542, %v541
      %v551 = vpack.c.b16 %v544, %v543
      %v552 = vpack.c.b16 %v546, %v545
      %vm559 = vcmask 785408
      %v561 = vsel %vm559, %v514, 0
      %v564 = vsel %vm559, %v522, 0
      %566 = vmatprep.subr.bf16.mxu0 0
      %567 = vmatpush1.bf16.msra.mxu0 0
      %568 = vmatprep.subr.bf16.mxu0 0
      %569 = vmatpush1.bf16.msra.mxu0 0
      %570 = vmatprep.subr.bf16.mxu0 0
      %571 = vmatpush1.bf16.msra.mxu0 %v552
      %572 = vmatprep.subr.bf16.mxu0 0
      %573 = vmatpush1.bf16.msra.mxu0 %v551
      %574 = vmatprep.subr.bf16.mxu0 0
      %575 = vmatpush1.bf16.msra.mxu0 %v550
      %576 = vmatprep.subr.bf16.mxu0 0
      %577 = vmatpush1.bf16.msra.mxu0 %v549
      %578 = vmatprep.subr.bf16.mxu0 0
      %579 = vmatpush1.bf16.msra.mxu0 %v548
      %580 = vmatprep.subr.bf16.mxu0 0
      %581 = vmatpush1.bf16.msra.mxu0 %v547
      %582 = vmatprep.subr.bf16.mxu0 0
      %583 = vmatpush2.bf16.msra.mxu0 0
      %584 = vmatprep.subr.bf16.mxu0 0
      %585 = vmatpush2.bf16.msra.mxu0 0
      %586 = vmatprep.subr.bf16.mxu0 0
      %587 = vmatpush2.bf16.msra.mxu0 0
      %588 = vmatprep.subr.bf16.mxu0 0
      %589 = vmatpush2.bf16.msra.mxu0 0
      %590 = vmatprep.subr.bf16.mxu0 0
      %591 = vmatpush2.bf16.msra.mxu0 0
      %592 = vmatprep.subr.bf16.mxu0 0
      %593 = vmatpush2.bf16.msra.mxu0 0
      %594 = vmatprep.subr.bf16.mxu0 0
      %595 = vmatpush2.bf16.msra.mxu0 0
      %596 = vmatprep.subr.bf16.mxu0 0
      %597 = vmatpush2.bf16.msra.mxu0 0
      %598 = vmatprep.mubr.bf16.mxu0 0
      %599 = vmatmul.mubr.bf16.gmra.mxu0 %v561
      %v600 = vpop.f32.mrf.mxu0
      %v601 = vadd.f32 0.0, %v600
      %v602 = vpop.f32.mrf.mxu0
      %v603 = vpop.f32.mrf.mxu0
      %v604 = vadd.f32 0.0, %v603
      %v605 = vpop.f32.mrf.mxu0
      %606 = vmatprep.mubr.bf16.mxu0 0
      %607 = vmatmul.mubr.bf16.gmra.mxu0 %v564
      %v608 = vpop.f32.mrf.mxu0
      %v609 = vadd.f32 0.0, %v608
      %v610 = vpop.f32.mrf.mxu0
      %v611 = vpop.f32.mrf.mxu0
      %v612 = vpop.f32.mrf.mxu0
      %613 = vdwg.mxu0
      %v617 = vcombine.high %v601, %v601
      %v618 = vcombine.high %v604, %v604
      %v619 = vcombine.high %v609, %v609
      %622 = vrot.lane.b32.xlu0 %v617, 96
      %v623 = vpop.permute.xlu0 %622
      %624 = vrot.lane.b32.xlu0 %v604, 96
      %v625 = vpop.permute.xlu0 %624
      %626 = vrot.lane.b32.xlu0 %v618, 96
      %v627 = vpop.permute.xlu0 %626
      %628 = vrot.lane.b32.xlu0 %v609, 96
      %v629 = vpop.permute.xlu0 %628
      %v634 = vadd.f32 %v601, %v623
      %v635 = vadd.f32 %v617, %v625
      %v636 = vadd.f32 %v604, %v627
      %v637 = vadd.f32 %v618, %v629
      %638 = vrot.lane.b32.xlu0 %v604, 64
      %v639 = vpop.permute.xlu0 %638
      %640 = vrot.lane.b32.xlu0 %v618, 64
      %v641 = vpop.permute.xlu0 %640
      %642 = vrot.lane.b32.xlu0 %v609, 64
      %v643 = vpop.permute.xlu0 %642
      %644 = vrot.lane.b32.xlu0 %v619, 64
      %v645 = vpop.permute.xlu0 %644
      %v650 = vadd.f32 %v634, %v639
      %v651 = vadd.f32 %v635, %v641
      %v652 = vadd.f32 %v636, %v643
      %v653 = vadd.f32 %v637, %v645
      %v654 = vld [vmem:[%s2] sm:$0x1]
      %v656 = vlaneseq
      %v657 = vshrl.u32 %v656, 7
      %v658 = vsub.s32 0, %v657
      %v659 = vrot.slane %v654, %v658
      %v661 = vadd.f32 %v650, %v659
      %v662 = vadd.f32 %v651, %v659
      %v663 = vadd.f32 %v652, %v659
      %v664 = vadd.f32 %v653, %v659
      %v665 = vmax.f32 %v661, 0.0
      %v666 = vmax.f32 %v662, 0.0
      %v667 = vmax.f32 %v663, 0.0
      %v668 = vmax.f32 %v664, 0.0
      %v669 = vpack.c.bf16 %v665, %v665
      %v670 = vpack.c.bf16 %v666, %v666
      %v671 = vpack.c.bf16 %v667, %v667
      %v672 = vpack.c.bf16 %v668, %v668
      %v673 = vld [vmem:[%s3] sm:$0xf]
      %v674 = vld [vmem:[%s3 + $0x4] sm:$0xf]
      %v675 = vld [vmem:[%s3 + $0x8] sm:$0xf]
      %v676 = vld [vmem:[%s3 + $0xc] sm:$0xf]
      %v677 = vld [vmem:[%s3 + $0x10] sm:$0xf]
      %v678 = vld [vmem:[%s3 + $0x14] sm:$0xf]
      %v679 = vld [vmem:[%s3 + $0x18] sm:$0xf]
      %v680 = vld [vmem:[%s3 + $0x1c] sm:$0xf]
      %v681 = vld [vmem:[%s3 + $0x20] sm:$0xf]
      %v682 = vld [vmem:[%s3 + $0x24] sm:$0xf]
      %v683 = vld [vmem:[%s3 + $0x28] sm:$0xf]
      %v684 = vld [vmem:[%s3 + $0x2c] sm:$0xf]
      %v686 = vshrl.u32 %v669, 16
      %v688 = vrot.slane %v686, 7
      %v689 = vshll.u32 %v669, 16
      %v691 = vor.u32 %v688, %v689
      %v693 = vshrl.u32 %v670, 16
      %v695 = vrot.slane %v693, 7
      %v696 = vshll.u32 %v670, 16
      %v698 = vor.u32 %v695, %v696
      %v700 = vshrl.u32 %v671, 16
      %v702 = vrot.slane %v700, 7
      %v703 = vshll.u32 %v671, 16
      %v705 = vor.u32 %v702, %v703
      %v707 = vshrl.u32 %v672, 16
      %v709 = vrot.slane %v707, 7
      %v710 = vshll.u32 %v672, 16
      %v712 = vor.u32 %v709, %v710
      %v717 = vsel %vm392, 0, %v691
      %v718 = vsel %vm392, 0, %v698
      %v719 = vsel %vm392, 0, %v705
      %v720 = vsel %vm392, 0, %v712
      %v721 = vsel %vm400, %v717, 0
      %v722 = vsel %vm400, %v718, 0
      %v723 = vsel %vm400, %v719, 0
      %v724 = vsel %vm400, %v720, 0
      %v726 = vshrl.u32 %v721, 16
      %v728 = vshll.u32 %v721, 16
      %v730 = vrot.slane %v728, 1
      %v731 = vor.u32 %v726, %v730
      %v733 = vshrl.u32 %v722, 16
      %v735 = vshll.u32 %v722, 16
      %v737 = vrot.slane %v735, 1
      %v738 = vor.u32 %v733, %v737
      %v740 = vshrl.u32 %v723, 16
      %v742 = vshll.u32 %v723, 16
      %v744 = vrot.slane %v742, 1
      %v745 = vor.u32 %v740, %v744
      %v747 = vshrl.u32 %v724, 16
      %v749 = vshll.u32 %v724, 16
      %v751 = vrot.slane %v749, 1
      %v752 = vor.u32 %v747, %v751
      %753 = vrot.lane.b32.xlu0 %v731, 32
      %v754 = vpop.permute.xlu0 %753
      %755 = vrot.lane.b32.xlu0 %v738, 32
      %v756 = vpop.permute.xlu0 %755
      %757 = vrot.lane.b32.xlu0 %v745, 32
      %v758 = vpop.permute.xlu0 %757
      %759 = vrot.lane.b32.xlu0 %v752, 32
      %v760 = vpop.permute.xlu0 %759
      %v765 = vrot.slane %v721, 1
      %v766 = vrot.slane %v722, 1
      %v767 = vrot.slane %v723, 1
      %v768 = vrot.slane %v724, 1
      %769 = vrot.lane.b32.xlu0 %v765, 64
      %v770 = vpop.permute.xlu0 %769
      %771 = vrot.lane.b32.xlu0 %v766, 64
      %v772 = vpop.permute.xlu0 %771
      %773 = vrot.lane.b32.xlu0 %v767, 64
      %v774 = vpop.permute.xlu0 %773
      %775 = vrot.lane.b32.xlu0 %v768, 64
      %v776 = vpop.permute.xlu0 %775
      %v778 = vsel %vm471, %v721, %v754
      %v780 = vsel %vm471, %v722, %v756
      %v782 = vsel %vm471, %v723, %v758
      %v784 = vsel %vm471, %v724, %v760
      %v786 = vsel %vm482, %v778, %v770
      %v788 = vsel %vm482, %v780, %v772
      %v790 = vsel %vm482, %v782, %v774
      %v792 = vsel %vm482, %v784, %v776
      %v797 = vcombine.low %v484, %v786
      %v798 = vcombine.low %v788, %v790
      %v800 = vunpack.c.l.s4 1983009808
      %v801 = vunpack.c.0.s8 %v800
      %v802 = vlaneseq
      %v803 = vshrl.u32 %v802, 7
      %v804 = vsub.s32 %v801, %v803
      %v805 = vrot.slane %v797, %v804
      %v807 = vunpack.c.l.s4 1983009808
      %v808 = vunpack.c.0.s8 %v807
      %v809 = vlaneseq
      %v810 = vshrl.u32 %v809, 7
      %v811 = vsub.s32 %v808, %v810
      %v812 = vrot.slane %v798, %v811
      %v813 = vcombine.low %v805, %v812
      %v814 = vcombine.low %v792, %v484
      %v816 = vunpack.c.l.s4 1983009808
      %v817 = vunpack.c.0.s8 %v816
      %v818 = vlaneseq
      %v819 = vshrl.u32 %v818, 7
      %v820 = vsub.s32 %v817, %v819
      %v821 = vrot.slane %v814, %v820
      %v834 = vunpack.c.l.b16 %v673
      %v835 = vunpack.c.l.b16 %v674
      %v836 = vunpack.c.l.b16 %v675
      %v837 = vunpack.c.l.b16 %v676
      %v838 = vunpack.c.l.b16 %v677
      %v839 = vunpack.c.l.b16 %v678
      %v840 = vunpack.c.l.b16 %v679
      %v841 = vunpack.c.l.b16 %v680
      %v842 = vunpack.c.l.b16 %v681
      %v843 = vunpack.c.l.b16 %v682
      %v844 = vunpack.c.l.b16 %v683
      %v845 = vunpack.c.l.b16 %v684
      %v846 = vpack.c.b16 %v835, %v834
      %v847 = vpack.c.b16 %v837, %v836
      %v848 = vpack.c.b16 %v839, %v838
      %v849 = vpack.c.b16 %v841, %v840
      %v850 = vpack.c.b16 %v843, %v842
      %v851 = vpack.c.b16 %v845, %v844
      %v859 = vsel %vm559, %v813, 0
      %v862 = vsel %vm559, %v821, 0
      %864 = vmatprep.subr.bf16.mxu0 0
      %865 = vmatpush1.bf16.msra.mxu0 0
      %866 = vmatprep.subr.bf16.mxu0 0
      %867 = vmatpush1.bf16.msra.mxu0 0
      %868 = vmatprep.subr.bf16.mxu0 0
      %869 = vmatpush1.bf16.msra.mxu0 %v851
      %870 = vmatprep.subr.bf16.mxu0 0
      %871 = vmatpush1.bf16.msra.mxu0 %v850
      %872 = vmatprep.subr.bf16.mxu0 0
      %873 = vmatpush1.bf16.msra.mxu0 %v849
      %874 = vmatprep.subr.bf16.mxu0 0
      %875 = vmatpush1.bf16.msra.mxu0 %v848
      %876 = vmatprep.subr.bf16.mxu0 0
      %877 = vmatpush1.bf16.msra.mxu0 %v847
      %878 = vmatprep.subr.bf16.mxu0 0
      %879 = vmatpush1.bf16.msra.mxu0 %v846
      %880 = vmatprep.subr.bf16.mxu0 0
      %881 = vmatpush2.bf16.msra.mxu0 0
      %882 = vmatprep.subr.bf16.mxu0 0
      %883 = vmatpush2.bf16.msra.mxu0 0
      %884 = vmatprep.subr.bf16.mxu0 0
      %885 = vmatpush2.bf16.msra.mxu0 0
      %886 = vmatprep.subr.bf16.mxu0 0
      %887 = vmatpush2.bf16.msra.mxu0 0
      %888 = vmatprep.subr.bf16.mxu0 0
      %889 = vmatpush2.bf16.msra.mxu0 0
      %890 = vmatprep.subr.bf16.mxu0 0
      %891 = vmatpush2.bf16.msra.mxu0 0
      %892 = vmatprep.subr.bf16.mxu0 0
      %893 = vmatpush2.bf16.msra.mxu0 0
      %894 = vmatprep.subr.bf16.mxu0 0
      %895 = vmatpush2.bf16.msra.mxu0 0
      %896 = vmatprep.mubr.bf16.mxu0 0
      %897 = vmatmul.mubr.bf16.gmra.mxu0 %v859
      %v898 = vpop.f32.mrf.mxu0
      %v899 = vadd.f32 0.0, %v898
      %v900 = vpop.f32.mrf.mxu0
      %v901 = vpop.f32.mrf.mxu0
      %v902 = vadd.f32 0.0, %v901
      %v903 = vpop.f32.mrf.mxu0
      %904 = vmatprep.mubr.bf16.mxu0 0
      %905 = vmatmul.mubr.bf16.gmra.mxu0 %v862
      %v906 = vpop.f32.mrf.mxu0
      %v907 = vadd.f32 0.0, %v906
      %v908 = vpop.f32.mrf.mxu0
      %v909 = vpop.f32.mrf.mxu0
      %v910 = vpop.f32.mrf.mxu0
      %911 = vdwg.mxu0
      %v915 = vcombine.high %v899, %v899
      %v916 = vcombine.high %v902, %v902
      %v917 = vcombine.high %v907, %v907
      %920 = vrot.lane.b32.xlu0 %v915, 96
      %v921 = vpop.permute.xlu0 %920
      %922 = vrot.lane.b32.xlu0 %v902, 96
      %v923 = vpop.permute.xlu0 %922
      %924 = vrot.lane.b32.xlu0 %v916, 96
      %v925 = vpop.permute.xlu0 %924
      %926 = vrot.lane.b32.xlu0 %v907, 96
      %v927 = vpop.permute.xlu0 %926
      %v932 = vadd.f32 %v899, %v921
      %v933 = vadd.f32 %v915, %v923
      %v934 = vadd.f32 %v902, %v925
      %v935 = vadd.f32 %v916, %v927
      %936 = vrot.lane.b32.xlu0 %v902, 64
      %v937 = vpop.permute.xlu0 %936
      %938 = vrot.lane.b32.xlu0 %v916, 64
      %v939 = vpop.permute.xlu0 %938
      %940 = vrot.lane.b32.xlu0 %v907, 64
      %v941 = vpop.permute.xlu0 %940
      %942 = vrot.lane.b32.xlu0 %v917, 64
      %v943 = vpop.permute.xlu0 %942
      %v948 = vadd.f32 %v932, %v937
      %v949 = vadd.f32 %v933, %v939
      %v950 = vadd.f32 %v934, %v941
      %v951 = vadd.f32 %v935, %v943
      %v952 = vld [vmem:[%s4] sm:$0x1]
      %v954 = vlaneseq
      %v955 = vshrl.u32 %v954, 7
      %v956 = vsub.s32 0, %v955
      %v957 = vrot.slane %v952, %v956
      %v959 = vadd.f32 %v948, %v957
      %v960 = vadd.f32 %v949, %v957
      %v961 = vadd.f32 %v950, %v957
      %v962 = vadd.f32 %v951, %v957
      %v967 = vcombine.low %v959, %v960
      %v968 = vcombine.low %v961, %v962
      %v971 = vsel %vm471, %v967, 0.0
      %v972 = vsel %vm471, %v968, 0.0
      %v973 = vadd.f32 %v971, %v972
      %v974 = vrot.slane %v973, 4
      %v975 = vadd.f32 %v973, %v974
      %v976 = vrot.slane %v975, 2
      %v977 = vadd.f32 %v975, %v976
      %v978 = vrot.slane %v977, 1
      %v979 = vadd.f32 %v977, %v978
      %v980 = vrcp.pop 16.0
      %v981 = vmul.f32 %v979, %v980
      %v982 = vld [vmem:[%s5] sm:$0xff]
      %v983 = vld [vmem:[%s5 + $0x8] sm:$0xff]
      %v984 = vld [vmem:[%s5 + $0x10] sm:$0xff]
      %v985 = vld [vmem:[%s5 + $0x18] sm:$0xff]
      %v986 = vld [vmem:[%s6] sm:$0x1]
      %v988 = vsel %vm471, %v981, 0
      %990 = vmatprep.subr.mxu0 0.0
      %991 = vmatpush1.msra.mxu0 0.0
      %992 = vmatprep.subr.mxu0 0.0
      %993 = vmatpush1.msra.mxu0 0.0
      %994 = vmatprep.subr.mxu0 0.0
      %995 = vmatpush1.msra.mxu0 0.0
      %996 = vmatprep.subr.mxu0 0.0
      %997 = vmatpush1.msra.mxu0 0.0
      %998 = vmatprep.subr.mxu0 0.0
      %999 = vmatpush1.msra.mxu0 0.0
      %1000 = vmatprep.subr.mxu0 0.0
      %1001 = vmatpush1.msra.mxu0 0.0
      %1002 = vmatprep.subr.mxu0 0.0
      %1003 = vmatpush1.msra.mxu0 0.0
      %1004 = vmatprep.subr.mxu0 0.0
      %1005 = vmatpush1.msra.mxu0 0.0
      %1006 = vmatprep.subr.mxu0 0.0
      %1007 = vmatpush1.msra.mxu0 0.0
      %1008 = vmatprep.subr.mxu0 0.0
      %1009 = vmatpush1.msra.mxu0 0.0
      %1010 = vmatprep.subr.mxu0 0.0
      %1011 = vmatpush1.msra.mxu0 0.0
      %1012 = vmatprep.subr.mxu0 0.0
      %1013 = vmatpush1.msra.mxu0 0.0
      %1014 = vmatprep.subr.mxu0 0.0
      %1015 = vmatpush1.msra.mxu0 %v985
      %1016 = vmatprep.subr.mxu0 0.0
      %1017 = vmatpush1.msra.mxu0 %v984
      %1018 = vmatprep.subr.mxu0 0.0
      %1019 = vmatpush1.msra.mxu0 %v983
      %1020 = vmatprep.subr.mxu0 0.0
      %1021 = vmatpush1.msra.mxu0 %v982
      %1022 = vmatprep.subr.mxu0 0.0
      %1023 = vmatpush2.msra.mxu0 0.0
      %1024 = vmatprep.subr.mxu0 0.0
      %1025 = vmatpush2.msra.mxu0 0.0
      %1026 = vmatprep.subr.mxu0 0.0
      %1027 = vmatpush2.msra.mxu0 0.0
      %1028 = vmatprep.subr.mxu0 0.0
      %1029 = vmatpush2.msra.mxu0 0.0
      %1030 = vmatprep.subr.mxu0 0.0
      %1031 = vmatpush2.msra.mxu0 0.0
      %1032 = vmatprep.subr.mxu0 0.0
      %1033 = vmatpush2.msra.mxu0 0.0
      %1034 = vmatprep.subr.mxu0 0.0
      %1035 = vmatpush2.msra.mxu0 0.0
      %1036 = vmatprep.subr.mxu0 0.0
      %1037 = vmatpush2.msra.mxu0 0.0
      %1038 = vmatprep.subr.mxu0 0.0
      %1039 = vmatpush2.msra.mxu0 0.0
      %1040 = vmatprep.subr.mxu0 0.0
      %1041 = vmatpush2.msra.mxu0 0.0
      %1042 = vmatprep.subr.mxu0 0.0
      %1043 = vmatpush2.msra.mxu0 0.0
      %1044 = vmatprep.subr.mxu0 0.0
      %1045 = vmatpush2.msra.mxu0 0.0
      %1046 = vmatprep.subr.mxu0 0.0
      %1047 = vmatpush2.msra.mxu0 0.0
      %1048 = vmatprep.subr.mxu0 0.0
      %1049 = vmatpush2.msra.mxu0 0.0
      %1050 = vmatprep.subr.mxu0 0.0
      %1051 = vmatpush2.msra.mxu0 0.0
      %1052 = vmatprep.subr.mxu0 0.0
      %1053 = vmatpush2.msra.mxu0 0.0
      %1054 = vmatprep.mubr.f32.mxu0 0.0
      %1055 = vmatmul.mubr.f32.gmra.mxu0 %v988
      %v1056 = vpop.f32.mrf.mxu0
      %v1057 = vadd.f32 %v986, %v1056
      %v1058 = vpop.f32.mrf.mxu0
      %1059 = vdwg.mxu0
      %v1060 = vmax.f32 %v1057, 0.0
      %v1061 = vld [vmem:[%s7] sm:$0x3]
      %v1062 = vld [vmem:[%s8] sm:$0x1]
      %vm1063 = vcmask 15360
      %v1065 = vsel %vm1063, %v1060, 0
      %vm1067 = vcmask 1041408
      %v1069 = vsel %vm1067, %v1061, 0
      %1071 = vmatprep.subr.mxu0 0.0
      %1072 = vmatpush1.msra.mxu0 0.0
      %1073 = vmatprep.subr.mxu0 0.0
      %1074 = vmatpush1.msra.mxu0 0.0
      %1075 = vmatprep.subr.mxu0 0.0
      %1076 = vmatpush1.msra.mxu0 0.0
      %1077 = vmatprep.subr.mxu0 0.0
      %1078 = vmatpush1.msra.mxu0 0.0
      %1079 = vmatprep.subr.mxu0 0.0
      %1080 = vmatpush1.msra.mxu0 0.0
      %1081 = vmatprep.subr.mxu0 0.0
      %1082 = vmatpush1.msra.mxu0 0.0
      %1083 = vmatprep.subr.mxu0 0.0
      %1084 = vmatpush1.msra.mxu0 0.0
      %1085 = vmatprep.subr.mxu0 0.0
      %1086 = vmatpush1.msra.mxu0 0.0
      %1087 = vmatprep.subr.mxu0 0.0
      %1088 = vmatpush1.msra.mxu0 0.0
      %1089 = vmatprep.subr.mxu0 0.0
      %1090 = vmatpush1.msra.mxu0 0.0
      %1091 = vmatprep.subr.mxu0 0.0
      %1092 = vmatpush1.msra.mxu0 0.0
      %1093 = vmatprep.subr.mxu0 0.0
      %1094 = vmatpush1.msra.mxu0 0.0
      %1095 = vmatprep.subr.mxu0 0.0
      %1096 = vmatpush1.msra.mxu0 0.0
      %1097 = vmatprep.subr.mxu0 0.0
      %1098 = vmatpush1.msra.mxu0 0.0
      %1099 = vmatprep.subr.mxu0 0.0
      %1100 = vmatpush1.msra.mxu0 0.0
      %1101 = vmatprep.subr.mxu0 0.0
      %1102 = vmatpush1.msra.mxu0 %v1069
      %1103 = vmatprep.subr.mxu0 0.0
      %1104 = vmatpush2.msra.mxu0 0.0
      %1105 = vmatprep.subr.mxu0 0.0
      %1106 = vmatpush2.msra.mxu0 0.0
      %1107 = vmatprep.subr.mxu0 0.0
      %1108 = vmatpush2.msra.mxu0 0.0
      %1109 = vmatprep.subr.mxu0 0.0
      %1110 = vmatpush2.msra.mxu0 0.0
      %1111 = vmatprep.subr.mxu0 0.0
      %1112 = vmatpush2.msra.mxu0 0.0
      %1113 = vmatprep.subr.mxu0 0.0
      %1114 = vmatpush2.msra.mxu0 0.0
      %1115 = vmatprep.subr.mxu0 0.0
      %1116 = vmatpush2.msra.mxu0 0.0
      %1117 = vmatprep.subr.mxu0 0.0
      %1118 = vmatpush2.msra.mxu0 0.0
      %1119 = vmatprep.subr.mxu0 0.0
      %1120 = vmatpush2.msra.mxu0 0.0
      %1121 = vmatprep.subr.mxu0 0.0
      %1122 = vmatpush2.msra.mxu0 0.0
      %1123 = vmatprep.subr.mxu0 0.0
      %1124 = vmatpush2.msra.mxu0 0.0
      %1125 = vmatprep.subr.mxu0 0.0
      %1126 = vmatpush2.msra.mxu0 0.0
      %1127 = vmatprep.subr.mxu0 0.0
      %1128 = vmatpush2.msra.mxu0 0.0
      %1129 = vmatprep.subr.mxu0 0.0
      %1130 = vmatpush2.msra.mxu0 0.0
      %1131 = vmatprep.subr.mxu0 0.0
      %1132 = vmatpush2.msra.mxu0 0.0
      %1133 = vmatprep.subr.mxu0 0.0
      %1134 = vmatpush2.msra.mxu0 0.0
      %1135 = vmatprep.mubr.f32.mxu0 0.0
      %1136 = vmatmul.mubr.f32.gmra.mxu0 %v1065
      %v1137 = vpop.f32.mrf.mxu0
      %v1138 = vadd.f32 %v1062, %v1137
      %v1139 = vpop.f32.mrf.mxu0
      %1140 = vdwg.mxu0
      %v1141 = vxor.u32 %v1138, 2147483648
      %v1142 = vmul.f32 %v1141, 1.442695
      %v1143 = vpow.pop %v1142
      %v1144 = vadd.f32 %v1143, 1.0
      %v1145 = vrcp.pop %v1144
      %v1146 = vmul.f32 1.0, %v1145
      %v1147 = vlaneseq
      %v1148 = vshrl.u32 %v1147, 7
      %v1149 = vsub.s32 0, %v1148
      %v1150 = vrot.slane %v1146, %v1149
      %v1151 = vmul.f32 %v959, %v1150
      %v1152 = vmul.f32 %v960, %v1150
      %v1153 = vmul.f32 %v961, %v1150
      %v1154 = vmul.f32 %v962, %v1150
      %v1155 = vunpack.c.l.bf16 %v334
      %v1156 = vunpack.c.l.bf16 %v335
      %v1157 = vunpack.c.l.bf16 %v336
      %v1158 = vunpack.c.l.bf16 %v337
      %v1159 = vadd.f32 %v1151, %v1155
      %v1160 = vadd.f32 %v1152, %v1156
      %v1161 = vadd.f32 %v1153, %v1157
      %v1162 = vadd.f32 %v1154, %v1158
      %v1163 = vpack.c.bf16 %v1159, %v1159
      %v1164 = vpack.c.bf16 %v1160, %v1160
      %v1165 = vpack.c.bf16 %v1161, %v1161
      %v1166 = vpack.c.bf16 %v1162, %v1162
      %s1167 = scalar_lea.vmem %s1, 48
      %v1168 = vld [vmem:[%s1167] sm:$0xf]
      %v1169 = vld [vmem:[%s1167 + $0x4] sm:$0xf]
      %v1170 = vld [vmem:[%s1167 + $0x8] sm:$0xf]
      %v1171 = vld [vmem:[%s1167 + $0xc] sm:$0xf]
      %v1172 = vld [vmem:[%s1167 + $0x10] sm:$0xf]
      %v1173 = vld [vmem:[%s1167 + $0x14] sm:$0xf]
      %v1174 = vld [vmem:[%s1167 + $0x18] sm:$0xf]
      %v1175 = vld [vmem:[%s1167 + $0x1c] sm:$0xf]
      %v1176 = vld [vmem:[%s1167 + $0x20] sm:$0xf]
      %v1177 = vld [vmem:[%s1167 + $0x24] sm:$0xf]
      %v1178 = vld [vmem:[%s1167 + $0x28] sm:$0xf]
      %v1179 = vld [vmem:[%s1167 + $0x2c] sm:$0xf]
      %v1181 = vshrl.u32 %v1163, 16
      %v1183 = vrot.slane %v1181, 7
      %v1184 = vshll.u32 %v1163, 16
      %v1186 = vor.u32 %v1183, %v1184
      %v1188 = vshrl.u32 %v1164, 16
      %v1190 = vrot.slane %v1188, 7
      %v1191 = vshll.u32 %v1164, 16
      %v1193 = vor.u32 %v1190, %v1191
      %v1195 = vshrl.u32 %v1165, 16
      %v1197 = vrot.slane %v1195, 7
      %v1198 = vshll.u32 %v1165, 16
      %v1200 = vor.u32 %v1197, %v1198
      %v1202 = vshrl.u32 %v1166, 16
      %v1204 = vrot.slane %v1202, 7
      %v1205 = vshll.u32 %v1166, 16
      %v1207 = vor.u32 %v1204, %v1205
      %v1212 = vsel %vm392, 0, %v1186
      %v1213 = vsel %vm392, 0, %v1193
      %v1214 = vsel %vm392, 0, %v1200
      %v1215 = vsel %vm392, 0, %v1207
      %v1216 = vsel %vm400, %v1212, 0
      %v1217 = vsel %vm400, %v1213, 0
      %v1218 = vsel %vm400, %v1214, 0
      %v1219 = vsel %vm400, %v1215, 0
      %v1221 = vshrl.u32 %v1216, 16
      %v1223 = vshll.u32 %v1216, 16
      %v1225 = vrot.slane %v1223, 1
      %v1226 = vor.u32 %v1221, %v1225
      %v1228 = vshrl.u32 %v1217, 16
      %v1230 = vshll.u32 %v1217, 16
      %v1232 = vrot.slane %v1230, 1
      %v1233 = vor.u32 %v1228, %v1232
      %v1235 = vshrl.u32 %v1218, 16
      %v1237 = vshll.u32 %v1218, 16
      %v1239 = vrot.slane %v1237, 1
      %v1240 = vor.u32 %v1235, %v1239
      %v1242 = vshrl.u32 %v1219, 16
      %v1244 = vshll.u32 %v1219, 16
      %v1246 = vrot.slane %v1244, 1
      %v1247 = vor.u32 %v1242, %v1246
      %1248 = vrot.lane.b32.xlu0 %v1226, 32
      %v1249 = vpop.permute.xlu0 %1248
      %1250 = vrot.lane.b32.xlu0 %v1233, 32
      %v1251 = vpop.permute.xlu0 %1250
      %1252 = vrot.lane.b32.xlu0 %v1240, 32
      %v1253 = vpop.permute.xlu0 %1252
      %1254 = vrot.lane.b32.xlu0 %v1247, 32
      %v1255 = vpop.permute.xlu0 %1254
      %v1260 = vrot.slane %v1216, 1
      %v1261 = vrot.slane %v1217, 1
      %v1262 = vrot.slane %v1218, 1
      %v1263 = vrot.slane %v1219, 1
      %1264 = vrot.lane.b32.xlu0 %v1260, 64
      %v1265 = vpop.permute.xlu0 %1264
      %1266 = vrot.lane.b32.xlu0 %v1261, 64
      %v1267 = vpop.permute.xlu0 %1266
      %1268 = vrot.lane.b32.xlu0 %v1262, 64
      %v1269 = vpop.permute.xlu0 %1268
      %1270 = vrot.lane.b32.xlu0 %v1263, 64
      %v1271 = vpop.permute.xlu0 %1270
      %v1273 = vsel %vm471, %v1216, %v1249
      %v1275 = vsel %vm471, %v1217, %v1251
      %v1277 = vsel %vm471, %v1218, %v1253
      %v1279 = vsel %vm471, %v1219, %v1255
      %v1281 = vsel %vm482, %v1273, %v1265
      %v1283 = vsel %vm482, %v1275, %v1267
      %v1285 = vsel %vm482, %v1277, %v1269
      %v1287 = vsel %vm482, %v1279, %v1271
      %v1292 = vcombine.low %v484, %v1281
      %v1293 = vcombine.low %v1283, %v1285
      %v1295 = vunpack.c.l.s4 1983009808
      %v1296 = vunpack.c.0.s8 %v1295
      %v1297 = vlaneseq
      %v1298 = vshrl.u32 %v1297, 7
      %v1299 = vsub.s32 %v1296, %v1298
      %v1300 = vrot.slane %v1292, %v1299
      %v1302 = vunpack.c.l.s4 1983009808
      %v1303 = vunpack.c.0.s8 %v1302
      %v1304 = vlaneseq
      %v1305 = vshrl.u32 %v1304, 7
      %v1306 = vsub.s32 %v1303, %v1305
      %v1307 = vrot.slane %v1293, %v1306
      %v1308 = vcombine.low %v1300, %v1307
      %v1309 = vcombine.low %v1287, %v484
      %v1311 = vunpack.c.l.s4 1983009808
      %v1312 = vunpack.c.0.s8 %v1311
      %v1313 = vlaneseq
      %v1314 = vshrl.u32 %v1313, 7
      %v1315 = vsub.s32 %v1312, %v1314
      %v1316 = vrot.slane %v1309, %v1315
      %v1329 = vunpack.c.l.b16 %v1168
      %v1330 = vunpack.c.l.b16 %v1169
      %v1331 = vunpack.c.l.b16 %v1170
      %v1332 = vunpack.c.l.b16 %v1171
      %v1333 = vunpack.c.l.b16 %v1172
      %v1334 = vunpack.c.l.b16 %v1173
      %v1335 = vunpack.c.l.b16 %v1174
      %v1336 = vunpack.c.l.b16 %v1175
      %v1337 = vunpack.c.l.b16 %v1176
      %v1338 = vunpack.c.l.b16 %v1177
      %v1339 = vunpack.c.l.b16 %v1178
      %v1340 = vunpack.c.l.b16 %v1179
      %v1341 = vpack.c.b16 %v1330, %v1329
      %v1342 = vpack.c.b16 %v1332, %v1331
      %v1343 = vpack.c.b16 %v1334, %v1333
      %v1344 = vpack.c.b16 %v1336, %v1335
      %v1345 = vpack.c.b16 %v1338, %v1337
      %v1346 = vpack.c.b16 %v1340, %v1339
      %v1354 = vsel %vm559, %v1308, 0
      %v1357 = vsel %vm559, %v1316, 0
      %1359 = vmatprep.subr.bf16.mxu0 0
      %1360 = vmatpush1.bf16.msra.mxu0 0
      %1361 = vmatprep.subr.bf16.mxu0 0
      %1362 = vmatpush1.bf16.msra.mxu0 0
      %1363 = vmatprep.subr.bf16.mxu0 0
      %1364 = vmatpush1.bf16.msra.mxu0 %v1346
      %1365 = vmatprep.subr.bf16.mxu0 0
      %1366 = vmatpush1.bf16.msra.mxu0 %v1345
      %1367 = vmatprep.subr.bf16.mxu0 0
      %1368 = vmatpush1.bf16.msra.mxu0 %v1344
      %1369 = vmatprep.subr.bf16.mxu0 0
      %1370 = vmatpush1.bf16.msra.mxu0 %v1343
      %1371 = vmatprep.subr.bf16.mxu0 0
      %1372 = vmatpush1.bf16.msra.mxu0 %v1342
      %1373 = vmatprep.subr.bf16.mxu0 0
      %1374 = vmatpush1.bf16.msra.mxu0 %v1341
      %1375 = vmatprep.subr.bf16.mxu0 0
      %1376 = vmatpush2.bf16.msra.mxu0 0
      %1377 = vmatprep.subr.bf16.mxu0 0
      %1378 = vmatpush2.bf16.msra.mxu0 0
      %1379 = vmatprep.subr.bf16.mxu0 0
      %1380 = vmatpush2.bf16.msra.mxu0 0
      %1381 = vmatprep.subr.bf16.mxu0 0
      %1382 = vmatpush2.bf16.msra.mxu0 0
      %1383 = vmatprep.subr.bf16.mxu0 0
      %1384 = vmatpush2.bf16.msra.mxu0 0
      %1385 = vmatprep.subr.bf16.mxu0 0
      %1386 = vmatpush2.bf16.msra.mxu0 0
      %1387 = vmatprep.subr.bf16.mxu0 0
      %1388 = vmatpush2.bf16.msra.mxu0 0
      %1389 = vmatprep.subr.bf16.mxu0 0
      %1390 = vmatpush2.bf16.msra.mxu0 0
      %1391 = vmatprep.mubr.bf16.mxu0 0
      %1392 = vmatmul.mubr.bf16.gmra.mxu0 %v1354
      %v1393 = vpop.f32.mrf.mxu0
      %v1394 = vadd.f32 0.0, %v1393
      %v1395 = vpop.f32.mrf.mxu0
      %v1396 = vpop.f32.mrf.mxu0
      %v1397 = vadd.f32 0.0, %v1396
      %v1398 = vpop.f32.mrf.mxu0
      %1399 = vmatprep.mubr.bf16.mxu0 0
      %1400 = vmatmul.mubr.bf16.gmra.mxu0 %v1357
      %v1401 = vpop.f32.mrf.mxu0
      %v1402 = vadd.f32 0.0, %v1401
      %v1403 = vpop.f32.mrf.mxu0
      %v1404 = vpop.f32.mrf.mxu0
      %v1405 = vpop.f32.mrf.mxu0
      %1406 = vdwg.mxu0
      %v1410 = vcombine.high %v1394, %v1394
      %v1411 = vcombine.high %v1397, %v1397
      %v1412 = vcombine.high %v1402, %v1402
      %1415 = vrot.lane.b32.xlu0 %v1410, 96
      %v1416 = vpop.permute.xlu0 %1415
      %1417 = vrot.lane.b32.xlu0 %v1397, 96
      %v1418 = vpop.permute.xlu0 %1417
      %1419 = vrot.lane.b32.xlu0 %v1411, 96
      %v1420 = vpop.permute.xlu0 %1419
      %1421 = vrot.lane.b32.xlu0 %v1402, 96
      %v1422 = vpop.permute.xlu0 %1421
      %v1427 = vadd.f32 %v1394, %v1416
      %v1428 = vadd.f32 %v1410, %v1418
      %v1429 = vadd.f32 %v1397, %v1420
      %v1430 = vadd.f32 %v1411, %v1422
      %1431 = vrot.lane.b32.xlu0 %v1397, 64
      %v1432 = vpop.permute.xlu0 %1431
      %1433 = vrot.lane.b32.xlu0 %v1411, 64
      %v1434 = vpop.permute.xlu0 %1433
      %1435 = vrot.lane.b32.xlu0 %v1402, 64
      %v1436 = vpop.permute.xlu0 %1435
      %1437 = vrot.lane.b32.xlu0 %v1412, 64
      %v1438 = vpop.permute.xlu0 %1437
      %v1443 = vadd.f32 %v1427, %v1432
      %v1444 = vadd.f32 %v1428, %v1434
      %v1445 = vadd.f32 %v1429, %v1436
      %v1446 = vadd.f32 %v1430, %v1438
      %s1447 = scalar_lea.vmem %s2, 1
      %v1448 = vld [vmem:[%s1447] sm:$0x1]
      %v1450 = vlaneseq
      %v1451 = vshrl.u32 %v1450, 7
      %v1452 = vsub.s32 0, %v1451
      %v1453 = vrot.slane %v1448, %v1452
      %v1455 = vadd.f32 %v1443, %v1453
      %v1456 = vadd.f32 %v1444, %v1453
      %v1457 = vadd.f32 %v1445, %v1453
      %v1458 = vadd.f32 %v1446, %v1453
      %v1459 = vmax.f32 %v1455, 0.0
      %v1460 = vmax.f32 %v1456, 0.0
      %v1461 = vmax.f32 %v1457, 0.0
      %v1462 = vmax.f32 %v1458, 0.0
      %v1463 = vpack.c.bf16 %v1459, %v1459
      %v1464 = vpack.c.bf16 %v1460, %v1460
      %v1465 = vpack.c.bf16 %v1461, %v1461
      %v1466 = vpack.c.bf16 %v1462, %v1462
      %s1467 = scalar_lea.vmem %s3, 48
      %v1468 = vld [vmem:[%s1467] sm:$0xf]
      %v1469 = vld [vmem:[%s1467 + $0x4] sm:$0xf]
      %v1470 = vld [vmem:[%s1467 + $0x8] sm:$0xf]
      %v1471 = vld [vmem:[%s1467 + $0xc] sm:$0xf]
      %v1472 = vld [vmem:[%s1467 + $0x10] sm:$0xf]
      %v1473 = vld [vmem:[%s1467 + $0x14] sm:$0xf]
      %v1474 = vld [vmem:[%s1467 + $0x18] sm:$0xf]
      %v1475 = vld [vmem:[%s1467 + $0x1c] sm:$0xf]
      %v1476 = vld [vmem:[%s1467 + $0x20] sm:$0xf]
      %v1477 = vld [vmem:[%s1467 + $0x24] sm:$0xf]
      %v1478 = vld [vmem:[%s1467 + $0x28] sm:$0xf]
      %v1479 = vld [vmem:[%s1467 + $0x2c] sm:$0xf]
      %v1481 = vshrl.u32 %v1463, 16
      %v1483 = vrot.slane %v1481, 7
      %v1484 = vshll.u32 %v1463, 16
      %v1486 = vor.u32 %v1483, %v1484
      %v1488 = vshrl.u32 %v1464, 16
      %v1490 = vrot.slane %v1488, 7
      %v1491 = vshll.u32 %v1464, 16
      %v1493 = vor.u32 %v1490, %v1491
      %v1495 = vshrl.u32 %v1465, 16
      %v1497 = vrot.slane %v1495, 7
      %v1498 = vshll.u32 %v1465, 16
      %v1500 = vor.u32 %v1497, %v1498
      %v1502 = vshrl.u32 %v1466, 16
      %v1504 = vrot.slane %v1502, 7
      %v1505 = vshll.u32 %v1466, 16
      %v1507 = vor.u32 %v1504, %v1505
      %v1512 = vsel %vm392, 0, %v1486
      %v1513 = vsel %vm392, 0, %v1493
      %v1514 = vsel %vm392, 0, %v1500
      %v1515 = vsel %vm392, 0, %v1507
      %v1516 = vsel %vm400, %v1512, 0
      %v1517 = vsel %vm400, %v1513, 0
      %v1518 = vsel %vm400, %v1514, 0
      %v1519 = vsel %vm400, %v1515, 0
      %v1521 = vshrl.u32 %v1516, 16
      %v1523 = vshll.u32 %v1516, 16
      %v1525 = vrot.slane %v1523, 1
      %v1526 = vor.u32 %v1521, %v1525
      %v1528 = vshrl.u32 %v1517, 16
      %v1530 = vshll.u32 %v1517, 16
      %v1532 = vrot.slane %v1530, 1
      %v1533 = vor.u32 %v1528, %v1532
      %v1535 = vshrl.u32 %v1518, 16
      %v1537 = vshll.u32 %v1518, 16
      %v1539 = vrot.slane %v1537, 1
      %v1540 = vor.u32 %v1535, %v1539
      %v1542 = vshrl.u32 %v1519, 16
      %v1544 = vshll.u32 %v1519, 16
      %v1546 = vrot.slane %v1544, 1
      %v1547 = vor.u32 %v1542, %v1546
      %1548 = vrot.lane.b32.xlu0 %v1526, 32
      %v1549 = vpop.permute.xlu0 %1548
      %1550 = vrot.lane.b32.xlu0 %v1533, 32
      %v1551 = vpop.permute.xlu0 %1550
      %1552 = vrot.lane.b32.xlu0 %v1540, 32
      %v1553 = vpop.permute.xlu0 %1552
      %1554 = vrot.lane.b32.xlu0 %v1547, 32
      %v1555 = vpop.permute.xlu0 %1554
      %v1560 = vrot.slane %v1516, 1
      %v1561 = vrot.slane %v1517, 1
      %v1562 = vrot.slane %v1518, 1
      %v1563 = vrot.slane %v1519, 1
      %1564 = vrot.lane.b32.xlu0 %v1560, 64
      %v1565 = vpop.permute.xlu0 %1564
      %1566 = vrot.lane.b32.xlu0 %v1561, 64
      %v1567 = vpop.permute.xlu0 %1566
      %1568 = vrot.lane.b32.xlu0 %v1562, 64
      %v1569 = vpop.permute.xlu0 %1568
      %1570 = vrot.lane.b32.xlu0 %v1563, 64
      %v1571 = vpop.permute.xlu0 %1570
      %v1573 = vsel %vm471, %v1516, %v1549
      %v1575 = vsel %vm471, %v1517, %v1551
      %v1577 = vsel %vm471, %v1518, %v1553
      %v1579 = vsel %vm471, %v1519, %v1555
      %v1581 = vsel %vm482, %v1573, %v1565
      %v1583 = vsel %vm482, %v1575, %v1567
      %v1585 = vsel %vm482, %v1577, %v1569
      %v1587 = vsel %vm482, %v1579, %v1571
      %v1592 = vcombine.low %v484, %v1581
      %v1593 = vcombine.low %v1583, %v1585
      %v1595 = vunpack.c.l.s4 1983009808
      %v1596 = vunpack.c.0.s8 %v1595
      %v1597 = vlaneseq
      %v1598 = vshrl.u32 %v1597, 7
      %v1599 = vsub.s32 %v1596, %v1598
      %v1600 = vrot.slane %v1592, %v1599
      %v1602 = vunpack.c.l.s4 1983009808
      %v1603 = vunpack.c.0.s8 %v1602
      %v1604 = vlaneseq
      %v1605 = vshrl.u32 %v1604, 7
      %v1606 = vsub.s32 %v1603, %v1605
      %v1607 = vrot.slane %v1593, %v1606
      %v1608 = vcombine.low %v1600, %v1607
      %v1609 = vcombine.low %v1587, %v484
      %v1611 = vunpack.c.l.s4 1983009808
      %v1612 = vunpack.c.0.s8 %v1611
      %v1613 = vlaneseq
      %v1614 = vshrl.u32 %v1613, 7
      %v1615 = vsub.s32 %v1612, %v1614
      %v1616 = vrot.slane %v1609, %v1615
      %v1629 = vunpack.c.l.b16 %v1468
      %v1630 = vunpack.c.l.b16 %v1469
      %v1631 = vunpack.c.l.b16 %v1470
      %v1632 = vunpack.c.l.b16 %v1471
      %v1633 = vunpack.c.l.b16 %v1472
      %v1634 = vunpack.c.l.b16 %v1473
      %v1635 = vunpack.c.l.b16 %v1474
      %v1636 = vunpack.c.l.b16 %v1475
      %v1637 = vunpack.c.l.b16 %v1476
      %v1638 = vunpack.c.l.b16 %v1477
      %v1639 = vunpack.c.l.b16 %v1478
      %v1640 = vunpack.c.l.b16 %v1479
      %v1641 = vpack.c.b16 %v1630, %v1629
      %v1642 = vpack.c.b16 %v1632, %v1631
      %v1643 = vpack.c.b16 %v1634, %v1633
      %v1644 = vpack.c.b16 %v1636, %v1635
      %v1645 = vpack.c.b16 %v1638, %v1637
      %v1646 = vpack.c.b16 %v1640, %v1639
      %v1654 = vsel %vm559, %v1608, 0
      %v1657 = vsel %vm559, %v1616, 0
      %1659 = vmatprep.subr.bf16.mxu0 0
      %1660 = vmatpush1.bf16.msra.mxu0 0
      %1661 = vmatprep.subr.bf16.mxu0 0
      %1662 = vmatpush1.bf16.msra.mxu0 0
      %1663 = vmatprep.subr.bf16.mxu0 0
      %1664 = vmatpush1.bf16.msra.mxu0 %v1646
      %1665 = vmatprep.subr.bf16.mxu0 0
      %1666 = vmatpush1.bf16.msra.mxu0 %v1645
      %1667 = vmatprep.subr.bf16.mxu0 0
      %1668 = vmatpush1.bf16.msra.mxu0 %v1644
      %1669 = vmatprep.subr.bf16.mxu0 0
      %1670 = vmatpush1.bf16.msra.mxu0 %v1643
      %1671 = vmatprep.subr.bf16.mxu0 0
      %1672 = vmatpush1.bf16.msra.mxu0 %v1642
      %1673 = vmatprep.subr.bf16.mxu0 0
      %1674 = vmatpush1.bf16.msra.mxu0 %v1641
      %1675 = vmatprep.subr.bf16.mxu0 0
      %1676 = vmatpush2.bf16.msra.mxu0 0
      %1677 = vmatprep.subr.bf16.mxu0 0
      %1678 = vmatpush2.bf16.msra.mxu0 0
      %1679 = vmatprep.subr.bf16.mxu0 0
      %1680 = vmatpush2.bf16.msra.mxu0 0
      %1681 = vmatprep.subr.bf16.mxu0 0
      %1682 = vmatpush2.bf16.msra.mxu0 0
      %1683 = vmatprep.subr.bf16.mxu0 0
      %1684 = vmatpush2.bf16.msra.mxu0 0
      %1685 = vmatprep.subr.bf16.mxu0 0
      %1686 = vmatpush2.bf16.msra.mxu0 0
      %1687 = vmatprep.subr.bf16.mxu0 0
      %1688 = vmatpush2.bf16.msra.mxu0 0
      %1689 = vmatprep.subr.bf16.mxu0 0
      %1690 = vmatpush2.bf16.msra.mxu0 0
      %1691 = vmatprep.mubr.bf16.mxu0 0
      %1692 = vmatmul.mubr.bf16.gmra.mxu0 %v1654
      %v1693 = vpop.f32.mrf.mxu0
      %v1694 = vadd.f32 0.0, %v1693
      %v1695 = vpop.f32.mrf.mxu0
      %v1696 = vpop.f32.mrf.mxu0
      %v1697 = vadd.f32 0.0, %v1696
      %v1698 = vpop.f32.mrf.mxu0
      %1699 = vmatprep.mubr.bf16.mxu0 0
      %1700 = vmatmul.mubr.bf16.gmra.mxu0 %v1657
      %v1701 = vpop.f32.mrf.mxu0
      %v1702 = vadd.f32 0.0, %v1701
      %v1703 = vpop.f32.mrf.mxu0
      %v1704 = vpop.f32.mrf.mxu0
      %v1705 = vpop.f32.mrf.mxu0
      %1706 = vdwg.mxu0
      %v1710 = vcombine.high %v1694, %v1694
      %v1711 = vcombine.high %v1697, %v1697
      %v1712 = vcombine.high %v1702, %v1702
      %1715 = vrot.lane.b32.xlu0 %v1710, 96
      %v1716 = vpop.permute.xlu0 %1715
      %1717 = vrot.lane.b32.xlu0 %v1697, 96
      %v1718 = vpop.permute.xlu0 %1717
      %1719 = vrot.lane.b32.xlu0 %v1711, 96
      %v1720 = vpop.permute.xlu0 %1719
      %1721 = vrot.lane.b32.xlu0 %v1702, 96
      %v1722 = vpop.permute.xlu0 %1721
      %v1727 = vadd.f32 %v1694, %v1716
      %v1728 = vadd.f32 %v1710, %v1718
      %v1729 = vadd.f32 %v1697, %v1720
      %v1730 = vadd.f32 %v1711, %v1722
      %1731 = vrot.lane.b32.xlu0 %v1697, 64
      %v1732 = vpop.permute.xlu0 %1731
      %1733 = vrot.lane.b32.xlu0 %v1711, 64
      %v1734 = vpop.permute.xlu0 %1733
      %1735 = vrot.lane.b32.xlu0 %v1702, 64
      %v1736 = vpop.permute.xlu0 %1735
      %1737 = vrot.lane.b32.xlu0 %v1712, 64
      %v1738 = vpop.permute.xlu0 %1737
      %v1743 = vadd.f32 %v1727, %v1732
      %v1744 = vadd.f32 %v1728, %v1734
      %v1745 = vadd.f32 %v1729, %v1736
      %v1746 = vadd.f32 %v1730, %v1738
      %s1747 = scalar_lea.vmem %s4, 1
      %v1748 = vld [vmem:[%s1747] sm:$0x1]
      %v1750 = vlaneseq
      %v1751 = vshrl.u32 %v1750, 7
      %v1752 = vsub.s32 0, %v1751
      %v1753 = vrot.slane %v1748, %v1752
      %v1755 = vadd.f32 %v1743, %v1753
      %v1756 = vadd.f32 %v1744, %v1753
      %v1757 = vadd.f32 %v1745, %v1753
      %v1758 = vadd.f32 %v1746, %v1753
      %v1763 = vcombine.low %v1755, %v1756
      %v1764 = vcombine.low %v1757, %v1758
      %v1767 = vsel %vm471, %v1763, 0.0
      %v1768 = vsel %vm471, %v1764, 0.0
      %v1769 = vadd.f32 %v1767, %v1768
      %v1770 = vrot.slane %v1769, 4
      %v1771 = vadd.f32 %v1769, %v1770
      %v1772 = vrot.slane %v1771, 2
      %v1773 = vadd.f32 %v1771, %v1772
      %v1774 = vrot.slane %v1773, 1
      %v1775 = vadd.f32 %v1773, %v1774
      %v1776 = vmul.f32 %v1775, %v980
      %s1777 = scalar_lea.vmem %s5, 32
      %v1778 = vld [vmem:[%s1777] sm:$0xff]
      %v1779 = vld [vmem:[%s1777 + $0x8] sm:$0xff]
      %v1780 = vld [vmem:[%s1777 + $0x10] sm:$0xff]
      %v1781 = vld [vmem:[%s1777 + $0x18] sm:$0xff]
      %s1782 = scalar_lea.vmem %s6, 1
      %v1783 = vld [vmem:[%s1782] sm:$0x1]
      %v1785 = vsel %vm471, %v1776, 0
      %1787 = vmatprep.subr.mxu0 0.0
      %1788 = vmatpush1.msra.mxu0 0.0
      %1789 = vmatprep.subr.mxu0 0.0
      %1790 = vmatpush1.msra.mxu0 0.0
      %1791 = vmatprep.subr.mxu0 0.0
      %1792 = vmatpush1.msra.mxu0 0.0
      %1793 = vmatprep.subr.mxu0 0.0
      %1794 = vmatpush1.msra.mxu0 0.0
      %1795 = vmatprep.subr.mxu0 0.0
      %1796 = vmatpush1.msra.mxu0 0.0
      %1797 = vmatprep.subr.mxu0 0.0
      %1798 = vmatpush1.msra.mxu0 0.0
      %1799 = vmatprep.subr.mxu0 0.0
      %1800 = vmatpush1.msra.mxu0 0.0
      %1801 = vmatprep.subr.mxu0 0.0
      %1802 = vmatpush1.msra.mxu0 0.0
      %1803 = vmatprep.subr.mxu0 0.0
      %1804 = vmatpush1.msra.mxu0 0.0
      %1805 = vmatprep.subr.mxu0 0.0
      %1806 = vmatpush1.msra.mxu0 0.0
      %1807 = vmatprep.subr.mxu0 0.0
      %1808 = vmatpush1.msra.mxu0 0.0
      %1809 = vmatprep.subr.mxu0 0.0
      %1810 = vmatpush1.msra.mxu0 0.0
      %1811 = vmatprep.subr.mxu0 0.0
      %1812 = vmatpush1.msra.mxu0 %v1781
      %1813 = vmatprep.subr.mxu0 0.0
      %1814 = vmatpush1.msra.mxu0 %v1780
      %1815 = vmatprep.subr.mxu0 0.0
      %1816 = vmatpush1.msra.mxu0 %v1779
      %1817 = vmatprep.subr.mxu0 0.0
      %1818 = vmatpush1.msra.mxu0 %v1778
      %1819 = vmatprep.subr.mxu0 0.0
      %1820 = vmatpush2.msra.mxu0 0.0
      %1821 = vmatprep.subr.mxu0 0.0
      %1822 = vmatpush2.msra.mxu0 0.0
      %1823 = vmatprep.subr.mxu0 0.0
      %1824 = vmatpush2.msra.mxu0 0.0
      %1825 = vmatprep.subr.mxu0 0.0
      %1826 = vmatpush2.msra.mxu0 0.0
      %1827 = vmatprep.subr.mxu0 0.0
      %1828 = vmatpush2.msra.mxu0 0.0
      %1829 = vmatprep.subr.mxu0 0.0
      %1830 = vmatpush2.msra.mxu0 0.0
      %1831 = vmatprep.subr.mxu0 0.0
      %1832 = vmatpush2.msra.mxu0 0.0
      %1833 = vmatprep.subr.mxu0 0.0
      %1834 = vmatpush2.msra.mxu0 0.0
      %1835 = vmatprep.subr.mxu0 0.0
      %1836 = vmatpush2.msra.mxu0 0.0
      %1837 = vmatprep.subr.mxu0 0.0
      %1838 = vmatpush2.msra.mxu0 0.0
      %1839 = vmatprep.subr.mxu0 0.0
      %1840 = vmatpush2.msra.mxu0 0.0
      %1841 = vmatprep.subr.mxu0 0.0
      %1842 = vmatpush2.msra.mxu0 0.0
      %1843 = vmatprep.subr.mxu0 0.0
      %1844 = vmatpush2.msra.mxu0 0.0
      %1845 = vmatprep.subr.mxu0 0.0
      %1846 = vmatpush2.msra.mxu0 0.0
      %1847 = vmatprep.subr.mxu0 0.0
      %1848 = vmatpush2.msra.mxu0 0.0
      %1849 = vmatprep.subr.mxu0 0.0
      %1850 = vmatpush2.msra.mxu0 0.0
      %1851 = vmatprep.mubr.f32.mxu0 0.0
      %1852 = vmatmul.mubr.f32.gmra.mxu0 %v1785
      %v1853 = vpop.f32.mrf.mxu0
      %v1854 = vadd.f32 %v1783, %v1853
      %v1855 = vpop.f32.mrf.mxu0
      %1856 = vdwg.mxu0
      %v1857 = vmax.f32 %v1854, 0.0
      %s1858 = scalar_lea.vmem %s7, 2
      %v1859 = vld [vmem:[%s1858] sm:$0x3]
      %s1860 = scalar_lea.vmem %s8, 1
      %v1861 = vld [vmem:[%s1860] sm:$0x1]
      %v1863 = vsel %vm1063, %v1857, 0
      %v1866 = vsel %vm1067, %v1859, 0
      %1868 = vmatprep.subr.mxu0 0.0
      %1869 = vmatpush1.msra.mxu0 0.0
      %1870 = vmatprep.subr.mxu0 0.0
      %1871 = vmatpush1.msra.mxu0 0.0
      %1872 = vmatprep.subr.mxu0 0.0
      %1873 = vmatpush1.msra.mxu0 0.0
      %1874 = vmatprep.subr.mxu0 0.0
      %1875 = vmatpush1.msra.mxu0 0.0
      %1876 = vmatprep.subr.mxu0 0.0
      %1877 = vmatpush1.msra.mxu0 0.0
      %1878 = vmatprep.subr.mxu0 0.0
      %1879 = vmatpush1.msra.mxu0 0.0
      %1880 = vmatprep.subr.mxu0 0.0
      %1881 = vmatpush1.msra.mxu0 0.0
      %1882 = vmatprep.subr.mxu0 0.0
      %1883 = vmatpush1.msra.mxu0 0.0
      %1884 = vmatprep.subr.mxu0 0.0
      %1885 = vmatpush1.msra.mxu0 0.0
      %1886 = vmatprep.subr.mxu0 0.0
      %1887 = vmatpush1.msra.mxu0 0.0
      %1888 = vmatprep.subr.mxu0 0.0
      %1889 = vmatpush1.msra.mxu0 0.0
      %1890 = vmatprep.subr.mxu0 0.0
      %1891 = vmatpush1.msra.mxu0 0.0
      %1892 = vmatprep.subr.mxu0 0.0
      %1893 = vmatpush1.msra.mxu0 0.0
      %1894 = vmatprep.subr.mxu0 0.0
      %1895 = vmatpush1.msra.mxu0 0.0
      %1896 = vmatprep.subr.mxu0 0.0
      %1897 = vmatpush1.msra.mxu0 0.0
      %1898 = vmatprep.subr.mxu0 0.0
      %1899 = vmatpush1.msra.mxu0 %v1866
      %1900 = vmatprep.subr.mxu0 0.0
      %1901 = vmatpush2.msra.mxu0 0.0
      %1902 = vmatprep.subr.mxu0 0.0
      %1903 = vmatpush2.msra.mxu0 0.0
      %1904 = vmatprep.subr.mxu0 0.0
      %1905 = vmatpush2.msra.mxu0 0.0
      %1906 = vmatprep.subr.mxu0 0.0
      %1907 = vmatpush2.msra.mxu0 0.0
      %1908 = vmatprep.subr.mxu0 0.0
      %1909 = vmatpush2.msra.mxu0 0.0
      %1910 = vmatprep.subr.mxu0 0.0
      %1911 = vmatpush2.msra.mxu0 0.0
      %1912 = vmatprep.subr.mxu0 0.0
      %1913 = vmatpush2.msra.mxu0 0.0
      %1914 = vmatprep.subr.mxu0 0.0
      %1915 = vmatpush2.msra.mxu0 0.0
      %1916 = vmatprep.subr.mxu0 0.0
      %1917 = vmatpush2.msra.mxu0 0.0
      %1918 = vmatprep.subr.mxu0 0.0
      %1919 = vmatpush2.msra.mxu0 0.0
      %1920 = vmatprep.subr.mxu0 0.0
      %1921 = vmatpush2.msra.mxu0 0.0
      %1922 = vmatprep.subr.mxu0 0.0
      %1923 = vmatpush2.msra.mxu0 0.0
      %1924 = vmatprep.subr.mxu0 0.0
      %1925 = vmatpush2.msra.mxu0 0.0
      %1926 = vmatprep.subr.mxu0 0.0
      %1927 = vmatpush2.msra.mxu0 0.0
      %1928 = vmatprep.subr.mxu0 0.0
      %1929 = vmatpush2.msra.mxu0 0.0
      %1930 = vmatprep.subr.mxu0 0.0
      %1931 = vmatpush2.msra.mxu0 0.0
      %1932 = vmatprep.mubr.f32.mxu0 0.0
      %1933 = vmatmul.mubr.f32.gmra.mxu0 %v1863
      %v1934 = vpop.f32.mrf.mxu0
      %v1935 = vadd.f32 %v1861, %v1934
      %v1936 = vpop.f32.mrf.mxu0
      %1937 = vdwg.mxu0
      %v1938 = vxor.u32 %v1935, 2147483648
      %v1939 = vmul.f32 %v1938, 1.442695
      %v1940 = vpow.pop %v1939
      %v1941 = vadd.f32 %v1940, 1.0
      %v1942 = vrcp.pop %v1941
      %v1943 = vmul.f32 1.0, %v1942
      %v1944 = vlaneseq
      %v1945 = vshrl.u32 %v1944, 7
      %v1946 = vsub.s32 0, %v1945
      %v1947 = vrot.slane %v1943, %v1946
      %v1948 = vmul.f32 %v1755, %v1947
      %v1949 = vmul.f32 %v1756, %v1947
      %v1950 = vmul.f32 %v1757, %v1947
      %v1951 = vmul.f32 %v1758, %v1947
      %v1952 = vunpack.c.l.bf16 %v1163
      %v1953 = vunpack.c.l.bf16 %v1164
      %v1954 = vunpack.c.l.bf16 %v1165
      %v1955 = vunpack.c.l.bf16 %v1166
      %v1956 = vadd.f32 %v1948, %v1952
      %v1957 = vadd.f32 %v1949, %v1953
      %v1958 = vadd.f32 %v1950, %v1954
      %v1959 = vadd.f32 %v1951, %v1955
      %v1960 = vpack.c.bf16 %v1956, %v1956
      %v1961 = vpack.c.bf16 %v1957, %v1957
      %v1962 = vpack.c.bf16 %v1958, %v1958
      %v1963 = vpack.c.bf16 %v1959, %v1959
      %vm1964 = vcmask 254976
      %1965 = vst.msk [vmem:[%s332] sm:$0x3] %vm1964, %v1960
      %1966 = vst.msk [vmem:[%s332 + $0x2] sm:$0x3] %vm1964, %v1961
      %1967 = vst.msk [vmem:[%s332 + $0x4] sm:$0x3] %vm1964, %v1962
      %1968 = vst.msk [vmem:[%s332 + $0x6] sm:$0x3] %vm1964, %v1963
      %p1969 = scmp.lt.s32.totalorder %s20, 1
      %s1970 = scalar_select %p1969, %s20, 1
      %s1971 = smul.addr %s1970, 4
      %s1972 = smul.addr %s1971, 2
      %s1973 = scalar_lea.vmem %s9, %s1972
      // Predicated region
      $region57: #{han_forward.14} parent=55 // pred_check
        %p1974 = pneg %p232
      $region58: #{han_forward.14} parent=55 // pred_check_branch
        %1976 = sbr.rel (%p1974) target = $region60
      $region59: #{han_forward.14} parent=55 // pred_region
        _
      $region60: #{han_forward.14} parent=55 // pred_fallthru
        _
    $region56: #{han_forward.14} parent=5 // pred_fallthru
      _
    %p1977 = scmp.le.s32.totalorder 2, %s15
    // Predicated region
    $region61: #{han_forward.14} parent=5 // pred_check
      %p1978 = pneg %p1977
    $region62: #{han_forward.14} parent=5 // pred_check_branch
      %1980 = sbr.rel (%p1978) target = $region64
    $region63: #{han_forward.14} parent=5 // pred_region
      %s1981 = ssub.s32 %s15, 2
      // Predicated region
      $region65: #{han_forward.14} parent=63 // pred_check
        %p1982 = pneg %p238
      $region66: #{han_forward.14} parent=63 // pred_check_branch
        %1984 = sbr.rel (%p1982) target = $region68
      $region67: #{han_forward.14} parent=63 // pred_region
        %p1985 = scmp.lt.s32.totalorder %s21, 1
        %s1986 = scalar_select %p1985, %s21, 1
        %s1987 = smul.addr %s1986, 4
        %s1988 = smul.addr %s1987, 2
        %s1989 = scalar_lea.vmem %s9, %s1988
      $region68: #{han_forward.14} parent=63 // pred_fallthru
        _
    $region64: #{han_forward.14} parent=5 // pred_fallthru
      _
  $region6: #{han_forward.14} parent=0 // loop_footer
    %s19 = sadd.s32 1, %s15
  $region7: #{han_forward.14} parent=0 // loop_footer_branch
    %14 = sbr.rel target = $region3
  $region8: #{han_forward.14} parent=0 // loop_exit
    _

// kernel: han_forward.20
$region0: #{han_forward.20}
  #allocation0 [shape = 'u32[]', space=smem, size = 0x4, offset = 0x4, fixed_abs, tag = 'smem constant byte address 0x4 - core index']
  #allocation1 [shape = 'u32[144,128]{1,0:T(1,128)}', space=vmem, size = 0x12000, scoped, tag = 'internal scratch']
  #allocation2 [shape = 'f32[4,4,32]{2,1,0:T(4,128)}', space=vmem, size = 0x2000, scoped, tag = 'scratch operand']
  %s0 = inlined_call_operand.vmem [shape: bf16[2,3,4,4,32], index: 0, kind: input, shape index: {}]
  %s1 = inlined_call_operand.vmem [shape: bf16[2,3,96,96], index: 1, kind: input, shape index: {}]
  %s2 = inlined_call_operand.vmem [shape: f32[1,32], index: 2, kind: input, shape index: {}]
  %s3 = inlined_call_operand.vmem [shape: bf16[2,4,4,32], index: 3, kind: output, shape index: {}]
  %s4 = sld [smem:[#allocation0]]
  $region53: #{han_forward.20} parent=0
    _
  %s6 = ssub.s32 1, %s4
  %s7 = scalar_select 0, %s6, %s4
  loop: start=0, step=1, limit=8
  $region2: #{han_forward.20} parent=0 // loop_pre_header
    _
  $region3: #{han_forward.20} parent=0 // loop_header
    %s9 = sphi 0, %s13
    %p10 = scmp.ge.s32.totalorder %s9, 8
    %s16 = sphi 0, %s28
    %s17 = sphi 0, %s24
    %s18 = sphi 0, %s16
    %s19 = sphi 0, %s17
    %s20 = sphi 0, %s18
    %s21 = sphi 0, %s19
    %s33 = sphi 0, %s35
    %s36 = sphi 0, %s33
    %s37 = sphi 0, %s36
    %s53 = sphi 0, %s37
    %s61 = sphi 0, %s63
    %s64 = sphi 0, %s61
    %s65 = sphi 0, %s64
    %s81 = sphi 0, %s65
    %s85 = sphi 0, %s85
    %s87 = sphi 0, %s85
    %s88 = sphi 0, %s87
    %s102 = sphi 0, %s88
    %s108 = sphi 0, %s110
    %s111 = sphi 0, %s108
    %s112 = sphi 0, %s111
    %s128 = sphi 0, %s112
  $region4: #{han_forward.20} parent=0 // loop_header_branch
    %12 = sbr.rel (%p10) target = $region8
  $region5: #{han_forward.20} parent=0 // loop_body
    %s14 = ssub.s32 %s9, 1
    %s15 = ssub.s32 %s9, 2
    %s22 = sadd.s32 1, %s17
    %p23 = scmp.ge.s32.totalorder %s22, 3
    %s24 = scalar_select %p23, 0, %s22
    %s25 = sadd.s32 1, %s16
    %s26 = scalar_select %p23, %s25, %s16
    %p27 = scmp.ge.s32.totalorder %s26, 2
    %s28 = scalar_select %p27, 0, %s26
    %s29 = ssub.s32 %s16, %s28
    %s30 = ssub.s32 %s17, %s24
    %s31 = sor.u32 %s29, %s30
    %p32 = scmp.eq.s32.totalorder %s31, 0
    %s34 = sadd.s32 %s33, 1
    %s35 = scalar_select %p32, %s33, %s34
    %p38 = pneg %p32
    %p39 = scmp.eq.s32.totalorder %s9, 5
    %p40 = por %p38, %p39
    %p41 = scmp.ne.s32.totalorder %s33, %s36
    %p42 = scmp.eq.s32.totalorder %s9, 0
    %p43 = por %p41, %p42
    %p44 = scmp.ne.s32.totalorder %s33, %s36
    %p45 = scmp.eq.s32.totalorder %s14, 5
    %p46 = por %p44, %p45
    %p47 = scmp.ne.s32.totalorder %s36, %s37
    %p48 = scmp.eq.s32.totalorder %s14, 0
    %p49 = por %p47, %p48
    %p50 = scmp.ne.s32.totalorder %s36, %s37
    %p51 = scmp.eq.s32.totalorder %s15, 5
    %p52 = por %p50, %p51
    %p54 = scmp.ne.s32.totalorder %s37, %s53
    %p55 = scmp.eq.s32.totalorder %s15, 0
    %p56 = por %p54, %p55
    %s57 = ssub.s32 %s16, %s28
    %s58 = ssub.s32 %s17, %s24
    %s59 = sor.u32 %s57, %s58
    %p60 = scmp.eq.s32.totalorder %s59, 0
    %s62 = sadd.s32 %s61, 1
    %s63 = scalar_select %p60, %s61, %s62
    %p66 = pneg %p60
    %p67 = scmp.eq.s32.totalorder %s9, 5
    %p68 = por %p66, %p67
    %p69 = scmp.ne.s32.totalorder %s61, %s64
    %p70 = scmp.eq.s32.totalorder %s9, 0
    %p71 = por %p69, %p70
    %p72 = scmp.ne.s32.totalorder %s61, %s64
    %p73 = scmp.eq.s32.totalorder %s14, 5
    %p74 = por %p72, %p73
    %p75 = scmp.ne.s32.totalorder %s64, %s65
    %p76 = scmp.eq.s32.totalorder %s14, 0
    %p77 = por %p75, %p76
    %p78 = scmp.ne.s32.totalorder %s64, %s65
    %p79 = scmp.eq.s32.totalorder %s15, 5
    %p80 = por %p78, %p79
    %p82 = scmp.ne.s32.totalorder %s65, %s81
    %p83 = scmp.eq.s32.totalorder %s15, 0
    %p84 = por %p82, %p83
    %s86 = sadd.s32 %s85, 1
    %p89 = scmp.eq.s32.totalorder %s9, 5
    %p90 = scmp.ne.s32.totalorder %s85, %s87
    %p91 = scmp.eq.s32.totalorder %s9, 0
    %p92 = por %p90, %p91
    %p93 = scmp.ne.s32.totalorder %s85, %s87
    %p94 = scmp.eq.s32.totalorder %s14, 5
    %p95 = por %p93, %p94
    %p96 = scmp.ne.s32.totalorder %s87, %s88
    %p97 = scmp.eq.s32.totalorder %s14, 0
    %p98 = por %p96, %p97
    %p99 = scmp.ne.s32.totalorder %s87, %s88
    %p100 = scmp.eq.s32.totalorder %s15, 5
    %p101 = por %p99, %p100
    %p103 = scmp.ne.s32.totalorder %s88, %s102
    %p104 = scmp.eq.s32.totalorder %s15, 0
    %p105 = por %p103, %p104
    %s106 = ssub.s32 %s16, %s28
    %p107 = scmp.eq.s32.totalorder %s106, 0
    %s109 = sadd.s32 %s108, 1
    %s110 = scalar_select %p107, %s108, %s109
    %p113 = pneg %p107
    %p114 = scmp.eq.s32.totalorder %s9, 5
    %p115 = por %p113, %p114
    %p116 = scmp.ne.s32.totalorder %s108, %s111
    %p117 = scmp.eq.s32.totalorder %s9, 0
    %p118 = por %p116, %p117
    %p119 = scmp.ne.s32.totalorder %s108, %s111
    %p120 = scmp.eq.s32.totalorder %s14, 5
    %p121 = por %p119, %p120
    %p122 = scmp.ne.s32.totalorder %s111, %s112
    %p123 = scmp.eq.s32.totalorder %s14, 0
    %p124 = por %p122, %p123
    %p125 = scmp.ne.s32.totalorder %s111, %s112
    %p126 = scmp.eq.s32.totalorder %s15, 5
    %p127 = por %p125, %p126
    %p129 = scmp.ne.s32.totalorder %s112, %s128
    %p130 = scmp.eq.s32.totalorder %s15, 0
    %p131 = por %p129, %p130
    %p132 = scmp.le.s32.totalorder 1, %s9
    %p133 = scmp.lt.s32.totalorder %s9, 7
    %p134 = pnand %p132, %p133
    %p135 = pneg %p134
    // Predicated region
    $region9: #{han_forward.20} parent=5 // pred_check
      _
    $region10: #{han_forward.20} parent=5 // pred_check_branch
      %137 = sbr.rel (%p134) target = $region12
    $region11: #{han_forward.20} parent=5 // pred_region
      %s138 = ssub.s32 %s9, 1
      // Predicated region
      $region13: #{han_forward.20} parent=11 // pred_check
        %p139 = pneg %p98
      $region14: #{han_forward.20} parent=11 // pred_check_branch
        %141 = sbr.rel (%p139) target = $region16
      $region15: #{han_forward.20} parent=11 // pred_region
        _
      $region16: #{han_forward.20} parent=11 // pred_fallthru
        _
    $region12: #{han_forward.20} parent=5 // pred_fallthru
      _
    %p142 = scmp.lt.s32.totalorder %s9, 6
    // Predicated region
    $region17: #{han_forward.20} parent=5 // pred_check
      %p143 = pneg %p142
    $region18: #{han_forward.20} parent=5 // pred_check_branch
      %145 = sbr.rel (%p143) target = $region20
    $region19: #{han_forward.20} parent=5 // pred_region
      // Predicated region
      $region21: #{han_forward.20} parent=19 // pred_check
        %p146 = pneg %p43
      $region22: #{han_forward.20} parent=19 // pred_check_branch
        %148 = sbr.rel (%p146) target = $region24
      $region23: #{han_forward.20} parent=19 // pred_region
        %p149 = scmp.lt.s32.totalorder %s16, 1
        %s150 = scalar_select %p149, %s16, 1
        %p151 = scmp.lt.s32.totalorder %s17, 2
        %s152 = scalar_select %p151, %s17, 2
        %s153 = smul.addr %s152, 4
        %s154 = smul.addr %s150, 12
        %s155 = sadd.s32 %s153, %s154
        %s156 = smul.addr %s155, 2
        %s157 = scalar_lea.vmem %s0, %s156
      $region24: #{han_forward.20} parent=19 // pred_fallthru
        _
      // Predicated region
      $region25: #{han_forward.20} parent=19 // pred_check
        %p158 = pneg %p71
      $region26: #{han_forward.20} parent=19 // pred_check_branch
        %160 = sbr.rel (%p158) target = $region28
      $region27: #{han_forward.20} parent=19 // pred_region
        %p161 = scmp.lt.s32.totalorder %s16, 1
        %s162 = scalar_select %p161, %s16, 1
        %p163 = scmp.lt.s32.totalorder %s17, 2
        %s164 = scalar_select %p163, %s17, 2
        %s165 = smul.addr %s164, 12
        %s166 = smul.addr %s162, 36
        %s167 = sadd.s32 %s165, %s166
        %s168 = smul.addr %s167, 4
        %s169 = scalar_lea.vmem %s1, %s168
      $region28: #{han_forward.20} parent=19 // pred_fallthru
        _
    $region20: #{han_forward.20} parent=5 // pred_fallthru
      _
    %p170 = scmp.le.s32.totalorder 1, %s9
    %p171 = scmp.lt.s32.totalorder %s9, 7
    %p172 = pnand %p170, %p171
    %p173 = pneg %p172
    // Predicated region
    $region29: #{han_forward.20} parent=5 // pred_check
      _
    $region30: #{han_forward.20} parent=5 // pred_check_branch
      %175 = sbr.rel (%p172) target = $region32
    $region31: #{han_forward.20} parent=5 // pred_region
      %s176 = ssub.s32 %s9, 1
      %p177 = scmp.lt.s32.totalorder %s18, 1
      %s178 = scalar_select %p177, %s18, 1
      %p179 = scmp.lt.s32.totalorder %s19, 2
      %s180 = scalar_select %p179, %s19, 2
      %s181 = smul.addr %s180, 4
      %s182 = smul.addr %s178, 12
      %s183 = sadd.s32 %s181, %s182
      %s184 = smul.addr %s183, 2
      %s185 = scalar_lea.vmem %s0, %s184
      %p186 = pneg %p49
      %p187 = pneg %p46
      %p188 = scmp.lt.s32.totalorder %s18, 1
      %s189 = scalar_select %p188, %s18, 1
      %p190 = scmp.lt.s32.totalorder %s19, 2
      %s191 = scalar_select %p190, %s19, 2
      %s192 = smul.addr %s191, 12
      %s193 = smul.addr %s189, 36
      %s194 = sadd.s32 %s192, %s193
      %s195 = smul.addr %s194, 4
      %s196 = scalar_lea.vmem %s1, %s195
      %p197 = pneg %p77
      %p198 = pneg %p74
      %p199 = pneg %p98
      %p200 = pneg %p95
      %p201 = pneg %p124
      %p202 = pneg %p121
      %p203 = scmp.lt.s32.totalorder %s18, 1
      %s204 = scalar_select %p203, %s18, 1
      %s205 = smul.addr %s204, 4
      %s206 = smul.addr %s205, 2
      %s207 = scalar_lea.vmem %s3, %s206
      %p208 = scmp.lt.s32.totalorder %s18, 1
      %s209 = scalar_select %p208, %s18, 1
      %p210 = scmp.lt.s32.totalorder %s19, 2
      %s211 = scalar_select %p210, %s19, 2
      %s212 = smul.addr %s211, 4
      %s213 = smul.addr %s209, 12
      %s214 = sadd.s32 %s212, %s213
      %s215 = smul.addr %s214, 2
      %s216 = scalar_lea.vmem %s0, %s215
      %p217 = scmp.lt.s32.totalorder %s18, 1
      %s218 = scalar_select %p217, %s18, 1
      %p219 = scmp.lt.s32.totalorder %s19, 2
      %s220 = scalar_select %p219, %s19, 2
      %s221 = smul.addr %s220, 12
      %s222 = smul.addr %s218, 36
      %s223 = sadd.s32 %s221, %s222
      %s224 = smul.addr %s223, 4
      %s225 = scalar_lea.vmem %s1, %s224
      %p226 = scmp.lt.s32.totalorder %s18, 1
      %s227 = scalar_select %p226, %s18, 1
      %s228 = smul.addr %s227, 4
      %s229 = smul.addr %s228, 2
      %s230 = scalar_lea.vmem %s3, %s229
      %p232 = scmp.eq.s32.totalorder %s19, 0
      // Predicated region
      $region33: #{han_forward.20} parent=31 // pred_check
        %p233 = pneg %p232
      $region34: #{han_forward.20} parent=31 // pred_check_branch
        %235 = sbr.rel (%p233) target = $region36
      $region35: #{han_forward.20} parent=31 // pred_region
        %vm236 = vcmask 257024
        %237 = vst.msk [vmem:[#allocation2] sm:$0xf] %vm236, 0.0
        %238 = vst.msk [vmem:[#allocation2 + $0x4] sm:$0xf] %vm236, 0.0
        %239 = vst.msk [vmem:[#allocation2 + $0x8] sm:$0xf] %vm236, 0.0
        %240 = vst.msk [vmem:[#allocation2 + $0xc] sm:$0xf] %vm236, 0.0
      $region36: #{han_forward.20} parent=31 // pred_fallthru
        _
      %v241 = vld [vmem:[#allocation2] sm:$0xf]
      %v242 = vld [vmem:[#allocation2 + $0x4] sm:$0xf]
      %v243 = vld [vmem:[#allocation2 + $0x8] sm:$0xf]
      %v244 = vld [vmem:[#allocation2 + $0xc] sm:$0xf]
      %v245 = vld [vmem:[%s216] sm:$0x3]
      %v246 = vld [vmem:[%s216 + $0x2] sm:$0x3]
      %v247 = vld [vmem:[%s216 + $0x4] sm:$0x3]
      %v248 = vld [vmem:[%s216 + $0x6] sm:$0x3]
      %v249 = vld [vmem:[%s225] sm:$0xf]
      %v250 = vld [vmem:[%s225 + $0x4] sm:$0xf]
      %v251 = vld [vmem:[%s225 + $0x8] sm:$0xf]
      %v252 = vld [vmem:[%s225 + $0xc] sm:$0xf]
      %v253 = vld [vmem:[%s225 + $0x10] sm:$0xf]
      %v254 = vld [vmem:[%s225 + $0x14] sm:$0xf]
      %v255 = vld [vmem:[%s225 + $0x18] sm:$0xf]
      %v256 = vld [vmem:[%s225 + $0x1c] sm:$0xf]
      %v257 = vld [vmem:[%s225 + $0x20] sm:$0xf]
      %v258 = vld [vmem:[%s225 + $0x24] sm:$0xf]
      %v259 = vld [vmem:[%s225 + $0x28] sm:$0xf]
      %v260 = vld [vmem:[%s225 + $0x2c] sm:$0xf]
      %v262 = vshrl.u32 0, 16
      %v264 = vrot.slane %v262, 7
      %v265 = vshll.u32 0, 16
      %v267 = vor.u32 %v264, %v265
      %v269 = vshrl.u32 %v245, 16
      %v271 = vrot.slane %v269, 7
      %v272 = vshll.u32 %v245, 16
      %v274 = vor.u32 %v271, %v272
      %v276 = vshrl.u32 %v246, 16
      %v278 = vrot.slane %v276, 7
      %v279 = vshll.u32 %v246, 16
      %v281 = vor.u32 %v278, %v279
      %v283 = vshrl.u32 %v247, 16
      %v285 = vrot.slane %v283, 7
      %v286 = vshll.u32 %v247, 16
      %v288 = vor.u32 %v285, %v286
      %v290 = vshrl.u32 %v248, 16
      %v292 = vrot.slane %v290, 7
      %v293 = vshll.u32 %v248, 16
      %v295 = vor.u32 %v292, %v293
      %vm301 = vcmask 1040384
      %vm302 = vsmask.f32 256
      %vm303 = vmand %vm301, %vm302
      %v304 = vsel %vm303, 0, %v267
      %v305 = vsel %vm303, 0, %v274
      %v306 = vsel %vm303, 0, %v281
      %v307 = vsel %vm303, 0, %v288
      %v308 = vsel %vm303, 0, %v295
      %vm309 = vcmask 1042432
      %vm310 = vsmask.f32 2304
      %vm311 = vmand %vm309, %vm310
      %v312 = vsel %vm311, %v304, 0
      %v313 = vsel %vm311, %v305, 0
      %v314 = vsel %vm311, %v306, 0
      %v315 = vsel %vm311, %v307, 0
      %v316 = vsel %vm311, %v308, 0
      %v318 = vshrl.u32 %v312, 16
      %v320 = vshll.u32 %v312, 16
      %v322 = vrot.slane %v320, 1
      %v323 = vor.u32 %v318, %v322
      %v325 = vshrl.u32 %v313, 16
      %v327 = vshll.u32 %v313, 16
      %v329 = vrot.slane %v327, 1
      %v330 = vor.u32 %v325, %v329
      %v332 = vshrl.u32 %v314, 16
      %v334 = vshll.u32 %v314, 16
      %v336 = vrot.slane %v334, 1
      %v337 = vor.u32 %v332, %v336
      %v339 = vshrl.u32 %v315, 16
      %v341 = vshll.u32 %v315, 16
      %v343 = vrot.slane %v341, 1
      %v344 = vor.u32 %v339, %v343
      %v346 = vshrl.u32 %v316, 16
      %v348 = vshll.u32 %v316, 16
      %v350 = vrot.slane %v348, 1
      %v351 = vor.u32 %v346, %v350
      %352 = vrot.lane.b32.xlu0 %v323, 32
      %v353 = vpop.permute.xlu0 %352
      %354 = vrot.lane.b32.xlu0 %v330, 32
      %v355 = vpop.permute.xlu0 %354
      %356 = vrot.lane.b32.xlu0 %v337, 32
      %v357 = vpop.permute.xlu0 %356
      %358 = vrot.lane.b32.xlu0 %v344, 32
      %v359 = vpop.permute.xlu0 %358
      %360 = vrot.lane.b32.xlu0 %v351, 32
      %v361 = vpop.permute.xlu0 %360
      %v367 = vrot.slane %v312, 1
      %v368 = vrot.slane %v313, 1
      %v369 = vrot.slane %v314, 1
      %v370 = vrot.slane %v315, 1
      %v371 = vrot.slane %v316, 1
      %372 = vrot.lane.b32.xlu0 %v367, 64
      %v373 = vpop.permute.xlu0 %372
      %374 = vrot.lane.b32.xlu0 %v368, 64
      %v375 = vpop.permute.xlu0 %374
      %376 = vrot.lane.b32.xlu0 %v369, 64
      %v377 = vpop.permute.xlu0 %376
      %378 = vrot.lane.b32.xlu0 %v370, 64
      %v379 = vpop.permute.xlu0 %378
      %380 = vrot.lane.b32.xlu0 %v371, 64
      %v381 = vpop.permute.xlu0 %380
      %vm382 = vcmask 261120
      %v384 = vsel %vm382, %v312, %v353
      %v386 = vsel %vm382, %v313, %v355
      %v388 = vsel %vm382, %v314, %v357
      %v390 = vsel %vm382, %v315, %v359
      %v392 = vsel %vm382, %v316, %v361
      %vm393 = vcmask 523264
      %v395 = vsel %vm393, %v384, %v373
      %v397 = vsel %vm393, %v386, %v375
      %v399 = vsel %vm393, %v388, %v377
      %v401 = vsel %vm393, %v390, %v379
      %v403 = vsel %vm393, %v392, %v381
      %v409 = vcombine.low %v395, %v397
      %v410 = vcombine.low %v399, %v401
      %v412 = vunpack.c.l.s4 1983009808
      %v413 = vunpack.c.0.s8 %v412
      %v414 = vlaneseq
      %v415 = vshrl.u32 %v414, 7
      %v416 = vsub.s32 %v413, %v415
      %v417 = vrot.slane %v409, %v416
      %v419 = vunpack.c.l.s4 1983009808
      %v420 = vunpack.c.0.s8 %v419
      %v421 = vlaneseq
      %v422 = vshrl.u32 %v421, 7
      %v423 = vsub.s32 %v420, %v422
      %v424 = vrot.slane %v410, %v423
      %v425 = vcombine.low %v417, %v424
      %v426 = vcombine.low %v403, %v395
      %v428 = vunpack.c.l.s4 1983009808
      %v429 = vunpack.c.0.s8 %v428
      %v430 = vlaneseq
      %v431 = vshrl.u32 %v430, 7
      %v432 = vsub.s32 %v429, %v431
      %v433 = vrot.slane %v426, %v432
      %v446 = vunpack.c.l.b16 %v249
      %v447 = vunpack.c.l.b16 %v250
      %v448 = vunpack.c.l.b16 %v251
      %v449 = vunpack.c.l.b16 %v252
      %v450 = vunpack.c.l.b16 %v253
      %v451 = vunpack.c.l.b16 %v254
      %v452 = vunpack.c.l.b16 %v255
      %v453 = vunpack.c.l.b16 %v256
      %v454 = vunpack.c.l.b16 %v257
      %v455 = vunpack.c.l.b16 %v258
      %v456 = vunpack.c.l.b16 %v259
      %v457 = vunpack.c.l.b16 %v260
      %v458 = vpack.c.b16 %v447, %v446
      %v459 = vpack.c.b16 %v449, %v448
      %v460 = vpack.c.b16 %v451, %v450
      %v461 = vpack.c.b16 %v453, %v452
      %v462 = vpack.c.b16 %v455, %v454
      %v463 = vpack.c.b16 %v457, %v456
      %vm470 = vcmask 785408
      %v472 = vsel %vm470, %v425, 0
      %v475 = vsel %vm470, %v433, 0
      %477 = vmatprep.subr.bf16.mxu0 0
      %478 = vmatpush1.bf16.msra.mxu0 0
      %479 = vmatprep.subr.bf16.mxu0 0
      %480 = vmatpush1.bf16.msra.mxu0 0
      %481 = vmatprep.subr.bf16.mxu0 0
      %482 = vmatpush1.bf16.msra.mxu0 %v463
      %483 = vmatprep.subr.bf16.mxu0 0
      %484 = vmatpush1.bf16.msra.mxu0 %v462
      %485 = vmatprep.subr.bf16.mxu0 0
      %486 = vmatpush1.bf16.msra.mxu0 %v461
      %487 = vmatprep.subr.bf16.mxu0 0
      %488 = vmatpush1.bf16.msra.mxu0 %v460
      %489 = vmatprep.subr.bf16.mxu0 0
      %490 = vmatpush1.bf16.msra.mxu0 %v459
      %491 = vmatprep.subr.bf16.mxu0 0
      %492 = vmatpush1.bf16.msra.mxu0 %v458
      %493 = vmatprep.subr.bf16.mxu0 0
      %494 = vmatpush2.bf16.msra.mxu0 0
      %495 = vmatprep.subr.bf16.mxu0 0
      %496 = vmatpush2.bf16.msra.mxu0 0
      %497 = vmatprep.subr.bf16.mxu0 0
      %498 = vmatpush2.bf16.msra.mxu0 0
      %499 = vmatprep.subr.bf16.mxu0 0
      %500 = vmatpush2.bf16.msra.mxu0 0
      %501 = vmatprep.subr.bf16.mxu0 0
      %502 = vmatpush2.bf16.msra.mxu0 0
      %503 = vmatprep.subr.bf16.mxu0 0
      %504 = vmatpush2.bf16.msra.mxu0 0
      %505 = vmatprep.subr.bf16.mxu0 0
      %506 = vmatpush2.bf16.msra.mxu0 0
      %507 = vmatprep.subr.bf16.mxu0 0
      %508 = vmatpush2.bf16.msra.mxu0 0
      %509 = vmatprep.mubr.bf16.mxu0 0
      %510 = vmatmul.mubr.bf16.gmra.mxu0 %v472
      %v511 = vpop.f32.mrf.mxu0
      %v512 = vadd.f32 0.0, %v511
      %v513 = vpop.f32.mrf.mxu0
      %v514 = vpop.f32.mrf.mxu0
      %v515 = vadd.f32 0.0, %v514
      %v516 = vpop.f32.mrf.mxu0
      %517 = vmatprep.mubr.bf16.mxu0 0
      %518 = vmatmul.mubr.bf16.gmra.mxu0 %v475
      %v519 = vpop.f32.mrf.mxu0
      %v520 = vadd.f32 0.0, %v519
      %v521 = vpop.f32.mrf.mxu0
      %v522 = vpop.f32.mrf.mxu0
      %v523 = vpop.f32.mrf.mxu0
      %524 = vdwg.mxu0
      %v528 = vcombine.high %v512, %v512
      %v529 = vcombine.high %v515, %v515
      %v530 = vcombine.high %v520, %v520
      %533 = vrot.lane.b32.xlu0 %v528, 96
      %v534 = vpop.permute.xlu0 %533
      %535 = vrot.lane.b32.xlu0 %v515, 96
      %v536 = vpop.permute.xlu0 %535
      %537 = vrot.lane.b32.xlu0 %v529, 96
      %v538 = vpop.permute.xlu0 %537
      %539 = vrot.lane.b32.xlu0 %v520, 96
      %v540 = vpop.permute.xlu0 %539
      %v545 = vadd.f32 %v512, %v534
      %v546 = vadd.f32 %v528, %v536
      %v547 = vadd.f32 %v515, %v538
      %v548 = vadd.f32 %v529, %v540
      %549 = vrot.lane.b32.xlu0 %v515, 64
      %v550 = vpop.permute.xlu0 %549
      %551 = vrot.lane.b32.xlu0 %v529, 64
      %v552 = vpop.permute.xlu0 %551
      %553 = vrot.lane.b32.xlu0 %v520, 64
      %v554 = vpop.permute.xlu0 %553
      %555 = vrot.lane.b32.xlu0 %v530, 64
      %v556 = vpop.permute.xlu0 %555
      %v561 = vadd.f32 %v545, %v550
      %v562 = vadd.f32 %v546, %v552
      %v563 = vadd.f32 %v547, %v554
      %v564 = vadd.f32 %v548, %v556
      %v565 = vadd.f32 %v241, %v561
      %v566 = vadd.f32 %v242, %v562
      %v567 = vadd.f32 %v243, %v563
      %v568 = vadd.f32 %v244, %v564
      %vm569 = vcmask 257024
      %570 = vst.msk [vmem:[#allocation2] sm:$0xf] %vm569, %v565
      %571 = vst.msk [vmem:[#allocation2 + $0x4] sm:$0xf] %vm569, %v566
      %572 = vst.msk [vmem:[#allocation2 + $0x8] sm:$0xf] %vm569, %v567
      %573 = vst.msk [vmem:[#allocation2 + $0xc] sm:$0xf] %vm569, %v568
      %p574 = scmp.eq.s32.totalorder %s19, 2
      // Predicated region
      $region37: #{han_forward.20} parent=31 // pred_check
        %p575 = pneg %p574
      $region38: #{han_forward.20} parent=31 // pred_check_branch
        %577 = sbr.rel (%p575) target = $region40
      $region39: #{han_forward.20} parent=31 // pred_region
        %v578 = vld [vmem:[#allocation2] sm:$0xf]
        %v579 = vld [vmem:[#allocation2 + $0x4] sm:$0xf]
        %v580 = vld [vmem:[#allocation2 + $0x8] sm:$0xf]
        %v581 = vld [vmem:[#allocation2 + $0xc] sm:$0xf]
        %v582 = vld [vmem:[%s2] sm:$0x1]
        %v584 = vlaneseq
        %v585 = vshrl.u32 %v584, 7
        %v586 = vsub.s32 0, %v585
        %v587 = vrot.slane %v582, %v586
        %v589 = vadd.f32 %v578, %v587
        %v590 = vadd.f32 %v579, %v587
        %v591 = vadd.f32 %v580, %v587
        %v592 = vadd.f32 %v581, %v587
        %v593 = vpack.c.bf16 %v589, %v589
        %v594 = vpack.c.bf16 %v590, %v590
        %v595 = vpack.c.bf16 %v591, %v591
        %v596 = vpack.c.bf16 %v592, %v592
        %vm597 = vcmask 254976
        %598 = vst.msk [vmem:[%s230] sm:$0x3] %vm597, %v593
        %599 = vst.msk [vmem:[%s230 + $0x2] sm:$0x3] %vm597, %v594
        %600 = vst.msk [vmem:[%s230 + $0x4] sm:$0x3] %vm597, %v595
        %601 = vst.msk [vmem:[%s230 + $0x6] sm:$0x3] %vm597, %v596
      $region40: #{han_forward.20} parent=31 // pred_fallthru
        _
      %p602 = scmp.lt.s32.totalorder %s18, 1
      %s603 = scalar_select %p602, %s18, 1
      %s604 = smul.addr %s603, 4
      %s605 = smul.addr %s604, 2
      %s606 = scalar_lea.vmem %s3, %s605
      // Predicated region
      $region41: #{han_forward.20} parent=31 // pred_check
        %p607 = pneg %p121
      $region42: #{han_forward.20} parent=31 // pred_check_branch
        %609 = sbr.rel (%p607) target = $region44
      $region43: #{han_forward.20} parent=31 // pred_region
        _
      $region44: #{han_forward.20} parent=31 // pred_fallthru
        _
    $region32: #{han_forward.20} parent=5 // pred_fallthru
      _
    %p610 = scmp.le.s32.totalorder 2, %s9
    // Predicated region
    $region45: #{han_forward.20} parent=5 // pred_check
      %p611 = pneg %p610
    $region46: #{han_forward.20} parent=5 // pred_check_branch
      %613 = sbr.rel (%p611) target = $region48
    $region47: #{han_forward.20} parent=5 // pred_region
      %s614 = ssub.s32 %s9, 2
      // Predicated region
      $region49: #{han_forward.20} parent=47 // pred_check
        %p615 = pneg %p127
      $region50: #{han_forward.20} parent=47 // pred_check_branch
        %617 = sbr.rel (%p615) target = $region52
      $region51: #{han_forward.20} parent=47 // pred_region
        %p618 = scmp.lt.s32.totalorder %s20, 1
        %s619 = scalar_select %p618, %s20, 1
        %s620 = smul.addr %s619, 4
        %s621 = smul.addr %s620, 2
        %s622 = scalar_lea.vmem %s3, %s621
      $region52: #{han_forward.20} parent=47 // pred_fallthru
        _
    $region48: #{han_forward.20} parent=5 // pred_fallthru
      _
  $region6: #{han_forward.20} parent=0 // loop_footer
    %s13 = sadd.s32 1, %s9
  $region7: #{han_forward.20} parent=0 // loop_footer_branch
    %8 = sbr.rel target = $region3
  $region8: #{han_forward.20} parent=0 // loop_exit
    _

// kernel: han_forward.21
$region0: #{han_forward.21}
  #allocation0 [shape = 'u32[]', space=smem, size = 0x4, offset = 0x4, fixed_abs, tag = 'smem constant byte address 0x4 - core index']
  #allocation1 [shape = 'u32[144,128]{1,0:T(1,128)}', space=vmem, size = 0x12000, scoped, tag = 'internal scratch']
  %s0 = inlined_call_operand.vmem [shape: bf16[2,4,4,32], index: 0, kind: input, shape index: {}]
  %s1 = inlined_call_operand.vmem [shape: bf16[96,96], index: 1, kind: input, shape index: {}]
  %s2 = inlined_call_operand.vmem [shape: f32[2], index: 2, kind: input, shape index: {}]
  %s3 = inlined_call_operand.vmem [shape: bf16[2,4,4,32], index: 3, kind: output, shape index: {}]
  %s4 = sld [smem:[#allocation0]]
  $region49: #{han_forward.21} parent=0
    _
  %s6 = ssub.s32 1, %s4
  %s7 = scalar_select 0, %s6, %s4
  $region1: #{han_forward.21} parent=0
    #allocation2 [shape = 'u8[512]{0}', space=smem, size = 0x200, scoped, tag = 'input window, operand 2, single buffered']
    #allocation3 [shape = 's32[2]{0}', space=sflag, size = 0x8, scoped, tag = 'scoped memory for han_forward.21']
    %8 = vsyncpa [#allocation3], 0
    loop: start=0, step=1, limit=4
    $region2: #{han_forward.21} parent=1 // loop_pre_header
      _
    $region3: #{han_forward.21} parent=1 // loop_header
      %s10 = sphi 0, %s14
      %p11 = scmp.ge.s32.totalorder %s10, 4
      %s20 = sphi 0, %s22
      %s23 = sphi 0, %s20
      %s24 = sphi 0, %s23
      %s40 = sphi 0, %s24
      %s44 = sphi 0, %s44
      %s46 = sphi 0, %s44
      %s47 = sphi 0, %s46
      %s61 = sphi 0, %s47
      %s65 = sphi 0, %s65
      %s67 = sphi 0, %s65
      %s68 = sphi 0, %s67
      %s82 = sphi 0, %s68
      %s88 = sphi 0, %s90
      %s91 = sphi 0, %s88
      %s92 = sphi 0, %s91
      %s108 = sphi 0, %s92
    $region4: #{han_forward.21} parent=1 // loop_header_branch
      %13 = sbr.rel (%p11) target = $region8
    $region5: #{han_forward.21} parent=1 // loop_body
      %s15 = ssub.s32 %s10, 1
      %s16 = ssub.s32 %s10, 2
      %s17 = sadd.s32 %s10, 1
      %s18 = ssub.s32 %s10, %s17
      %p19 = scmp.eq.s32.totalorder %s18, 0
      %s21 = sadd.s32 %s20, 1
      %s22 = scalar_select %p19, %s20, %s21
      %p25 = pneg %p19
      %p26 = scmp.eq.s32.totalorder %s10, 1
      %p27 = por %p25, %p26
      %p28 = scmp.ne.s32.totalorder %s20, %s23
      %p29 = scmp.eq.s32.totalorder %s10, 0
      %p30 = por %p28, %p29
      %p31 = scmp.ne.s32.totalorder %s20, %s23
      %p32 = scmp.eq.s32.totalorder %s15, 1
      %p33 = por %p31, %p32
      %p34 = scmp.ne.s32.totalorder %s23, %s24
      %p35 = scmp.eq.s32.totalorder %s15, 0
      %p36 = por %p34, %p35
      %p37 = scmp.ne.s32.totalorder %s23, %s24
      %p38 = scmp.eq.s32.totalorder %s16, 1
      %p39 = por %p37, %p38
      %p41 = scmp.ne.s32.totalorder %s24, %s40
      %p42 = scmp.eq.s32.totalorder %s16, 0
      %p43 = por %p41, %p42
      %s45 = sadd.s32 %s44, 1
      %p48 = scmp.eq.s32.totalorder %s10, 1
      %p49 = scmp.ne.s32.totalorder %s44, %s46
      %p50 = scmp.eq.s32.totalorder %s10, 0
      %p51 = por %p49, %p50
      %p52 = scmp.ne.s32.totalorder %s44, %s46
      %p53 = scmp.eq.s32.totalorder %s15, 1
      %p54 = por %p52, %p53
      %p55 = scmp.ne.s32.totalorder %s46, %s47
      %p56 = scmp.eq.s32.totalorder %s15, 0
      %p57 = por %p55, %p56
      %p58 = scmp.ne.s32.totalorder %s46, %s47
      %p59 = scmp.eq.s32.totalorder %s16, 1
      %p60 = por %p58, %p59
      %p62 = scmp.ne.s32.totalorder %s47, %s61
      %p63 = scmp.eq.s32.totalorder %s16, 0
      %p64 = por %p62, %p63
      %s66 = sadd.s32 %s65, 1
      %p69 = scmp.eq.s32.totalorder %s10, 1
      %p70 = scmp.ne.s32.totalorder %s65, %s67
      %p71 = scmp.eq.s32.totalorder %s10, 0
      %p72 = por %p70, %p71
      %p73 = scmp.ne.s32.totalorder %s65, %s67
      %p74 = scmp.eq.s32.totalorder %s15, 1
      %p75 = por %p73, %p74
      %p76 = scmp.ne.s32.totalorder %s67, %s68
      %p77 = scmp.eq.s32.totalorder %s15, 0
      %p78 = por %p76, %p77
      %p79 = scmp.ne.s32.totalorder %s67, %s68
      %p80 = scmp.eq.s32.totalorder %s16, 1
      %p81 = por %p79, %p80
      %p83 = scmp.ne.s32.totalorder %s68, %s82
      %p84 = scmp.eq.s32.totalorder %s16, 0
      %p85 = por %p83, %p84
      %s86 = ssub.s32 %s10, %s17
      %p87 = scmp.eq.s32.totalorder %s86, 0
      %s89 = sadd.s32 %s88, 1
      %s90 = scalar_select %p87, %s88, %s89
      %p93 = pneg %p87
      %p94 = scmp.eq.s32.totalorder %s10, 1
      %p95 = por %p93, %p94
      %p96 = scmp.ne.s32.totalorder %s88, %s91
      %p97 = scmp.eq.s32.totalorder %s10, 0
      %p98 = por %p96, %p97
      %p99 = scmp.ne.s32.totalorder %s88, %s91
      %p100 = scmp.eq.s32.totalorder %s15, 1
      %p101 = por %p99, %p100
      %p102 = scmp.ne.s32.totalorder %s91, %s92
      %p103 = scmp.eq.s32.totalorder %s15, 0
      %p104 = por %p102, %p103
      %p105 = scmp.ne.s32.totalorder %s91, %s92
      %p106 = scmp.eq.s32.totalorder %s16, 1
      %p107 = por %p105, %p106
      %p109 = scmp.ne.s32.totalorder %s92, %s108
      %p110 = scmp.eq.s32.totalorder %s16, 0
      %p111 = por %p109, %p110
      %p112 = scmp.le.s32.totalorder 1, %s10
      %p113 = scmp.lt.s32.totalorder %s10, 3
      %p114 = pnand %p112, %p113
      %p115 = pneg %p114
      // Predicated region
      $region9: #{han_forward.21} parent=5 // pred_check
        _
      $region10: #{han_forward.21} parent=5 // pred_check_branch
        %117 = sbr.rel (%p114) target = $region12
      $region11: #{han_forward.21} parent=5 // pred_region
        %s118 = ssub.s32 %s10, 1
        // Predicated region
        $region13: #{han_forward.21} parent=11 // pred_check
          %p119 = pneg %p57
        $region14: #{han_forward.21} parent=11 // pred_check_branch
          %121 = sbr.rel (%p119) target = $region16
        $region15: #{han_forward.21} parent=11 // pred_region
          _
        $region16: #{han_forward.21} parent=11 // pred_fallthru
          _
        // Predicated region
        $region17: #{han_forward.21} parent=11 // pred_check
          %p122 = pneg %p78
        $region18: #{han_forward.21} parent=11 // pred_check_branch
          %124 = sbr.rel (%p122) target = $region20
        $region19: #{han_forward.21} parent=11 // pred_region
          %s126 = ssub.s32 16, 16
          %127 = vsyncadd [#allocation3], %s126
          %s129 = sshll.u32 %s2, 4
          %s130 = int_to_ptr.vmem [resolvable:$true] %s129
          %132 = dma.vmem_to_smem %s130, 16, [#allocation2], [#allocation3]
        $region20: #{han_forward.21} parent=11 // pred_fallthru
          _
      $region12: #{han_forward.21} parent=5 // pred_fallthru
        _
      %p133 = scmp.lt.s32.totalorder %s10, 2
      // Predicated region
      $region21: #{han_forward.21} parent=5 // pred_check
        %p134 = pneg %p133
      $region22: #{han_forward.21} parent=5 // pred_check_branch
        %136 = sbr.rel (%p134) target = $region24
      $region23: #{han_forward.21} parent=5 // pred_region
        // Predicated region
        $region25: #{han_forward.21} parent=23 // pred_check
          %p137 = pneg %p30
        $region26: #{han_forward.21} parent=23 // pred_check_branch
          %139 = sbr.rel (%p137) target = $region28
        $region27: #{han_forward.21} parent=23 // pred_region
          %p140 = scmp.lt.s32.totalorder %s10, 1
          %s141 = scalar_select %p140, %s10, 1
          %s142 = smul.addr %s141, 4
          %s143 = smul.addr %s142, 2
          %s144 = scalar_lea.vmem %s0, %s143
        $region28: #{han_forward.21} parent=23 // pred_fallthru
          _
      $region24: #{han_forward.21} parent=5 // pred_fallthru
        _
      %p145 = scmp.le.s32.totalorder 1, %s10
      %p146 = scmp.lt.s32.totalorder %s10, 3
      %p147 = pnand %p145, %p146
      %p148 = pneg %p147
      // Predicated region
      $region29: #{han_forward.21} parent=5 // pred_check
        _
      $region30: #{han_forward.21} parent=5 // pred_check_branch
        %150 = sbr.rel (%p147) target = $region32
      $region31: #{han_forward.21} parent=5 // pred_region
        %s151 = ssub.s32 %s10, 1
        // Predicated region
        $region33: #{han_forward.21} parent=31 // pred_check
          %p152 = pneg %p78
        $region34: #{han_forward.21} parent=31 // pred_check_branch
          %154 = sbr.rel (%p152) target = $region36
        $region35: #{han_forward.21} parent=31 // pred_region
          %155 = dma.done [#allocation3], 16
        $region36: #{han_forward.21} parent=31 // pred_fallthru
          _
        %156 = sfence
        %p157 = scmp.lt.s32.totalorder %s15, 1
        %s158 = scalar_select %p157, %s15, 1
        %s159 = smul.addr %s158, 4
        %s160 = smul.addr %s159, 2
        %s161 = scalar_lea.vmem %s0, %s160
        %p162 = pneg %p36
        %p163 = pneg %p33
        %p164 = pneg %p57
        %p165 = pneg %p54
        %p166 = pneg %p78
        %p167 = pneg %p75
        %p168 = pneg %p104
        %p169 = pneg %p101
        %p170 = scmp.lt.s32.totalorder %s15, 1
        %s171 = scalar_select %p170, %s15, 1
        %s172 = smul.addr %s171, 4
        %s173 = smul.addr %s172, 2
        %s174 = scalar_lea.vmem %s3, %s173
        %p175 = scmp.lt.s32.totalorder %s15, 1
        %s176 = scalar_select %p175, %s15, 1
        %s177 = smul.addr %s176, 4
        %s178 = smul.addr %s177, 2
        %s179 = scalar_lea.vmem %s0, %s178
        %p180 = scmp.lt.s32.totalorder %s15, 1
        %s181 = scalar_select %p180, %s15, 1
        %s182 = smul.addr %s181, 4
        %s183 = smul.addr %s182, 2
        %s184 = scalar_lea.vmem %s3, %s183
        %v186 = vld [vmem:[%s179] sm:$0x3]
        %v187 = vld [vmem:[%s179 + $0x2] sm:$0x3]
        %v188 = vld [vmem:[%s179 + $0x4] sm:$0x3]
        %v189 = vld [vmem:[%s179 + $0x6] sm:$0x3]
        %v190 = vld [vmem:[%s1] sm:$0xf]
        %v191 = vld [vmem:[%s1 + $0x4] sm:$0xf]
        %v192 = vld [vmem:[%s1 + $0x8] sm:$0xf]
        %v193 = vld [vmem:[%s1 + $0xc] sm:$0xf]
        %v194 = vld [vmem:[%s1 + $0x10] sm:$0xf]
        %v195 = vld [vmem:[%s1 + $0x14] sm:$0xf]
        %v196 = vld [vmem:[%s1 + $0x18] sm:$0xf]
        %v197 = vld [vmem:[%s1 + $0x1c] sm:$0xf]
        %v198 = vld [vmem:[%s1 + $0x20] sm:$0xf]
        %v199 = vld [vmem:[%s1 + $0x24] sm:$0xf]
        %v200 = vld [vmem:[%s1 + $0x28] sm:$0xf]
        %v201 = vld [vmem:[%s1 + $0x2c] sm:$0xf]
        %v203 = vshrl.u32 0, 16
        %v205 = vrot.slane %v203, 7
        %v206 = vshll.u32 0, 16
        %v208 = vor.u32 %v205, %v206
        %v210 = vshrl.u32 %v186, 16
        %v212 = vrot.slane %v210, 7
        %v213 = vshll.u32 %v186, 16
        %v215 = vor.u32 %v212, %v213
        %v217 = vshrl.u32 %v187, 16
        %v219 = vrot.slane %v217, 7
        %v220 = vshll.u32 %v187, 16
        %v222 = vor.u32 %v219, %v220
        %v224 = vshrl.u32 %v188, 16
        %v226 = vrot.slane %v224, 7
        %v227 = vshll.u32 %v188, 16
        %v229 = vor.u32 %v226, %v227
        %v231 = vshrl.u32 %v189, 16
        %v233 = vrot.slane %v231, 7
        %v234 = vshll.u32 %v189, 16
        %v236 = vor.u32 %v233, %v234
        %vm242 = vcmask 1040384
        %vm243 = vsmask.f32 256
        %vm244 = vmand %vm242, %vm243
        %v245 = vsel %vm244, 0, %v208
        %v246 = vsel %vm244, 0, %v215
        %v247 = vsel %vm244, 0, %v222
        %v248 = vsel %vm244, 0, %v229
        %v249 = vsel %vm244, 0, %v236
        %vm250 = vcmask 1042432
        %vm251 = vsmask.f32 2304
        %vm252 = vmand %vm250, %vm251
        %v253 = vsel %vm252, %v245, 0
        %v254 = vsel %vm252, %v246, 0
        %v255 = vsel %vm252, %v247, 0
        %v256 = vsel %vm252, %v248, 0
        %v257 = vsel %vm252, %v249, 0
        %v259 = vshrl.u32 %v253, 16
        %v261 = vshll.u32 %v253, 16
        %v263 = vrot.slane %v261, 1
        %v264 = vor.u32 %v259, %v263
        %v266 = vshrl.u32 %v254, 16
        %v268 = vshll.u32 %v254, 16
        %v270 = vrot.slane %v268, 1
        %v271 = vor.u32 %v266, %v270
        %v273 = vshrl.u32 %v255, 16
        %v275 = vshll.u32 %v255, 16
        %v277 = vrot.slane %v275, 1
        %v278 = vor.u32 %v273, %v277
        %v280 = vshrl.u32 %v256, 16
        %v282 = vshll.u32 %v256, 16
        %v284 = vrot.slane %v282, 1
        %v285 = vor.u32 %v280, %v284
        %v287 = vshrl.u32 %v257, 16
        %v289 = vshll.u32 %v257, 16
        %v291 = vrot.slane %v289, 1
        %v292 = vor.u32 %v287, %v291
        %293 = vrot.lane.b32.xlu0 %v264, 32
        %v294 = vpop.permute.xlu0 %293
        %295 = vrot.lane.b32.xlu0 %v271, 32
        %v296 = vpop.permute.xlu0 %295
        %297 = vrot.lane.b32.xlu0 %v278, 32
        %v298 = vpop.permute.xlu0 %297
        %299 = vrot.lane.b32.xlu0 %v285, 32
        %v300 = vpop.permute.xlu0 %299
        %301 = vrot.lane.b32.xlu0 %v292, 32
        %v302 = vpop.permute.xlu0 %301
        %v308 = vrot.slane %v253, 1
        %v309 = vrot.slane %v254, 1
        %v310 = vrot.slane %v255, 1
        %v311 = vrot.slane %v256, 1
        %v312 = vrot.slane %v257, 1
        %313 = vrot.lane.b32.xlu0 %v308, 64
        %v314 = vpop.permute.xlu0 %313
        %315 = vrot.lane.b32.xlu0 %v309, 64
        %v316 = vpop.permute.xlu0 %315
        %317 = vrot.lane.b32.xlu0 %v310, 64
        %v318 = vpop.permute.xlu0 %317
        %319 = vrot.lane.b32.xlu0 %v311, 64
        %v320 = vpop.permute.xlu0 %319
        %321 = vrot.lane.b32.xlu0 %v312, 64
        %v322 = vpop.permute.xlu0 %321
        %vm323 = vcmask 261120
        %v325 = vsel %vm323, %v253, %v294
        %v327 = vsel %vm323, %v254, %v296
        %v329 = vsel %vm323, %v255, %v298
        %v331 = vsel %vm323, %v256, %v300
        %v333 = vsel %vm323, %v257, %v302
        %vm334 = vcmask 523264
        %v336 = vsel %vm334, %v325, %v314
        %v338 = vsel %vm334, %v327, %v316
        %v340 = vsel %vm334, %v329, %v318
        %v342 = vsel %vm334, %v331, %v320
        %v344 = vsel %vm334, %v333, %v322
        %v350 = vcombine.low %v336, %v338
        %v351 = vcombine.low %v340, %v342
        %v353 = vunpack.c.l.s4 1983009808
        %v354 = vunpack.c.0.s8 %v353
        %v355 = vlaneseq
        %v356 = vshrl.u32 %v355, 7
        %v357 = vsub.s32 %v354, %v356
        %v358 = vrot.slane %v350, %v357
        %v360 = vunpack.c.l.s4 1983009808
        %v361 = vunpack.c.0.s8 %v360
        %v362 = vlaneseq
        %v363 = vshrl.u32 %v362, 7
        %v364 = vsub.s32 %v361, %v363
        %v365 = vrot.slane %v351, %v364
        %v366 = vcombine.low %v358, %v365
        %v367 = vcombine.low %v344, %v336
        %v369 = vunpack.c.l.s4 1983009808
        %v370 = vunpack.c.0.s8 %v369
        %v371 = vlaneseq
        %v372 = vshrl.u32 %v371, 7
        %v373 = vsub.s32 %v370, %v372
        %v374 = vrot.slane %v367, %v373
        %v387 = vunpack.c.l.b16 %v190
        %v388 = vunpack.c.l.b16 %v191
        %v389 = vunpack.c.l.b16 %v192
        %v390 = vunpack.c.l.b16 %v193
        %v391 = vunpack.c.l.b16 %v194
        %v392 = vunpack.c.l.b16 %v195
        %v393 = vunpack.c.l.b16 %v196
        %v394 = vunpack.c.l.b16 %v197
        %v395 = vunpack.c.l.b16 %v198
        %v396 = vunpack.c.l.b16 %v199
        %v397 = vunpack.c.l.b16 %v200
        %v398 = vunpack.c.l.b16 %v201
        %v399 = vpack.c.b16 %v388, %v387
        %v400 = vpack.c.b16 %v390, %v389
        %v401 = vpack.c.b16 %v392, %v391
        %v402 = vpack.c.b16 %v394, %v393
        %v403 = vpack.c.b16 %v396, %v395
        %v404 = vpack.c.b16 %v398, %v397
        %vm411 = vcmask 785408
        %v413 = vsel %vm411, %v366, 0
        %v416 = vsel %vm411, %v374, 0
        %418 = vmatprep.subr.bf16.mxu0 0
        %419 = vmatpush1.bf16.msra.mxu0 0
        %420 = vmatprep.subr.bf16.mxu0 0
        %421 = vmatpush1.bf16.msra.mxu0 0
        %422 = vmatprep.subr.bf16.mxu0 0
        %423 = vmatpush1.bf16.msra.mxu0 %v404
        %424 = vmatprep.subr.bf16.mxu0 0
        %425 = vmatpush1.bf16.msra.mxu0 %v403
        %426 = vmatprep.subr.bf16.mxu0 0
        %427 = vmatpush1.bf16.msra.mxu0 %v402
        %428 = vmatprep.subr.bf16.mxu0 0
        %429 = vmatpush1.bf16.msra.mxu0 %v401
        %430 = vmatprep.subr.bf16.mxu0 0
        %431 = vmatpush1.bf16.msra.mxu0 %v400
        %432 = vmatprep.subr.bf16.mxu0 0
        %433 = vmatpush1.bf16.msra.mxu0 %v399
        %434 = vmatprep.subr.bf16.mxu0 0
        %435 = vmatpush2.bf16.msra.mxu0 0
        %436 = vmatprep.subr.bf16.mxu0 0
        %437 = vmatpush2.bf16.msra.mxu0 0
        %438 = vmatprep.subr.bf16.mxu0 0
        %439 = vmatpush2.bf16.msra.mxu0 0
        %440 = vmatprep.subr.bf16.mxu0 0
        %441 = vmatpush2.bf16.msra.mxu0 0
        %442 = vmatprep.subr.bf16.mxu0 0
        %443 = vmatpush2.bf16.msra.mxu0 0
        %444 = vmatprep.subr.bf16.mxu0 0
        %445 = vmatpush2.bf16.msra.mxu0 0
        %446 = vmatprep.subr.bf16.mxu0 0
        %447 = vmatpush2.bf16.msra.mxu0 0
        %448 = vmatprep.subr.bf16.mxu0 0
        %449 = vmatpush2.bf16.msra.mxu0 0
        %450 = vmatprep.mubr.bf16.mxu0 0
        %451 = vmatmul.mubr.bf16.gmra.mxu0 %v413
        %v452 = vpop.f32.mrf.mxu0
        %v453 = vadd.f32 0.0, %v452
        %v454 = vpop.f32.mrf.mxu0
        %v455 = vpop.f32.mrf.mxu0
        %v456 = vadd.f32 0.0, %v455
        %v457 = vpop.f32.mrf.mxu0
        %458 = vmatprep.mubr.bf16.mxu0 0
        %459 = vmatmul.mubr.bf16.gmra.mxu0 %v416
        %v460 = vpop.f32.mrf.mxu0
        %v461 = vadd.f32 0.0, %v460
        %v462 = vpop.f32.mrf.mxu0
        %v463 = vpop.f32.mrf.mxu0
        %v464 = vpop.f32.mrf.mxu0
        %465 = vdwg.mxu0
        %v469 = vcombine.high %v453, %v453
        %v470 = vcombine.high %v456, %v456
        %v471 = vcombine.high %v461, %v461
        %474 = vrot.lane.b32.xlu0 %v469, 96
        %v475 = vpop.permute.xlu0 %474
        %476 = vrot.lane.b32.xlu0 %v456, 96
        %v477 = vpop.permute.xlu0 %476
        %478 = vrot.lane.b32.xlu0 %v470, 96
        %v479 = vpop.permute.xlu0 %478
        %480 = vrot.lane.b32.xlu0 %v461, 96
        %v481 = vpop.permute.xlu0 %480
        %v486 = vadd.f32 %v453, %v475
        %v487 = vadd.f32 %v469, %v477
        %v488 = vadd.f32 %v456, %v479
        %v489 = vadd.f32 %v470, %v481
        %490 = vrot.lane.b32.xlu0 %v456, 64
        %v491 = vpop.permute.xlu0 %490
        %492 = vrot.lane.b32.xlu0 %v470, 64
        %v493 = vpop.permute.xlu0 %492
        %494 = vrot.lane.b32.xlu0 %v461, 64
        %v495 = vpop.permute.xlu0 %494
        %496 = vrot.lane.b32.xlu0 %v471, 64
        %v497 = vpop.permute.xlu0 %496
        %v502 = vadd.f32 %v486, %v491
        %v503 = vadd.f32 %v487, %v493
        %v504 = vadd.f32 %v488, %v495
        %v505 = vadd.f32 %v489, %v497
        %s506 = sld [smem:[#allocation2]]
        %v507 = vstv %s506
        %v508 = vadd.f32 %v502, %v507
        %v509 = vadd.f32 %v503, %v507
        %v510 = vadd.f32 %v504, %v507
        %v511 = vadd.f32 %v505, %v507
        %s512 = sld [smem:[#allocation2 + $0x1]]
        %v513 = vxor.u32 %v508, 2147483648
        %v514 = vxor.u32 %v509, 2147483648
        %v515 = vxor.u32 %v510, 2147483648
        %v516 = vxor.u32 %v511, 2147483648
        %v517 = vmul.f32 %v513, 1.442695
        %v518 = vpow.pop %v517
        %v519 = vmul.f32 %v514, 1.442695
        %v520 = vpow.pop %v519
        %v521 = vmul.f32 %v515, 1.442695
        %v522 = vpow.pop %v521
        %v523 = vmul.f32 %v516, 1.442695
        %v524 = vpow.pop %v523
        %v525 = vadd.f32 %v518, 1.0
        %v526 = vadd.f32 %v520, 1.0
        %v527 = vadd.f32 %v522, 1.0
        %v528 = vadd.f32 %v524, 1.0
        %v529 = vrcp.pop %v525
        %v530 = vmul.f32 1.0, %v529
        %v531 = vrcp.pop %v526
        %v532 = vmul.f32 1.0, %v531
        %v533 = vrcp.pop %v527
        %v534 = vmul.f32 1.0, %v533
        %v535 = vrcp.pop %v528
        %v536 = vmul.f32 1.0, %v535
        %v537 = vstv %s512
        %v538 = vmul.f32 %v537, %v530
        %v539 = vmul.f32 %v537, %v532
        %v540 = vmul.f32 %v537, %v534
        %v541 = vmul.f32 %v537, %v536
        %v542 = vunpack.c.l.bf16 %v186
        %v543 = vunpack.c.l.bf16 %v187
        %v544 = vunpack.c.l.bf16 %v188
        %v545 = vunpack.c.l.bf16 %v189
        %v546 = vmul.f32 %v542, %v538
        %v547 = vmul.f32 %v543, %v539
        %v548 = vmul.f32 %v544, %v540
        %v549 = vmul.f32 %v545, %v541
        %v550 = vadd.f32 %v546, %v542
        %v551 = vadd.f32 %v547, %v543
        %v552 = vadd.f32 %v548, %v544
        %v553 = vadd.f32 %v549, %v545
        %v554 = vpack.c.bf16 %v550, %v550
        %v555 = vpack.c.bf16 %v551, %v551
        %v556 = vpack.c.bf16 %v552, %v552
        %v557 = vpack.c.bf16 %v553, %v553
        %vm558 = vcmask 254976
        %559 = vst.msk [vmem:[%s184] sm:$0x3] %vm558, %v554
        %560 = vst.msk [vmem:[%s184 + $0x2] sm:$0x3] %vm558, %v555
        %561 = vst.msk [vmem:[%s184 + $0x4] sm:$0x3] %vm558, %v556
        %562 = vst.msk [vmem:[%s184 + $0x6] sm:$0x3] %vm558, %v557
        %p563 = scmp.lt.s32.totalorder %s15, 1
        %s564 = scalar_select %p563, %s15, 1
        %s565 = smul.addr %s564, 4
        %s566 = smul.addr %s565, 2
        %s567 = scalar_lea.vmem %s3, %s566
        // Predicated region
        $region37: #{han_forward.21} parent=31 // pred_check
          %p568 = pneg %p101
        $region38: #{han_forward.21} parent=31 // pred_check_branch
          %570 = sbr.rel (%p568) target = $region40
        $region39: #{han_forward.21} parent=31 // pred_region
          _
        $region40: #{han_forward.21} parent=31 // pred_fallthru
          _
      $region32: #{han_forward.21} parent=5 // pred_fallthru
        _
      %p571 = scmp.le.s32.totalorder 2, %s10
      // Predicated region
      $region41: #{han_forward.21} parent=5 // pred_check
        %p572 = pneg %p571
      $region42: #{han_forward.21} parent=5 // pred_check_branch
        %574 = sbr.rel (%p572) target = $region44
      $region43: #{han_forward.21} parent=5 // pred_region
        %s575 = ssub.s32 %s10, 2
        // Predicated region
        $region45: #{han_forward.21} parent=43 // pred_check
          %p576 = pneg %p107
        $region46: #{han_forward.21} parent=43 // pred_check_branch
          %578 = sbr.rel (%p576) target = $region48
        $region47: #{han_forward.21} parent=43 // pred_region
          %p579 = scmp.lt.s32.totalorder %s16, 1
          %s580 = scalar_select %p579, %s16, 1
          %s581 = smul.addr %s580, 4
          %s582 = smul.addr %s581, 2
          %s583 = scalar_lea.vmem %s3, %s582
        $region48: #{han_forward.21} parent=43 // pred_fallthru
          _
      $region44: #{han_forward.21} parent=5 // pred_fallthru
        _
    $region6: #{han_forward.21} parent=1 // loop_footer
      %s14 = sadd.s32 1, %s10
    $region7: #{han_forward.21} parent=1 // loop_footer_branch
      %9 = sbr.rel target = $region3
    $region8: #{han_forward.21} parent=1 // loop_exit
      _
    %584 = vsyncpa [#allocation3], 1
    %s585 = scalar_lea.sflag [#allocation3], 1
    %586 = vsyncpa %s585, 1

// kernel: han_forward.22
$region0: #{han_forward.22}
  #allocation0 [shape = 'u32[]', space=smem, size = 0x4, offset = 0x4, fixed_abs, tag = 'smem constant byte address 0x4 - core index']
  #allocation1 [shape = 'u32[144,128]{1,0:T(1,128)}', space=vmem, size = 0x12000, scoped, tag = 'internal scratch']
  %s0 = inlined_call_operand.vmem [shape: bf16[2,4,4,32], index: 0, kind: input, shape index: {}]
  %s1 = inlined_call_operand.vmem [shape: bf16[2,4,4,32], index: 1, kind: input, shape index: {}]
  %s2 = inlined_call_operand.vmem [shape: bf16[96,96], index: 2, kind: input, shape index: {}]
  %s3 = inlined_call_operand.vmem [shape: bf16[96,96], index: 3, kind: input, shape index: {}]
  %s4 = inlined_call_operand.vmem [shape: f32[1,32], index: 4, kind: input, shape index: {}]
  %s5 = inlined_call_operand.vmem [shape: bf16[2,4,4,32], index: 5, kind: input, shape index: {}]
  %s6 = inlined_call_operand.vmem [shape: bf16[2,4,4,32], index: 6, kind: output, shape index: {}]
  %s7 = sld [smem:[#allocation0]]
  $region57: #{han_forward.22} parent=0
    _
  %s9 = ssub.s32 1, %s7
  %s10 = scalar_select 0, %s9, %s7
  loop: start=0, step=1, limit=4
  $region2: #{han_forward.22} parent=0 // loop_pre_header
    _
  $region3: #{han_forward.22} parent=0 // loop_header
    %s12 = sphi 0, %s16
    %p13 = scmp.ge.s32.totalorder %s12, 4
    %s22 = sphi 0, %s24
    %s25 = sphi 0, %s22
    %s26 = sphi 0, %s25
    %s42 = sphi 0, %s26
    %s48 = sphi 0, %s50
    %s51 = sphi 0, %s48
    %s52 = sphi 0, %s51
    %s68 = sphi 0, %s52
    %s72 = sphi 0, %s72
    %s74 = sphi 0, %s72
    %s75 = sphi 0, %s74
    %s89 = sphi 0, %s75
    %s93 = sphi 0, %s93
    %s95 = sphi 0, %s93
    %s96 = sphi 0, %s95
    %s110 = sphi 0, %s96
    %s114 = sphi 0, %s114
    %s116 = sphi 0, %s114
    %s117 = sphi 0, %s116
    %s131 = sphi 0, %s117
    %s137 = sphi 0, %s139
    %s140 = sphi 0, %s137
    %s141 = sphi 0, %s140
    %s157 = sphi 0, %s141
    %s163 = sphi 0, %s165
    %s166 = sphi 0, %s163
    %s167 = sphi 0, %s166
    %s183 = sphi 0, %s167
  $region4: #{han_forward.22} parent=0 // loop_header_branch
    %15 = sbr.rel (%p13) target = $region8
  $region5: #{han_forward.22} parent=0 // loop_body
    %s17 = ssub.s32 %s12, 1
    %s18 = ssub.s32 %s12, 2
    %s19 = sadd.s32 %s12, 1
    %s20 = ssub.s32 %s12, %s19
    %p21 = scmp.eq.s32.totalorder %s20, 0
    %s23 = sadd.s32 %s22, 1
    %s24 = scalar_select %p21, %s22, %s23
    %p27 = pneg %p21
    %p28 = scmp.eq.s32.totalorder %s12, 1
    %p29 = por %p27, %p28
    %p30 = scmp.ne.s32.totalorder %s22, %s25
    %p31 = scmp.eq.s32.totalorder %s12, 0
    %p32 = por %p30, %p31
    %p33 = scmp.ne.s32.totalorder %s22, %s25
    %p34 = scmp.eq.s32.totalorder %s17, 1
    %p35 = por %p33, %p34
    %p36 = scmp.ne.s32.totalorder %s25, %s26
    %p37 = scmp.eq.s32.totalorder %s17, 0
    %p38 = por %p36, %p37
    %p39 = scmp.ne.s32.totalorder %s25, %s26
    %p40 = scmp.eq.s32.totalorder %s18, 1
    %p41 = por %p39, %p40
    %p43 = scmp.ne.s32.totalorder %s26, %s42
    %p44 = scmp.eq.s32.totalorder %s18, 0
    %p45 = por %p43, %p44
    %s46 = ssub.s32 %s12, %s19
    %p47 = scmp.eq.s32.totalorder %s46, 0
    %s49 = sadd.s32 %s48, 1
    %s50 = scalar_select %p47, %s48, %s49
    %p53 = pneg %p47
    %p54 = scmp.eq.s32.totalorder %s12, 1
    %p55 = por %p53, %p54
    %p56 = scmp.ne.s32.totalorder %s48, %s51
    %p57 = scmp.eq.s32.totalorder %s12, 0
    %p58 = por %p56, %p57
    %p59 = scmp.ne.s32.totalorder %s48, %s51
    %p60 = scmp.eq.s32.totalorder %s17, 1
    %p61 = por %p59, %p60
    %p62 = scmp.ne.s32.totalorder %s51, %s52
    %p63 = scmp.eq.s32.totalorder %s17, 0
    %p64 = por %p62, %p63
    %p65 = scmp.ne.s32.totalorder %s51, %s52
    %p66 = scmp.eq.s32.totalorder %s18, 1
    %p67 = por %p65, %p66
    %p69 = scmp.ne.s32.totalorder %s52, %s68
    %p70 = scmp.eq.s32.totalorder %s18, 0
    %p71 = por %p69, %p70
    %s73 = sadd.s32 %s72, 1
    %p76 = scmp.eq.s32.totalorder %s12, 1
    %p77 = scmp.ne.s32.totalorder %s72, %s74
    %p78 = scmp.eq.s32.totalorder %s12, 0
    %p79 = por %p77, %p78
    %p80 = scmp.ne.s32.totalorder %s72, %s74
    %p81 = scmp.eq.s32.totalorder %s17, 1
    %p82 = por %p80, %p81
    %p83 = scmp.ne.s32.totalorder %s74, %s75
    %p84 = scmp.eq.s32.totalorder %s17, 0
    %p85 = por %p83, %p84
    %p86 = scmp.ne.s32.totalorder %s74, %s75
    %p87 = scmp.eq.s32.totalorder %s18, 1
    %p88 = por %p86, %p87
    %p90 = scmp.ne.s32.totalorder %s75, %s89
    %p91 = scmp.eq.s32.totalorder %s18, 0
    %p92 = por %p90, %p91
    %s94 = sadd.s32 %s93, 1
    %p97 = scmp.eq.s32.totalorder %s12, 1
    %p98 = scmp.ne.s32.totalorder %s93, %s95
    %p99 = scmp.eq.s32.totalorder %s12, 0
    %p100 = por %p98, %p99
    %p101 = scmp.ne.s32.totalorder %s93, %s95
    %p102 = scmp.eq.s32.totalorder %s17, 1
    %p103 = por %p101, %p102
    %p104 = scmp.ne.s32.totalorder %s95, %s96
    %p105 = scmp.eq.s32.totalorder %s17, 0
    %p106 = por %p104, %p105
    %p107 = scmp.ne.s32.totalorder %s95, %s96
    %p108 = scmp.eq.s32.totalorder %s18, 1
    %p109 = por %p107, %p108
    %p111 = scmp.ne.s32.totalorder %s96, %s110
    %p112 = scmp.eq.s32.totalorder %s18, 0
    %p113 = por %p111, %p112
    %s115 = sadd.s32 %s114, 1
    %p118 = scmp.eq.s32.totalorder %s12, 1
    %p119 = scmp.ne.s32.totalorder %s114, %s116
    %p120 = scmp.eq.s32.totalorder %s12, 0
    %p121 = por %p119, %p120
    %p122 = scmp.ne.s32.totalorder %s114, %s116
    %p123 = scmp.eq.s32.totalorder %s17, 1
    %p124 = por %p122, %p123
    %p125 = scmp.ne.s32.totalorder %s116, %s117
    %p126 = scmp.eq.s32.totalorder %s17, 0
    %p127 = por %p125, %p126
    %p128 = scmp.ne.s32.totalorder %s116, %s117
    %p129 = scmp.eq.s32.totalorder %s18, 1
    %p130 = por %p128, %p129
    %p132 = scmp.ne.s32.totalorder %s117, %s131
    %p133 = scmp.eq.s32.totalorder %s18, 0
    %p134 = por %p132, %p133
    %s135 = ssub.s32 %s12, %s19
    %p136 = scmp.eq.s32.totalorder %s135, 0
    %s138 = sadd.s32 %s137, 1
    %s139 = scalar_select %p136, %s137, %s138
    %p142 = pneg %p136
    %p143 = scmp.eq.s32.totalorder %s12, 1
    %p144 = por %p142, %p143
    %p145 = scmp.ne.s32.totalorder %s137, %s140
    %p146 = scmp.eq.s32.totalorder %s12, 0
    %p147 = por %p145, %p146
    %p148 = scmp.ne.s32.totalorder %s137, %s140
    %p149 = scmp.eq.s32.totalorder %s17, 1
    %p150 = por %p148, %p149
    %p151 = scmp.ne.s32.totalorder %s140, %s141
    %p152 = scmp.eq.s32.totalorder %s17, 0
    %p153 = por %p151, %p152
    %p154 = scmp.ne.s32.totalorder %s140, %s141
    %p155 = scmp.eq.s32.totalorder %s18, 1
    %p156 = por %p154, %p155
    %p158 = scmp.ne.s32.totalorder %s141, %s157
    %p159 = scmp.eq.s32.totalorder %s18, 0
    %p160 = por %p158, %p159
    %s161 = ssub.s32 %s12, %s19
    %p162 = scmp.eq.s32.totalorder %s161, 0
    %s164 = sadd.s32 %s163, 1
    %s165 = scalar_select %p162, %s163, %s164
    %p168 = pneg %p162
    %p169 = scmp.eq.s32.totalorder %s12, 1
    %p170 = por %p168, %p169
    %p171 = scmp.ne.s32.totalorder %s163, %s166
    %p172 = scmp.eq.s32.totalorder %s12, 0
    %p173 = por %p171, %p172
    %p174 = scmp.ne.s32.totalorder %s163, %s166
    %p175 = scmp.eq.s32.totalorder %s17, 1
    %p176 = por %p174, %p175
    %p177 = scmp.ne.s32.totalorder %s166, %s167
    %p178 = scmp.eq.s32.totalorder %s17, 0
    %p179 = por %p177, %p178
    %p180 = scmp.ne.s32.totalorder %s166, %s167
    %p181 = scmp.eq.s32.totalorder %s18, 1
    %p182 = por %p180, %p181
    %p184 = scmp.ne.s32.totalorder %s167, %s183
    %p185 = scmp.eq.s32.totalorder %s18, 0
    %p186 = por %p184, %p185
    %p187 = scmp.le.s32.totalorder 1, %s12
    %p188 = scmp.lt.s32.totalorder %s12, 3
    %p189 = pnand %p187, %p188
    %p190 = pneg %p189
    // Predicated region
    $region9: #{han_forward.22} parent=5 // pred_check
      _
    $region10: #{han_forward.22} parent=5 // pred_check_branch
      %192 = sbr.rel (%p189) target = $region12
    $region11: #{han_forward.22} parent=5 // pred_region
      %s193 = ssub.s32 %s12, 1
      // Predicated region
      $region13: #{han_forward.22} parent=11 // pred_check
        %p194 = pneg %p85
      $region14: #{han_forward.22} parent=11 // pred_check_branch
        %196 = sbr.rel (%p194) target = $region16
      $region15: #{han_forward.22} parent=11 // pred_region
        _
      $region16: #{han_forward.22} parent=11 // pred_fallthru
        _
      // Predicated region
      $region17: #{han_forward.22} parent=11 // pred_check
        %p197 = pneg %p106
      $region18: #{han_forward.22} parent=11 // pred_check_branch
        %199 = sbr.rel (%p197) target = $region20
      $region19: #{han_forward.22} parent=11 // pred_region
        _
      $region20: #{han_forward.22} parent=11 // pred_fallthru
        _
      // Predicated region
      $region21: #{han_forward.22} parent=11 // pred_check
        %p200 = pneg %p127
      $region22: #{han_forward.22} parent=11 // pred_check_branch
        %202 = sbr.rel (%p200) target = $region24
      $region23: #{han_forward.22} parent=11 // pred_region
        _
      $region24: #{han_forward.22} parent=11 // pred_fallthru
        _
    $region12: #{han_forward.22} parent=5 // pred_fallthru
      _
    %p203 = scmp.lt.s32.totalorder %s12, 2
    // Predicated region
    $region25: #{han_forward.22} parent=5 // pred_check
      %p204 = pneg %p203
    $region26: #{han_forward.22} parent=5 // pred_check_branch
      %206 = sbr.rel (%p204) target = $region28
    $region27: #{han_forward.22} parent=5 // pred_region
      // Predicated region
      $region29: #{han_forward.22} parent=27 // pred_check
        %p207 = pneg %p32
      $region30: #{han_forward.22} parent=27 // pred_check_branch
        %209 = sbr.rel (%p207) target = $region32
      $region31: #{han_forward.22} parent=27 // pred_region
        %p210 = scmp.lt.s32.totalorder %s12, 1
        %s211 = scalar_select %p210, %s12, 1
        %s212 = smul.addr %s211, 4
        %s213 = smul.addr %s212, 2
        %s214 = scalar_lea.vmem %s0, %s213
      $region32: #{han_forward.22} parent=27 // pred_fallthru
        _
      // Predicated region
      $region33: #{han_forward.22} parent=27 // pred_check
        %p215 = pneg %p58
      $region34: #{han_forward.22} parent=27 // pred_check_branch
        %217 = sbr.rel (%p215) target = $region36
      $region35: #{han_forward.22} parent=27 // pred_region
        %p218 = scmp.lt.s32.totalorder %s12, 1
        %s219 = scalar_select %p218, %s12, 1
        %s220 = smul.addr %s219, 4
        %s221 = smul.addr %s220, 2
        %s222 = scalar_lea.vmem %s1, %s221
      $region36: #{han_forward.22} parent=27 // pred_fallthru
        _
      // Predicated region
      $region37: #{han_forward.22} parent=27 // pred_check
        %p223 = pneg %p147
      $region38: #{han_forward.22} parent=27 // pred_check_branch
        %225 = sbr.rel (%p223) target = $region40
      $region39: #{han_forward.22} parent=27 // pred_region
        %p226 = scmp.lt.s32.totalorder %s12, 1
        %s227 = scalar_select %p226, %s12, 1
        %s228 = smul.addr %s227, 4
        %s229 = smul.addr %s228, 2
        %s230 = scalar_lea.vmem %s5, %s229
      $region40: #{han_forward.22} parent=27 // pred_fallthru
        _
    $region28: #{han_forward.22} parent=5 // pred_fallthru
      _
    %p231 = scmp.le.s32.totalorder 1, %s12
    %p232 = scmp.lt.s32.totalorder %s12, 3
    %p233 = pnand %p231, %p232
    %p234 = pneg %p233
    // Predicated region
    $region41: #{han_forward.22} parent=5 // pred_check
      _
    $region42: #{han_forward.22} parent=5 // pred_check_branch
      %236 = sbr.rel (%p233) target = $region44
    $region43: #{han_forward.22} parent=5 // pred_region
      %s237 = ssub.s32 %s12, 1
      %p238 = scmp.lt.s32.totalorder %s17, 1
      %s239 = scalar_select %p238, %s17, 1
      %s240 = smul.addr %s239, 4
      %s241 = smul.addr %s240, 2
      %s242 = scalar_lea.vmem %s0, %s241
      %p243 = pneg %p38
      %p244 = pneg %p35
      %p245 = scmp.lt.s32.totalorder %s17, 1
      %s246 = scalar_select %p245, %s17, 1
      %s247 = smul.addr %s246, 4
      %s248 = smul.addr %s247, 2
      %s249 = scalar_lea.vmem %s1, %s248
      %p250 = pneg %p64
      %p251 = pneg %p61
      %p252 = pneg %p85
      %p253 = pneg %p82
      %p254 = pneg %p106
      %p255 = pneg %p103
      %p256 = pneg %p127
      %p257 = pneg %p124
      %p258 = scmp.lt.s32.totalorder %s17, 1
      %s259 = scalar_select %p258, %s17, 1
      %s260 = smul.addr %s259, 4
      %s261 = smul.addr %s260, 2
      %s262 = scalar_lea.vmem %s5, %s261
      %p263 = pneg %p153
      %p264 = pneg %p150
      %p265 = pneg %p179
      %p266 = pneg %p176
      %p267 = scmp.lt.s32.totalorder %s17, 1
      %s268 = scalar_select %p267, %s17, 1
      %s269 = smul.addr %s268, 4
      %s270 = smul.addr %s269, 2
      %s271 = scalar_lea.vmem %s6, %s270
      %p272 = scmp.lt.s32.totalorder %s17, 1
      %s273 = scalar_select %p272, %s17, 1
      %s274 = smul.addr %s273, 4
      %s275 = smul.addr %s274, 2
      %s276 = scalar_lea.vmem %s0, %s275
      %p277 = scmp.lt.s32.totalorder %s17, 1
      %s278 = scalar_select %p277, %s17, 1
      %s279 = smul.addr %s278, 4
      %s280 = smul.addr %s279, 2
      %s281 = scalar_lea.vmem %s1, %s280
      %p282 = scmp.lt.s32.totalorder %s17, 1
      %s283 = scalar_select %p282, %s17, 1
      %s284 = smul.addr %s283, 4
      %s285 = smul.addr %s284, 2
      %s286 = scalar_lea.vmem %s5, %s285
      %p287 = scmp.lt.s32.totalorder %s17, 1
      %s288 = scalar_select %p287, %s17, 1
      %s289 = smul.addr %s288, 4
      %s290 = smul.addr %s289, 2
      %s291 = scalar_lea.vmem %s6, %s290
      %v293 = vld [vmem:[%s276] sm:$0x3]
      %v294 = vld [vmem:[%s276 + $0x2] sm:$0x3]
      %v295 = vld [vmem:[%s276 + $0x4] sm:$0x3]
      %v296 = vld [vmem:[%s276 + $0x6] sm:$0x3]
      %v297 = vld [vmem:[%s2] sm:$0xf]
      %v298 = vld [vmem:[%s2 + $0x4] sm:$0xf]
      %v299 = vld [vmem:[%s2 + $0x8] sm:$0xf]
      %v300 = vld [vmem:[%s2 + $0xc] sm:$0xf]
      %v301 = vld [vmem:[%s2 + $0x10] sm:$0xf]
      %v302 = vld [vmem:[%s2 + $0x14] sm:$0xf]
      %v303 = vld [vmem:[%s2 + $0x18] sm:$0xf]
      %v304 = vld [vmem:[%s2 + $0x1c] sm:$0xf]
      %v305 = vld [vmem:[%s2 + $0x20] sm:$0xf]
      %v306 = vld [vmem:[%s2 + $0x24] sm:$0xf]
      %v307 = vld [vmem:[%s2 + $0x28] sm:$0xf]
      %v308 = vld [vmem:[%s2 + $0x2c] sm:$0xf]
      %v310 = vshrl.u32 0, 16
      %v312 = vrot.slane %v310, 7
      %v313 = vshll.u32 0, 16
      %v315 = vor.u32 %v312, %v313
      %v317 = vshrl.u32 %v293, 16
      %v319 = vrot.slane %v317, 7
      %v320 = vshll.u32 %v293, 16
      %v322 = vor.u32 %v319, %v320
      %v324 = vshrl.u32 %v294, 16
      %v326 = vrot.slane %v324, 7
      %v327 = vshll.u32 %v294, 16
      %v329 = vor.u32 %v326, %v327
      %v331 = vshrl.u32 %v295, 16
      %v333 = vrot.slane %v331, 7
      %v334 = vshll.u32 %v295, 16
      %v336 = vor.u32 %v333, %v334
      %v338 = vshrl.u32 %v296, 16
      %v340 = vrot.slane %v338, 7
      %v341 = vshll.u32 %v296, 16
      %v343 = vor.u32 %v340, %v341
      %vm349 = vcmask 1040384
      %vm350 = vsmask.f32 256
      %vm351 = vmand %vm349, %vm350
      %v352 = vsel %vm351, 0, %v315
      %v353 = vsel %vm351, 0, %v322
      %v354 = vsel %vm351, 0, %v329
      %v355 = vsel %vm351, 0, %v336
      %v356 = vsel %vm351, 0, %v343
      %vm357 = vcmask 1042432
      %vm358 = vsmask.f32 2304
      %vm359 = vmand %vm357, %vm358
      %v360 = vsel %vm359, %v352, 0
      %v361 = vsel %vm359, %v353, 0
      %v362 = vsel %vm359, %v354, 0
      %v363 = vsel %vm359, %v355, 0
      %v364 = vsel %vm359, %v356, 0
      %v366 = vshrl.u32 %v360, 16
      %v368 = vshll.u32 %v360, 16
      %v370 = vrot.slane %v368, 1
      %v371 = vor.u32 %v366, %v370
      %v373 = vshrl.u32 %v361, 16
      %v375 = vshll.u32 %v361, 16
      %v377 = vrot.slane %v375, 1
      %v378 = vor.u32 %v373, %v377
      %v380 = vshrl.u32 %v362, 16
      %v382 = vshll.u32 %v362, 16
      %v384 = vrot.slane %v382, 1
      %v385 = vor.u32 %v380, %v384
      %v387 = vshrl.u32 %v363, 16
      %v389 = vshll.u32 %v363, 16
      %v391 = vrot.slane %v389, 1
      %v392 = vor.u32 %v387, %v391
      %v394 = vshrl.u32 %v364, 16
      %v396 = vshll.u32 %v364, 16
      %v398 = vrot.slane %v396, 1
      %v399 = vor.u32 %v394, %v398
      %400 = vrot.lane.b32.xlu0 %v371, 32
      %v401 = vpop.permute.xlu0 %400
      %402 = vrot.lane.b32.xlu0 %v378, 32
      %v403 = vpop.permute.xlu0 %402
      %404 = vrot.lane.b32.xlu0 %v385, 32
      %v405 = vpop.permute.xlu0 %404
      %406 = vrot.lane.b32.xlu0 %v392, 32
      %v407 = vpop.permute.xlu0 %406
      %408 = vrot.lane.b32.xlu0 %v399, 32
      %v409 = vpop.permute.xlu0 %408
      %v415 = vrot.slane %v360, 1
      %v416 = vrot.slane %v361, 1
      %v417 = vrot.slane %v362, 1
      %v418 = vrot.slane %v363, 1
      %v419 = vrot.slane %v364, 1
      %420 = vrot.lane.b32.xlu0 %v415, 64
      %v421 = vpop.permute.xlu0 %420
      %422 = vrot.lane.b32.xlu0 %v416, 64
      %v423 = vpop.permute.xlu0 %422
      %424 = vrot.lane.b32.xlu0 %v417, 64
      %v425 = vpop.permute.xlu0 %424
      %426 = vrot.lane.b32.xlu0 %v418, 64
      %v427 = vpop.permute.xlu0 %426
      %428 = vrot.lane.b32.xlu0 %v419, 64
      %v429 = vpop.permute.xlu0 %428
      %vm430 = vcmask 261120
      %v432 = vsel %vm430, %v360, %v401
      %v434 = vsel %vm430, %v361, %v403
      %v436 = vsel %vm430, %v362, %v405
      %v438 = vsel %vm430, %v363, %v407
      %v440 = vsel %vm430, %v364, %v409
      %vm441 = vcmask 523264
      %v443 = vsel %vm441, %v432, %v421
      %v445 = vsel %vm441, %v434, %v423
      %v447 = vsel %vm441, %v436, %v425
      %v449 = vsel %vm441, %v438, %v427
      %v451 = vsel %vm441, %v440, %v429
      %v457 = vcombine.low %v443, %v445
      %v458 = vcombine.low %v447, %v449
      %v460 = vunpack.c.l.s4 1983009808
      %v461 = vunpack.c.0.s8 %v460
      %v462 = vlaneseq
      %v463 = vshrl.u32 %v462, 7
      %v464 = vsub.s32 %v461, %v463
      %v465 = vrot.slane %v457, %v464
      %v467 = vunpack.c.l.s4 1983009808
      %v468 = vunpack.c.0.s8 %v467
      %v469 = vlaneseq
      %v470 = vshrl.u32 %v469, 7
      %v471 = vsub.s32 %v468, %v470
      %v472 = vrot.slane %v458, %v471
      %v473 = vcombine.low %v465, %v472
      %v474 = vcombine.low %v451, %v443
      %v476 = vunpack.c.l.s4 1983009808
      %v477 = vunpack.c.0.s8 %v476
      %v478 = vlaneseq
      %v479 = vshrl.u32 %v478, 7
      %v480 = vsub.s32 %v477, %v479
      %v481 = vrot.slane %v474, %v480
      %v494 = vunpack.c.l.b16 %v297
      %v495 = vunpack.c.l.b16 %v298
      %v496 = vunpack.c.l.b16 %v299
      %v497 = vunpack.c.l.b16 %v300
      %v498 = vunpack.c.l.b16 %v301
      %v499 = vunpack.c.l.b16 %v302
      %v500 = vunpack.c.l.b16 %v303
      %v501 = vunpack.c.l.b16 %v304
      %v502 = vunpack.c.l.b16 %v305
      %v503 = vunpack.c.l.b16 %v306
      %v504 = vunpack.c.l.b16 %v307
      %v505 = vunpack.c.l.b16 %v308
      %v506 = vpack.c.b16 %v495, %v494
      %v507 = vpack.c.b16 %v497, %v496
      %v508 = vpack.c.b16 %v499, %v498
      %v509 = vpack.c.b16 %v501, %v500
      %v510 = vpack.c.b16 %v503, %v502
      %v511 = vpack.c.b16 %v505, %v504
      %vm518 = vcmask 785408
      %v520 = vsel %vm518, %v473, 0
      %v523 = vsel %vm518, %v481, 0
      %525 = vmatprep.subr.bf16.mxu0 0
      %526 = vmatpush1.bf16.msra.mxu0 0
      %527 = vmatprep.subr.bf16.mxu0 0
      %528 = vmatpush1.bf16.msra.mxu0 0
      %529 = vmatprep.subr.bf16.mxu0 0
      %530 = vmatpush1.bf16.msra.mxu0 %v511
      %531 = vmatprep.subr.bf16.mxu0 0
      %532 = vmatpush1.bf16.msra.mxu0 %v510
      %533 = vmatprep.subr.bf16.mxu0 0
      %534 = vmatpush1.bf16.msra.mxu0 %v509
      %535 = vmatprep.subr.bf16.mxu0 0
      %536 = vmatpush1.bf16.msra.mxu0 %v508
      %537 = vmatprep.subr.bf16.mxu0 0
      %538 = vmatpush1.bf16.msra.mxu0 %v507
      %539 = vmatprep.subr.bf16.mxu0 0
      %540 = vmatpush1.bf16.msra.mxu0 %v506
      %541 = vmatprep.subr.bf16.mxu0 0
      %542 = vmatpush2.bf16.msra.mxu0 0
      %543 = vmatprep.subr.bf16.mxu0 0
      %544 = vmatpush2.bf16.msra.mxu0 0
      %545 = vmatprep.subr.bf16.mxu0 0
      %546 = vmatpush2.bf16.msra.mxu0 0
      %547 = vmatprep.subr.bf16.mxu0 0
      %548 = vmatpush2.bf16.msra.mxu0 0
      %549 = vmatprep.subr.bf16.mxu0 0
      %550 = vmatpush2.bf16.msra.mxu0 0
      %551 = vmatprep.subr.bf16.mxu0 0
      %552 = vmatpush2.bf16.msra.mxu0 0
      %553 = vmatprep.subr.bf16.mxu0 0
      %554 = vmatpush2.bf16.msra.mxu0 0
      %555 = vmatprep.subr.bf16.mxu0 0
      %556 = vmatpush2.bf16.msra.mxu0 0
      %557 = vmatprep.mubr.bf16.mxu0 0
      %558 = vmatmul.mubr.bf16.gmra.mxu0 %v520
      %v559 = vpop.f32.mrf.mxu0
      %v560 = vadd.f32 0.0, %v559
      %v561 = vpop.f32.mrf.mxu0
      %v562 = vpop.f32.mrf.mxu0
      %v563 = vadd.f32 0.0, %v562
      %v564 = vpop.f32.mrf.mxu0
      %565 = vmatprep.mubr.bf16.mxu0 0
      %566 = vmatmul.mubr.bf16.gmra.mxu0 %v523
      %v567 = vpop.f32.mrf.mxu0
      %v568 = vadd.f32 0.0, %v567
      %v569 = vpop.f32.mrf.mxu0
      %v570 = vpop.f32.mrf.mxu0
      %v571 = vpop.f32.mrf.mxu0
      %572 = vdwg.mxu0
      %v576 = vcombine.high %v560, %v560
      %v577 = vcombine.high %v563, %v563
      %v578 = vcombine.high %v568, %v568
      %581 = vrot.lane.b32.xlu0 %v576, 96
      %v582 = vpop.permute.xlu0 %581
      %583 = vrot.lane.b32.xlu0 %v563, 96
      %v584 = vpop.permute.xlu0 %583
      %585 = vrot.lane.b32.xlu0 %v577, 96
      %v586 = vpop.permute.xlu0 %585
      %587 = vrot.lane.b32.xlu0 %v568, 96
      %v588 = vpop.permute.xlu0 %587
      %v593 = vadd.f32 %v560, %v582
      %v594 = vadd.f32 %v576, %v584
      %v595 = vadd.f32 %v563, %v586
      %v596 = vadd.f32 %v577, %v588
      %597 = vrot.lane.b32.xlu0 %v563, 64
      %v598 = vpop.permute.xlu0 %597
      %599 = vrot.lane.b32.xlu0 %v577, 64
      %v600 = vpop.permute.xlu0 %599
      %601 = vrot.lane.b32.xlu0 %v568, 64
      %v602 = vpop.permute.xlu0 %601
      %603 = vrot.lane.b32.xlu0 %v578, 64
      %v604 = vpop.permute.xlu0 %603
      %v609 = vadd.f32 %v593, %v598
      %v610 = vadd.f32 %v594, %v600
      %v611 = vadd.f32 %v595, %v602
      %v612 = vadd.f32 %v596, %v604
      %v613 = vld [vmem:[%s281] sm:$0x3]
      %v614 = vld [vmem:[%s281 + $0x2] sm:$0x3]
      %v615 = vld [vmem:[%s281 + $0x4] sm:$0x3]
      %v616 = vld [vmem:[%s281 + $0x6] sm:$0x3]
      %v617 = vld [vmem:[%s3] sm:$0xf]
      %v618 = vld [vmem:[%s3 + $0x4] sm:$0xf]
      %v619 = vld [vmem:[%s3 + $0x8] sm:$0xf]
      %v620 = vld [vmem:[%s3 + $0xc] sm:$0xf]
      %v621 = vld [vmem:[%s3 + $0x10] sm:$0xf]
      %v622 = vld [vmem:[%s3 + $0x14] sm:$0xf]
      %v623 = vld [vmem:[%s3 + $0x18] sm:$0xf]
      %v624 = vld [vmem:[%s3 + $0x1c] sm:$0xf]
      %v625 = vld [vmem:[%s3 + $0x20] sm:$0xf]
      %v626 = vld [vmem:[%s3 + $0x24] sm:$0xf]
      %v627 = vld [vmem:[%s3 + $0x28] sm:$0xf]
      %v628 = vld [vmem:[%s3 + $0x2c] sm:$0xf]
      %v630 = vshrl.u32 %v613, 16
      %v632 = vrot.slane %v630, 7
      %v633 = vshll.u32 %v613, 16
      %v635 = vor.u32 %v632, %v633
      %v637 = vshrl.u32 %v614, 16
      %v639 = vrot.slane %v637, 7
      %v640 = vshll.u32 %v614, 16
      %v642 = vor.u32 %v639, %v640
      %v644 = vshrl.u32 %v615, 16
      %v646 = vrot.slane %v644, 7
      %v647 = vshll.u32 %v615, 16
      %v649 = vor.u32 %v646, %v647
      %v651 = vshrl.u32 %v616, 16
      %v653 = vrot.slane %v651, 7
      %v654 = vshll.u32 %v616, 16
      %v656 = vor.u32 %v653, %v654
      %v661 = vsel %vm351, 0, %v635
      %v662 = vsel %vm351, 0, %v642
      %v663 = vsel %vm351, 0, %v649
      %v664 = vsel %vm351, 0, %v656
      %v665 = vsel %vm359, %v661, 0
      %v666 = vsel %vm359, %v662, 0
      %v667 = vsel %vm359, %v663, 0
      %v668 = vsel %vm359, %v664, 0
      %v670 = vshrl.u32 %v665, 16
      %v672 = vshll.u32 %v665, 16
      %v674 = vrot.slane %v672, 1
      %v675 = vor.u32 %v670, %v674
      %v677 = vshrl.u32 %v666, 16
      %v679 = vshll.u32 %v666, 16
      %v681 = vrot.slane %v679, 1
      %v682 = vor.u32 %v677, %v681
      %v684 = vshrl.u32 %v667, 16
      %v686 = vshll.u32 %v667, 16
      %v688 = vrot.slane %v686, 1
      %v689 = vor.u32 %v684, %v688
      %v691 = vshrl.u32 %v668, 16
      %v693 = vshll.u32 %v668, 16
      %v695 = vrot.slane %v693, 1
      %v696 = vor.u32 %v691, %v695
      %697 = vrot.lane.b32.xlu0 %v675, 32
      %v698 = vpop.permute.xlu0 %697
      %699 = vrot.lane.b32.xlu0 %v682, 32
      %v700 = vpop.permute.xlu0 %699
      %701 = vrot.lane.b32.xlu0 %v689, 32
      %v702 = vpop.permute.xlu0 %701
      %703 = vrot.lane.b32.xlu0 %v696, 32
      %v704 = vpop.permute.xlu0 %703
      %v709 = vrot.slane %v665, 1
      %v710 = vrot.slane %v666, 1
      %v711 = vrot.slane %v667, 1
      %v712 = vrot.slane %v668, 1
      %713 = vrot.lane.b32.xlu0 %v709, 64
      %v714 = vpop.permute.xlu0 %713
      %715 = vrot.lane.b32.xlu0 %v710, 64
      %v716 = vpop.permute.xlu0 %715
      %717 = vrot.lane.b32.xlu0 %v711, 64
      %v718 = vpop.permute.xlu0 %717
      %719 = vrot.lane.b32.xlu0 %v712, 64
      %v720 = vpop.permute.xlu0 %719
      %v722 = vsel %vm430, %v665, %v698
      %v724 = vsel %vm430, %v666, %v700
      %v726 = vsel %vm430, %v667, %v702
      %v728 = vsel %vm430, %v668, %v704
      %v730 = vsel %vm441, %v722, %v714
      %v732 = vsel %vm441, %v724, %v716
      %v734 = vsel %vm441, %v726, %v718
      %v736 = vsel %vm441, %v728, %v720
      %v741 = vcombine.low %v443, %v730
      %v742 = vcombine.low %v732, %v734
      %v744 = vunpack.c.l.s4 1983009808
      %v745 = vunpack.c.0.s8 %v744
      %v746 = vlaneseq
      %v747 = vshrl.u32 %v746, 7
      %v748 = vsub.s32 %v745, %v747
      %v749 = vrot.slane %v741, %v748
      %v751 = vunpack.c.l.s4 1983009808
      %v752 = vunpack.c.0.s8 %v751
      %v753 = vlaneseq
      %v754 = vshrl.u32 %v753, 7
      %v755 = vsub.s32 %v752, %v754
      %v756 = vrot.slane %v742, %v755
      %v757 = vcombine.low %v749, %v756
      %v758 = vcombine.low %v736, %v443
      %v760 = vunpack.c.l.s4 1983009808
      %v761 = vunpack.c.0.s8 %v760
      %v762 = vlaneseq
      %v763 = vshrl.u32 %v762, 7
      %v764 = vsub.s32 %v761, %v763
      %v765 = vrot.slane %v758, %v764
      %v778 = vunpack.c.l.b16 %v617
      %v779 = vunpack.c.l.b16 %v618
      %v780 = vunpack.c.l.b16 %v619
      %v781 = vunpack.c.l.b16 %v620
      %v782 = vunpack.c.l.b16 %v621
      %v783 = vunpack.c.l.b16 %v622
      %v784 = vunpack.c.l.b16 %v623
      %v785 = vunpack.c.l.b16 %v624
      %v786 = vunpack.c.l.b16 %v625
      %v787 = vunpack.c.l.b16 %v626
      %v788 = vunpack.c.l.b16 %v627
      %v789 = vunpack.c.l.b16 %v628
      %v790 = vpack.c.b16 %v779, %v778
      %v791 = vpack.c.b16 %v781, %v780
      %v792 = vpack.c.b16 %v783, %v782
      %v793 = vpack.c.b16 %v785, %v784
      %v794 = vpack.c.b16 %v787, %v786
      %v795 = vpack.c.b16 %v789, %v788
      %v803 = vsel %vm518, %v757, 0
      %v806 = vsel %vm518, %v765, 0
      %808 = vmatprep.subr.bf16.mxu0 0
      %809 = vmatpush1.bf16.msra.mxu0 0
      %810 = vmatprep.subr.bf16.mxu0 0
      %811 = vmatpush1.bf16.msra.mxu0 0
      %812 = vmatprep.subr.bf16.mxu0 0
      %813 = vmatpush1.bf16.msra.mxu0 %v795
      %814 = vmatprep.subr.bf16.mxu0 0
      %815 = vmatpush1.bf16.msra.mxu0 %v794
      %816 = vmatprep.subr.bf16.mxu0 0
      %817 = vmatpush1.bf16.msra.mxu0 %v793
      %818 = vmatprep.subr.bf16.mxu0 0
      %819 = vmatpush1.bf16.msra.mxu0 %v792
      %820 = vmatprep.subr.bf16.mxu0 0
      %821 = vmatpush1.bf16.msra.mxu0 %v791
      %822 = vmatprep.subr.bf16.mxu0 0
      %823 = vmatpush1.bf16.msra.mxu0 %v790
      %824 = vmatprep.subr.bf16.mxu0 0
      %825 = vmatpush2.bf16.msra.mxu0 0
      %826 = vmatprep.subr.bf16.mxu0 0
      %827 = vmatpush2.bf16.msra.mxu0 0
      %828 = vmatprep.subr.bf16.mxu0 0
      %829 = vmatpush2.bf16.msra.mxu0 0
      %830 = vmatprep.subr.bf16.mxu0 0
      %831 = vmatpush2.bf16.msra.mxu0 0
      %832 = vmatprep.subr.bf16.mxu0 0
      %833 = vmatpush2.bf16.msra.mxu0 0
      %834 = vmatprep.subr.bf16.mxu0 0
      %835 = vmatpush2.bf16.msra.mxu0 0
      %836 = vmatprep.subr.bf16.mxu0 0
      %837 = vmatpush2.bf16.msra.mxu0 0
      %838 = vmatprep.subr.bf16.mxu0 0
      %839 = vmatpush2.bf16.msra.mxu0 0
      %840 = vmatprep.mubr.bf16.mxu0 0
      %841 = vmatmul.mubr.bf16.gmra.mxu0 %v803
      %v842 = vpop.f32.mrf.mxu0
      %v843 = vadd.f32 0.0, %v842
      %v844 = vpop.f32.mrf.mxu0
      %v845 = vpop.f32.mrf.mxu0
      %v846 = vadd.f32 0.0, %v845
      %v847 = vpop.f32.mrf.mxu0
      %848 = vmatprep.mubr.bf16.mxu0 0
      %849 = vmatmul.mubr.bf16.gmra.mxu0 %v806
      %v850 = vpop.f32.mrf.mxu0
      %v851 = vadd.f32 0.0, %v850
      %v852 = vpop.f32.mrf.mxu0
      %v853 = vpop.f32.mrf.mxu0
      %v854 = vpop.f32.mrf.mxu0
      %855 = vdwg.mxu0
      %v859 = vcombine.high %v843, %v843
      %v860 = vcombine.high %v846, %v846
      %v861 = vcombine.high %v851, %v851
      %864 = vrot.lane.b32.xlu0 %v859, 96
      %v865 = vpop.permute.xlu0 %864
      %866 = vrot.lane.b32.xlu0 %v846, 96
      %v867 = vpop.permute.xlu0 %866
      %868 = vrot.lane.b32.xlu0 %v860, 96
      %v869 = vpop.permute.xlu0 %868
      %870 = vrot.lane.b32.xlu0 %v851, 96
      %v871 = vpop.permute.xlu0 %870
      %v876 = vadd.f32 %v843, %v865
      %v877 = vadd.f32 %v859, %v867
      %v878 = vadd.f32 %v846, %v869
      %v879 = vadd.f32 %v860, %v871
      %880 = vrot.lane.b32.xlu0 %v846, 64
      %v881 = vpop.permute.xlu0 %880
      %882 = vrot.lane.b32.xlu0 %v860, 64
      %v883 = vpop.permute.xlu0 %882
      %884 = vrot.lane.b32.xlu0 %v851, 64
      %v885 = vpop.permute.xlu0 %884
      %886 = vrot.lane.b32.xlu0 %v861, 64
      %v887 = vpop.permute.xlu0 %886
      %v892 = vadd.f32 %v876, %v881
      %v893 = vadd.f32 %v877, %v883
      %v894 = vadd.f32 %v878, %v885
      %v895 = vadd.f32 %v879, %v887
      %v896 = vadd.f32 %v609, %v892
      %v897 = vadd.f32 %v610, %v893
      %v898 = vadd.f32 %v611, %v894
      %v899 = vadd.f32 %v612, %v895
      %v900 = vld [vmem:[%s4] sm:$0x1]
      %v902 = vlaneseq
      %v903 = vshrl.u32 %v902, 7
      %v904 = vsub.s32 0, %v903
      %v905 = vrot.slane %v900, %v904
      %v907 = vadd.f32 %v896, %v905
      %v908 = vadd.f32 %v897, %v905
      %v909 = vadd.f32 %v898, %v905
      %v910 = vadd.f32 %v899, %v905
      %v911 = vld [vmem:[%s286] sm:$0x3]
      %v912 = vld [vmem:[%s286 + $0x2] sm:$0x3]
      %v913 = vld [vmem:[%s286 + $0x4] sm:$0x3]
      %v914 = vld [vmem:[%s286 + $0x6] sm:$0x3]
      %v915 = vunpack.c.l.bf16 %v911
      %v916 = vunpack.c.l.bf16 %v912
      %v917 = vunpack.c.l.bf16 %v913
      %v918 = vunpack.c.l.bf16 %v914
      %v919 = vadd.f32 %v907, %v915
      %v920 = vadd.f32 %v908, %v916
      %v921 = vadd.f32 %v909, %v917
      %v922 = vadd.f32 %v910, %v918
      %v923 = vpack.c.bf16 %v919, %v919
      %v924 = vpack.c.bf16 %v920, %v920
      %v925 = vpack.c.bf16 %v921, %v921
      %v926 = vpack.c.bf16 %v922, %v922
      %vm927 = vcmask 254976
      %928 = vst.msk [vmem:[%s291] sm:$0x3] %vm927, %v923
      %929 = vst.msk [vmem:[%s291 + $0x2] sm:$0x3] %vm927, %v924
      %930 = vst.msk [vmem:[%s291 + $0x4] sm:$0x3] %vm927, %v925
      %931 = vst.msk [vmem:[%s291 + $0x6] sm:$0x3] %vm927, %v926
      %p932 = scmp.lt.s32.totalorder %s17, 1
      %s933 = scalar_select %p932, %s17, 1
      %s934 = smul.addr %s933, 4
      %s935 = smul.addr %s934, 2
      %s936 = scalar_lea.vmem %s6, %s935
      // Predicated region
      $region45: #{han_forward.22} parent=43 // pred_check
        %p937 = pneg %p176
      $region46: #{han_forward.22} parent=43 // pred_check_branch
        %939 = sbr.rel (%p937) target = $region48
      $region47: #{han_forward.22} parent=43 // pred_region
        _
      $region48: #{han_forward.22} parent=43 // pred_fallthru
        _
    $region44: #{han_forward.22} parent=5 // pred_fallthru
      _
    %p940 = scmp.le.s32.totalorder 2, %s12
    // Predicated region
    $region49: #{han_forward.22} parent=5 // pred_check
      %p941 = pneg %p940
    $region50: #{han_forward.22} parent=5 // pred_check_branch
      %943 = sbr.rel (%p941) target = $region52
    $region51: #{han_forward.22} parent=5 // pred_region
      %s944 = ssub.s32 %s12, 2
      // Predicated region
      $region53: #{han_forward.22} parent=51 // pred_check
        %p945 = pneg %p182
      $region54: #{han_forward.22} parent=51 // pred_check_branch
        %947 = sbr.rel (%p945) target = $region56
      $region55: #{han_forward.22} parent=51 // pred_region
        %p948 = scmp.lt.s32.totalorder %s18, 1
        %s949 = scalar_select %p948, %s18, 1
        %s950 = smul.addr %s949, 4
        %s951 = smul.addr %s950, 2
        %s952 = scalar_lea.vmem %s6, %s951
      $region56: #{han_forward.22} parent=51 // pred_fallthru
        _
    $region52: #{han_forward.22} parent=5 // pred_fallthru
      _
  $region6: #{han_forward.22} parent=0 // loop_footer
    %s16 = sadd.s32 1, %s12
  $region7: #{han_forward.22} parent=0 // loop_footer_branch
    %11 = sbr.rel target = $region3
  $region8: #{han_forward.22} parent=0 // loop_exit
    _

// kernel: han_forward.23
$region0: #{han_forward.23}
  #allocation0 [shape = 'u32[]', space=smem, size = 0x4, offset = 0x4, fixed_abs, tag = 'smem constant byte address 0x4 - core index']
  #allocation1 [shape = 'u32[144,128]{1,0:T(1,128)}', space=vmem, size = 0x12000, scoped, tag = 'internal scratch']
  %s0 = inlined_call_operand.vmem [shape: bf16[2,4,4,32], index: 0, kind: input, shape index: {}]
  %s1 = inlined_call_operand.vmem [shape: bf16[96,384], index: 1, kind: input, shape index: {}]
  %s2 = inlined_call_operand.vmem [shape: f32[1,128], index: 2, kind: input, shape index: {}]
  %s3 = inlined_call_operand.vmem [shape: bf16[2,4,4,128], index: 3, kind: output, shape index: {}]
  %s4 = sld [smem:[#allocation0]]
  $region45: #{han_forward.23} parent=0
    _
  %s6 = ssub.s32 1, %s4
  %s7 = scalar_select 0, %s6, %s4
  loop: start=0, step=1, limit=4
  $region2: #{han_forward.23} parent=0 // loop_pre_header
    _
  $region3: #{han_forward.23} parent=0 // loop_header
    %s9 = sphi 0, %s13
    %p10 = scmp.ge.s32.totalorder %s9, 4
    %s19 = sphi 0, %s21
    %s22 = sphi 0, %s19
    %s23 = sphi 0, %s22
    %s39 = sphi 0, %s23
    %s43 = sphi 0, %s43
    %s45 = sphi 0, %s43
    %s46 = sphi 0, %s45
    %s60 = sphi 0, %s46
    %s64 = sphi 0, %s64
    %s66 = sphi 0, %s64
    %s67 = sphi 0, %s66
    %s81 = sphi 0, %s67
    %s87 = sphi 0, %s89
    %s90 = sphi 0, %s87
    %s91 = sphi 0, %s90
    %s107 = sphi 0, %s91
  $region4: #{han_forward.23} parent=0 // loop_header_branch
    %12 = sbr.rel (%p10) target = $region8
  $region5: #{han_forward.23} parent=0 // loop_body
    %s14 = ssub.s32 %s9, 1
    %s15 = ssub.s32 %s9, 2
    %s16 = sadd.s32 %s9, 1
    %s17 = ssub.s32 %s9, %s16
    %p18 = scmp.eq.s32.totalorder %s17, 0
    %s20 = sadd.s32 %s19, 1
    %s21 = scalar_select %p18, %s19, %s20
    %p24 = pneg %p18
    %p25 = scmp.eq.s32.totalorder %s9, 1
    %p26 = por %p24, %p25
    %p27 = scmp.ne.s32.totalorder %s19, %s22
    %p28 = scmp.eq.s32.totalorder %s9, 0
    %p29 = por %p27, %p28
    %p30 = scmp.ne.s32.totalorder %s19, %s22
    %p31 = scmp.eq.s32.totalorder %s14, 1
    %p32 = por %p30, %p31
    %p33 = scmp.ne.s32.totalorder %s22, %s23
    %p34 = scmp.eq.s32.totalorder %s14, 0
    %p35 = por %p33, %p34
    %p36 = scmp.ne.s32.totalorder %s22, %s23
    %p37 = scmp.eq.s32.totalorder %s15, 1
    %p38 = por %p36, %p37
    %p40 = scmp.ne.s32.totalorder %s23, %s39
    %p41 = scmp.eq.s32.totalorder %s15, 0
    %p42 = por %p40, %p41
    %s44 = sadd.s32 %s43, 1
    %p47 = scmp.eq.s32.totalorder %s9, 1
    %p48 = scmp.ne.s32.totalorder %s43, %s45
    %p49 = scmp.eq.s32.totalorder %s9, 0
    %p50 = por %p48, %p49
    %p51 = scmp.ne.s32.totalorder %s43, %s45
    %p52 = scmp.eq.s32.totalorder %s14, 1
    %p53 = por %p51, %p52
    %p54 = scmp.ne.s32.totalorder %s45, %s46
    %p55 = scmp.eq.s32.totalorder %s14, 0
    %p56 = por %p54, %p55
    %p57 = scmp.ne.s32.totalorder %s45, %s46
    %p58 = scmp.eq.s32.totalorder %s15, 1
    %p59 = por %p57, %p58
    %p61 = scmp.ne.s32.totalorder %s46, %s60
    %p62 = scmp.eq.s32.totalorder %s15, 0
    %p63 = por %p61, %p62
    %s65 = sadd.s32 %s64, 1
    %p68 = scmp.eq.s32.totalorder %s9, 1
    %p69 = scmp.ne.s32.totalorder %s64, %s66
    %p70 = scmp.eq.s32.totalorder %s9, 0
    %p71 = por %p69, %p70
    %p72 = scmp.ne.s32.totalorder %s64, %s66
    %p73 = scmp.eq.s32.totalorder %s14, 1
    %p74 = por %p72, %p73
    %p75 = scmp.ne.s32.totalorder %s66, %s67
    %p76 = scmp.eq.s32.totalorder %s14, 0
    %p77 = por %p75, %p76
    %p78 = scmp.ne.s32.totalorder %s66, %s67
    %p79 = scmp.eq.s32.totalorder %s15, 1
    %p80 = por %p78, %p79
    %p82 = scmp.ne.s32.totalorder %s67, %s81
    %p83 = scmp.eq.s32.totalorder %s15, 0
    %p84 = por %p82, %p83
    %s85 = ssub.s32 %s9, %s16
    %p86 = scmp.eq.s32.totalorder %s85, 0
    %s88 = sadd.s32 %s87, 1
    %s89 = scalar_select %p86, %s87, %s88
    %p92 = pneg %p86
    %p93 = scmp.eq.s32.totalorder %s9, 1
    %p94 = por %p92, %p93
    %p95 = scmp.ne.s32.totalorder %s87, %s90
    %p96 = scmp.eq.s32.totalorder %s9, 0
    %p97 = por %p95, %p96
    %p98 = scmp.ne.s32.totalorder %s87, %s90
    %p99 = scmp.eq.s32.totalorder %s14, 1
    %p100 = por %p98, %p99
    %p101 = scmp.ne.s32.totalorder %s90, %s91
    %p102 = scmp.eq.s32.totalorder %s14, 0
    %p103 = por %p101, %p102
    %p104 = scmp.ne.s32.totalorder %s90, %s91
    %p105 = scmp.eq.s32.totalorder %s15, 1
    %p106 = por %p104, %p105
    %p108 = scmp.ne.s32.totalorder %s91, %s107
    %p109 = scmp.eq.s32.totalorder %s15, 0
    %p110 = por %p108, %p109
    %p111 = scmp.le.s32.totalorder 1, %s9
    %p112 = scmp.lt.s32.totalorder %s9, 3
    %p113 = pnand %p111, %p112
    %p114 = pneg %p113
    // Predicated region
    $region9: #{han_forward.23} parent=5 // pred_check
      _
    $region10: #{han_forward.23} parent=5 // pred_check_branch
      %116 = sbr.rel (%p113) target = $region12
    $region11: #{han_forward.23} parent=5 // pred_region
      %s117 = ssub.s32 %s9, 1
      // Predicated region
      $region13: #{han_forward.23} parent=11 // pred_check
        %p118 = pneg %p56
      $region14: #{han_forward.23} parent=11 // pred_check_branch
        %120 = sbr.rel (%p118) target = $region16
      $region15: #{han_forward.23} parent=11 // pred_region
        _
      $region16: #{han_forward.23} parent=11 // pred_fallthru
        _
      // Predicated region
      $region17: #{han_forward.23} parent=11 // pred_check
        %p121 = pneg %p77
      $region18: #{han_forward.23} parent=11 // pred_check_branch
        %123 = sbr.rel (%p121) target = $region20
      $region19: #{han_forward.23} parent=11 // pred_region
        _
      $region20: #{han_forward.23} parent=11 // pred_fallthru
        _
    $region12: #{han_forward.23} parent=5 // pred_fallthru
      _
    %p124 = scmp.lt.s32.totalorder %s9, 2
    // Predicated region
    $region21: #{han_forward.23} parent=5 // pred_check
      %p125 = pneg %p124
    $region22: #{han_forward.23} parent=5 // pred_check_branch
      %127 = sbr.rel (%p125) target = $region24
    $region23: #{han_forward.23} parent=5 // pred_region
      // Predicated region
      $region25: #{han_forward.23} parent=23 // pred_check
        %p128 = pneg %p29
      $region26: #{han_forward.23} parent=23 // pred_check_branch
        %130 = sbr.rel (%p128) target = $region28
      $region27: #{han_forward.23} parent=23 // pred_region
        %p131 = scmp.lt.s32.totalorder %s9, 1
        %s132 = scalar_select %p131, %s9, 1
        %s133 = smul.addr %s132, 4
        %s134 = smul.addr %s133, 2
        %s135 = scalar_lea.vmem %s0, %s134
      $region28: #{han_forward.23} parent=23 // pred_fallthru
        _
    $region24: #{han_forward.23} parent=5 // pred_fallthru
      _
    %p136 = scmp.le.s32.totalorder 1, %s9
    %p137 = scmp.lt.s32.totalorder %s9, 3
    %p138 = pnand %p136, %p137
    %p139 = pneg %p138
    // Predicated region
    $region29: #{han_forward.23} parent=5 // pred_check
      _
    $region30: #{han_forward.23} parent=5 // pred_check_branch
      %141 = sbr.rel (%p138) target = $region32
    $region31: #{han_forward.23} parent=5 // pred_region
      %s142 = ssub.s32 %s9, 1
      %p143 = scmp.lt.s32.totalorder %s14, 1
      %s144 = scalar_select %p143, %s14, 1
      %s145 = smul.addr %s144, 4
      %s146 = smul.addr %s145, 2
      %s147 = scalar_lea.vmem %s0, %s146
      %p148 = pneg %p35
      %p149 = pneg %p32
      %p150 = pneg %p56
      %p151 = pneg %p53
      %p152 = pneg %p77
      %p153 = pneg %p74
      %p154 = pneg %p103
      %p155 = pneg %p100
      %p156 = scmp.lt.s32.totalorder %s14, 1
      %s157 = scalar_select %p156, %s14, 1
      %s158 = smul.addr %s157, 4
      %s159 = smul.addr %s158, 2
      %s160 = scalar_lea.vmem %s3, %s159
      %p161 = scmp.lt.s32.totalorder %s14, 1
      %s162 = scalar_select %p161, %s14, 1
      %s163 = smul.addr %s162, 4
      %s164 = smul.addr %s163, 2
      %s165 = scalar_lea.vmem %s0, %s164
      %p166 = scmp.lt.s32.totalorder %s14, 1
      %s167 = scalar_select %p166, %s14, 1
      %s168 = smul.addr %s167, 4
      %s169 = smul.addr %s168, 2
      %s170 = scalar_lea.vmem %s3, %s169
      %v172 = vld [vmem:[%s165] sm:$0x3]
      %v173 = vld [vmem:[%s165 + $0x2] sm:$0x3]
      %v174 = vld [vmem:[%s165 + $0x4] sm:$0x3]
      %v175 = vld [vmem:[%s165 + $0x6] sm:$0x3]
      %v176 = vld [vmem:[%s1] sm:$0xff]
      %v177 = vld [vmem:[%s1 + $0x8] sm:$0xf]
      %v178 = vld [vmem:[%s1 + $0xc] sm:$0xff]
      %v179 = vld [vmem:[%s1 + $0x14] sm:$0xf]
      %v180 = vld [vmem:[%s1 + $0x18] sm:$0xff]
      %v181 = vld [vmem:[%s1 + $0x20] sm:$0xf]
      %v182 = vld [vmem:[%s1 + $0x24] sm:$0xff]
      %v183 = vld [vmem:[%s1 + $0x2c] sm:$0xf]
      %v184 = vld [vmem:[%s1 + $0x30] sm:$0xff]
      %v185 = vld [vmem:[%s1 + $0x38] sm:$0xf]
      %v186 = vld [vmem:[%s1 + $0x3c] sm:$0xff]
      %v187 = vld [vmem:[%s1 + $0x44] sm:$0xf]
      %v188 = vld [vmem:[%s1 + $0x48] sm:$0xff]
      %v189 = vld [vmem:[%s1 + $0x50] sm:$0xf]
      %v190 = vld [vmem:[%s1 + $0x54] sm:$0xff]
      %v191 = vld [vmem:[%s1 + $0x5c] sm:$0xf]
      %v192 = vld [vmem:[%s1 + $0x60] sm:$0xff]
      %v193 = vld [vmem:[%s1 + $0x68] sm:$0xf]
      %v194 = vld [vmem:[%s1 + $0x6c] sm:$0xff]
      %v195 = vld [vmem:[%s1 + $0x74] sm:$0xf]
      %v196 = vld [vmem:[%s1 + $0x78] sm:$0xff]
      %v197 = vld [vmem:[%s1 + $0x80] sm:$0xf]
      %v198 = vld [vmem:[%s1 + $0x84] sm:$0xff]
      %v199 = vld [vmem:[%s1 + $0x8c] sm:$0xf]
      %v201 = vshrl.u32 0, 16
      %v203 = vrot.slane %v201, 7
      %v204 = vshll.u32 0, 16
      %v206 = vor.u32 %v203, %v204
      %v208 = vshrl.u32 %v172, 16
      %v210 = vrot.slane %v208, 7
      %v211 = vshll.u32 %v172, 16
      %v213 = vor.u32 %v210, %v211
      %v215 = vshrl.u32 %v173, 16
      %v217 = vrot.slane %v215, 7
      %v218 = vshll.u32 %v173, 16
      %v220 = vor.u32 %v217, %v218
      %v222 = vshrl.u32 %v174, 16
      %v224 = vrot.slane %v222, 7
      %v225 = vshll.u32 %v174, 16
      %v227 = vor.u32 %v224, %v225
      %v229 = vshrl.u32 %v175, 16
      %v231 = vrot.slane %v229, 7
      %v232 = vshll.u32 %v175, 16
      %v234 = vor.u32 %v231, %v232
      %vm240 = vcmask 1040384
      %vm241 = vsmask.f32 256
      %vm242 = vmand %vm240, %vm241
      %v243 = vsel %vm242, 0, %v206
      %v244 = vsel %vm242, 0, %v213
      %v245 = vsel %vm242, 0, %v220
      %v246 = vsel %vm242, 0, %v227
      %v247 = vsel %vm242, 0, %v234
      %vm248 = vcmask 1042432
      %vm249 = vsmask.f32 2304
      %vm250 = vmand %vm248, %vm249
      %v251 = vsel %vm250, %v243, 0
      %v252 = vsel %vm250, %v244, 0
      %v253 = vsel %vm250, %v245, 0
      %v254 = vsel %vm250, %v246, 0
      %v255 = vsel %vm250, %v247, 0
      %v257 = vshrl.u32 %v251, 16
      %v259 = vshll.u32 %v251, 16
      %v261 = vrot.slane %v259, 1
      %v262 = vor.u32 %v257, %v261
      %v264 = vshrl.u32 %v252, 16
      %v266 = vshll.u32 %v252, 16
      %v268 = vrot.slane %v266, 1
      %v269 = vor.u32 %v264, %v268
      %v271 = vshrl.u32 %v253, 16
      %v273 = vshll.u32 %v253, 16
      %v275 = vrot.slane %v273, 1
      %v276 = vor.u32 %v271, %v275
      %v278 = vshrl.u32 %v254, 16
      %v280 = vshll.u32 %v254, 16
      %v282 = vrot.slane %v280, 1
      %v283 = vor.u32 %v278, %v282
      %v285 = vshrl.u32 %v255, 16
      %v287 = vshll.u32 %v255, 16
      %v289 = vrot.slane %v287, 1
      %v290 = vor.u32 %v285, %v289
      %291 = vrot.lane.b32.xlu0 %v262, 32
      %v292 = vpop.permute.xlu0 %291
      %293 = vrot.lane.b32.xlu0 %v269, 32
      %v294 = vpop.permute.xlu0 %293
      %295 = vrot.lane.b32.xlu0 %v276, 32
      %v296 = vpop.permute.xlu0 %295
      %297 = vrot.lane.b32.xlu0 %v283, 32
      %v298 = vpop.permute.xlu0 %297
      %299 = vrot.lane.b32.xlu0 %v290, 32
      %v300 = vpop.permute.xlu0 %299
      %v306 = vrot.slane %v251, 1
      %v307 = vrot.slane %v252, 1
      %v308 = vrot.slane %v253, 1
      %v309 = vrot.slane %v254, 1
      %v310 = vrot.slane %v255, 1
      %311 = vrot.lane.b32.xlu0 %v306, 64
      %v312 = vpop.permute.xlu0 %311
      %313 = vrot.lane.b32.xlu0 %v307, 64
      %v314 = vpop.permute.xlu0 %313
      %315 = vrot.lane.b32.xlu0 %v308, 64
      %v316 = vpop.permute.xlu0 %315
      %317 = vrot.lane.b32.xlu0 %v309, 64
      %v318 = vpop.permute.xlu0 %317
      %319 = vrot.lane.b32.xlu0 %v310, 64
      %v320 = vpop.permute.xlu0 %319
      %vm321 = vcmask 261120
      %v323 = vsel %vm321, %v251, %v292
      %v325 = vsel %vm321, %v252, %v294
      %v327 = vsel %vm321, %v253, %v296
      %v329 = vsel %vm321, %v254, %v298
      %v331 = vsel %vm321, %v255, %v300
      %vm332 = vcmask 523264
      %v334 = vsel %vm332, %v323, %v312
      %v336 = vsel %vm332, %v325, %v314
      %v338 = vsel %vm332, %v327, %v316
      %v340 = vsel %vm332, %v329, %v318
      %v342 = vsel %vm332, %v331, %v320
      %v348 = vcombine.low %v334, %v336
      %v349 = vcombine.low %v338, %v340
      %v351 = vunpack.c.l.s4 1983009808
      %v352 = vunpack.c.0.s8 %v351
      %v353 = vlaneseq
      %v354 = vshrl.u32 %v353, 7
      %v355 = vsub.s32 %v352, %v354
      %v356 = vrot.slane %v348, %v355
      %v358 = vunpack.c.l.s4 1983009808
      %v359 = vunpack.c.0.s8 %v358
      %v360 = vlaneseq
      %v361 = vshrl.u32 %v360, 7
      %v362 = vsub.s32 %v359, %v361
      %v363 = vrot.slane %v349, %v362
      %v364 = vcombine.low %v356, %v363
      %v365 = vcombine.low %v342, %v334
      %v367 = vunpack.c.l.s4 1983009808
      %v368 = vunpack.c.0.s8 %v367
      %v369 = vlaneseq
      %v370 = vshrl.u32 %v369, 7
      %v371 = vsub.s32 %v368, %v370
      %v372 = vrot.slane %v365, %v371
      %v397 = vunpack.c.l.b16 %v176
      %v398 = vunpack.c.h.b16 %v176
      %v399 = vunpack.c.l.b16 %v177
      %v400 = vunpack.c.l.b16 %v178
      %v401 = vunpack.c.h.b16 %v178
      %v402 = vunpack.c.l.b16 %v179
      %v403 = vunpack.c.l.b16 %v180
      %v404 = vunpack.c.h.b16 %v180
      %v405 = vunpack.c.l.b16 %v181
      %v406 = vunpack.c.l.b16 %v182
      %v407 = vunpack.c.h.b16 %v182
      %v408 = vunpack.c.l.b16 %v183
      %v409 = vunpack.c.l.b16 %v184
      %v410 = vunpack.c.h.b16 %v184
      %v411 = vunpack.c.l.b16 %v185
      %v412 = vunpack.c.l.b16 %v186
      %v413 = vunpack.c.h.b16 %v186
      %v414 = vunpack.c.l.b16 %v187
      %v415 = vunpack.c.l.b16 %v188
      %v416 = vunpack.c.h.b16 %v188
      %v417 = vunpack.c.l.b16 %v189
      %v418 = vunpack.c.l.b16 %v190
      %v419 = vunpack.c.h.b16 %v190
      %v420 = vunpack.c.l.b16 %v191
      %v421 = vunpack.c.l.b16 %v192
      %v422 = vunpack.c.h.b16 %v192
      %v423 = vunpack.c.l.b16 %v193
      %v424 = vunpack.c.l.b16 %v194
      %v425 = vunpack.c.h.b16 %v194
      %v426 = vunpack.c.l.b16 %v195
      %v427 = vunpack.c.l.b16 %v196
      %v428 = vunpack.c.h.b16 %v196
      %v429 = vunpack.c.l.b16 %v197
      %v430 = vunpack.c.l.b16 %v198
      %v431 = vunpack.c.h.b16 %v198
      %v432 = vunpack.c.l.b16 %v199
      %v433 = vpack.c.b16 %v400, %v397
      %v434 = vpack.c.b16 %v401, %v398
      %v435 = vpack.c.b16 %v402, %v399
      %v436 = vpack.c.b16 %v406, %v403
      %v437 = vpack.c.b16 %v407, %v404
      %v438 = vpack.c.b16 %v408, %v405
      %v439 = vpack.c.b16 %v412, %v409
      %v440 = vpack.c.b16 %v413, %v410
      %v441 = vpack.c.b16 %v414, %v411
      %v442 = vpack.c.b16 %v418, %v415
      %v443 = vpack.c.b16 %v419, %v416
      %v444 = vpack.c.b16 %v420, %v417
      %v445 = vpack.c.b16 %v424, %v421
      %v446 = vpack.c.b16 %v425, %v422
      %v447 = vpack.c.b16 %v426, %v423
      %v448 = vpack.c.b16 %v430, %v427
      %v449 = vpack.c.b16 %v431, %v428
      %v450 = vpack.c.b16 %v432, %v429
      %vm469 = vcmask 785408
      %v471 = vsel %vm469, %v364, 0
      %v474 = vsel %vm469, %v372, 0
      %476 = vmatprep.subr.bf16.mxu0 0
      %477 = vmatpush1.bf16.msra.mxu0 0
      %478 = vmatprep.subr.bf16.mxu0 0
      %479 = vmatpush1.bf16.msra.mxu0 0
      %480 = vmatprep.subr.bf16.mxu0 %v449
      %481 = vmatpush1.bf16.msra.mxu0 %v448
      %482 = vmatprep.subr.bf16.mxu0 %v446
      %483 = vmatpush1.bf16.msra.mxu0 %v445
      %484 = vmatprep.subr.bf16.mxu0 %v443
      %485 = vmatpush1.bf16.msra.mxu0 %v442
      %486 = vmatprep.subr.bf16.mxu0 %v440
      %487 = vmatpush1.bf16.msra.mxu0 %v439
      %488 = vmatprep.subr.bf16.mxu0 %v437
      %489 = vmatpush1.bf16.msra.mxu0 %v436
      %490 = vmatprep.subr.bf16.mxu0 %v434
      %491 = vmatpush1.bf16.msra.mxu0 %v433
      %492 = vmatprep.subr.bf16.mxu0 0
      %493 = vmatpush2.bf16.msra.mxu0 0
      %494 = vmatprep.subr.bf16.mxu0 0
      %495 = vmatpush2.bf16.msra.mxu0 0
      %496 = vmatprep.subr.bf16.mxu0 0
      %497 = vmatpush2.bf16.msra.mxu0 0
      %498 = vmatprep.subr.bf16.mxu0 0
      %499 = vmatpush2.bf16.msra.mxu0 0
      %500 = vmatprep.subr.bf16.mxu0 0
      %501 = vmatpush2.bf16.msra.mxu0 0
      %502 = vmatprep.subr.bf16.mxu0 0
      %503 = vmatpush2.bf16.msra.mxu0 0
      %504 = vmatprep.subr.bf16.mxu0 0
      %505 = vmatpush2.bf16.msra.mxu0 0
      %506 = vmatprep.subr.bf16.mxu0 0
      %507 = vmatpush2.bf16.msra.mxu0 0
      %508 = vmatprep.mubr.bf16.mxu0 0
      %509 = vmatmul.mubr.bf16.gmra.mxu0 %v471
      %v510 = vpop.f32.mrf.mxu0
      %v511 = vadd.f32 0.0, %v510
      %v512 = vpop.f32.mrf.mxu0
      %v513 = vadd.f32 0.0, %v512
      %v514 = vpop.f32.mrf.mxu0
      %v515 = vadd.f32 0.0, %v514
      %v516 = vpop.f32.mrf.mxu0
      %v517 = vadd.f32 0.0, %v516
      %518 = vmatprep.mubr.bf16.mxu0 0
      %519 = vmatmul.mubr.bf16.gmra.mxu0 %v474
      %v520 = vpop.f32.mrf.mxu0
      %v521 = vadd.f32 0.0, %v520
      %v522 = vpop.f32.mrf.mxu0
      %v523 = vadd.f32 0.0, %v522
      %v524 = vpop.f32.mrf.mxu0
      %v525 = vpop.f32.mrf.mxu0
      %526 = vdwg.mxu0
      %527 = vmatprep.subr.bf16.mxu0 0
      %528 = vmatpush1.bf16.msra.mxu0 0
      %529 = vmatprep.subr.bf16.mxu0 0
      %530 = vmatpush1.bf16.msra.mxu0 0
      %531 = vmatprep.subr.bf16.mxu0 0
      %532 = vmatpush1.bf16.msra.mxu0 %v450
      %533 = vmatprep.subr.bf16.mxu0 0
      %534 = vmatpush1.bf16.msra.mxu0 %v447
      %535 = vmatprep.subr.bf16.mxu0 0
      %536 = vmatpush1.bf16.msra.mxu0 %v444
      %537 = vmatprep.subr.bf16.mxu0 0
      %538 = vmatpush1.bf16.msra.mxu0 %v441
      %539 = vmatprep.subr.bf16.mxu0 0
      %540 = vmatpush1.bf16.msra.mxu0 %v438
      %541 = vmatprep.subr.bf16.mxu0 0
      %542 = vmatpush1.bf16.msra.mxu0 %v435
      %543 = vmatprep.subr.bf16.mxu0 0
      %544 = vmatpush2.bf16.msra.mxu0 0
      %545 = vmatprep.subr.bf16.mxu0 0
      %546 = vmatpush2.bf16.msra.mxu0 0
      %547 = vmatprep.subr.bf16.mxu0 0
      %548 = vmatpush2.bf16.msra.mxu0 0
      %549 = vmatprep.subr.bf16.mxu0 0
      %550 = vmatpush2.bf16.msra.mxu0 0
      %551 = vmatprep.subr.bf16.mxu0 0
      %552 = vmatpush2.bf16.msra.mxu0 0
      %553 = vmatprep.subr.bf16.mxu0 0
      %554 = vmatpush2.bf16.msra.mxu0 0
      %555 = vmatprep.subr.bf16.mxu0 0
      %556 = vmatpush2.bf16.msra.mxu0 0
      %557 = vmatprep.subr.bf16.mxu0 0
      %558 = vmatpush2.bf16.msra.mxu0 0
      %559 = vmatprep.mubr.bf16.mxu0 0
      %560 = vmatmul.mubr.bf16.gmra.mxu0 %v471
      %v561 = vpop.f32.mrf.mxu0
      %v562 = vpop.f32.mrf.mxu0
      %v563 = vpop.f32.mrf.mxu0
      %v564 = vadd.f32 0.0, %v563
      %v565 = vpop.f32.mrf.mxu0
      %566 = vmatprep.mubr.bf16.mxu0 0
      %567 = vmatmul.mubr.bf16.gmra.mxu0 %v474
      %v568 = vpop.f32.mrf.mxu0
      %v569 = vadd.f32 0.0, %v568
      %v570 = vpop.f32.mrf.mxu0
      %v571 = vpop.f32.mrf.mxu0
      %v572 = vpop.f32.mrf.mxu0
      %573 = vdwg.mxu0
      %v582 = vcombine.low %v511, %v513
      %v583 = vcombine.high %v511, %v513
      %v584 = vcombine.low %v515, %v517
      %v585 = vcombine.high %v515, %v517
      %v586 = vcombine.high %v564, %v564
      %v587 = vcombine.low %v521, %v523
      %v588 = vcombine.high %v569, %v569
      %v595 = vrot.slane %v583, 4
      %v596 = vrot.slane %v584, 4
      %v597 = vrot.slane %v585, 4
      %v598 = vrot.slane %v587, 4
      %v603 = vadd.f32 %v582, %v595
      %v604 = vadd.f32 %v583, %v596
      %v605 = vadd.f32 %v584, %v597
      %v606 = vadd.f32 %v585, %v598
      %v607 = vadd.f32 %v603, %v564
      %v608 = vadd.f32 %v604, %v586
      %v609 = vadd.f32 %v605, %v569
      %v610 = vadd.f32 %v606, %v588
      %v611 = vld [vmem:[%s2] sm:$0x1]
      %v613 = vlaneseq
      %v614 = vshrl.u32 %v613, 7
      %v615 = vsub.s32 0, %v614
      %v616 = vrot.slane %v611, %v615
      %v618 = vadd.f32 %v607, %v616
      %v619 = vadd.f32 %v608, %v616
      %v620 = vadd.f32 %v609, %v616
      %v621 = vadd.f32 %v610, %v616
      %v622 = vpack.c.bf16 %v618, %v618
      %v623 = vpack.c.bf16 %v619, %v619
      %v624 = vpack.c.bf16 %v620, %v620
      %v625 = vpack.c.bf16 %v621, %v621
      %626 = vst [vmem:[%s170] sm:$0x3] %v622
      %627 = vst [vmem:[%s170 + $0x2] sm:$0x3] %v623
      %628 = vst [vmem:[%s170 + $0x4] sm:$0x3] %v624
      %629 = vst [vmem:[%s170 + $0x6] sm:$0x3] %v625
      %p630 = scmp.lt.s32.totalorder %s14, 1
      %s631 = scalar_select %p630, %s14, 1
      %s632 = smul.addr %s631, 4
      %s633 = smul.addr %s632, 2
      %s634 = scalar_lea.vmem %s3, %s633
      // Predicated region
      $region33: #{han_forward.23} parent=31 // pred_check
        %p635 = pneg %p100
      $region34: #{han_forward.23} parent=31 // pred_check_branch
        %637 = sbr.rel (%p635) target = $region36
      $region35: #{han_forward.23} parent=31 // pred_region
        _
      $region36: #{han_forward.23} parent=31 // pred_fallthru
        _
    $region32: #{han_forward.23} parent=5 // pred_fallthru
      _
    %p638 = scmp.le.s32.totalorder 2, %s9
    // Predicated region
    $region37: #{han_forward.23} parent=5 // pred_check
      %p639 = pneg %p638
    $region38: #{han_forward.23} parent=5 // pred_check_branch
      %641 = sbr.rel (%p639) target = $region40
    $region39: #{han_forward.23} parent=5 // pred_region
      %s642 = ssub.s32 %s9, 2
      // Predicated region
      $region41: #{han_forward.23} parent=39 // pred_check
        %p643 = pneg %p106
      $region42: #{han_forward.23} parent=39 // pred_check_branch
        %645 = sbr.rel (%p643) target = $region44
      $region43: #{han_forward.23} parent=39 // pred_region
        %p646 = scmp.lt.s32.totalorder %s15, 1
        %s647 = scalar_select %p646, %s15, 1
        %s648 = smul.addr %s647, 4
        %s649 = smul.addr %s648, 2
        %s650 = scalar_lea.vmem %s3, %s649
      $region44: #{han_forward.23} parent=39 // pred_fallthru
        _
    $region40: #{han_forward.23} parent=5 // pred_fallthru
      _
  $region6: #{han_forward.23} parent=0 // loop_footer
    %s13 = sadd.s32 1, %s9
  $region7: #{han_forward.23} parent=0 // loop_footer_branch
    %8 = sbr.rel target = $region3
  $region8: #{han_forward.23} parent=0 // loop_exit
    _

// kernel: han_forward.24
$region0: #{han_forward.24}
  #allocation0 [shape = 'u32[]', space=smem, size = 0x4, offset = 0x4, fixed_abs, tag = 'smem constant byte address 0x4 - core index']
  #allocation1 [shape = 'u32[144,128]{1,0:T(1,128)}', space=vmem, size = 0x12000, scoped, tag = 'internal scratch']
  %s0 = inlined_call_operand.vmem [shape: bf16[2,8,8,32], index: 0, kind: input, shape index: {}]
  %s1 = inlined_call_operand.vmem [shape: bf16[96,384], index: 1, kind: input, shape index: {}]
  %s2 = inlined_call_operand.vmem [shape: f32[1,128], index: 2, kind: input, shape index: {}]
  %s3 = inlined_call_operand.vmem [shape: bf16[2,8,8,128], index: 3, kind: output, shape index: {}]
  %s4 = sld [smem:[#allocation0]]
  $region45: #{han_forward.24} parent=0
    _
  %s6 = ssub.s32 1, %s4
  %s7 = scalar_select 0, %s6, %s4
  loop: start=0, step=1, limit=4
  $region2: #{han_forward.24} parent=0 // loop_pre_header
    _
  $region3: #{han_forward.24} parent=0 // loop_header
    %s9 = sphi 0, %s13
    %p10 = scmp.ge.s32.totalorder %s9, 4
    %s19 = sphi 0, %s21
    %s22 = sphi 0, %s19
    %s23 = sphi 0, %s22
    %s39 = sphi 0, %s23
    %s43 = sphi 0, %s43
    %s45 = sphi 0, %s43
    %s46 = sphi 0, %s45
    %s60 = sphi 0, %s46
    %s64 = sphi 0, %s64
    %s66 = sphi 0, %s64
    %s67 = sphi 0, %s66
    %s81 = sphi 0, %s67
    %s87 = sphi 0, %s89
    %s90 = sphi 0, %s87
    %s91 = sphi 0, %s90
    %s107 = sphi 0, %s91
  $region4: #{han_forward.24} parent=0 // loop_header_branch
    %12 = sbr.rel (%p10) target = $region8
  $region5: #{han_forward.24} parent=0 // loop_body
    %s14 = ssub.s32 %s9, 1
    %s15 = ssub.s32 %s9, 2
    %s16 = sadd.s32 %s9, 1
    %s17 = ssub.s32 %s9, %s16
    %p18 = scmp.eq.s32.totalorder %s17, 0
    %s20 = sadd.s32 %s19, 1
    %s21 = scalar_select %p18, %s19, %s20
    %p24 = pneg %p18
    %p25 = scmp.eq.s32.totalorder %s9, 1
    %p26 = por %p24, %p25
    %p27 = scmp.ne.s32.totalorder %s19, %s22
    %p28 = scmp.eq.s32.totalorder %s9, 0
    %p29 = por %p27, %p28
    %p30 = scmp.ne.s32.totalorder %s19, %s22
    %p31 = scmp.eq.s32.totalorder %s14, 1
    %p32 = por %p30, %p31
    %p33 = scmp.ne.s32.totalorder %s22, %s23
    %p34 = scmp.eq.s32.totalorder %s14, 0
    %p35 = por %p33, %p34
    %p36 = scmp.ne.s32.totalorder %s22, %s23
    %p37 = scmp.eq.s32.totalorder %s15, 1
    %p38 = por %p36, %p37
    %p40 = scmp.ne.s32.totalorder %s23, %s39
    %p41 = scmp.eq.s32.totalorder %s15, 0
    %p42 = por %p40, %p41
    %s44 = sadd.s32 %s43, 1
    %p47 = scmp.eq.s32.totalorder %s9, 1
    %p48 = scmp.ne.s32.totalorder %s43, %s45
    %p49 = scmp.eq.s32.totalorder %s9, 0
    %p50 = por %p48, %p49
    %p51 = scmp.ne.s32.totalorder %s43, %s45
    %p52 = scmp.eq.s32.totalorder %s14, 1
    %p53 = por %p51, %p52
    %p54 = scmp.ne.s32.totalorder %s45, %s46
    %p55 = scmp.eq.s32.totalorder %s14, 0
    %p56 = por %p54, %p55
    %p57 = scmp.ne.s32.totalorder %s45, %s46
    %p58 = scmp.eq.s32.totalorder %s15, 1
    %p59 = por %p57, %p58
    %p61 = scmp.ne.s32.totalorder %s46, %s60
    %p62 = scmp.eq.s32.totalorder %s15, 0
    %p63 = por %p61, %p62
    %s65 = sadd.s32 %s64, 1
    %p68 = scmp.eq.s32.totalorder %s9, 1
    %p69 = scmp.ne.s32.totalorder %s64, %s66
    %p70 = scmp.eq.s32.totalorder %s9, 0
    %p71 = por %p69, %p70
    %p72 = scmp.ne.s32.totalorder %s64, %s66
    %p73 = scmp.eq.s32.totalorder %s14, 1
    %p74 = por %p72, %p73
    %p75 = scmp.ne.s32.totalorder %s66, %s67
    %p76 = scmp.eq.s32.totalorder %s14, 0
    %p77 = por %p75, %p76
    %p78 = scmp.ne.s32.totalorder %s66, %s67
    %p79 = scmp.eq.s32.totalorder %s15, 1
    %p80 = por %p78, %p79
    %p82 = scmp.ne.s32.totalorder %s67, %s81
    %p83 = scmp.eq.s32.totalorder %s15, 0
    %p84 = por %p82, %p83
    %s85 = ssub.s32 %s9, %s16
    %p86 = scmp.eq.s32.totalorder %s85, 0
    %s88 = sadd.s32 %s87, 1
    %s89 = scalar_select %p86, %s87, %s88
    %p92 = pneg %p86
    %p93 = scmp.eq.s32.totalorder %s9, 1
    %p94 = por %p92, %p93
    %p95 = scmp.ne.s32.totalorder %s87, %s90
    %p96 = scmp.eq.s32.totalorder %s9, 0
    %p97 = por %p95, %p96
    %p98 = scmp.ne.s32.totalorder %s87, %s90
    %p99 = scmp.eq.s32.totalorder %s14, 1
    %p100 = por %p98, %p99
    %p101 = scmp.ne.s32.totalorder %s90, %s91
    %p102 = scmp.eq.s32.totalorder %s14, 0
    %p103 = por %p101, %p102
    %p104 = scmp.ne.s32.totalorder %s90, %s91
    %p105 = scmp.eq.s32.totalorder %s15, 1
    %p106 = por %p104, %p105
    %p108 = scmp.ne.s32.totalorder %s91, %s107
    %p109 = scmp.eq.s32.totalorder %s15, 0
    %p110 = por %p108, %p109
    %p111 = scmp.le.s32.totalorder 1, %s9
    %p112 = scmp.lt.s32.totalorder %s9, 3
    %p113 = pnand %p111, %p112
    %p114 = pneg %p113
    // Predicated region
    $region9: #{han_forward.24} parent=5 // pred_check
      _
    $region10: #{han_forward.24} parent=5 // pred_check_branch
      %116 = sbr.rel (%p113) target = $region12
    $region11: #{han_forward.24} parent=5 // pred_region
      %s117 = ssub.s32 %s9, 1
      // Predicated region
      $region13: #{han_forward.24} parent=11 // pred_check
        %p118 = pneg %p56
      $region14: #{han_forward.24} parent=11 // pred_check_branch
        %120 = sbr.rel (%p118) target = $region16
      $region15: #{han_forward.24} parent=11 // pred_region
        _
      $region16: #{han_forward.24} parent=11 // pred_fallthru
        _
      // Predicated region
      $region17: #{han_forward.24} parent=11 // pred_check
        %p121 = pneg %p77
      $region18: #{han_forward.24} parent=11 // pred_check_branch
        %123 = sbr.rel (%p121) target = $region20
      $region19: #{han_forward.24} parent=11 // pred_region
        _
      $region20: #{han_forward.24} parent=11 // pred_fallthru
        _
    $region12: #{han_forward.24} parent=5 // pred_fallthru
      _
    %p124 = scmp.lt.s32.totalorder %s9, 2
    // Predicated region
    $region21: #{han_forward.24} parent=5 // pred_check
      %p125 = pneg %p124
    $region22: #{han_forward.24} parent=5 // pred_check_branch
      %127 = sbr.rel (%p125) target = $region24
    $region23: #{han_forward.24} parent=5 // pred_region
      // Predicated region
      $region25: #{han_forward.24} parent=23 // pred_check
        %p128 = pneg %p29
      $region26: #{han_forward.24} parent=23 // pred_check_branch
        %130 = sbr.rel (%p128) target = $region28
      $region27: #{han_forward.24} parent=23 // pred_region
        %p131 = scmp.lt.s32.totalorder %s9, 1
        %s132 = scalar_select %p131, %s9, 1
        %s133 = smul.addr %s132, 8
        %s134 = smul.addr %s133, 4
        %s135 = scalar_lea.vmem %s0, %s134
      $region28: #{han_forward.24} parent=23 // pred_fallthru
        _
    $region24: #{han_forward.24} parent=5 // pred_fallthru
      _
    %p136 = scmp.le.s32.totalorder 1, %s9
    %p137 = scmp.lt.s32.totalorder %s9, 3
    %p138 = pnand %p136, %p137
    %p139 = pneg %p138
    // Predicated region
    $region29: #{han_forward.24} parent=5 // pred_check
      _
    $region30: #{han_forward.24} parent=5 // pred_check_branch
      %141 = sbr.rel (%p138) target = $region32
    $region31: #{han_forward.24} parent=5 // pred_region
      %s142 = ssub.s32 %s9, 1
      %p143 = scmp.lt.s32.totalorder %s14, 1
      %s144 = scalar_select %p143, %s14, 1
      %s145 = smul.addr %s144, 8
      %s146 = smul.addr %s145, 4
      %s147 = scalar_lea.vmem %s0, %s146
      %p148 = pneg %p35
      %p149 = pneg %p32
      %p150 = pneg %p56
      %p151 = pneg %p53
      %p152 = pneg %p77
      %p153 = pneg %p74
      %p154 = pneg %p103
      %p155 = pneg %p100
      %p156 = scmp.lt.s32.totalorder %s14, 1
      %s157 = scalar_select %p156, %s14, 1
      %s158 = smul.addr %s157, 8
      %s159 = smul.addr %s158, 4
      %s160 = scalar_lea.vmem %s3, %s159
      %p161 = scmp.lt.s32.totalorder %s14, 1
      %s162 = scalar_select %p161, %s14, 1
      %s163 = smul.addr %s162, 8
      %s164 = smul.addr %s163, 4
      %s165 = scalar_lea.vmem %s0, %s164
      %p166 = scmp.lt.s32.totalorder %s14, 1
      %s167 = scalar_select %p166, %s14, 1
      %s168 = smul.addr %s167, 8
      %s169 = smul.addr %s168, 4
      %s170 = scalar_lea.vmem %s3, %s169
      %v172 = vld [vmem:[%s165] sm:$0xf]
      %v173 = vld [vmem:[%s165 + $0x4] sm:$0xf]
      %v174 = vld [vmem:[%s165 + $0x8] sm:$0xf]
      %v175 = vld [vmem:[%s165 + $0xc] sm:$0xf]
      %v176 = vld [vmem:[%s165 + $0x10] sm:$0xf]
      %v177 = vld [vmem:[%s165 + $0x14] sm:$0xf]
      %v178 = vld [vmem:[%s165 + $0x18] sm:$0xf]
      %v179 = vld [vmem:[%s165 + $0x1c] sm:$0xf]
      %v180 = vld [vmem:[%s1] sm:$0xff]
      %v181 = vld [vmem:[%s1 + $0x8] sm:$0xf]
      %v182 = vld [vmem:[%s1 + $0xc] sm:$0xff]
      %v183 = vld [vmem:[%s1 + $0x14] sm:$0xf]
      %v184 = vld [vmem:[%s1 + $0x18] sm:$0xff]
      %v185 = vld [vmem:[%s1 + $0x20] sm:$0xf]
      %v186 = vld [vmem:[%s1 + $0x24] sm:$0xff]
      %v187 = vld [vmem:[%s1 + $0x2c] sm:$0xf]
      %v188 = vld [vmem:[%s1 + $0x30] sm:$0xff]
      %v189 = vld [vmem:[%s1 + $0x38] sm:$0xf]
      %v190 = vld [vmem:[%s1 + $0x3c] sm:$0xff]
      %v191 = vld [vmem:[%s1 + $0x44] sm:$0xf]
      %v192 = vld [vmem:[%s1 + $0x48] sm:$0xff]
      %v193 = vld [vmem:[%s1 + $0x50] sm:$0xf]
      %v194 = vld [vmem:[%s1 + $0x54] sm:$0xff]
      %v195 = vld [vmem:[%s1 + $0x5c] sm:$0xf]
      %v196 = vld [vmem:[%s1 + $0x60] sm:$0xff]
      %v197 = vld [vmem:[%s1 + $0x68] sm:$0xf]
      %v198 = vld [vmem:[%s1 + $0x6c] sm:$0xff]
      %v199 = vld [vmem:[%s1 + $0x74] sm:$0xf]
      %v200 = vld [vmem:[%s1 + $0x78] sm:$0xff]
      %v201 = vld [vmem:[%s1 + $0x80] sm:$0xf]
      %v202 = vld [vmem:[%s1 + $0x84] sm:$0xff]
      %v203 = vld [vmem:[%s1 + $0x8c] sm:$0xf]
      %v205 = vshrl.u32 0, 16
      %v207 = vrot.slane %v205, 7
      %v208 = vshll.u32 0, 16
      %v210 = vor.u32 %v207, %v208
      %v212 = vshrl.u32 %v172, 16
      %v214 = vrot.slane %v212, 7
      %v215 = vshll.u32 %v172, 16
      %v217 = vor.u32 %v214, %v215
      %v219 = vshrl.u32 %v173, 16
      %v221 = vrot.slane %v219, 7
      %v222 = vshll.u32 %v173, 16
      %v224 = vor.u32 %v221, %v222
      %v226 = vshrl.u32 %v174, 16
      %v228 = vrot.slane %v226, 7
      %v229 = vshll.u32 %v174, 16
      %v231 = vor.u32 %v228, %v229
      %v233 = vshrl.u32 %v175, 16
      %v235 = vrot.slane %v233, 7
      %v236 = vshll.u32 %v175, 16
      %v238 = vor.u32 %v235, %v236
      %v240 = vshrl.u32 %v176, 16
      %v242 = vrot.slane %v240, 7
      %v243 = vshll.u32 %v176, 16
      %v245 = vor.u32 %v242, %v243
      %v247 = vshrl.u32 %v177, 16
      %v249 = vrot.slane %v247, 7
      %v250 = vshll.u32 %v177, 16
      %v252 = vor.u32 %v249, %v250
      %v254 = vshrl.u32 %v178, 16
      %v256 = vrot.slane %v254, 7
      %v257 = vshll.u32 %v178, 16
      %v259 = vor.u32 %v256, %v257
      %v261 = vshrl.u32 %v179, 16
      %v263 = vrot.slane %v261, 7
      %v264 = vshll.u32 %v179, 16
      %v266 = vor.u32 %v263, %v264
      %vm276 = vcmask 1040384
      %vm277 = vsmask.f32 256
      %vm278 = vmand %vm276, %vm277
      %v279 = vsel %vm278, 0, %v210
      %v280 = vsel %vm278, 0, %v217
      %v281 = vsel %vm278, 0, %v224
      %v282 = vsel %vm278, 0, %v231
      %v283 = vsel %vm278, 0, %v238
      %v284 = vsel %vm278, 0, %v245
      %v285 = vsel %vm278, 0, %v252
      %v286 = vsel %vm278, 0, %v259
      %v287 = vsel %vm278, 0, %v266
      %vm288 = vcmask 1044480
      %vm289 = vsmask.f32 4352
      %vm290 = vmand %vm288, %vm289
      %v291 = vsel %vm290, %v279, 0
      %v292 = vsel %vm290, %v280, 0
      %v293 = vsel %vm290, %v281, 0
      %v294 = vsel %vm290, %v282, 0
      %v295 = vsel %vm290, %v283, 0
      %v296 = vsel %vm290, %v284, 0
      %v297 = vsel %vm290, %v285, 0
      %v298 = vsel %vm290, %v286, 0
      %v299 = vsel %vm290, %v287, 0
      %v301 = vshrl.u32 %v291, 16
      %v303 = vshll.u32 %v291, 16
      %v305 = vrot.slane %v303, 1
      %v306 = vor.u32 %v301, %v305
      %v308 = vshrl.u32 %v292, 16
      %v310 = vshll.u32 %v292, 16
      %v312 = vrot.slane %v310, 1
      %v313 = vor.u32 %v308, %v312
      %v315 = vshrl.u32 %v293, 16
      %v317 = vshll.u32 %v293, 16
      %v319 = vrot.slane %v317, 1
      %v320 = vor.u32 %v315, %v319
      %v322 = vshrl.u32 %v294, 16
      %v324 = vshll.u32 %v294, 16
      %v326 = vrot.slane %v324, 1
      %v327 = vor.u32 %v322, %v326
      %v329 = vshrl.u32 %v295, 16
      %v331 = vshll.u32 %v295, 16
      %v333 = vrot.slane %v331, 1
      %v334 = vor.u32 %v329, %v333
      %v336 = vshrl.u32 %v296, 16
      %v338 = vshll.u32 %v296, 16
      %v340 = vrot.slane %v338, 1
      %v341 = vor.u32 %v336, %v340
      %v343 = vshrl.u32 %v297, 16
      %v345 = vshll.u32 %v297, 16
      %v347 = vrot.slane %v345, 1
      %v348 = vor.u32 %v343, %v347
      %v350 = vshrl.u32 %v298, 16
      %v352 = vshll.u32 %v298, 16
      %v354 = vrot.slane %v352, 1
      %v355 = vor.u32 %v350, %v354
      %v357 = vshrl.u32 %v299, 16
      %v359 = vshll.u32 %v299, 16
      %v361 = vrot.slane %v359, 1
      %v362 = vor.u32 %v357, %v361
      %363 = vrot.lane.b32.xlu0 %v306, 32
      %v364 = vpop.permute.xlu0 %363
      %365 = vrot.lane.b32.xlu0 %v313, 32
      %v366 = vpop.permute.xlu0 %365
      %367 = vrot.lane.b32.xlu0 %v320, 32
      %v368 = vpop.permute.xlu0 %367
      %369 = vrot.lane.b32.xlu0 %v327, 32
      %v370 = vpop.permute.xlu0 %369
      %371 = vrot.lane.b32.xlu0 %v334, 32
      %v372 = vpop.permute.xlu0 %371
      %373 = vrot.lane.b32.xlu0 %v341, 32
      %v374 = vpop.permute.xlu0 %373
      %375 = vrot.lane.b32.xlu0 %v348, 32
      %v376 = vpop.permute.xlu0 %375
      %377 = vrot.lane.b32.xlu0 %v355, 32
      %v378 = vpop.permute.xlu0 %377
      %379 = vrot.lane.b32.xlu0 %v362, 32
      %v380 = vpop.permute.xlu0 %379
      %v390 = vrot.slane %v291, 1
      %v391 = vrot.slane %v292, 1
      %v392 = vrot.slane %v293, 1
      %v393 = vrot.slane %v294, 1
      %v394 = vrot.slane %v295, 1
      %v395 = vrot.slane %v296, 1
      %v396 = vrot.slane %v297, 1
      %v397 = vrot.slane %v298, 1
      %v398 = vrot.slane %v299, 1
      %399 = vrot.lane.b32.xlu0 %v390, 64
      %v400 = vpop.permute.xlu0 %399
      %401 = vrot.lane.b32.xlu0 %v391, 64
      %v402 = vpop.permute.xlu0 %401
      %403 = vrot.lane.b32.xlu0 %v392, 64
      %v404 = vpop.permute.xlu0 %403
      %405 = vrot.lane.b32.xlu0 %v393, 64
      %v406 = vpop.permute.xlu0 %405
      %407 = vrot.lane.b32.xlu0 %v394, 64
      %v408 = vpop.permute.xlu0 %407
      %409 = vrot.lane.b32.xlu0 %v395, 64
      %v410 = vpop.permute.xlu0 %409
      %411 = vrot.lane.b32.xlu0 %v396, 64
      %v412 = vpop.permute.xlu0 %411
      %413 = vrot.lane.b32.xlu0 %v397, 64
      %v414 = vpop.permute.xlu0 %413
      %415 = vrot.lane.b32.xlu0 %v398, 64
      %v416 = vpop.permute.xlu0 %415
      %vm417 = vcmask 261120
      %v419 = vsel %vm417, %v291, %v364
      %v421 = vsel %vm417, %v292, %v366
      %v423 = vsel %vm417, %v293, %v368
      %v425 = vsel %vm417, %v294, %v370
      %v427 = vsel %vm417, %v295, %v372
      %v429 = vsel %vm417, %v296, %v374
      %v431 = vsel %vm417, %v297, %v376
      %v433 = vsel %vm417, %v298, %v378
      %v435 = vsel %vm417, %v299, %v380
      %vm436 = vcmask 523264
      %v438 = vsel %vm436, %v419, %v400
      %v440 = vsel %vm436, %v421, %v402
      %v442 = vsel %vm436, %v423, %v404
      %v444 = vsel %vm436, %v425, %v406
      %v446 = vsel %vm436, %v427, %v408
      %v448 = vsel %vm436, %v429, %v410
      %v450 = vsel %vm436, %v431, %v412
      %v452 = vsel %vm436, %v433, %v414
      %v454 = vsel %vm436, %v435, %v416
      %v464 = vunpack.c.l.b16 %v438
      %v465 = vunpack.c.l.b16 %v440
      %v466 = vunpack.c.l.b16 %v442
      %v467 = vunpack.c.l.b16 %v444
      %v468 = vunpack.c.l.b16 %v446
      %v469 = vunpack.c.l.b16 %v448
      %v470 = vunpack.c.l.b16 %v450
      %v471 = vunpack.c.l.b16 %v452
      %v472 = vunpack.c.l.b16 %v454
      %v473 = vpack.c.b16 %v465, %v464
      %v474 = vpack.c.b16 %v467, %v466
      %v475 = vpack.c.b16 %v469, %v468
      %v476 = vpack.c.b16 %v471, %v470
      %v477 = vpack.c.b16 %v464, %v472
      %v502 = vunpack.c.l.b16 %v180
      %v503 = vunpack.c.h.b16 %v180
      %v504 = vunpack.c.l.b16 %v181
      %v505 = vunpack.c.l.b16 %v182
      %v506 = vunpack.c.h.b16 %v182
      %v507 = vunpack.c.l.b16 %v183
      %v508 = vunpack.c.l.b16 %v184
      %v509 = vunpack.c.h.b16 %v184
      %v510 = vunpack.c.l.b16 %v185
      %v511 = vunpack.c.l.b16 %v186
      %v512 = vunpack.c.h.b16 %v186
      %v513 = vunpack.c.l.b16 %v187
      %v514 = vunpack.c.l.b16 %v188
      %v515 = vunpack.c.h.b16 %v188
      %v516 = vunpack.c.l.b16 %v189
      %v517 = vunpack.c.l.b16 %v190
      %v518 = vunpack.c.h.b16 %v190
      %v519 = vunpack.c.l.b16 %v191
      %v520 = vunpack.c.l.b16 %v192
      %v521 = vunpack.c.h.b16 %v192
      %v522 = vunpack.c.l.b16 %v193
      %v523 = vunpack.c.l.b16 %v194
      %v524 = vunpack.c.h.b16 %v194
      %v525 = vunpack.c.l.b16 %v195
      %v526 = vunpack.c.l.b16 %v196
      %v527 = vunpack.c.h.b16 %v196
      %v528 = vunpack.c.l.b16 %v197
      %v529 = vunpack.c.l.b16 %v198
      %v530 = vunpack.c.h.b16 %v198
      %v531 = vunpack.c.l.b16 %v199
      %v532 = vunpack.c.l.b16 %v200
      %v533 = vunpack.c.h.b16 %v200
      %v534 = vunpack.c.l.b16 %v201
      %v535 = vunpack.c.l.b16 %v202
      %v536 = vunpack.c.h.b16 %v202
      %v537 = vunpack.c.l.b16 %v203
      %v538 = vpack.c.b16 %v505, %v502
      %v539 = vpack.c.b16 %v506, %v503
      %v540 = vpack.c.b16 %v507, %v504
      %v541 = vpack.c.b16 %v511, %v508
      %v542 = vpack.c.b16 %v512, %v509
      %v543 = vpack.c.b16 %v513, %v510
      %v544 = vpack.c.b16 %v517, %v514
      %v545 = vpack.c.b16 %v518, %v515
      %v546 = vpack.c.b16 %v519, %v516
      %v547 = vpack.c.b16 %v523, %v520
      %v548 = vpack.c.b16 %v524, %v521
      %v549 = vpack.c.b16 %v525, %v522
      %v550 = vpack.c.b16 %v529, %v526
      %v551 = vpack.c.b16 %v530, %v527
      %v552 = vpack.c.b16 %v531, %v528
      %v553 = vpack.c.b16 %v535, %v532
      %v554 = vpack.c.b16 %v536, %v533
      %v555 = vpack.c.b16 %v537, %v534
      %vm574 = vcmask 785408
      %v576 = vsel %vm574, %v473, 0
      %v579 = vsel %vm574, %v474, 0
      %v582 = vsel %vm574, %v475, 0
      %v585 = vsel %vm574, %v476, 0
      %v588 = vsel %vm574, %v477, 0
      %590 = vmatprep.subr.bf16.mxu0 0
      %591 = vmatpush1.bf16.msra.mxu0 0
      %592 = vmatprep.subr.bf16.mxu0 0
      %593 = vmatpush1.bf16.msra.mxu0 0
      %594 = vmatprep.subr.bf16.mxu0 %v554
      %595 = vmatpush1.bf16.msra.mxu0 %v553
      %596 = vmatprep.subr.bf16.mxu0 %v551
      %597 = vmatpush1.bf16.msra.mxu0 %v550
      %598 = vmatprep.subr.bf16.mxu0 %v548
      %599 = vmatpush1.bf16.msra.mxu0 %v547
      %600 = vmatprep.subr.bf16.mxu0 %v545
      %601 = vmatpush1.bf16.msra.mxu0 %v544
      %602 = vmatprep.subr.bf16.mxu0 %v542
      %603 = vmatpush1.bf16.msra.mxu0 %v541
      %604 = vmatprep.subr.bf16.mxu0 %v539
      %605 = vmatpush1.bf16.msra.mxu0 %v538
      %606 = vmatprep.subr.bf16.mxu0 0
      %607 = vmatpush2.bf16.msra.mxu0 0
      %608 = vmatprep.subr.bf16.mxu0 0
      %609 = vmatpush2.bf16.msra.mxu0 0
      %610 = vmatprep.subr.bf16.mxu0 0
      %611 = vmatpush2.bf16.msra.mxu0 0
      %612 = vmatprep.subr.bf16.mxu0 0
      %613 = vmatpush2.bf16.msra.mxu0 0
      %614 = vmatprep.subr.bf16.mxu0 0
      %615 = vmatpush2.bf16.msra.mxu0 0
      %616 = vmatprep.subr.bf16.mxu0 0
      %617 = vmatpush2.bf16.msra.mxu0 0
      %618 = vmatprep.subr.bf16.mxu0 0
      %619 = vmatpush2.bf16.msra.mxu0 0
      %620 = vmatprep.subr.bf16.mxu0 0
      %621 = vmatpush2.bf16.msra.mxu0 0
      %622 = vmatprep.mubr.bf16.mxu0 0
      %623 = vmatmul.mubr.bf16.gmra.mxu0 %v576
      %v624 = vpop.f32.mrf.mxu0
      %v625 = vadd.f32 0.0, %v624
      %v626 = vpop.f32.mrf.mxu0
      %v627 = vpop.f32.mrf.mxu0
      %v628 = vadd.f32 0.0, %v627
      %v629 = vpop.f32.mrf.mxu0
      %v630 = vadd.f32 0.0, %v629
      %631 = vmatprep.mubr.bf16.mxu0 0
      %632 = vmatmul.mubr.bf16.gmra.mxu0 %v579
      %v633 = vpop.f32.mrf.mxu0
      %v634 = vadd.f32 0.0, %v633
      %v635 = vpop.f32.mrf.mxu0
      %v636 = vadd.f32 0.0, %v635
      %v637 = vpop.f32.mrf.mxu0
      %v638 = vadd.f32 0.0, %v637
      %v639 = vpop.f32.mrf.mxu0
      %v640 = vadd.f32 0.0, %v639
      %641 = vmatprep.mubr.bf16.mxu0 0
      %642 = vmatmul.mubr.bf16.gmra.mxu0 %v582
      %v643 = vpop.f32.mrf.mxu0
      %v644 = vadd.f32 0.0, %v643
      %v645 = vpop.f32.mrf.mxu0
      %v646 = vadd.f32 0.0, %v645
      %v647 = vpop.f32.mrf.mxu0
      %v648 = vadd.f32 0.0, %v647
      %v649 = vpop.f32.mrf.mxu0
      %v650 = vadd.f32 0.0, %v649
      %651 = vmatprep.mubr.bf16.mxu0 0
      %652 = vmatmul.mubr.bf16.gmra.mxu0 %v585
      %v653 = vpop.f32.mrf.mxu0
      %v654 = vadd.f32 0.0, %v653
      %v655 = vpop.f32.mrf.mxu0
      %v656 = vadd.f32 0.0, %v655
      %v657 = vpop.f32.mrf.mxu0
      %v658 = vadd.f32 0.0, %v657
      %v659 = vpop.f32.mrf.mxu0
      %v660 = vadd.f32 0.0, %v659
      %661 = vmatprep.mubr.bf16.mxu0 0
      %662 = vmatmul.mubr.bf16.gmra.mxu0 %v588
      %v663 = vpop.f32.mrf.mxu0
      %v664 = vpop.f32.mrf.mxu0
      %v665 = vadd.f32 0.0, %v664
      %v666 = vpop.f32.mrf.mxu0
      %v667 = vpop.f32.mrf.mxu0
      %668 = vdwg.mxu0
      %669 = vmatprep.subr.bf16.mxu0 0
      %670 = vmatpush1.bf16.msra.mxu0 0
      %671 = vmatprep.subr.bf16.mxu0 0
      %672 = vmatpush1.bf16.msra.mxu0 0
      %673 = vmatprep.subr.bf16.mxu0 0
      %674 = vmatpush1.bf16.msra.mxu0 %v555
      %675 = vmatprep.subr.bf16.mxu0 0
      %676 = vmatpush1.bf16.msra.mxu0 %v552
      %677 = vmatprep.subr.bf16.mxu0 0
      %678 = vmatpush1.bf16.msra.mxu0 %v549
      %679 = vmatprep.subr.bf16.mxu0 0
      %680 = vmatpush1.bf16.msra.mxu0 %v546
      %681 = vmatprep.subr.bf16.mxu0 0
      %682 = vmatpush1.bf16.msra.mxu0 %v543
      %683 = vmatprep.subr.bf16.mxu0 0
      %684 = vmatpush1.bf16.msra.mxu0 %v540
      %685 = vmatprep.subr.bf16.mxu0 0
      %686 = vmatpush2.bf16.msra.mxu0 0
      %687 = vmatprep.subr.bf16.mxu0 0
      %688 = vmatpush2.bf16.msra.mxu0 0
      %689 = vmatprep.subr.bf16.mxu0 0
      %690 = vmatpush2.bf16.msra.mxu0 0
      %691 = vmatprep.subr.bf16.mxu0 0
      %692 = vmatpush2.bf16.msra.mxu0 0
      %693 = vmatprep.subr.bf16.mxu0 0
      %694 = vmatpush2.bf16.msra.mxu0 0
      %695 = vmatprep.subr.bf16.mxu0 0
      %696 = vmatpush2.bf16.msra.mxu0 0
      %697 = vmatprep.subr.bf16.mxu0 0
      %698 = vmatpush2.bf16.msra.mxu0 0
      %699 = vmatprep.subr.bf16.mxu0 0
      %700 = vmatpush2.bf16.msra.mxu0 0
      %701 = vmatprep.mubr.bf16.mxu0 0
      %702 = vmatmul.mubr.bf16.gmra.mxu0 %v576
      %v703 = vpop.f32.mrf.mxu0
      %v704 = vpop.f32.mrf.mxu0
      %v705 = vpop.f32.mrf.mxu0
      %v706 = vpop.f32.mrf.mxu0
      %707 = vmatprep.mubr.bf16.mxu0 0
      %708 = vmatmul.mubr.bf16.gmra.mxu0 %v579
      %v709 = vpop.f32.mrf.mxu0
      %v710 = vadd.f32 0.0, %v709
      %v711 = vpop.f32.mrf.mxu0
      %v712 = vpop.f32.mrf.mxu0
      %v713 = vadd.f32 0.0, %v712
      %v714 = vpop.f32.mrf.mxu0
      %715 = vmatprep.mubr.bf16.mxu0 0
      %716 = vmatmul.mubr.bf16.gmra.mxu0 %v582
      %v717 = vpop.f32.mrf.mxu0
      %v718 = vadd.f32 0.0, %v717
      %v719 = vpop.f32.mrf.mxu0
      %v720 = vpop.f32.mrf.mxu0
      %v721 = vadd.f32 0.0, %v720
      %v722 = vpop.f32.mrf.mxu0
      %723 = vmatprep.mubr.bf16.mxu0 0
      %724 = vmatmul.mubr.bf16.gmra.mxu0 %v585
      %v725 = vpop.f32.mrf.mxu0
      %v726 = vadd.f32 0.0, %v725
      %v727 = vpop.f32.mrf.mxu0
      %v728 = vpop.f32.mrf.mxu0
      %v729 = vadd.f32 0.0, %v728
      %v730 = vpop.f32.mrf.mxu0
      %731 = vmatprep.mubr.bf16.mxu0 0
      %732 = vmatmul.mubr.bf16.gmra.mxu0 %v588
      %v733 = vpop.f32.mrf.mxu0
      %v734 = vadd.f32 0.0, %v733
      %v735 = vpop.f32.mrf.mxu0
      %v736 = vpop.f32.mrf.mxu0
      %v737 = vadd.f32 0.0, %v736
      %v738 = vpop.f32.mrf.mxu0
      %739 = vdwg.mxu0
      %v740 = vadd.f32 %v625, %v630
      %v741 = vadd.f32 %v628, %v636
      %v742 = vadd.f32 %v634, %v640
      %v743 = vadd.f32 %v638, %v646
      %v744 = vadd.f32 %v644, %v650
      %v745 = vadd.f32 %v648, %v656
      %v746 = vadd.f32 %v654, %v660
      %v747 = vadd.f32 %v658, %v665
      %v748 = vadd.f32 %v740, %v710
      %v749 = vadd.f32 %v741, %v713
      %v750 = vadd.f32 %v742, %v718
      %v751 = vadd.f32 %v743, %v721
      %v752 = vadd.f32 %v744, %v726
      %v753 = vadd.f32 %v745, %v729
      %v754 = vadd.f32 %v746, %v734
      %v755 = vadd.f32 %v747, %v737
      %v756 = vld [vmem:[%s2] sm:$0x1]
      %v758 = vlaneseq
      %v759 = vshrl.u32 %v758, 7
      %v760 = vsub.s32 0, %v759
      %v761 = vrot.slane %v756, %v760
      %v763 = vadd.f32 %v748, %v761
      %v764 = vadd.f32 %v749, %v761
      %v765 = vadd.f32 %v750, %v761
      %v766 = vadd.f32 %v751, %v761
      %v767 = vadd.f32 %v752, %v761
      %v768 = vadd.f32 %v753, %v761
      %v769 = vadd.f32 %v754, %v761
      %v770 = vadd.f32 %v755, %v761
      %v771 = vpack.c.bf16 %v763, %v763
      %v772 = vpack.c.bf16 %v764, %v764
      %v773 = vpack.c.bf16 %v765, %v765
      %v774 = vpack.c.bf16 %v766, %v766
      %v775 = vpack.c.bf16 %v767, %v767
      %v776 = vpack.c.bf16 %v768, %v768
      %v777 = vpack.c.bf16 %v769, %v769
      %v778 = vpack.c.bf16 %v770, %v770
      %779 = vst [vmem:[%s170] sm:$0xf] %v771
      %780 = vst [vmem:[%s170 + $0x4] sm:$0xf] %v772
      %781 = vst [vmem:[%s170 + $0x8] sm:$0xf] %v773
      %782 = vst [vmem:[%s170 + $0xc] sm:$0xf] %v774
      %783 = vst [vmem:[%s170 + $0x10] sm:$0xf] %v775
      %784 = vst [vmem:[%s170 + $0x14] sm:$0xf] %v776
      %785 = vst [vmem:[%s170 + $0x18] sm:$0xf] %v777
      %786 = vst [vmem:[%s170 + $0x1c] sm:$0xf] %v778
      %p787 = scmp.lt.s32.totalorder %s14, 1
      %s788 = scalar_select %p787, %s14, 1
      %s789 = smul.addr %s788, 8
      %s790 = smul.addr %s789, 4
      %s791 = scalar_lea.vmem %s3, %s790
      // Predicated region
      $region33: #{han_forward.24} parent=31 // pred_check
        %p792 = pneg %p100
      $region34: #{han_forward.24} parent=31 // pred_check_branch
        %794 = sbr.rel (%p792) target = $region36
      $region35: #{han_forward.24} parent=31 // pred_region
        _
      $region36: #{han_forward.24} parent=31 // pred_fallthru
        _
    $region32: #{han_forward.24} parent=5 // pred_fallthru
      _
    %p795 = scmp.le.s32.totalorder 2, %s9
    // Predicated region
    $region37: #{han_forward.24} parent=5 // pred_check
      %p796 = pneg %p795
    $region38: #{han_forward.24} parent=5 // pred_check_branch
      %798 = sbr.rel (%p796) target = $region40
    $region39: #{han_forward.24} parent=5 // pred_region
      %s799 = ssub.s32 %s9, 2
      // Predicated region
      $region41: #{han_forward.24} parent=39 // pred_check
        %p800 = pneg %p106
      $region42: #{han_forward.24} parent=39 // pred_check_branch
        %802 = sbr.rel (%p800) target = $region44
      $region43: #{han_forward.24} parent=39 // pred_region
        %p803 = scmp.lt.s32.totalorder %s15, 1
        %s804 = scalar_select %p803, %s15, 1
        %s805 = smul.addr %s804, 8
        %s806 = smul.addr %s805, 4
        %s807 = scalar_lea.vmem %s3, %s806
      $region44: #{han_forward.24} parent=39 // pred_fallthru
        _
    $region40: #{han_forward.24} parent=5 // pred_fallthru
      _
  $region6: #{han_forward.24} parent=0 // loop_footer
    %s13 = sadd.s32 1, %s9
  $region7: #{han_forward.24} parent=0 // loop_footer_branch
    %8 = sbr.rel target = $region3
  $region8: #{han_forward.24} parent=0 // loop_exit
    _

// kernel: han_forward.25
$region0: #{han_forward.25}
  #allocation0 [shape = 'u32[]', space=smem, size = 0x4, offset = 0x4, fixed_abs, tag = 'smem constant byte address 0x4 - core index']
  #allocation1 [shape = 'u32[144,128]{1,0:T(1,128)}', space=vmem, size = 0x12000, scoped, tag = 'internal scratch']
  %s0 = inlined_call_operand.vmem [shape: bf16[2,16,16,32], index: 0, kind: input, shape index: {}]
  %s1 = inlined_call_operand.vmem [shape: bf16[96,9], index: 1, kind: input, shape index: {}]
  %s2 = inlined_call_operand.vmem [shape: f32[1,3], index: 2, kind: input, shape index: {}]
  %s3 = inlined_call_operand.vmem [shape: f32[2,16,16,3], index: 3, kind: output, shape index: {}]
  %s4 = sld [smem:[#allocation0]]
  $region45: #{han_forward.25} parent=0
    _
  %s6 = ssub.s32 1, %s4
  %s7 = scalar_select 0, %s6, %s4
  loop: start=0, step=1, limit=4
  $region2: #{han_forward.25} parent=0 // loop_pre_header
    _
  $region3: #{han_forward.25} parent=0 // loop_header
    %s9 = sphi 0, %s13
    %p10 = scmp.ge.s32.totalorder %s9, 4
    %s19 = sphi 0, %s21
    %s22 = sphi 0, %s19
    %s23 = sphi 0, %s22
    %s39 = sphi 0, %s23
    %s43 = sphi 0, %s43
    %s45 = sphi 0, %s43
    %s46 = sphi 0, %s45
    %s60 = sphi 0, %s46
    %s64 = sphi 0, %s64
    %s66 = sphi 0, %s64
    %s67 = sphi 0, %s66
    %s81 = sphi 0, %s67
    %s87 = sphi 0, %s89
    %s90 = sphi 0, %s87
    %s91 = sphi 0, %s90
    %s107 = sphi 0, %s91
  $region4: #{han_forward.25} parent=0 // loop_header_branch
    %12 = sbr.rel (%p10) target = $region8
  $region5: #{han_forward.25} parent=0 // loop_body
    %s14 = ssub.s32 %s9, 1
    %s15 = ssub.s32 %s9, 2
    %s16 = sadd.s32 %s9, 1
    %s17 = ssub.s32 %s9, %s16
    %p18 = scmp.eq.s32.totalorder %s17, 0
    %s20 = sadd.s32 %s19, 1
    %s21 = scalar_select %p18, %s19, %s20
    %p24 = pneg %p18
    %p25 = scmp.eq.s32.totalorder %s9, 1
    %p26 = por %p24, %p25
    %p27 = scmp.ne.s32.totalorder %s19, %s22
    %p28 = scmp.eq.s32.totalorder %s9, 0
    %p29 = por %p27, %p28
    %p30 = scmp.ne.s32.totalorder %s19, %s22
    %p31 = scmp.eq.s32.totalorder %s14, 1
    %p32 = por %p30, %p31
    %p33 = scmp.ne.s32.totalorder %s22, %s23
    %p34 = scmp.eq.s32.totalorder %s14, 0
    %p35 = por %p33, %p34
    %p36 = scmp.ne.s32.totalorder %s22, %s23
    %p37 = scmp.eq.s32.totalorder %s15, 1
    %p38 = por %p36, %p37
    %p40 = scmp.ne.s32.totalorder %s23, %s39
    %p41 = scmp.eq.s32.totalorder %s15, 0
    %p42 = por %p40, %p41
    %s44 = sadd.s32 %s43, 1
    %p47 = scmp.eq.s32.totalorder %s9, 1
    %p48 = scmp.ne.s32.totalorder %s43, %s45
    %p49 = scmp.eq.s32.totalorder %s9, 0
    %p50 = por %p48, %p49
    %p51 = scmp.ne.s32.totalorder %s43, %s45
    %p52 = scmp.eq.s32.totalorder %s14, 1
    %p53 = por %p51, %p52
    %p54 = scmp.ne.s32.totalorder %s45, %s46
    %p55 = scmp.eq.s32.totalorder %s14, 0
    %p56 = por %p54, %p55
    %p57 = scmp.ne.s32.totalorder %s45, %s46
    %p58 = scmp.eq.s32.totalorder %s15, 1
    %p59 = por %p57, %p58
    %p61 = scmp.ne.s32.totalorder %s46, %s60
    %p62 = scmp.eq.s32.totalorder %s15, 0
    %p63 = por %p61, %p62
    %s65 = sadd.s32 %s64, 1
    %p68 = scmp.eq.s32.totalorder %s9, 1
    %p69 = scmp.ne.s32.totalorder %s64, %s66
    %p70 = scmp.eq.s32.totalorder %s9, 0
    %p71 = por %p69, %p70
    %p72 = scmp.ne.s32.totalorder %s64, %s66
    %p73 = scmp.eq.s32.totalorder %s14, 1
    %p74 = por %p72, %p73
    %p75 = scmp.ne.s32.totalorder %s66, %s67
    %p76 = scmp.eq.s32.totalorder %s14, 0
    %p77 = por %p75, %p76
    %p78 = scmp.ne.s32.totalorder %s66, %s67
    %p79 = scmp.eq.s32.totalorder %s15, 1
    %p80 = por %p78, %p79
    %p82 = scmp.ne.s32.totalorder %s67, %s81
    %p83 = scmp.eq.s32.totalorder %s15, 0
    %p84 = por %p82, %p83
    %s85 = ssub.s32 %s9, %s16
    %p86 = scmp.eq.s32.totalorder %s85, 0
    %s88 = sadd.s32 %s87, 1
    %s89 = scalar_select %p86, %s87, %s88
    %p92 = pneg %p86
    %p93 = scmp.eq.s32.totalorder %s9, 1
    %p94 = por %p92, %p93
    %p95 = scmp.ne.s32.totalorder %s87, %s90
    %p96 = scmp.eq.s32.totalorder %s9, 0
    %p97 = por %p95, %p96
    %p98 = scmp.ne.s32.totalorder %s87, %s90
    %p99 = scmp.eq.s32.totalorder %s14, 1
    %p100 = por %p98, %p99
    %p101 = scmp.ne.s32.totalorder %s90, %s91
    %p102 = scmp.eq.s32.totalorder %s14, 0
    %p103 = por %p101, %p102
    %p104 = scmp.ne.s32.totalorder %s90, %s91
    %p105 = scmp.eq.s32.totalorder %s15, 1
    %p106 = por %p104, %p105
    %p108 = scmp.ne.s32.totalorder %s91, %s107
    %p109 = scmp.eq.s32.totalorder %s15, 0
    %p110 = por %p108, %p109
    %p111 = scmp.le.s32.totalorder 1, %s9
    %p112 = scmp.lt.s32.totalorder %s9, 3
    %p113 = pnand %p111, %p112
    %p114 = pneg %p113
    // Predicated region
    $region9: #{han_forward.25} parent=5 // pred_check
      _
    $region10: #{han_forward.25} parent=5 // pred_check_branch
      %116 = sbr.rel (%p113) target = $region12
    $region11: #{han_forward.25} parent=5 // pred_region
      %s117 = ssub.s32 %s9, 1
      // Predicated region
      $region13: #{han_forward.25} parent=11 // pred_check
        %p118 = pneg %p56
      $region14: #{han_forward.25} parent=11 // pred_check_branch
        %120 = sbr.rel (%p118) target = $region16
      $region15: #{han_forward.25} parent=11 // pred_region
        _
      $region16: #{han_forward.25} parent=11 // pred_fallthru
        _
      // Predicated region
      $region17: #{han_forward.25} parent=11 // pred_check
        %p121 = pneg %p77
      $region18: #{han_forward.25} parent=11 // pred_check_branch
        %123 = sbr.rel (%p121) target = $region20
      $region19: #{han_forward.25} parent=11 // pred_region
        _
      $region20: #{han_forward.25} parent=11 // pred_fallthru
        _
    $region12: #{han_forward.25} parent=5 // pred_fallthru
      _
    %p124 = scmp.lt.s32.totalorder %s9, 2
    // Predicated region
    $region21: #{han_forward.25} parent=5 // pred_check
      %p125 = pneg %p124
    $region22: #{han_forward.25} parent=5 // pred_check_branch
      %127 = sbr.rel (%p125) target = $region24
    $region23: #{han_forward.25} parent=5 // pred_region
      // Predicated region
      $region25: #{han_forward.25} parent=23 // pred_check
        %p128 = pneg %p29
      $region26: #{han_forward.25} parent=23 // pred_check_branch
        %130 = sbr.rel (%p128) target = $region28
      $region27: #{han_forward.25} parent=23 // pred_region
        %p131 = scmp.lt.s32.totalorder %s9, 1
        %s132 = scalar_select %p131, %s9, 1
        %s133 = smul.addr %s132, 32
        %s134 = smul.addr %s133, 4
        %s135 = scalar_lea.vmem %s0, %s134
      $region28: #{han_forward.25} parent=23 // pred_fallthru
        _
    $region24: #{han_forward.25} parent=5 // pred_fallthru
      _
    %p136 = scmp.le.s32.totalorder 1, %s9
    %p137 = scmp.lt.s32.totalorder %s9, 3
    %p138 = pnand %p136, %p137
    %p139 = pneg %p138
    // Predicated region
    $region29: #{han_forward.25} parent=5 // pred_check
      _
    $region30: #{han_forward.25} parent=5 // pred_check_branch
      %141 = sbr.rel (%p138) target = $region32
    $region31: #{han_forward.25} parent=5 // pred_region
      %s142 = ssub.s32 %s9, 1
      %p143 = scmp.lt.s32.totalorder %s14, 1
      %s144 = scalar_select %p143, %s14, 1
      %s145 = smul.addr %s144, 32
      %s146 = smul.addr %s145, 4
      %s147 = scalar_lea.vmem %s0, %s146
      %p148 = pneg %p35
      %p149 = pneg %p32
      %p150 = pneg %p56
      %p151 = pneg %p53
      %p152 = pneg %p77
      %p153 = pneg %p74
      %p154 = pneg %p103
      %p155 = pneg %p100
      %p156 = scmp.lt.s32.totalorder %s14, 1
      %s157 = scalar_select %p156, %s14, 1
      %s158 = smul.addr %s157, 32
      %s159 = smul.addr %s158, 8
      %s160 = scalar_lea.vmem %s3, %s159
      %p161 = scmp.lt.s32.totalorder %s14, 1
      %s162 = scalar_select %p161, %s14, 1
      %s163 = smul.addr %s162, 32
      %s164 = smul.addr %s163, 4
      %s165 = scalar_lea.vmem %s0, %s164
      %p166 = scmp.lt.s32.totalorder %s14, 1
      %s167 = scalar_select %p166, %s14, 1
      %s168 = smul.addr %s167, 32
      %s169 = smul.addr %s168, 8
      %s170 = scalar_lea.vmem %s3, %s169
      %v172 = vld [vmem:[%s165] sm:$0xf]
      %v173 = vld [vmem:[%s165 + $0x4] sm:$0xf]
      %v174 = vld [vmem:[%s165 + $0x8] sm:$0xf]
      %v175 = vld [vmem:[%s165 + $0xc] sm:$0xf]
      %v176 = vld [vmem:[%s165 + $0x10] sm:$0xf]
      %v177 = vld [vmem:[%s165 + $0x14] sm:$0xf]
      %v178 = vld [vmem:[%s165 + $0x18] sm:$0xf]
      %v179 = vld [vmem:[%s165 + $0x1c] sm:$0xf]
      %v180 = vld [vmem:[%s165 + $0x20] sm:$0xf]
      %v181 = vld [vmem:[%s165 + $0x24] sm:$0xf]
      %v182 = vld [vmem:[%s165 + $0x28] sm:$0xf]
      %v183 = vld [vmem:[%s165 + $0x2c] sm:$0xf]
      %v184 = vld [vmem:[%s165 + $0x30] sm:$0xf]
      %v185 = vld [vmem:[%s165 + $0x34] sm:$0xf]
      %v186 = vld [vmem:[%s165 + $0x38] sm:$0xf]
      %v187 = vld [vmem:[%s165 + $0x3c] sm:$0xf]
      %v188 = vld [vmem:[%s165 + $0x40] sm:$0xf]
      %v189 = vld [vmem:[%s165 + $0x44] sm:$0xf]
      %v190 = vld [vmem:[%s165 + $0x48] sm:$0xf]
      %v191 = vld [vmem:[%s165 + $0x4c] sm:$0xf]
      %v192 = vld [vmem:[%s165 + $0x50] sm:$0xf]
      %v193 = vld [vmem:[%s165 + $0x54] sm:$0xf]
      %v194 = vld [vmem:[%s165 + $0x58] sm:$0xf]
      %v195 = vld [vmem:[%s165 + $0x5c] sm:$0xf]
      %v196 = vld [vmem:[%s165 + $0x60] sm:$0xf]
      %v197 = vld [vmem:[%s165 + $0x64] sm:$0xf]
      %v198 = vld [vmem:[%s165 + $0x68] sm:$0xf]
      %v199 = vld [vmem:[%s165 + $0x6c] sm:$0xf]
      %v200 = vld [vmem:[%s165 + $0x70] sm:$0xf]
      %v201 = vld [vmem:[%s165 + $0x74] sm:$0xf]
      %v202 = vld [vmem:[%s165 + $0x78] sm:$0xf]
      %v203 = vld [vmem:[%s165 + $0x7c] sm:$0xf]
      %v204 = vld [vmem:[%s1] sm:$0xf]
      %v205 = vld [vmem:[%s1 + $0x4] sm:$0xf]
      %v206 = vld [vmem:[%s1 + $0x8] sm:$0xf]
      %v207 = vld [vmem:[%s1 + $0xc] sm:$0xf]
      %v208 = vld [vmem:[%s1 + $0x10] sm:$0xf]
      %v209 = vld [vmem:[%s1 + $0x14] sm:$0xf]
      %v210 = vld [vmem:[%s1 + $0x18] sm:$0xf]
      %v211 = vld [vmem:[%s1 + $0x1c] sm:$0xf]
      %v212 = vld [vmem:[%s1 + $0x20] sm:$0xf]
      %v213 = vld [vmem:[%s1 + $0x24] sm:$0xf]
      %v214 = vld [vmem:[%s1 + $0x28] sm:$0xf]
      %v215 = vld [vmem:[%s1 + $0x2c] sm:$0xf]
      %v248 = vunpack.c.l.b16 %v172
      %v249 = vunpack.c.l.b16 %v173
      %v250 = vunpack.c.l.b16 %v174
      %v251 = vunpack.c.l.b16 %v175
      %v252 = vunpack.c.l.b16 %v176
      %v253 = vunpack.c.l.b16 %v177
      %v254 = vunpack.c.l.b16 %v178
      %v255 = vunpack.c.l.b16 %v179
      %v256 = vunpack.c.l.b16 %v180
      %v257 = vunpack.c.l.b16 %v181
      %v258 = vunpack.c.l.b16 %v182
      %v259 = vunpack.c.l.b16 %v183
      %v260 = vunpack.c.l.b16 %v184
      %v261 = vunpack.c.l.b16 %v185
      %v262 = vunpack.c.l.b16 %v186
      %v263 = vunpack.c.l.b16 %v187
      %v264 = vunpack.c.l.b16 %v188
      %v265 = vunpack.c.l.b16 %v189
      %v266 = vunpack.c.l.b16 %v190
      %v267 = vunpack.c.l.b16 %v191
      %v268 = vunpack.c.l.b16 %v192
      %v269 = vunpack.c.l.b16 %v193
      %v270 = vunpack.c.l.b16 %v194
      %v271 = vunpack.c.l.b16 %v195
      %v272 = vunpack.c.l.b16 %v196
      %v273 = vunpack.c.l.b16 %v197
      %v274 = vunpack.c.l.b16 %v198
      %v275 = vunpack.c.l.b16 %v199
      %v276 = vunpack.c.l.b16 %v200
      %v277 = vunpack.c.l.b16 %v201
      %v278 = vunpack.c.l.b16 %v202
      %v279 = vunpack.c.l.b16 %v203
      %v280 = vpack.c.b16 %v249, %v248
      %v281 = vpack.c.b16 %v251, %v250
      %v282 = vpack.c.b16 %v253, %v252
      %v283 = vpack.c.b16 %v255, %v254
      %v284 = vpack.c.b16 %v257, %v256
      %v285 = vpack.c.b16 %v259, %v258
      %v286 = vpack.c.b16 %v261, %v260
      %v287 = vpack.c.b16 %v263, %v262
      %v288 = vpack.c.b16 %v265, %v264
      %v289 = vpack.c.b16 %v267, %v266
      %v290 = vpack.c.b16 %v269, %v268
      %v291 = vpack.c.b16 %v271, %v270
      %v292 = vpack.c.b16 %v273, %v272
      %v293 = vpack.c.b16 %v275, %v274
      %v294 = vpack.c.b16 %v277, %v276
      %v295 = vpack.c.b16 %v279, %v278
      %v297 = vshrl.u32 0, 16
      %v299 = vrot.slane %v297, 7
      %v300 = vshll.u32 0, 16
      %v302 = vor.u32 %v299, %v300
      %v304 = vshrl.u32 %v280, 16
      %v306 = vrot.slane %v304, 7
      %v307 = vshll.u32 %v280, 16
      %v309 = vor.u32 %v306, %v307
      %v311 = vshrl.u32 %v281, 16
      %v313 = vrot.slane %v311, 7
      %v314 = vshll.u32 %v281, 16
      %v316 = vor.u32 %v313, %v314
      %v318 = vshrl.u32 %v282, 16
      %v320 = vrot.slane %v318, 7
      %v321 = vshll.u32 %v282, 16
      %v323 = vor.u32 %v320, %v321
      %v325 = vshrl.u32 %v283, 16
      %v327 = vrot.slane %v325, 7
      %v328 = vshll.u32 %v283, 16
      %v330 = vor.u32 %v327, %v328
      %v332 = vshrl.u32 %v284, 16
      %v334 = vrot.slane %v332, 7
      %v335 = vshll.u32 %v284, 16
      %v337 = vor.u32 %v334, %v335
      %v339 = vshrl.u32 %v285, 16
      %v341 = vrot.slane %v339, 7
      %v342 = vshll.u32 %v285, 16
      %v344 = vor.u32 %v341, %v342
      %v346 = vshrl.u32 %v286, 16
      %v348 = vrot.slane %v346, 7
      %v349 = vshll.u32 %v286, 16
      %v351 = vor.u32 %v348, %v349
      %v353 = vshrl.u32 %v287, 16
      %v355 = vrot.slane %v353, 7
      %v356 = vshll.u32 %v287, 16
      %v358 = vor.u32 %v355, %v356
      %v360 = vshrl.u32 %v288, 16
      %v362 = vrot.slane %v360, 7
      %v363 = vshll.u32 %v288, 16
      %v365 = vor.u32 %v362, %v363
      %v367 = vshrl.u32 %v289, 16
      %v369 = vrot.slane %v367, 7
      %v370 = vshll.u32 %v289, 16
      %v372 = vor.u32 %v369, %v370
      %v374 = vshrl.u32 %v290, 16
      %v376 = vrot.slane %v374, 7
      %v377 = vshll.u32 %v290, 16
      %v379 = vor.u32 %v376, %v377
      %v381 = vshrl.u32 %v291, 16
      %v383 = vrot.slane %v381, 7
      %v384 = vshll.u32 %v291, 16
      %v386 = vor.u32 %v383, %v384
      %v388 = vshrl.u32 %v292, 16
      %v390 = vrot.slane %v388, 7
      %v391 = vshll.u32 %v292, 16
      %v393 = vor.u32 %v390, %v391
      %v395 = vshrl.u32 %v293, 16
      %v397 = vrot.slane %v395, 7
      %v398 = vshll.u32 %v293, 16
      %v400 = vor.u32 %v397, %v398
      %v402 = vshrl.u32 %v294, 16
      %v404 = vrot.slane %v402, 7
      %v405 = vshll.u32 %v294, 16
      %v407 = vor.u32 %v404, %v405
      %v409 = vshrl.u32 %v295, 16
      %v411 = vrot.slane %v409, 7
      %v412 = vshll.u32 %v295, 16
      %v414 = vor.u32 %v411, %v412
      %vm449 = vcmask 1040384
      %vm450 = vsmask.f32 256
      %vm451 = vmand %vm449, %vm450
      %v452 = vsel %vm451, 0, %v302
      %v453 = vsel %vm451, 0, %v309
      %v454 = vsel %vm451, 0, %v316
      %v455 = vsel %vm451, 0, %v323
      %v456 = vsel %vm451, 0, %v330
      %v457 = vsel %vm451, 0, %v337
      %v458 = vsel %vm451, 0, %v344
      %v459 = vsel %vm451, 0, %v351
      %v460 = vsel %vm451, 0, %v358
      %v461 = vsel %vm451, 0, %v365
      %v462 = vsel %vm451, 0, %v372
      %v463 = vsel %vm451, 0, %v379
      %v464 = vsel %vm451, 0, %v386
      %v465 = vsel %vm451, 0, %v393
      %v466 = vsel %vm451, 0, %v400
      %v467 = vsel %vm451, 0, %v407
      %v468 = vsel %vm451, 0, %v414
      %v469 = vsel %vm451, %v299, 0
      %v470 = vsel %vm451, %v306, 0
      %v471 = vsel %vm451, %v313, 0
      %v472 = vsel %vm451, %v320, 0
      %v473 = vsel %vm451, %v327, 0
      %v474 = vsel %vm451, %v334, 0
      %v475 = vsel %vm451, %v341, 0
      %v476 = vsel %vm451, %v348, 0
      %v477 = vsel %vm451, %v355, 0
      %v478 = vsel %vm451, %v362, 0
      %v479 = vsel %vm451, %v369, 0
      %v480 = vsel %vm451, %v376, 0
      %v481 = vsel %vm451, %v383, 0
      %v482 = vsel %vm451, %v390, 0
      %v483 = vsel %vm451, %v397, 0
      %v484 = vsel %vm451, %v404, 0
      %v485 = vsel %vm451, %v411, 0
      %vm486 = vsmask.f32 7424
      %v488 = vshrl.u32 %v452, 16
      %v490 = vshll.u32 %v452, 16
      %v492 = vrot.slane %v490, 1
      %v493 = vor.u32 %v488, %v492
      %v495 = vshll.u32 %v469, 16
      %v497 = vrot.slane %v495, 1
      %v498 = vsel %vm486, %v493, %v497
      %v500 = vshrl.u32 %v453, 16
      %v502 = vshll.u32 %v453, 16
      %v504 = vrot.slane %v502, 1
      %v505 = vor.u32 %v500, %v504
      %v507 = vshll.u32 %v470, 16
      %v509 = vrot.slane %v507, 1
      %v510 = vsel %vm486, %v505, %v509
      %v512 = vshrl.u32 %v454, 16
      %v514 = vshll.u32 %v454, 16
      %v516 = vrot.slane %v514, 1
      %v517 = vor.u32 %v512, %v516
      %v519 = vshll.u32 %v471, 16
      %v521 = vrot.slane %v519, 1
      %v522 = vsel %vm486, %v517, %v521
      %v524 = vshrl.u32 %v455, 16
      %v526 = vshll.u32 %v455, 16
      %v528 = vrot.slane %v526, 1
      %v529 = vor.u32 %v524, %v528
      %v531 = vshll.u32 %v472, 16
      %v533 = vrot.slane %v531, 1
      %v534 = vsel %vm486, %v529, %v533
      %v536 = vshrl.u32 %v456, 16
      %v538 = vshll.u32 %v456, 16
      %v540 = vrot.slane %v538, 1
      %v541 = vor.u32 %v536, %v540
      %v543 = vshll.u32 %v473, 16
      %v545 = vrot.slane %v543, 1
      %v546 = vsel %vm486, %v541, %v545
      %v548 = vshrl.u32 %v457, 16
      %v550 = vshll.u32 %v457, 16
      %v552 = vrot.slane %v550, 1
      %v553 = vor.u32 %v548, %v552
      %v555 = vshll.u32 %v474, 16
      %v557 = vrot.slane %v555, 1
      %v558 = vsel %vm486, %v553, %v557
      %v560 = vshrl.u32 %v458, 16
      %v562 = vshll.u32 %v458, 16
      %v564 = vrot.slane %v562, 1
      %v565 = vor.u32 %v560, %v564
      %v567 = vshll.u32 %v475, 16
      %v569 = vrot.slane %v567, 1
      %v570 = vsel %vm486, %v565, %v569
      %v572 = vshrl.u32 %v459, 16
      %v574 = vshll.u32 %v459, 16
      %v576 = vrot.slane %v574, 1
      %v577 = vor.u32 %v572, %v576
      %v579 = vshll.u32 %v476, 16
      %v581 = vrot.slane %v579, 1
      %v582 = vsel %vm486, %v577, %v581
      %v584 = vshrl.u32 %v460, 16
      %v586 = vshll.u32 %v460, 16
      %v588 = vrot.slane %v586, 1
      %v589 = vor.u32 %v584, %v588
      %v591 = vshll.u32 %v477, 16
      %v593 = vrot.slane %v591, 1
      %v594 = vsel %vm486, %v589, %v593
      %v596 = vshrl.u32 %v461, 16
      %v598 = vshll.u32 %v461, 16
      %v600 = vrot.slane %v598, 1
      %v601 = vor.u32 %v596, %v600
      %v603 = vshll.u32 %v478, 16
      %v605 = vrot.slane %v603, 1
      %v606 = vsel %vm486, %v601, %v605
      %v608 = vshrl.u32 %v462, 16
      %v610 = vshll.u32 %v462, 16
      %v612 = vrot.slane %v610, 1
      %v613 = vor.u32 %v608, %v612
      %v615 = vshll.u32 %v479, 16
      %v617 = vrot.slane %v615, 1
      %v618 = vsel %vm486, %v613, %v617
      %v620 = vshrl.u32 %v463, 16
      %v622 = vshll.u32 %v463, 16
      %v624 = vrot.slane %v622, 1
      %v625 = vor.u32 %v620, %v624
      %v627 = vshll.u32 %v480, 16
      %v629 = vrot.slane %v627, 1
      %v630 = vsel %vm486, %v625, %v629
      %v632 = vshrl.u32 %v464, 16
      %v634 = vshll.u32 %v464, 16
      %v636 = vrot.slane %v634, 1
      %v637 = vor.u32 %v632, %v636
      %v639 = vshll.u32 %v481, 16
      %v641 = vrot.slane %v639, 1
      %v642 = vsel %vm486, %v637, %v641
      %v644 = vshrl.u32 %v465, 16
      %v646 = vshll.u32 %v465, 16
      %v648 = vrot.slane %v646, 1
      %v649 = vor.u32 %v644, %v648
      %v651 = vshll.u32 %v482, 16
      %v653 = vrot.slane %v651, 1
      %v654 = vsel %vm486, %v649, %v653
      %v656 = vshrl.u32 %v466, 16
      %v658 = vshll.u32 %v466, 16
      %v660 = vrot.slane %v658, 1
      %v661 = vor.u32 %v656, %v660
      %v663 = vshll.u32 %v483, 16
      %v665 = vrot.slane %v663, 1
      %v666 = vsel %vm486, %v661, %v665
      %v668 = vshrl.u32 %v467, 16
      %v670 = vshll.u32 %v467, 16
      %v672 = vrot.slane %v670, 1
      %v673 = vor.u32 %v668, %v672
      %v675 = vshll.u32 %v484, 16
      %v677 = vrot.slane %v675, 1
      %v678 = vsel %vm486, %v673, %v677
      %v680 = vshrl.u32 %v468, 16
      %v682 = vshll.u32 %v468, 16
      %v684 = vrot.slane %v682, 1
      %v685 = vor.u32 %v680, %v684
      %v687 = vshll.u32 %v485, 16
      %v689 = vrot.slane %v687, 1
      %v690 = vsel %vm486, %v685, %v689
      %691 = vrot.lane.b32.xlu0 %v498, 32
      %v692 = vpop.permute.xlu0 %691
      %693 = vrot.lane.b32.xlu0 %v510, 32
      %v694 = vpop.permute.xlu0 %693
      %695 = vrot.lane.b32.xlu0 %v522, 32
      %v696 = vpop.permute.xlu0 %695
      %697 = vrot.lane.b32.xlu0 %v534, 32
      %v698 = vpop.permute.xlu0 %697
      %699 = vrot.lane.b32.xlu0 %v546, 32
      %v700 = vpop.permute.xlu0 %699
      %701 = vrot.lane.b32.xlu0 %v558, 32
      %v702 = vpop.permute.xlu0 %701
      %703 = vrot.lane.b32.xlu0 %v570, 32
      %v704 = vpop.permute.xlu0 %703
      %705 = vrot.lane.b32.xlu0 %v582, 32
      %v706 = vpop.permute.xlu0 %705
      %707 = vrot.lane.b32.xlu0 %v594, 32
      %v708 = vpop.permute.xlu0 %707
      %709 = vrot.lane.b32.xlu0 %v606, 32
      %v710 = vpop.permute.xlu0 %709
      %711 = vrot.lane.b32.xlu0 %v618, 32
      %v712 = vpop.permute.xlu0 %711
      %713 = vrot.lane.b32.xlu0 %v630, 32
      %v714 = vpop.permute.xlu0 %713
      %715 = vrot.lane.b32.xlu0 %v642, 32
      %v716 = vpop.permute.xlu0 %715
      %717 = vrot.lane.b32.xlu0 %v654, 32
      %v718 = vpop.permute.xlu0 %717
      %719 = vrot.lane.b32.xlu0 %v666, 32
      %v720 = vpop.permute.xlu0 %719
      %721 = vrot.lane.b32.xlu0 %v678, 32
      %v722 = vpop.permute.xlu0 %721
      %723 = vrot.lane.b32.xlu0 %v690, 32
      %v724 = vpop.permute.xlu0 %723
      %vm759 = vcmask 1046528
      %v760 = vrot.slane %v452, 1
      %v761 = vrot.slane %v469, 1
      %v762 = vsel %vm759, %v760, %v761
      %v763 = vrot.slane %v453, 1
      %v764 = vrot.slane %v470, 1
      %v765 = vsel %vm759, %v763, %v764
      %v766 = vrot.slane %v454, 1
      %v767 = vrot.slane %v471, 1
      %v768 = vsel %vm759, %v766, %v767
      %v769 = vrot.slane %v455, 1
      %v770 = vrot.slane %v472, 1
      %v771 = vsel %vm759, %v769, %v770
      %v772 = vrot.slane %v456, 1
      %v773 = vrot.slane %v473, 1
      %v774 = vsel %vm759, %v772, %v773
      %v775 = vrot.slane %v457, 1
      %v776 = vrot.slane %v474, 1
      %v777 = vsel %vm759, %v775, %v776
      %v778 = vrot.slane %v458, 1
      %v779 = vrot.slane %v475, 1
      %v780 = vsel %vm759, %v778, %v779
      %v781 = vrot.slane %v459, 1
      %v782 = vrot.slane %v476, 1
      %v783 = vsel %vm759, %v781, %v782
      %v784 = vrot.slane %v460, 1
      %v785 = vrot.slane %v477, 1
      %v786 = vsel %vm759, %v784, %v785
      %v787 = vrot.slane %v461, 1
      %v788 = vrot.slane %v478, 1
      %v789 = vsel %vm759, %v787, %v788
      %v790 = vrot.slane %v462, 1
      %v791 = vrot.slane %v479, 1
      %v792 = vsel %vm759, %v790, %v791
      %v793 = vrot.slane %v463, 1
      %v794 = vrot.slane %v480, 1
      %v795 = vsel %vm759, %v793, %v794
      %v796 = vrot.slane %v464, 1
      %v797 = vrot.slane %v481, 1
      %v798 = vsel %vm759, %v796, %v797
      %v799 = vrot.slane %v465, 1
      %v800 = vrot.slane %v482, 1
      %v801 = vsel %vm759, %v799, %v800
      %v802 = vrot.slane %v466, 1
      %v803 = vrot.slane %v483, 1
      %v804 = vsel %vm759, %v802, %v803
      %v805 = vrot.slane %v467, 1
      %v806 = vrot.slane %v484, 1
      %v807 = vsel %vm759, %v805, %v806
      %v808 = vrot.slane %v468, 1
      %v809 = vrot.slane %v485, 1
      %v810 = vsel %vm759, %v808, %v809
      %811 = vrot.lane.b32.xlu0 %v762, 64
      %v812 = vpop.permute.xlu0 %811
      %813 = vrot.lane.b32.xlu0 %v765, 64
      %v814 = vpop.permute.xlu0 %813
      %815 = vrot.lane.b32.xlu0 %v768, 64
      %v816 = vpop.permute.xlu0 %815
      %817 = vrot.lane.b32.xlu0 %v771, 64
      %v818 = vpop.permute.xlu0 %817
      %819 = vrot.lane.b32.xlu0 %v774, 64
      %v820 = vpop.permute.xlu0 %819
      %821 = vrot.lane.b32.xlu0 %v777, 64
      %v822 = vpop.permute.xlu0 %821
      %823 = vrot.lane.b32.xlu0 %v780, 64
      %v824 = vpop.permute.xlu0 %823
      %825 = vrot.lane.b32.xlu0 %v783, 64
      %v826 = vpop.permute.xlu0 %825
      %827 = vrot.lane.b32.xlu0 %v786, 64
      %v828 = vpop.permute.xlu0 %827
      %829 = vrot.lane.b32.xlu0 %v789, 64
      %v830 = vpop.permute.xlu0 %829
      %831 = vrot.lane.b32.xlu0 %v792, 64
      %v832 = vpop.permute.xlu0 %831
      %833 = vrot.lane.b32.xlu0 %v795, 64
      %v834 = vpop.permute.xlu0 %833
      %835 = vrot.lane.b32.xlu0 %v798, 64
      %v836 = vpop.permute.xlu0 %835
      %837 = vrot.lane.b32.xlu0 %v801, 64
      %v838 = vpop.permute.xlu0 %837
      %839 = vrot.lane.b32.xlu0 %v804, 64
      %v840 = vpop.permute.xlu0 %839
      %841 = vrot.lane.b32.xlu0 %v807, 64
      %v842 = vpop.permute.xlu0 %841
      %843 = vrot.lane.b32.xlu0 %v810, 64
      %v844 = vpop.permute.xlu0 %843
      %vm845 = vcmask 261120
      %v847 = vsel %vm845, %v452, %v692
      %v849 = vsel %vm845, %v453, %v694
      %v851 = vsel %vm845, %v454, %v696
      %v853 = vsel %vm845, %v455, %v698
      %v855 = vsel %vm845, %v456, %v700
      %v857 = vsel %vm845, %v457, %v702
      %v859 = vsel %vm845, %v458, %v704
      %v861 = vsel %vm845, %v459, %v706
      %v863 = vsel %vm845, %v460, %v708
      %v865 = vsel %vm845, %v461, %v710
      %v867 = vsel %vm845, %v462, %v712
      %v869 = vsel %vm845, %v463, %v714
      %v871 = vsel %vm845, %v464, %v716
      %v873 = vsel %vm845, %v465, %v718
      %v875 = vsel %vm845, %v466, %v720
      %v877 = vsel %vm845, %v467, %v722
      %v879 = vsel %vm845, %v468, %v724
      %vm880 = vcmask 523264
      %v882 = vsel %vm880, %v847, %v812
      %v884 = vsel %vm880, %v849, %v814
      %v886 = vsel %vm880, %v851, %v816
      %v888 = vsel %vm880, %v853, %v818
      %v890 = vsel %vm880, %v855, %v820
      %v892 = vsel %vm880, %v857, %v822
      %v894 = vsel %vm880, %v859, %v824
      %v896 = vsel %vm880, %v861, %v826
      %v898 = vsel %vm880, %v863, %v828
      %v900 = vsel %vm880, %v865, %v830
      %v902 = vsel %vm880, %v867, %v832
      %v904 = vsel %vm880, %v869, %v834
      %v906 = vsel %vm880, %v871, %v836
      %v908 = vsel %vm880, %v873, %v838
      %v910 = vsel %vm880, %v875, %v840
      %v912 = vsel %vm880, %v877, %v842
      %v914 = vsel %vm880, %v879, %v844
      %v927 = vunpack.c.l.b16 %v204
      %v928 = vunpack.c.l.b16 %v205
      %v929 = vunpack.c.l.b16 %v206
      %v930 = vunpack.c.l.b16 %v207
      %v931 = vunpack.c.l.b16 %v208
      %v932 = vunpack.c.l.b16 %v209
      %v933 = vunpack.c.l.b16 %v210
      %v934 = vunpack.c.l.b16 %v211
      %v935 = vunpack.c.l.b16 %v212
      %v936 = vunpack.c.l.b16 %v213
      %v937 = vunpack.c.l.b16 %v214
      %v938 = vunpack.c.l.b16 %v215
      %v939 = vpack.c.b16 %v928, %v927
      %v940 = vpack.c.b16 %v930, %v929
      %v941 = vpack.c.b16 %v932, %v931
      %v942 = vpack.c.b16 %v934, %v933
      %v943 = vpack.c.b16 %v936, %v935
      %v944 = vpack.c.b16 %v938, %v937
      %vm951 = vcmask 785408
      %v952 = vsel %vm951, %v882, 0
      %v954 = vsel %vm951, %v884, 0
      %v956 = vsel %vm951, %v886, 0
      %v958 = vsel %vm951, %v888, 0
      %v960 = vsel %vm951, %v890, 0
      %v962 = vsel %vm951, %v892, 0
      %v964 = vsel %vm951, %v894, 0
      %v966 = vsel %vm951, %v896, 0
      %v968 = vsel %vm951, %v898, 0
      %v970 = vsel %vm951, %v900, 0
      %v972 = vsel %vm951, %v902, 0
      %v974 = vsel %vm951, %v904, 0
      %v976 = vsel %vm951, %v906, 0
      %v978 = vsel %vm951, %v908, 0
      %v980 = vsel %vm951, %v910, 0
      %v982 = vsel %vm951, %v912, 0
      %v984 = vsel %vm951, %v914, 0
      %986 = vmatprep.subr.bf16.mxu0 0
      %987 = vmatpush1.bf16.msra.mxu0 0
      %988 = vmatprep.subr.bf16.mxu0 0
      %989 = vmatpush1.bf16.msra.mxu0 0
      %990 = vmatprep.subr.bf16.mxu0 0
      %991 = vmatpush1.bf16.msra.mxu0 %v944
      %992 = vmatprep.subr.bf16.mxu0 0
      %993 = vmatpush1.bf16.msra.mxu0 %v943
      %994 = vmatprep.subr.bf16.mxu0 0
      %995 = vmatpush1.bf16.msra.mxu0 %v942
      %996 = vmatprep.subr.bf16.mxu0 0
      %997 = vmatpush1.bf16.msra.mxu0 %v941
      %998 = vmatprep.subr.bf16.mxu0 0
      %999 = vmatpush1.bf16.msra.mxu0 %v940
      %1000 = vmatprep.subr.bf16.mxu0 0
      %1001 = vmatpush1.bf16.msra.mxu0 %v939
      %1002 = vmatprep.subr.bf16.mxu0 0
      %1003 = vmatpush2.bf16.msra.mxu0 0
      %1004 = vmatprep.subr.bf16.mxu0 0
      %1005 = vmatpush2.bf16.msra.mxu0 0
      %1006 = vmatprep.subr.bf16.mxu0 0
      %1007 = vmatpush2.bf16.msra.mxu0 0
      %1008 = vmatprep.subr.bf16.mxu0 0
      %1009 = vmatpush2.bf16.msra.mxu0 0
      %1010 = vmatprep.subr.bf16.mxu0 0
      %1011 = vmatpush2.bf16.msra.mxu0 0
      %1012 = vmatprep.subr.bf16.mxu0 0
      %1013 = vmatpush2.bf16.msra.mxu0 0
      %1014 = vmatprep.subr.bf16.mxu0 0
      %1015 = vmatpush2.bf16.msra.mxu0 0
      %1016 = vmatprep.subr.bf16.mxu0 0
      %1017 = vmatpush2.bf16.msra.mxu0 0
      %1018 = vmatprep.mubr.bf16.mxu0 0
      %1019 = vmatmul.mubr.bf16.gmra.mxu0 %v952
      %v1020 = vpop.f32.mrf.mxu0
      %v1021 = vadd.f32 0.0, %v1020
      %v1022 = vpop.f32.mrf.mxu0
      %v1023 = vpop.f32.mrf.mxu0
      %v1024 = vadd.f32 0.0, %v1023
      %v1025 = vpop.f32.mrf.mxu0
      %1026 = vmatprep.mubr.bf16.mxu0 0
      %1027 = vmatmul.mubr.bf16.gmra.mxu0 %v954
      %v1028 = vpop.f32.mrf.mxu0
      %v1029 = vadd.f32 0.0, %v1028
      %v1030 = vpop.f32.mrf.mxu0
      %v1031 = vpop.f32.mrf.mxu0
      %v1032 = vadd.f32 0.0, %v1031
      %v1033 = vpop.f32.mrf.mxu0
      %1034 = vmatprep.mubr.bf16.mxu0 0
      %1035 = vmatmul.mubr.bf16.gmra.mxu0 %v956
      %v1036 = vpop.f32.mrf.mxu0
      %v1037 = vadd.f32 0.0, %v1036
      %v1038 = vpop.f32.mrf.mxu0
      %v1039 = vpop.f32.mrf.mxu0
      %v1040 = vadd.f32 0.0, %v1039
      %v1041 = vpop.f32.mrf.mxu0
      %1042 = vmatprep.mubr.bf16.mxu0 0
      %1043 = vmatmul.mubr.bf16.gmra.mxu0 %v958
      %v1044 = vpop.f32.mrf.mxu0
      %v1045 = vadd.f32 0.0, %v1044
      %v1046 = vpop.f32.mrf.mxu0
      %v1047 = vpop.f32.mrf.mxu0
      %v1048 = vadd.f32 0.0, %v1047
      %v1049 = vpop.f32.mrf.mxu0
      %1050 = vmatprep.mubr.bf16.mxu0 0
      %1051 = vmatmul.mubr.bf16.gmra.mxu0 %v960
      %v1052 = vpop.f32.mrf.mxu0
      %v1053 = vadd.f32 0.0, %v1052
      %v1054 = vpop.f32.mrf.mxu0
      %v1055 = vpop.f32.mrf.mxu0
      %v1056 = vadd.f32 0.0, %v1055
      %v1057 = vpop.f32.mrf.mxu0
      %1058 = vmatprep.mubr.bf16.mxu0 0
      %1059 = vmatmul.mubr.bf16.gmra.mxu0 %v962
      %v1060 = vpop.f32.mrf.mxu0
      %v1061 = vadd.f32 0.0, %v1060
      %v1062 = vpop.f32.mrf.mxu0
      %v1063 = vpop.f32.mrf.mxu0
      %v1064 = vadd.f32 0.0, %v1063
      %v1065 = vpop.f32.mrf.mxu0
      %1066 = vmatprep.mubr.bf16.mxu0 0
      %1067 = vmatmul.mubr.bf16.gmra.mxu0 %v964
      %v1068 = vpop.f32.mrf.mxu0
      %v1069 = vadd.f32 0.0, %v1068
      %v1070 = vpop.f32.mrf.mxu0
      %v1071 = vpop.f32.mrf.mxu0
      %v1072 = vadd.f32 0.0, %v1071
      %v1073 = vpop.f32.mrf.mxu0
      %1074 = vmatprep.mubr.bf16.mxu0 0
      %1075 = vmatmul.mubr.bf16.gmra.mxu0 %v966
      %v1076 = vpop.f32.mrf.mxu0
      %v1077 = vadd.f32 0.0, %v1076
      %v1078 = vpop.f32.mrf.mxu0
      %v1079 = vpop.f32.mrf.mxu0
      %v1080 = vadd.f32 0.0, %v1079
      %v1081 = vpop.f32.mrf.mxu0
      %1082 = vmatprep.mubr.bf16.mxu0 0
      %1083 = vmatmul.mubr.bf16.gmra.mxu0 %v968
      %v1084 = vpop.f32.mrf.mxu0
      %v1085 = vadd.f32 0.0, %v1084
      %v1086 = vpop.f32.mrf.mxu0
      %v1087 = vpop.f32.mrf.mxu0
      %v1088 = vadd.f32 0.0, %v1087
      %v1089 = vpop.f32.mrf.mxu0
      %1090 = vmatprep.mubr.bf16.mxu0 0
      %1091 = vmatmul.mubr.bf16.gmra.mxu0 %v970
      %v1092 = vpop.f32.mrf.mxu0
      %v1093 = vadd.f32 0.0, %v1092
      %v1094 = vpop.f32.mrf.mxu0
      %v1095 = vpop.f32.mrf.mxu0
      %v1096 = vadd.f32 0.0, %v1095
      %v1097 = vpop.f32.mrf.mxu0
      %1098 = vmatprep.mubr.bf16.mxu0 0
      %1099 = vmatmul.mubr.bf16.gmra.mxu0 %v972
      %v1100 = vpop.f32.mrf.mxu0
      %v1101 = vadd.f32 0.0, %v1100
      %v1102 = vpop.f32.mrf.mxu0
      %v1103 = vpop.f32.mrf.mxu0
      %v1104 = vadd.f32 0.0, %v1103
      %v1105 = vpop.f32.mrf.mxu0
      %1106 = vmatprep.mubr.bf16.mxu0 0
      %1107 = vmatmul.mubr.bf16.gmra.mxu0 %v974
      %v1108 = vpop.f32.mrf.mxu0
      %v1109 = vadd.f32 0.0, %v1108
      %v1110 = vpop.f32.mrf.mxu0
      %v1111 = vpop.f32.mrf.mxu0
      %v1112 = vadd.f32 0.0, %v1111
      %v1113 = vpop.f32.mrf.mxu0
      %1114 = vmatprep.mubr.bf16.mxu0 0
      %1115 = vmatmul.mubr.bf16.gmra.mxu0 %v976
      %v1116 = vpop.f32.mrf.mxu0
      %v1117 = vadd.f32 0.0, %v1116
      %v1118 = vpop.f32.mrf.mxu0
      %v1119 = vpop.f32.mrf.mxu0
      %v1120 = vadd.f32 0.0, %v1119
      %v1121 = vpop.f32.mrf.mxu0
      %1122 = vmatprep.mubr.bf16.mxu0 0
      %1123 = vmatmul.mubr.bf16.gmra.mxu0 %v978
      %v1124 = vpop.f32.mrf.mxu0
      %v1125 = vadd.f32 0.0, %v1124
      %v1126 = vpop.f32.mrf.mxu0
      %v1127 = vpop.f32.mrf.mxu0
      %v1128 = vadd.f32 0.0, %v1127
      %v1129 = vpop.f32.mrf.mxu0
      %1130 = vmatprep.mubr.bf16.mxu0 0
      %1131 = vmatmul.mubr.bf16.gmra.mxu0 %v980
      %v1132 = vpop.f32.mrf.mxu0
      %v1133 = vadd.f32 0.0, %v1132
      %v1134 = vpop.f32.mrf.mxu0
      %v1135 = vpop.f32.mrf.mxu0
      %v1136 = vadd.f32 0.0, %v1135
      %v1137 = vpop.f32.mrf.mxu0
      %1138 = vmatprep.mubr.bf16.mxu0 0
      %1139 = vmatmul.mubr.bf16.gmra.mxu0 %v982
      %v1140 = vpop.f32.mrf.mxu0
      %v1141 = vadd.f32 0.0, %v1140
      %v1142 = vpop.f32.mrf.mxu0
      %v1143 = vpop.f32.mrf.mxu0
      %v1144 = vadd.f32 0.0, %v1143
      %v1145 = vpop.f32.mrf.mxu0
      %1146 = vmatprep.mubr.bf16.mxu0 0
      %1147 = vmatmul.mubr.bf16.gmra.mxu0 %v984
      %v1148 = vpop.f32.mrf.mxu0
      %v1149 = vadd.f32 0.0, %v1148
      %v1150 = vpop.f32.mrf.mxu0
      %v1151 = vpop.f32.mrf.mxu0
      %v1152 = vadd.f32 0.0, %v1151
      %v1153 = vpop.f32.mrf.mxu0
      %1154 = vmatprep.mubr.bf16.mxu0 0
      %1155 = vmatmul.mubr.bf16.gmra.mxu0 %v952
      %v1156 = vpop.f32.mrf.mxu0
      %v1157 = vadd.f32 0.0, %v1156
      %v1158 = vpop.f32.mrf.mxu0
      %v1159 = vpop.f32.mrf.mxu0
      %v1160 = vadd.f32 0.0, %v1159
      %v1161 = vpop.f32.mrf.mxu0
      %1162 = vdwg.mxu0
      %1195 = vrot.lane.b32.xlu0 %v1029, 125
      %v1196 = vpop.permute.xlu0 %1195
      %1197 = vrot.lane.b32.xlu0 %v1032, 125
      %v1198 = vpop.permute.xlu0 %1197
      %1199 = vrot.lane.b32.xlu0 %v1037, 125
      %v1200 = vpop.permute.xlu0 %1199
      %1201 = vrot.lane.b32.xlu0 %v1040, 125
      %v1202 = vpop.permute.xlu0 %1201
      %1203 = vrot.lane.b32.xlu0 %v1045, 125
      %v1204 = vpop.permute.xlu0 %1203
      %1205 = vrot.lane.b32.xlu0 %v1048, 125
      %v1206 = vpop.permute.xlu0 %1205
      %1207 = vrot.lane.b32.xlu0 %v1053, 125
      %v1208 = vpop.permute.xlu0 %1207
      %1209 = vrot.lane.b32.xlu0 %v1056, 125
      %v1210 = vpop.permute.xlu0 %1209
      %1211 = vrot.lane.b32.xlu0 %v1061, 125
      %v1212 = vpop.permute.xlu0 %1211
      %1213 = vrot.lane.b32.xlu0 %v1064, 125
      %v1214 = vpop.permute.xlu0 %1213
      %1215 = vrot.lane.b32.xlu0 %v1069, 125
      %v1216 = vpop.permute.xlu0 %1215
      %1217 = vrot.lane.b32.xlu0 %v1072, 125
      %v1218 = vpop.permute.xlu0 %1217
      %1219 = vrot.lane.b32.xlu0 %v1077, 125
      %v1220 = vpop.permute.xlu0 %1219
      %1221 = vrot.lane.b32.xlu0 %v1080, 125
      %v1222 = vpop.permute.xlu0 %1221
      %1223 = vrot.lane.b32.xlu0 %v1085, 125
      %v1224 = vpop.permute.xlu0 %1223
      %1225 = vrot.lane.b32.xlu0 %v1088, 125
      %v1226 = vpop.permute.xlu0 %1225
      %1227 = vrot.lane.b32.xlu0 %v1093, 125
      %v1228 = vpop.permute.xlu0 %1227
      %1229 = vrot.lane.b32.xlu0 %v1096, 125
      %v1230 = vpop.permute.xlu0 %1229
      %1231 = vrot.lane.b32.xlu0 %v1101, 125
      %v1232 = vpop.permute.xlu0 %1231
      %1233 = vrot.lane.b32.xlu0 %v1104, 125
      %v1234 = vpop.permute.xlu0 %1233
      %1235 = vrot.lane.b32.xlu0 %v1109, 125
      %v1236 = vpop.permute.xlu0 %1235
      %1237 = vrot.lane.b32.xlu0 %v1112, 125
      %v1238 = vpop.permute.xlu0 %1237
      %1239 = vrot.lane.b32.xlu0 %v1117, 125
      %v1240 = vpop.permute.xlu0 %1239
      %1241 = vrot.lane.b32.xlu0 %v1120, 125
      %v1242 = vpop.permute.xlu0 %1241
      %1243 = vrot.lane.b32.xlu0 %v1125, 125
      %v1244 = vpop.permute.xlu0 %1243
      %1245 = vrot.lane.b32.xlu0 %v1128, 125
      %v1246 = vpop.permute.xlu0 %1245
      %1247 = vrot.lane.b32.xlu0 %v1133, 125
      %v1248 = vpop.permute.xlu0 %1247
      %1249 = vrot.lane.b32.xlu0 %v1136, 125
      %v1250 = vpop.permute.xlu0 %1249
      %1251 = vrot.lane.b32.xlu0 %v1141, 125
      %v1252 = vpop.permute.xlu0 %1251
      %1253 = vrot.lane.b32.xlu0 %v1144, 125
      %v1254 = vpop.permute.xlu0 %1253
      %1255 = vrot.lane.b32.xlu0 %v1149, 125
      %v1256 = vpop.permute.xlu0 %1255
      %1257 = vrot.lane.b32.xlu0 %v1152, 125
      %v1258 = vpop.permute.xlu0 %1257
      %v1291 = vadd.f32 %v1021, %v1196
      %v1292 = vadd.f32 %v1024, %v1198
      %v1293 = vadd.f32 %v1029, %v1200
      %v1294 = vadd.f32 %v1032, %v1202
      %v1295 = vadd.f32 %v1037, %v1204
      %v1296 = vadd.f32 %v1040, %v1206
      %v1297 = vadd.f32 %v1045, %v1208
      %v1298 = vadd.f32 %v1048, %v1210
      %v1299 = vadd.f32 %v1053, %v1212
      %v1300 = vadd.f32 %v1056, %v1214
      %v1301 = vadd.f32 %v1061, %v1216
      %v1302 = vadd.f32 %v1064, %v1218
      %v1303 = vadd.f32 %v1069, %v1220
      %v1304 = vadd.f32 %v1072, %v1222
      %v1305 = vadd.f32 %v1077, %v1224
      %v1306 = vadd.f32 %v1080, %v1226
      %v1307 = vadd.f32 %v1085, %v1228
      %v1308 = vadd.f32 %v1088, %v1230
      %v1309 = vadd.f32 %v1093, %v1232
      %v1310 = vadd.f32 %v1096, %v1234
      %v1311 = vadd.f32 %v1101, %v1236
      %v1312 = vadd.f32 %v1104, %v1238
      %v1313 = vadd.f32 %v1109, %v1240
      %v1314 = vadd.f32 %v1112, %v1242
      %v1315 = vadd.f32 %v1117, %v1244
      %v1316 = vadd.f32 %v1120, %v1246
      %v1317 = vadd.f32 %v1125, %v1248
      %v1318 = vadd.f32 %v1128, %v1250
      %v1319 = vadd.f32 %v1133, %v1252
      %v1320 = vadd.f32 %v1136, %v1254
      %v1321 = vadd.f32 %v1141, %v1256
      %v1322 = vadd.f32 %v1144, %v1258
      %1325 = vrot.lane.b32.xlu0 %v1037, 122
      %v1326 = vpop.permute.xlu0 %1325
      %1327 = vrot.lane.b32.xlu0 %v1040, 122
      %v1328 = vpop.permute.xlu0 %1327
      %1329 = vrot.lane.b32.xlu0 %v1045, 122
      %v1330 = vpop.permute.xlu0 %1329
      %1331 = vrot.lane.b32.xlu0 %v1048, 122
      %v1332 = vpop.permute.xlu0 %1331
      %1333 = vrot.lane.b32.xlu0 %v1053, 122
      %v1334 = vpop.permute.xlu0 %1333
      %1335 = vrot.lane.b32.xlu0 %v1056, 122
      %v1336 = vpop.permute.xlu0 %1335
      %1337 = vrot.lane.b32.xlu0 %v1061, 122
      %v1338 = vpop.permute.xlu0 %1337
      %1339 = vrot.lane.b32.xlu0 %v1064, 122
      %v1340 = vpop.permute.xlu0 %1339
      %1341 = vrot.lane.b32.xlu0 %v1069, 122
      %v1342 = vpop.permute.xlu0 %1341
      %1343 = vrot.lane.b32.xlu0 %v1072, 122
      %v1344 = vpop.permute.xlu0 %1343
      %1345 = vrot.lane.b32.xlu0 %v1077, 122
      %v1346 = vpop.permute.xlu0 %1345
      %1347 = vrot.lane.b32.xlu0 %v1080, 122
      %v1348 = vpop.permute.xlu0 %1347
      %1349 = vrot.lane.b32.xlu0 %v1085, 122
      %v1350 = vpop.permute.xlu0 %1349
      %1351 = vrot.lane.b32.xlu0 %v1088, 122
      %v1352 = vpop.permute.xlu0 %1351
      %1353 = vrot.lane.b32.xlu0 %v1093, 122
      %v1354 = vpop.permute.xlu0 %1353
      %1355 = vrot.lane.b32.xlu0 %v1096, 122
      %v1356 = vpop.permute.xlu0 %1355
      %1357 = vrot.lane.b32.xlu0 %v1101, 122
      %v1358 = vpop.permute.xlu0 %1357
      %1359 = vrot.lane.b32.xlu0 %v1104, 122
      %v1360 = vpop.permute.xlu0 %1359
      %1361 = vrot.lane.b32.xlu0 %v1109, 122
      %v1362 = vpop.permute.xlu0 %1361
      %1363 = vrot.lane.b32.xlu0 %v1112, 122
      %v1364 = vpop.permute.xlu0 %1363
      %1365 = vrot.lane.b32.xlu0 %v1117, 122
      %v1366 = vpop.permute.xlu0 %1365
      %1367 = vrot.lane.b32.xlu0 %v1120, 122
      %v1368 = vpop.permute.xlu0 %1367
      %1369 = vrot.lane.b32.xlu0 %v1125, 122
      %v1370 = vpop.permute.xlu0 %1369
      %1371 = vrot.lane.b32.xlu0 %v1128, 122
      %v1372 = vpop.permute.xlu0 %1371
      %1373 = vrot.lane.b32.xlu0 %v1133, 122
      %v1374 = vpop.permute.xlu0 %1373
      %1375 = vrot.lane.b32.xlu0 %v1136, 122
      %v1376 = vpop.permute.xlu0 %1375
      %1377 = vrot.lane.b32.xlu0 %v1141, 122
      %v1378 = vpop.permute.xlu0 %1377
      %1379 = vrot.lane.b32.xlu0 %v1144, 122
      %v1380 = vpop.permute.xlu0 %1379
      %1381 = vrot.lane.b32.xlu0 %v1149, 122
      %v1382 = vpop.permute.xlu0 %1381
      %1383 = vrot.lane.b32.xlu0 %v1152, 122
      %v1384 = vpop.permute.xlu0 %1383
      %1385 = vrot.lane.b32.xlu0 %v1157, 122
      %v1386 = vpop.permute.xlu0 %1385
      %1387 = vrot.lane.b32.xlu0 %v1160, 122
      %v1388 = vpop.permute.xlu0 %1387
      %v1421 = vadd.f32 %v1291, %v1326
      %v1422 = vadd.f32 %v1292, %v1328
      %v1423 = vadd.f32 %v1293, %v1330
      %v1424 = vadd.f32 %v1294, %v1332
      %v1425 = vadd.f32 %v1295, %v1334
      %v1426 = vadd.f32 %v1296, %v1336
      %v1427 = vadd.f32 %v1297, %v1338
      %v1428 = vadd.f32 %v1298, %v1340
      %v1429 = vadd.f32 %v1299, %v1342
      %v1430 = vadd.f32 %v1300, %v1344
      %v1431 = vadd.f32 %v1301, %v1346
      %v1432 = vadd.f32 %v1302, %v1348
      %v1433 = vadd.f32 %v1303, %v1350
      %v1434 = vadd.f32 %v1304, %v1352
      %v1435 = vadd.f32 %v1305, %v1354
      %v1436 = vadd.f32 %v1306, %v1356
      %v1437 = vadd.f32 %v1307, %v1358
      %v1438 = vadd.f32 %v1308, %v1360
      %v1439 = vadd.f32 %v1309, %v1362
      %v1440 = vadd.f32 %v1310, %v1364
      %v1441 = vadd.f32 %v1311, %v1366
      %v1442 = vadd.f32 %v1312, %v1368
      %v1443 = vadd.f32 %v1313, %v1370
      %v1444 = vadd.f32 %v1314, %v1372
      %v1445 = vadd.f32 %v1315, %v1374
      %v1446 = vadd.f32 %v1316, %v1376
      %v1447 = vadd.f32 %v1317, %v1378
      %v1448 = vadd.f32 %v1318, %v1380
      %v1449 = vadd.f32 %v1319, %v1382
      %v1450 = vadd.f32 %v1320, %v1384
      %v1451 = vadd.f32 %v1321, %v1386
      %v1452 = vadd.f32 %v1322, %v1388
      %v1453 = vld [vmem:[%s2] sm:$0x1]
      %v1455 = vlaneseq
      %v1456 = vshrl.u32 %v1455, 7
      %v1457 = vsub.s32 0, %v1456
      %v1458 = vrot.slane %v1453, %v1457
      %v1460 = vadd.f32 %v1421, %v1458
      %v1461 = vadd.f32 %v1422, %v1458
      %v1462 = vadd.f32 %v1423, %v1458
      %v1463 = vadd.f32 %v1424, %v1458
      %v1464 = vadd.f32 %v1425, %v1458
      %v1465 = vadd.f32 %v1426, %v1458
      %v1466 = vadd.f32 %v1427, %v1458
      %v1467 = vadd.f32 %v1428, %v1458
      %v1468 = vadd.f32 %v1429, %v1458
      %v1469 = vadd.f32 %v1430, %v1458
      %v1470 = vadd.f32 %v1431, %v1458
      %v1471 = vadd.f32 %v1432, %v1458
      %v1472 = vadd.f32 %v1433, %v1458
      %v1473 = vadd.f32 %v1434, %v1458
      %v1474 = vadd.f32 %v1435, %v1458
      %v1475 = vadd.f32 %v1436, %v1458
      %v1476 = vadd.f32 %v1437, %v1458
      %v1477 = vadd.f32 %v1438, %v1458
      %v1478 = vadd.f32 %v1439, %v1458
      %v1479 = vadd.f32 %v1440, %v1458
      %v1480 = vadd.f32 %v1441, %v1458
      %v1481 = vadd.f32 %v1442, %v1458
      %v1482 = vadd.f32 %v1443, %v1458
      %v1483 = vadd.f32 %v1444, %v1458
      %v1484 = vadd.f32 %v1445, %v1458
      %v1485 = vadd.f32 %v1446, %v1458
      %v1486 = vadd.f32 %v1447, %v1458
      %v1487 = vadd.f32 %v1448, %v1458
      %v1488 = vadd.f32 %v1449, %v1458
      %v1489 = vadd.f32 %v1450, %v1458
      %v1490 = vadd.f32 %v1451, %v1458
      %v1491 = vadd.f32 %v1452, %v1458
      %vm1492 = vcmask 23552
      %1493 = vst.msk [vmem:[%s170] sm:$0xff] %vm1492, %v1460
      %1494 = vst.msk [vmem:[%s170 + $0x8] sm:$0xff] %vm1492, %v1461
      %1495 = vst.msk [vmem:[%s170 + $0x10] sm:$0xff] %vm1492, %v1462
      %1496 = vst.msk [vmem:[%s170 + $0x18] sm:$0xff] %vm1492, %v1463
      %1497 = vst.msk [vmem:[%s170 + $0x20] sm:$0xff] %vm1492, %v1464
      %1498 = vst.msk [vmem:[%s170 + $0x28] sm:$0xff] %vm1492, %v1465
      %1499 = vst.msk [vmem:[%s170 + $0x30] sm:$0xff] %vm1492, %v1466
      %1500 = vst.msk [vmem:[%s170 + $0x38] sm:$0xff] %vm1492, %v1467
      %1501 = vst.msk [vmem:[%s170 + $0x40] sm:$0xff] %vm1492, %v1468
      %1502 = vst.msk [vmem:[%s170 + $0x48] sm:$0xff] %vm1492, %v1469
      %1503 = vst.msk [vmem:[%s170 + $0x50] sm:$0xff] %vm1492, %v1470
      %1504 = vst.msk [vmem:[%s170 + $0x58] sm:$0xff] %vm1492, %v1471
      %1505 = vst.msk [vmem:[%s170 + $0x60] sm:$0xff] %vm1492, %v1472
      %1506 = vst.msk [vmem:[%s170 + $0x68] sm:$0xff] %vm1492, %v1473
      %1507 = vst.msk [vmem:[%s170 + $0x70] sm:$0xff] %vm1492, %v1474
      %1508 = vst.msk [vmem:[%s170 + $0x78] sm:$0xff] %vm1492, %v1475
      %1509 = vst.msk [vmem:[%s170 + $0x80] sm:$0xff] %vm1492, %v1476
      %1510 = vst.msk [vmem:[%s170 + $0x88] sm:$0xff] %vm1492, %v1477
      %1511 = vst.msk [vmem:[%s170 + $0x90] sm:$0xff] %vm1492, %v1478
      %1512 = vst.msk [vmem:[%s170 + $0x98] sm:$0xff] %vm1492, %v1479
      %1513 = vst.msk [vmem:[%s170 + $0xa0] sm:$0xff] %vm1492, %v1480
      %1514 = vst.msk [vmem:[%s170 + $0xa8] sm:$0xff] %vm1492, %v1481
      %1515 = vst.msk [vmem:[%s170 + $0xb0] sm:$0xff] %vm1492, %v1482
      %1516 = vst.msk [vmem:[%s170 + $0xb8] sm:$0xff] %vm1492, %v1483
      %1517 = vst.msk [vmem:[%s170 + $0xc0] sm:$0xff] %vm1492, %v1484
      %1518 = vst.msk [vmem:[%s170 + $0xc8] sm:$0xff] %vm1492, %v1485
      %1519 = vst.msk [vmem:[%s170 + $0xd0] sm:$0xff] %vm1492, %v1486
      %1520 = vst.msk [vmem:[%s170 + $0xd8] sm:$0xff] %vm1492, %v1487
      %1521 = vst.msk [vmem:[%s170 + $0xe0] sm:$0xff] %vm1492, %v1488
      %1522 = vst.msk [vmem:[%s170 + $0xe8] sm:$0xff] %vm1492, %v1489
      %1523 = vst.msk [vmem:[%s170 + $0xf0] sm:$0xff] %vm1492, %v1490
      %1524 = vst.msk [vmem:[%s170 + $0xf8] sm:$0xff] %vm1492, %v1491
      %p1525 = scmp.lt.s32.totalorder %s14, 1
      %s1526 = scalar_select %p1525, %s14, 1
      %s1527 = smul.addr %s1526, 32
      %s1528 = smul.addr %s1527, 8
      %s1529 = scalar_lea.vmem %s3, %s1528
      // Predicated region
      $region33: #{han_forward.25} parent=31 // pred_check
        %p1530 = pneg %p100
      $region34: #{han_forward.25} parent=31 // pred_check_branch
        %1532 = sbr.rel (%p1530) target = $region36
      $region35: #{han_forward.25} parent=31 // pred_region
        _
      $region36: #{han_forward.25} parent=31 // pred_fallthru
        _
    $region32: #{han_forward.25} parent=5 // pred_fallthru
      _
    %p1533 = scmp.le.s32.totalorder 2, %s9
    // Predicated region
    $region37: #{han_forward.25} parent=5 // pred_check
      %p1534 = pneg %p1533
    $region38: #{han_forward.25} parent=5 // pred_check_branch
      %1536 = sbr.rel (%p1534) target = $region40
    $region39: #{han_forward.25} parent=5 // pred_region
      %s1537 = ssub.s32 %s9, 2
      // Predicated region
      $region41: #{han_forward.25} parent=39 // pred_check
        %p1538 = pneg %p106
      $region42: #{han_forward.25} parent=39 // pred_check_branch
        %1540 = sbr.rel (%p1538) target = $region44
      $region43: #{han_forward.25} parent=39 // pred_region
        %p1541 = scmp.lt.s32.totalorder %s15, 1
        %s1542 = scalar_select %p1541, %s15, 1
        %s1543 = smul.addr %s1542, 32
        %s1544 = smul.addr %s1543, 8
        %s1545 = scalar_lea.vmem %s3, %s1544
      $region44: #{han_forward.25} parent=39 // pred_fallthru
        _
    $region40: #{han_forward.25} parent=5 // pred_fallthru
      _
  $region6: #{han_forward.25} parent=0 // loop_footer
    %s13 = sadd.s32 1, %s9
  $region7: #{han_forward.25} parent=0 // loop_footer_branch
    %8 = sbr.rel target = $region3
  $region8: #{han_forward.25} parent=0 // loop_exit
    _

</llo_original>
